<compile_context>
chip_gen: v5e
topology: v5e:2x2
jax: 0.10.0
libtpu: 0.0.40
codegen_flags: <defaults>
</compile_context>

<pallas_src>
import functools

import jax
import jax.numpy as jnp
from jax.experimental import pallas as pl
from jax.experimental.pallas import tpu as pltpu

TM_MAX = 512                      # max rows per matmul M-tile (fits 64 MiB v7x VMEM)
TR_MAX = 512                      # max rows per elementwise tile
LANE = 128                        # lane width / Cout padding granularity
VMEM_LIMIT = 48 * 1024 * 1024     # raise scoped VMEM above the 16/32 MiB defaults


def _round_up(x, m):
    return ((x + m - 1) // m) * m


def _leaky(v):
    return jnp.where(v >= 0.0, v, 0.2 * v)


# ----------------------------------------------------------------------------
# Pallas kernels
# ----------------------------------------------------------------------------
def _mm_bias_act_kernel(p_ref, w_ref, b_ref, o_ref, *, act):
    """One M-tile of: out = act(patches @ weight + bias).  f32 in, f32 out."""
    acc = jnp.dot(p_ref[...], w_ref[...], preferred_element_type=jnp.float32)
    acc = acc + b_ref[...]                     # (1, Cout) broadcast over rows
    if act == "leaky":
        acc = _leaky(acc)
    elif act == "tanh":
        acc = jnp.tanh(acc)
    o_ref[...] = acc.astype(o_ref.dtype)


def _mm_bias_stats_kernel(p_ref, w_ref, b_ref, o_ref, st_ref, *, m_valid, tm):
    """Conv matmul + bias, plus fused per-channel sum / sum-of-squares.

    Padded rows (M rounded up to the tile) are masked out of the statistics so
    downstream BatchNorm uses exactly the valid batch elements.
    """
    acc = jnp.dot(p_ref[...], w_ref[...], preferred_element_type=jnp.float32)
    acc = acc + b_ref[...]
    o_ref[...] = acc.astype(o_ref.dtype)

    row = pl.program_id(0) * tm + jax.lax.broadcasted_iota(jnp.int32, (tm, 1), 0)
    valid = (row < m_valid).astype(jnp.float32)          # (tm, 1)
    masked = acc * valid
    s = jnp.sum(masked, axis=0, keepdims=True)            # (1, Cout)
    ss = jnp.sum(masked * masked, axis=0, keepdims=True)  # (1, Cout)
    st_ref[...] = jnp.concatenate([s, ss], axis=0)[None]  # (1, 2, Cout)


def _scale_shift_lrelu_kernel(x_ref, s_ref, t_ref, o_ref):
    """BatchNorm (pre-folded into per-channel scale/shift) + LeakyReLU(0.2)."""
    y = x_ref[...] * s_ref[...] + t_ref[...]
    o_ref[...] = _leaky(y)


# ----------------------------------------------------------------------------
# Wrappers
# ----------------------------------------------------------------------------
def matmul_bias_act(patches, wmat, bias, act, *, want_stats=False):
    """patches: (M, K)  wmat: (K, Cout)  bias: (Cout,) -> (M, Cout) [, (2, Cout)]."""
    m, k = patches.shape
    n = wmat.shape[1]
    npad = _round_up(n, LANE)                       # lane-dense output stores
    tm = min(TM_MAX, _round_up(m, 8))               # large sublane-aligned M tile
    mp = _round_up(m, tm)

    p = jnp.pad(patches, ((0, mp - m), (0, 0))).astype(jnp.float32)
    w = jnp.pad(wmat, ((0, 0), (0, npad - n))).astype(jnp.float32)
    b = jnp.pad(bias, (0, npad - n)).astype(jnp.float32).reshape(1, npad)

    grid = (mp // tm,)
    in_specs = [
        pl.BlockSpec((tm, k), lambda i: (i, 0)),
        pl.BlockSpec((k, npad), lambda i: (0, 0)),
        pl.BlockSpec((1, npad), lambda i: (0, 0)),
    ]
    cparams = pltpu.CompilerParams(
        dimension_semantics=("parallel",), vmem_limit_bytes=VMEM_LIMIT)

    if want_stats:
        out, stats = pl.pallas_call(
            functools.partial(_mm_bias_stats_kernel, m_valid=m, tm=tm),
            out_shape=(jax.ShapeDtypeStruct((mp, npad), jnp.float32),
                       jax.ShapeDtypeStruct((mp // tm, 2, npad), jnp.float32)),
            grid=grid,
            in_specs=in_specs,
            out_specs=(pl.BlockSpec((tm, npad), lambda i: (i, 0)),
                       pl.BlockSpec((1, 2, npad), lambda i: (i, 0, 0))),
            compiler_params=cparams,
        )(p, w, b)
        stats = jnp.sum(stats, axis=0)              # tiny (2, Cout) reduction
        return out[:m, :n], stats[:, :n]

    out = pl.pallas_call(
        functools.partial(_mm_bias_act_kernel, act=act),
        out_shape=jax.ShapeDtypeStruct((mp, npad), jnp.float32),
        grid=grid,
        in_specs=in_specs,
        out_specs=pl.BlockSpec((tm, npad), lambda i: (i, 0)),
        compiler_params=cparams,
    )(p, w, b)
    return out[:m, :n]


def conv2d(x_nhwc, w_oihw, bias, stride, pad, act, *, want_stats=False):
    """Conv2d (PyTorch OIHW weights) + bias + activation via im2col matmul."""
    n, h, wdim, cin = x_nhwc.shape
    cout, _, kh, kw = w_oihw.shape
    ho = (h + 2 * pad - kh) // stride + 1
    wo = (wdim + 2 * pad - kw) // stride + 1

    xp = jnp.pad(x_nhwc.astype(jnp.float32),
                 ((0, 0), (pad, pad), (pad, pad), (0, 0)))
    cols = []
    for dy in range(kh):
        for dx in range(kw):
            cols.append(
                xp[:,
                   dy:dy + stride * (ho - 1) + 1:stride,
                   dx:dx + stride * (wo - 1) + 1:stride,
                   :]
            )
    # patch ordering (dy, dx, cin) matches the (2, 3, 1, 0) weight transpose.
    patches = jnp.concatenate(cols, axis=-1).reshape(n * ho * wo, kh * kw * cin)
    wmat = jnp.transpose(w_oihw.astype(jnp.float32),
                         (2, 3, 1, 0)).reshape(kh * kw * cin, cout)
    # TODO(synk): fuse im2col into the Pallas kernel (grid axis over (dy,dx)
    # with VMEM f32 accumulator) to avoid materialising the replicated patch
    # matrix in HBM entirely.

    res = matmul_bias_act(patches, wmat, bias, act, want_stats=want_stats)
    if want_stats:
        out, stats = res
        return out.reshape(n, ho, wo, cout), stats
    return res.reshape(n, ho, wo, cout)


def bn_lrelu_apply(x_nhwc, stats, gamma, beta, eps=1e-5):
    """Training-mode BatchNorm2d (batch stats from fused conv sums) + LeakyReLU."""
    n, h, w, c = x_nhwc.shape
    count = n * h * w
    mean = stats[0] / count
    var = stats[1] / count - mean * mean          # biased var, matches PyTorch norm
    scale = gamma * jax.lax.rsqrt(var + eps)
    shift = beta - mean * scale

    x2 = x_nhwc.reshape(count, c)
    tr = min(TR_MAX, _round_up(count, 8))
    mp = _round_up(count, tr)
    xp = jnp.pad(x2, ((0, mp - count), (0, 0)))

    out = pl.pallas_call(
        _scale_shift_lrelu_kernel,
        out_shape=jax.ShapeDtypeStruct((mp, c), jnp.float32),
        grid=(mp // tr,),
        in_specs=[pl.BlockSpec((tr, c), lambda i: (i, 0)),
                  pl.BlockSpec((1, c), lambda i: (0, 0)),
                  pl.BlockSpec((1, c), lambda i: (0, 0))],
        out_specs=pl.BlockSpec((tr, c), lambda i: (i, 0)),
        compiler_params=pltpu.CompilerParams(
            dimension_semantics=("parallel",), vmem_limit_bytes=VMEM_LIMIT),
    )(xp, scale.reshape(1, c), shift.reshape(1, c))
    return out[:count].reshape(n, h, w, c)


# ----------------------------------------------------------------------------
# PatchDiscriminator forward
# ----------------------------------------------------------------------------
def patch_discriminator_forward(x_nchw, params):
    x = jnp.transpose(x_nchw, (0, 2, 3, 1))  # NCHW -> NHWC
    # Conv(3->64,4,2,1) + LeakyReLU (fused epilogue)
    x = conv2d(x, params["w1"], params["b1"], 2, 1, "leaky")
    # Conv(64->128,4,2,1) + BN + LeakyReLU (stats fused into conv epilogue)
    x, st = conv2d(x, params["w2"], params["b2"], 2, 1, "none", want_stats=True)
    x = bn_lrelu_apply(x, st, params["g2"], params["be2"])
    # Conv(128->256,4,2,1) + BN + LeakyReLU
    x, st = conv2d(x, params["w3"], params["b3"], 2, 1, "none", want_stats=True)
    x = bn_lrelu_apply(x, st, params["g3"], params["be3"])
    # Conv(256->512,4,2,1) + BN + LeakyReLU
    x, st = conv2d(x, params["w4"], params["b4"], 2, 1, "none", want_stats=True)
    x = bn_lrelu_apply(x, st, params["g4"], params["be4"])
    # Conv(512->3,3,1,1) + Tanh (fused epilogue)
    x = conv2d(x, params["w5"], params["b5"], 1, 1, "tanh")
    return jnp.transpose(x, (0, 3, 1, 2))  # NHWC -> NCHW


# ----------------------------------------------------------------------------
# Pure-JAX reference (lax.conv, f32, HIGHEST precision) for correctness check
# ----------------------------------------------------------------------------
def _ref_forward(x, p):
    def conv(x, w, b, stride, pad):
        y = jax.lax.conv_general_dilated(
            x, w, (stride, stride), [(pad, pad), (pad, pad)],
            dimension_numbers=("NCHW", "OIHW", "NCHW"),
            precision=jax.lax.Precision.HIGHEST,
            preferred_element_type=jnp.float32)
        return y + b.reshape(1, -1, 1, 1)

    def bn(x, g, bt, eps=1e-5):
        mean = jnp.mean(x, axis=(0, 2, 3), keepdims=True)
        var = jnp.mean((x - mean) ** 2, axis=(0, 2, 3), keepdims=True)
        return (x - mean) / jnp.sqrt(var + eps) * g.reshape(1, -1, 1, 1) \
            + bt.reshape(1, -1, 1, 1)

    lr = lambda v: jnp.where(v >= 0, v, 0.2 * v)
    x = lr(conv(x, p["w1"], p["b1"], 2, 1))
    x = lr(bn(conv(x, p["w2"], p["b2"], 2, 1), p["g2"], p["be2"]))
    x = lr(bn(conv(x, p["w3"], p["b3"], 2, 1), p["g3"], p["be3"]))
    x = lr(bn(conv(x, p["w4"], p["b4"], 2, 1), p["g4"], p["be4"]))
    return jnp.tanh(conv(x, p["w5"], p["b5"], 1, 1))


# ----------------------------------------------------------------------------
def _init_params(key):
    ks = jax.random.split(key, 10)
    f32 = jnp.float32
    p = {
        "w1": 0.05 * jax.random.normal(ks[0], (64, 3, 4, 4), f32),
        "b1": 0.05 * jax.random.normal(ks[1], (64,), f32),
        "w2": 0.05 * jax.random.normal(ks[2], (128, 64, 4, 4), f32),
        "b2": 0.05 * jax.random.normal(ks[3], (128,), f32),
        "w3": 0.05 * jax.random.normal(ks[4], (256, 128, 4, 4), f32),
        "b3": 0.05 * jax.random.normal(ks[5], (256,), f32),
        "w4": 0.05 * jax.random.normal(ks[6], (512, 256, 4, 4), f32),
        "b4": 0.05 * jax.random.normal(ks[7], (512,), f32),
        "w5": 0.05 * jax.random.normal(ks[8], (3, 512, 3, 3), f32),
        "b5": 0.05 * jax.random.normal(ks[9], (3,), f32),
        # BatchNorm affine params (PyTorch default init: weight=1, bias=0)
        "g2": jnp.ones((128,), f32), "be2": jnp.zeros((128,), f32),
        "g3": jnp.ones((256,), f32), "be3": jnp.zeros((256,), f32),
        "g4": jnp.ones((512,), f32), "be4": jnp.zeros((512,), f32),
    }
    return p


if __name__ == "__main__":
    key = jax.random.PRNGKey(0)
    kp, kx = jax.random.split(key)
    params = _init_params(kp)
    x = jax.random.normal(kx, (2, 3, 16, 16), jnp.float32)  # NCHW like PyTorch

    fwd = jax.jit(patch_discriminator_forward)
    y = jax.block_until_ready(fwd(x, params))
    assert y.shape == (2, 3, 1, 1), y.shape

    # Check against the f32 PyTorch-equivalent reference (f32 matmuls in the
    # kernel -> only summation-order level differences remain, even after
    # training-mode BatchNorm amplification).
    y_ref = jax.block_until_ready(_ref_forward(x, params))
    max_err = float(jnp.max(jnp.abs(y - y_ref)))
    assert jnp.allclose(y, y_ref, atol=2e-2, rtol=2e-2), max_err

    print("KERNEL_OK")
</pallas_src>

<mosaic_0001>
module attributes {stable_mosaic.version = 11 : i64} {
  func.func @_mm_bias_act_kernel(%arg0: i32, %arg1: memref<128x48xf32, #tpu.memory_space<vmem>>, %arg2: memref<48x128xf32, #tpu.memory_space<vmem>>, %arg3: memref<1x128xf32, #tpu.memory_space<vmem>>, %arg4: memref<128x128xf32, #tpu.memory_space<vmem>>) attributes {dimension_semantics = [#tpu.dimension_semantics<parallel>], iteration_bounds = array<i64: 1>, scalar_prefetch = 0 : i64, scratch_operands = 0 : i64, tpu.core_type = #tpu.core_type<tc>, window_params = [{transform_indices = @transform_0, window_bounds = array<i64: 128, 48>}, {pipeline_mode = #tpu.pipeline_mode<synchronous>, transform_indices = @transform_1, window_bounds = array<i64: 48, 128>}, {pipeline_mode = #tpu.pipeline_mode<synchronous>, transform_indices = @transform_2, window_bounds = array<i64: 1, 128>}, {transform_indices = @transform_3, window_bounds = array<i64: 128, 128>}]} {
    %c0 = arith.constant 0 : index
    %c0_0 = arith.constant 0 : index
    %0 = vector.load %arg1[%c0, %c0_0] : memref<128x48xf32, #tpu.memory_space<vmem>>, vector<128x48xf32>
    %c0_1 = arith.constant 0 : index
    %c0_2 = arith.constant 0 : index
    %1 = vector.load %arg2[%c0_1, %c0_2] : memref<48x128xf32, #tpu.memory_space<vmem>>, vector<48x128xf32>
    %cst = arith.constant dense<0.000000e+00> : vector<128x128xf32>
    %2 = tpu.matmul %0, %1, %cst {dimension_numbers = #tpu.dot_dimension_numbers<[1], [0], [0], [1], [0, 0, 1, 1], [], []>} : vector<128x48xf32>, vector<48x128xf32>, vector<128x128xf32> -> vector<128x128xf32>
    %c0_3 = arith.constant 0 : index
    %c0_4 = arith.constant 0 : index
    %3 = vector.load %arg3[%c0_3, %c0_4] : memref<1x128xf32, #tpu.memory_space<vmem>>, vector<1x128xf32>
    %4 = vector.broadcast %3 : vector<1x128xf32> to vector<128x128xf32>
    %5 = arith.addf %2, %4 : vector<128x128xf32>
    %cst_5 = arith.constant 0.000000e+00 : f32
    %6 = vector.broadcast %cst_5 : f32 to vector<128x128xf32>
    %7 = arith.cmpf oge, %5, %6 : vector<128x128xf32>
    %cst_6 = arith.constant 2.000000e-01 : f32
    %8 = vector.broadcast %cst_6 : f32 to vector<128x128xf32>
    %9 = arith.mulf %8, %5 : vector<128x128xf32>
    %10 = arith.select %7, %5, %9 : vector<128x128xi1>, vector<128x128xf32>
    %c0_7 = arith.constant 0 : index
    %c0_8 = arith.constant 0 : index
    %11 = vector.load %arg4[%c0_7, %c0_8] : memref<128x128xf32, #tpu.memory_space<vmem>>, vector<128x128xf32>
    tpu.vector_store %arg4[%c0_7, %c0_8], %10 {strides = array<i32>} : memref<128x128xf32, #tpu.memory_space<vmem>>, vector<128x128xf32>,
    return
  }
  func.func @transform_0(%arg0: i32) -> (i32, i32) {
    %c0_i32 = arith.constant 0 : i32
    %c0_i32_0 = arith.constant 0 : i32
    return %arg0, %c0_i32 : i32, i32
  }
  func.func @transform_1(%arg0: i32) -> (i32, i32) {
    %c0_i32 = arith.constant 0 : i32
    %c0_i32_0 = arith.constant 0 : i32
    %c0_i32_1 = arith.constant 0 : i32
    return %c0_i32, %c0_i32_0 : i32, i32
  }
  func.func @transform_2(%arg0: i32) -> (i32, i32) {
    %c0_i32 = arith.constant 0 : i32
    %c0_i32_0 = arith.constant 0 : i32
    %c0_i32_1 = arith.constant 0 : i32
    return %c0_i32, %c0_i32_0 : i32, i32
  }
  func.func @transform_3(%arg0: i32) -> (i32, i32) {
    %c0_i32 = arith.constant 0 : i32
    %c0_i32_0 = arith.constant 0 : i32
    return %arg0, %c0_i32 : i32, i32
  }
}

module attributes {stable_mosaic.version = 11 : i64} {
  func.func @_mm_bias_stats_kernel(%arg0: i32, %arg1: memref<32x1024xf32, #tpu.memory_space<vmem>>, %arg2: memref<1024x128xf32, #tpu.memory_space<vmem>>, %arg3: memref<1x128xf32, #tpu.memory_space<vmem>>, %arg4: memref<32x128xf32, #tpu.memory_space<vmem>>, %arg5: memref<1x2x128xf32, #tpu.memory_space<vmem>>) attributes {dimension_semantics = [#tpu.dimension_semantics<parallel>], iteration_bounds = array<i64: 1>, scalar_prefetch = 0 : i64, scratch_operands = 0 : i64, tpu.core_type = #tpu.core_type<tc>, window_params = [{transform_indices = @transform_0, window_bounds = array<i64: 32, 1024>}, {pipeline_mode = #tpu.pipeline_mode<synchronous>, transform_indices = @transform_1, window_bounds = array<i64: 1024, 128>}, {pipeline_mode = #tpu.pipeline_mode<synchronous>, transform_indices = @transform_2, window_bounds = array<i64: 1, 128>}, {transform_indices = @transform_3, window_bounds = array<i64: 32, 128>}, {transform_indices = @transform_4, window_bounds = array<i64: 1, 2, 128>}]} {
    %c0 = arith.constant 0 : index
    %c0_0 = arith.constant 0 : index
    %0 = vector.load %arg1[%c0, %c0_0] : memref<32x1024xf32, #tpu.memory_space<vmem>>, vector<32x1024xf32>
    %c0_1 = arith.constant 0 : index
    %c0_2 = arith.constant 0 : index
    %1 = vector.load %arg2[%c0_1, %c0_2] : memref<1024x128xf32, #tpu.memory_space<vmem>>, vector<1024x128xf32>
    %cst = arith.constant dense<0.000000e+00> : vector<32x128xf32>
    %2 = tpu.matmul %0, %1, %cst {dimension_numbers = #tpu.dot_dimension_numbers<[1], [0], [0], [1], [0, 0, 1, 1], [], []>} : vector<32x1024xf32>, vector<1024x128xf32>, vector<32x128xf32> -> vector<32x128xf32>
    %c0_3 = arith.constant 0 : index
    %c0_4 = arith.constant 0 : index
    %3 = vector.load %arg3[%c0_3, %c0_4] : memref<1x128xf32, #tpu.memory_space<vmem>>, vector<1x128xf32>
    %4 = vector.broadcast %3 : vector<1x128xf32> to vector<32x128xf32>
    %5 = arith.addf %2, %4 : vector<32x128xf32>
    %c0_5 = arith.constant 0 : index
    %c0_6 = arith.constant 0 : index
    %6 = vector.load %arg4[%c0_5, %c0_6] : memref<32x128xf32, #tpu.memory_space<vmem>>, vector<32x128xf32>
    tpu.vector_store %arg4[%c0_5, %c0_6], %5 {strides = array<i32>} : memref<32x128xf32, #tpu.memory_space<vmem>>, vector<32x128xf32>,
    %c32_i32 = arith.constant 32 : i32
    %7 = arith.muli %arg0, %c32_i32 : i32
    %8 = tpu.iota {dimensions = array<i32: 0>} : vector<32x1xi32>
    %9 = vector.broadcast %7 : i32 to vector<32x1xi32>
    %10 = arith.addi %9, %8 : vector<32x1xi32>
    %c32_i32_7 = arith.constant 32 : i32
    %11 = vector.broadcast %c32_i32_7 : i32 to vector<32x1xi32>
    %12 = arith.cmpi slt, %10, %11 : vector<32x1xi32>
    %13 = arith.extui %12 : vector<32x1xi1> to vector<32x1xi32>
    %14 = arith.sitofp %13 : vector<32x1xi32> to vector<32x1xf32>
    %15 = vector.broadcast %14 : vector<32x1xf32> to vector<32x128xf32>
    %16 = arith.mulf %5, %15 : vector<32x128xf32>
    %cst_8 = arith.constant dense<0.000000e+00> : vector<128xf32>
    %17 = vector.multi_reduction <add>, %16, %cst_8 [0] : vector<32x128xf32> to vector<128xf32>
    %18 = vector.shape_cast %17 : vector<128xf32> to vector<1x128xf32>
    %19 = arith.mulf %16, %16 : vector<32x128xf32>
    %cst_9 = arith.constant dense<0.000000e+00> : vector<128xf32>
    %20 = vector.multi_reduction <add>, %19, %cst_9 [0] : vector<32x128xf32> to vector<128xf32>
    %21 = vector.shape_cast %20 : vector<128xf32> to vector<1x128xf32>
    %22 = tpu.concatenate %18, %21 in 0 : vector<1x128xf32>, vector<1x128xf32> -> vector<2x128xf32>
    %23 = vector.shape_cast %22 : vector<2x128xf32> to vector<1x2x128xf32>
    %c0_10 = arith.constant 0 : index
    %c0_11 = arith.constant 0 : index
    %c0_12 = arith.constant 0 : index
    %24 = vector.load %arg5[%c0_10, %c0_11, %c0_12] : memref<1x2x128xf32, #tpu.memory_space<vmem>>, vector<1x2x128xf32>
    tpu.vector_store %arg5[%c0_10, %c0_11, %c0_12], %23 {strides = array<i32>} : memref<1x2x128xf32, #tpu.memory_space<vmem>>, vector<1x2x128xf32>,
    return
  }
  func.func @transform_0(%arg0: i32) -> (i32, i32) {
    %c0_i32 = arith.constant 0 : i32
    %c0_i32_0 = arith.constant 0 : i32
    return %arg0, %c0_i32 : i32, i32
  }
  func.func @transform_1(%arg0: i32) -> (i32, i32) {
    %c0_i32 = arith.constant 0 : i32
    %c0_i32_0 = arith.constant 0 : i32
    %c0_i32_1 = arith.constant 0 : i32
    return %c0_i32, %c0_i32_0 : i32, i32
  }
  func.func @transform_2(%arg0: i32) -> (i32, i32) {
    %c0_i32 = arith.constant 0 : i32
    %c0_i32_0 = arith.constant 0 : i32
    %c0_i32_1 = arith.constant 0 : i32
    return %c0_i32, %c0_i32_0 : i32, i32
  }
  func.func @transform_3(%arg0: i32) -> (i32, i32) {
    %c0_i32 = arith.constant 0 : i32
    %c0_i32_0 = arith.constant 0 : i32
    return %arg0, %c0_i32 : i32, i32
  }
  func.func @transform_4(%arg0: i32) -> (i32, i32, i32) {
    %c0_i32 = arith.constant 0 : i32
    %c0_i32_0 = arith.constant 0 : i32
    %c0_i32_1 = arith.constant 0 : i32
    return %arg0, %c0_i32, %c0_i32_0 : i32, i32, i32
  }
}

module attributes {stable_mosaic.version = 11 : i64} {
  func.func @_scale_shift_lrelu_kernel(%arg0: i32, %arg1: memref<32x128xf32, #tpu.memory_space<vmem>>, %arg2: memref<1x128xf32, #tpu.memory_space<vmem>>, %arg3: memref<1x128xf32, #tpu.memory_space<vmem>>, %arg4: memref<32x128xf32, #tpu.memory_space<vmem>>) attributes {dimension_semantics = [#tpu.dimension_semantics<parallel>], iteration_bounds = array<i64: 1>, scalar_prefetch = 0 : i64, scratch_operands = 0 : i64, tpu.core_type = #tpu.core_type<tc>, window_params = [{transform_indices = @transform_0, window_bounds = array<i64: 32, 128>}, {pipeline_mode = #tpu.pipeline_mode<synchronous>, transform_indices = @transform_1, window_bounds = array<i64: 1, 128>}, {pipeline_mode = #tpu.pipeline_mode<synchronous>, transform_indices = @transform_2, window_bounds = array<i64: 1, 128>}, {transform_indices = @transform_3, window_bounds = array<i64: 32, 128>}]} {
    %c0 = arith.constant 0 : index
    %c0_0 = arith.constant 0 : index
    %0 = vector.load %arg1[%c0, %c0_0] : memref<32x128xf32, #tpu.memory_space<vmem>>, vector<32x128xf32>
    %c0_1 = arith.constant 0 : index
    %c0_2 = arith.constant 0 : index
    %1 = vector.load %arg2[%c0_1, %c0_2] : memref<1x128xf32, #tpu.memory_space<vmem>>, vector<1x128xf32>
    %2 = vector.broadcast %1 : vector<1x128xf32> to vector<32x128xf32>
    %3 = arith.mulf %0, %2 : vector<32x128xf32>
    %c0_3 = arith.constant 0 : index
    %c0_4 = arith.constant 0 : index
    %4 = vector.load %arg3[%c0_3, %c0_4] : memref<1x128xf32, #tpu.memory_space<vmem>>, vector<1x128xf32>
    %5 = vector.broadcast %4 : vector<1x128xf32> to vector<32x128xf32>
    %6 = arith.addf %3, %5 : vector<32x128xf32>
    %cst = arith.constant 0.000000e+00 : f32
    %7 = vector.broadcast %cst : f32 to vector<32x128xf32>
    %8 = arith.cmpf oge, %6, %7 : vector<32x128xf32>
    %cst_5 = arith.constant 2.000000e-01 : f32
    %9 = vector.broadcast %cst_5 : f32 to vector<32x128xf32>
    %10 = arith.mulf %9, %6 : vector<32x128xf32>
    %11 = arith.select %8, %6, %10 : vector<32x128xi1>, vector<32x128xf32>
    %c0_6 = arith.constant 0 : index
    %c0_7 = arith.constant 0 : index
    %12 = vector.load %arg4[%c0_6, %c0_7] : memref<32x128xf32, #tpu.memory_space<vmem>>, vector<32x128xf32>
    tpu.vector_store %arg4[%c0_6, %c0_7], %11 {strides = array<i32>} : memref<32x128xf32, #tpu.memory_space<vmem>>, vector<32x128xf32>,
    return
  }
  func.func @transform_0(%arg0: i32) -> (i32, i32) {
    %c0_i32 = arith.constant 0 : i32
    %c0_i32_0 = arith.constant 0 : i32
    return %arg0, %c0_i32 : i32, i32
  }
  func.func @transform_1(%arg0: i32) -> (i32, i32) {
    %c0_i32 = arith.constant 0 : i32
    %c0_i32_0 = arith.constant 0 : i32
    %c0_i32_1 = arith.constant 0 : i32
    return %c0_i32, %c0_i32_0 : i32, i32
  }
  func.func @transform_2(%arg0: i32) -> (i32, i32) {
    %c0_i32 = arith.constant 0 : i32
    %c0_i32_0 = arith.constant 0 : i32
    %c0_i32_1 = arith.constant 0 : i32
    return %c0_i32, %c0_i32_0 : i32, i32
  }
  func.func @transform_3(%arg0: i32) -> (i32, i32) {
    %c0_i32 = arith.constant 0 : i32
    %c0_i32_0 = arith.constant 0 : i32
    return %arg0, %c0_i32 : i32, i32
  }
}

module attributes {stable_mosaic.version = 11 : i64} {
  func.func @_mm_bias_stats_kernel(%arg0: i32, %arg1: memref<8x2048xf32, #tpu.memory_space<vmem>>, %arg2: memref<2048x256xf32, #tpu.memory_space<vmem>>, %arg3: memref<1x256xf32, #tpu.memory_space<vmem>>, %arg4: memref<8x256xf32, #tpu.memory_space<vmem>>, %arg5: memref<1x2x256xf32, #tpu.memory_space<vmem>>) attributes {dimension_semantics = [#tpu.dimension_semantics<parallel>], iteration_bounds = array<i64: 1>, scalar_prefetch = 0 : i64, scratch_operands = 0 : i64, tpu.core_type = #tpu.core_type<tc>, window_params = [{transform_indices = @transform_0, window_bounds = array<i64: 8, 2048>}, {pipeline_mode = #tpu.pipeline_mode<synchronous>, transform_indices = @transform_1, window_bounds = array<i64: 2048, 256>}, {pipeline_mode = #tpu.pipeline_mode<synchronous>, transform_indices = @transform_2, window_bounds = array<i64: 1, 256>}, {transform_indices = @transform_3, window_bounds = array<i64: 8, 256>}, {transform_indices = @transform_4, window_bounds = array<i64: 1, 2, 256>}]} {
    %c0 = arith.constant 0 : index
    %c0_0 = arith.constant 0 : index
    %0 = vector.load %arg1[%c0, %c0_0] : memref<8x2048xf32, #tpu.memory_space<vmem>>, vector<8x2048xf32>
    %c0_1 = arith.constant 0 : index
    %c0_2 = arith.constant 0 : index
    %1 = vector.load %arg2[%c0_1, %c0_2] : memref<2048x256xf32, #tpu.memory_space<vmem>>, vector<2048x256xf32>
    %cst = arith.constant dense<0.000000e+00> : vector<8x256xf32>
    %2 = tpu.matmul %0, %1, %cst {dimension_numbers = #tpu.dot_dimension_numbers<[1], [0], [0], [1], [0, 0, 1, 1], [], []>} : vector<8x2048xf32>, vector<2048x256xf32>, vector<8x256xf32> -> vector<8x256xf32>
    %c0_3 = arith.constant 0 : index
    %c0_4 = arith.constant 0 : index
    %3 = vector.load %arg3[%c0_3, %c0_4] : memref<1x256xf32, #tpu.memory_space<vmem>>, vector<1x256xf32>
    %4 = vector.broadcast %3 : vector<1x256xf32> to vector<8x256xf32>
    %5 = arith.addf %2, %4 : vector<8x256xf32>
    %c0_5 = arith.constant 0 : index
    %c0_6 = arith.constant 0 : index
    %6 = vector.load %arg4[%c0_5, %c0_6] : memref<8x256xf32, #tpu.memory_space<vmem>>, vector<8x256xf32>
    tpu.vector_store %arg4[%c0_5, %c0_6], %5 {strides = array<i32>} : memref<8x256xf32, #tpu.memory_space<vmem>>, vector<8x256xf32>,
    %c8_i32 = arith.constant 8 : i32
    %7 = arith.muli %arg0, %c8_i32 : i32
    %8 = tpu.iota {dimensions = array<i32: 0>} : vector<8x1xi32>
    %9 = vector.broadcast %7 : i32 to vector<8x1xi32>
    %10 = arith.addi %9, %8 : vector<8x1xi32>
    %c8_i32_7 = arith.constant 8 : i32
    %11 = vector.broadcast %c8_i32_7 : i32 to vector<8x1xi32>
    %12 = arith.cmpi slt, %10, %11 : vector<8x1xi32>
    %13 = arith.extui %12 : vector<8x1xi1> to vector<8x1xi32>
    %14 = arith.sitofp %13 : vector<8x1xi32> to vector<8x1xf32>
    %15 = vector.broadcast %14 : vector<8x1xf32> to vector<8x256xf32>
    %16 = arith.mulf %5, %15 : vector<8x256xf32>
    %cst_8 = arith.constant dense<0.000000e+00> : vector<256xf32>
    %17 = vector.multi_reduction <add>, %16, %cst_8 [0] : vector<8x256xf32> to vector<256xf32>
    %18 = vector.shape_cast %17 : vector<256xf32> to vector<1x256xf32>
    %19 = arith.mulf %16, %16 : vector<8x256xf32>
    %cst_9 = arith.constant dense<0.000000e+00> : vector<256xf32>
    %20 = vector.multi_reduction <add>, %19, %cst_9 [0] : vector<8x256xf32> to vector<256xf32>
    %21 = vector.shape_cast %20 : vector<256xf32> to vector<1x256xf32>
    %22 = tpu.concatenate %18, %21 in 0 : vector<1x256xf32>, vector<1x256xf32> -> vector<2x256xf32>
    %23 = vector.shape_cast %22 : vector<2x256xf32> to vector<1x2x256xf32>
    %c0_10 = arith.constant 0 : index
    %c0_11 = arith.constant 0 : index
    %c0_12 = arith.constant 0 : index
    %24 = vector.load %arg5[%c0_10, %c0_11, %c0_12] : memref<1x2x256xf32, #tpu.memory_space<vmem>>, vector<1x2x256xf32>
    tpu.vector_store %arg5[%c0_10, %c0_11, %c0_12], %23 {strides = array<i32>} : memref<1x2x256xf32, #tpu.memory_space<vmem>>, vector<1x2x256xf32>,
    return
  }
  func.func @transform_0(%arg0: i32) -> (i32, i32) {
    %c0_i32 = arith.constant 0 : i32
    %c0_i32_0 = arith.constant 0 : i32
    return %arg0, %c0_i32 : i32, i32
  }
  func.func @transform_1(%arg0: i32) -> (i32, i32) {
    %c0_i32 = arith.constant 0 : i32
    %c0_i32_0 = arith.constant 0 : i32
    %c0_i32_1 = arith.constant 0 : i32
    return %c0_i32, %c0_i32_0 : i32, i32
  }
  func.func @transform_2(%arg0: i32) -> (i32, i32) {
    %c0_i32 = arith.constant 0 : i32
    %c0_i32_0 = arith.constant 0 : i32
    %c0_i32_1 = arith.constant 0 : i32
    return %c0_i32, %c0_i32_0 : i32, i32
  }
  func.func @transform_3(%arg0: i32) -> (i32, i32) {
    %c0_i32 = arith.constant 0 : i32
    %c0_i32_0 = arith.constant 0 : i32
    return %arg0, %c0_i32 : i32, i32
  }
  func.func @transform_4(%arg0: i32) -> (i32, i32, i32) {
    %c0_i32 = arith.constant 0 : i32
    %c0_i32_0 = arith.constant 0 : i32
    %c0_i32_1 = arith.constant 0 : i32
    return %arg0, %c0_i32, %c0_i32_0 : i32, i32, i32
  }
}

module attributes {stable_mosaic.version = 11 : i64} {
  func.func @_scale_shift_lrelu_kernel(%arg0: i32, %arg1: memref<8x256xf32, #tpu.memory_space<vmem>>, %arg2: memref<1x256xf32, #tpu.memory_space<vmem>>, %arg3: memref<1x256xf32, #tpu.memory_space<vmem>>, %arg4: memref<8x256xf32, #tpu.memory_space<vmem>>) attributes {dimension_semantics = [#tpu.dimension_semantics<parallel>], iteration_bounds = array<i64: 1>, scalar_prefetch = 0 : i64, scratch_operands = 0 : i64, tpu.core_type = #tpu.core_type<tc>, window_params = [{transform_indices = @transform_0, window_bounds = array<i64: 8, 256>}, {pipeline_mode = #tpu.pipeline_mode<synchronous>, transform_indices = @transform_1, window_bounds = array<i64: 1, 256>}, {pipeline_mode = #tpu.pipeline_mode<synchronous>, transform_indices = @transform_2, window_bounds = array<i64: 1, 256>}, {transform_indices = @transform_3, window_bounds = array<i64: 8, 256>}]} {
    %c0 = arith.constant 0 : index
    %c0_0 = arith.constant 0 : index
    %0 = vector.load %arg1[%c0, %c0_0] : memref<8x256xf32, #tpu.memory_space<vmem>>, vector<8x256xf32>
    %c0_1 = arith.constant 0 : index
    %c0_2 = arith.constant 0 : index
    %1 = vector.load %arg2[%c0_1, %c0_2] : memref<1x256xf32, #tpu.memory_space<vmem>>, vector<1x256xf32>
    %2 = vector.broadcast %1 : vector<1x256xf32> to vector<8x256xf32>
    %3 = arith.mulf %0, %2 : vector<8x256xf32>
    %c0_3 = arith.constant 0 : index
    %c0_4 = arith.constant 0 : index
    %4 = vector.load %arg3[%c0_3, %c0_4] : memref<1x256xf32, #tpu.memory_space<vmem>>, vector<1x256xf32>
    %5 = vector.broadcast %4 : vector<1x256xf32> to vector<8x256xf32>
    %6 = arith.addf %3, %5 : vector<8x256xf32>
    %cst = arith.constant 0.000000e+00 : f32
    %7 = vector.broadcast %cst : f32 to vector<8x256xf32>
    %8 = arith.cmpf oge, %6, %7 : vector<8x256xf32>
    %cst_5 = arith.constant 2.000000e-01 : f32
    %9 = vector.broadcast %cst_5 : f32 to vector<8x256xf32>
    %10 = arith.mulf %9, %6 : vector<8x256xf32>
    %11 = arith.select %8, %6, %10 : vector<8x256xi1>, vector<8x256xf32>
    %c0_6 = arith.constant 0 : index
    %c0_7 = arith.constant 0 : index
    %12 = vector.load %arg4[%c0_6, %c0_7] : memref<8x256xf32, #tpu.memory_space<vmem>>, vector<8x256xf32>
    tpu.vector_store %arg4[%c0_6, %c0_7], %11 {strides = array<i32>} : memref<8x256xf32, #tpu.memory_space<vmem>>, vector<8x256xf32>,
    return
  }
  func.func @transform_0(%arg0: i32) -> (i32, i32) {
    %c0_i32 = arith.constant 0 : i32
    %c0_i32_0 = arith.constant 0 : i32
    return %arg0, %c0_i32 : i32, i32
  }
  func.func @transform_1(%arg0: i32) -> (i32, i32) {
    %c0_i32 = arith.constant 0 : i32
    %c0_i32_0 = arith.constant 0 : i32
    %c0_i32_1 = arith.constant 0 : i32
    return %c0_i32, %c0_i32_0 : i32, i32
  }
  func.func @transform_2(%arg0: i32) -> (i32, i32) {
    %c0_i32 = arith.constant 0 : i32
    %c0_i32_0 = arith.constant 0 : i32
    %c0_i32_1 = arith.constant 0 : i32
    return %c0_i32, %c0_i32_0 : i32, i32
  }
  func.func @transform_3(%arg0: i32) -> (i32, i32) {
    %c0_i32 = arith.constant 0 : i32
    %c0_i32_0 = arith.constant 0 : i32
    return %arg0, %c0_i32 : i32, i32
  }
}

module attributes {stable_mosaic.version = 11 : i64} {
  func.func @_mm_bias_stats_kernel(%arg0: i32, %arg1: memref<8x4096xf32, #tpu.memory_space<vmem>>, %arg2: memref<4096x512xf32, #tpu.memory_space<vmem>>, %arg3: memref<1x512xf32, #tpu.memory_space<vmem>>, %arg4: memref<8x512xf32, #tpu.memory_space<vmem>>, %arg5: memref<1x2x512xf32, #tpu.memory_space<vmem>>) attributes {dimension_semantics = [#tpu.dimension_semantics<parallel>], iteration_bounds = array<i64: 1>, scalar_prefetch = 0 : i64, scratch_operands = 0 : i64, tpu.core_type = #tpu.core_type<tc>, window_params = [{transform_indices = @transform_0, window_bounds = array<i64: 8, 4096>}, {pipeline_mode = #tpu.pipeline_mode<synchronous>, transform_indices = @transform_1, window_bounds = array<i64: 4096, 512>}, {pipeline_mode = #tpu.pipeline_mode<synchronous>, transform_indices = @transform_2, window_bounds = array<i64: 1, 512>}, {transform_indices = @transform_3, window_bounds = array<i64: 8, 512>}, {transform_indices = @transform_4, window_bounds = array<i64: 1, 2, 512>}]} {
    %c0 = arith.constant 0 : index
    %c0_0 = arith.constant 0 : index
    %0 = vector.load %arg1[%c0, %c0_0] : memref<8x4096xf32, #tpu.memory_space<vmem>>, vector<8x4096xf32>
    %c0_1 = arith.constant 0 : index
    %c0_2 = arith.constant 0 : index
    %1 = vector.load %arg2[%c0_1, %c0_2] : memref<4096x512xf32, #tpu.memory_space<vmem>>, vector<4096x512xf32>
    %cst = arith.constant dense<0.000000e+00> : vector<8x512xf32>
    %2 = tpu.matmul %0, %1, %cst {dimension_numbers = #tpu.dot_dimension_numbers<[1], [0], [0], [1], [0, 0, 1, 1], [], []>} : vector<8x4096xf32>, vector<4096x512xf32>, vector<8x512xf32> -> vector<8x512xf32>
    %c0_3 = arith.constant 0 : index
    %c0_4 = arith.constant 0 : index
    %3 = vector.load %arg3[%c0_3, %c0_4] : memref<1x512xf32, #tpu.memory_space<vmem>>, vector<1x512xf32>
    %4 = vector.broadcast %3 : vector<1x512xf32> to vector<8x512xf32>
    %5 = arith.addf %2, %4 : vector<8x512xf32>
    %c0_5 = arith.constant 0 : index
    %c0_6 = arith.constant 0 : index
    %6 = vector.load %arg4[%c0_5, %c0_6] : memref<8x512xf32, #tpu.memory_space<vmem>>, vector<8x512xf32>
    tpu.vector_store %arg4[%c0_5, %c0_6], %5 {strides = array<i32>} : memref<8x512xf32, #tpu.memory_space<vmem>>, vector<8x512xf32>,
    %c8_i32 = arith.constant 8 : i32
    %7 = arith.muli %arg0, %c8_i32 : i32
    %8 = tpu.iota {dimensions = array<i32: 0>} : vector<8x1xi32>
    %9 = vector.broadcast %7 : i32 to vector<8x1xi32>
    %10 = arith.addi %9, %8 : vector<8x1xi32>
    %c2_i32 = arith.constant 2 : i32
    %11 = vector.broadcast %c2_i32 : i32 to vector<8x1xi32>
    %12 = arith.cmpi slt, %10, %11 : vector<8x1xi32>
    %13 = arith.extui %12 : vector<8x1xi1> to vector<8x1xi32>
    %14 = arith.sitofp %13 : vector<8x1xi32> to vector<8x1xf32>
    %15 = vector.broadcast %14 : vector<8x1xf32> to vector<8x512xf32>
    %16 = arith.mulf %5, %15 : vector<8x512xf32>
    %cst_7 = arith.constant dense<0.000000e+00> : vector<512xf32>
    %17 = vector.multi_reduction <add>, %16, %cst_7 [0] : vector<8x512xf32> to vector<512xf32>
    %18 = vector.shape_cast %17 : vector<512xf32> to vector<1x512xf32>
    %19 = arith.mulf %16, %16 : vector<8x512xf32>
    %cst_8 = arith.constant dense<0.000000e+00> : vector<512xf32>
    %20 = vector.multi_reduction <add>, %19, %cst_8 [0] : vector<8x512xf32> to vector<512xf32>
    %21 = vector.shape_cast %20 : vector<512xf32> to vector<1x512xf32>
    %22 = tpu.concatenate %18, %21 in 0 : vector<1x512xf32>, vector<1x512xf32> -> vector<2x512xf32>
    %23 = vector.shape_cast %22 : vector<2x512xf32> to vector<1x2x512xf32>
    %c0_9 = arith.constant 0 : index
    %c0_10 = arith.constant 0 : index
    %c0_11 = arith.constant 0 : index
    %24 = vector.load %arg5[%c0_9, %c0_10, %c0_11] : memref<1x2x512xf32, #tpu.memory_space<vmem>>, vector<1x2x512xf32>
    tpu.vector_store %arg5[%c0_9, %c0_10, %c0_11], %23 {strides = array<i32>} : memref<1x2x512xf32, #tpu.memory_space<vmem>>, vector<1x2x512xf32>,
    return
  }
  func.func @transform_0(%arg0: i32) -> (i32, i32) {
    %c0_i32 = arith.constant 0 : i32
    %c0_i32_0 = arith.constant 0 : i32
    return %arg0, %c0_i32 : i32, i32
  }
  func.func @transform_1(%arg0: i32) -> (i32, i32) {
    %c0_i32 = arith.constant 0 : i32
    %c0_i32_0 = arith.constant 0 : i32
    %c0_i32_1 = arith.constant 0 : i32
    return %c0_i32, %c0_i32_0 : i32, i32
  }
  func.func @transform_2(%arg0: i32) -> (i32, i32) {
    %c0_i32 = arith.constant 0 : i32
    %c0_i32_0 = arith.constant 0 : i32
    %c0_i32_1 = arith.constant 0 : i32
    return %c0_i32, %c0_i32_0 : i32, i32
  }
  func.func @transform_3(%arg0: i32) -> (i32, i32) {
    %c0_i32 = arith.constant 0 : i32
    %c0_i32_0 = arith.constant 0 : i32
    return %arg0, %c0_i32 : i32, i32
  }
  func.func @transform_4(%arg0: i32) -> (i32, i32, i32) {
    %c0_i32 = arith.constant 0 : i32
    %c0_i32_0 = arith.constant 0 : i32
    %c0_i32_1 = arith.constant 0 : i32
    return %arg0, %c0_i32, %c0_i32_0 : i32, i32, i32
  }
}

module attributes {stable_mosaic.version = 11 : i64} {
  func.func @_scale_shift_lrelu_kernel(%arg0: i32, %arg1: memref<8x512xf32, #tpu.memory_space<vmem>>, %arg2: memref<1x512xf32, #tpu.memory_space<vmem>>, %arg3: memref<1x512xf32, #tpu.memory_space<vmem>>, %arg4: memref<8x512xf32, #tpu.memory_space<vmem>>) attributes {dimension_semantics = [#tpu.dimension_semantics<parallel>], iteration_bounds = array<i64: 1>, scalar_prefetch = 0 : i64, scratch_operands = 0 : i64, tpu.core_type = #tpu.core_type<tc>, window_params = [{transform_indices = @transform_0, window_bounds = array<i64: 8, 512>}, {pipeline_mode = #tpu.pipeline_mode<synchronous>, transform_indices = @transform_1, window_bounds = array<i64: 1, 512>}, {pipeline_mode = #tpu.pipeline_mode<synchronous>, transform_indices = @transform_2, window_bounds = array<i64: 1, 512>}, {transform_indices = @transform_3, window_bounds = array<i64: 8, 512>}]} {
    %c0 = arith.constant 0 : index
    %c0_0 = arith.constant 0 : index
    %0 = vector.load %arg1[%c0, %c0_0] : memref<8x512xf32, #tpu.memory_space<vmem>>, vector<8x512xf32>
    %c0_1 = arith.constant 0 : index
    %c0_2 = arith.constant 0 : index
    %1 = vector.load %arg2[%c0_1, %c0_2] : memref<1x512xf32, #tpu.memory_space<vmem>>, vector<1x512xf32>
    %2 = vector.broadcast %1 : vector<1x512xf32> to vector<8x512xf32>
    %3 = arith.mulf %0, %2 : vector<8x512xf32>
    %c0_3 = arith.constant 0 : index
    %c0_4 = arith.constant 0 : index
    %4 = vector.load %arg3[%c0_3, %c0_4] : memref<1x512xf32, #tpu.memory_space<vmem>>, vector<1x512xf32>
    %5 = vector.broadcast %4 : vector<1x512xf32> to vector<8x512xf32>
    %6 = arith.addf %3, %5 : vector<8x512xf32>
    %cst = arith.constant 0.000000e+00 : f32
    %7 = vector.broadcast %cst : f32 to vector<8x512xf32>
    %8 = arith.cmpf oge, %6, %7 : vector<8x512xf32>
    %cst_5 = arith.constant 2.000000e-01 : f32
    %9 = vector.broadcast %cst_5 : f32 to vector<8x512xf32>
    %10 = arith.mulf %9, %6 : vector<8x512xf32>
    %11 = arith.select %8, %6, %10 : vector<8x512xi1>, vector<8x512xf32>
    %c0_6 = arith.constant 0 : index
    %c0_7 = arith.constant 0 : index
    %12 = vector.load %arg4[%c0_6, %c0_7] : memref<8x512xf32, #tpu.memory_space<vmem>>, vector<8x512xf32>
    tpu.vector_store %arg4[%c0_6, %c0_7], %11 {strides = array<i32>} : memref<8x512xf32, #tpu.memory_space<vmem>>, vector<8x512xf32>,
    return
  }
  func.func @transform_0(%arg0: i32) -> (i32, i32) {
    %c0_i32 = arith.constant 0 : i32
    %c0_i32_0 = arith.constant 0 : i32
    return %arg0, %c0_i32 : i32, i32
  }
  func.func @transform_1(%arg0: i32) -> (i32, i32) {
    %c0_i32 = arith.constant 0 : i32
    %c0_i32_0 = arith.constant 0 : i32
    %c0_i32_1 = arith.constant 0 : i32
    return %c0_i32, %c0_i32_0 : i32, i32
  }
  func.func @transform_2(%arg0: i32) -> (i32, i32) {
    %c0_i32 = arith.constant 0 : i32
    %c0_i32_0 = arith.constant 0 : i32
    %c0_i32_1 = arith.constant 0 : i32
    return %c0_i32, %c0_i32_0 : i32, i32
  }
  func.func @transform_3(%arg0: i32) -> (i32, i32) {
    %c0_i32 = arith.constant 0 : i32
    %c0_i32_0 = arith.constant 0 : i32
    return %arg0, %c0_i32 : i32, i32
  }
}

module attributes {stable_mosaic.version = 11 : i64} {
  func.func @_mm_bias_act_kernel(%arg0: i32, %arg1: memref<8x4608xf32, #tpu.memory_space<vmem>>, %arg2: memref<4608x128xf32, #tpu.memory_space<vmem>>, %arg3: memref<1x128xf32, #tpu.memory_space<vmem>>, %arg4: memref<8x128xf32, #tpu.memory_space<vmem>>) attributes {dimension_semantics = [#tpu.dimension_semantics<parallel>], iteration_bounds = array<i64: 1>, scalar_prefetch = 0 : i64, scratch_operands = 0 : i64, tpu.core_type = #tpu.core_type<tc>, window_params = [{transform_indices = @transform_0, window_bounds = array<i64: 8, 4608>}, {pipeline_mode = #tpu.pipeline_mode<synchronous>, transform_indices = @transform_1, window_bounds = array<i64: 4608, 128>}, {pipeline_mode = #tpu.pipeline_mode<synchronous>, transform_indices = @transform_2, window_bounds = array<i64: 1, 128>}, {transform_indices = @transform_3, window_bounds = array<i64: 8, 128>}]} {
    %c0 = arith.constant 0 : index
    %c0_0 = arith.constant 0 : index
    %0 = vector.load %arg1[%c0, %c0_0] : memref<8x4608xf32, #tpu.memory_space<vmem>>, vector<8x4608xf32>
    %c0_1 = arith.constant 0 : index
    %c0_2 = arith.constant 0 : index
    %1 = vector.load %arg2[%c0_1, %c0_2] : memref<4608x128xf32, #tpu.memory_space<vmem>>, vector<4608x128xf32>
    %cst = arith.constant dense<0.000000e+00> : vector<8x128xf32>
    %2 = tpu.matmul %0, %1, %cst {dimension_numbers = #tpu.dot_dimension_numbers<[1], [0], [0], [1], [0, 0, 1, 1], [], []>} : vector<8x4608xf32>, vector<4608x128xf32>, vector<8x128xf32> -> vector<8x128xf32>
    %c0_3 = arith.constant 0 : index
    %c0_4 = arith.constant 0 : index
    %3 = vector.load %arg3[%c0_3, %c0_4] : memref<1x128xf32, #tpu.memory_space<vmem>>, vector<1x128xf32>
    %4 = vector.broadcast %3 : vector<1x128xf32> to vector<8x128xf32>
    %5 = arith.addf %2, %4 : vector<8x128xf32>
    %6 = math.tanh %5 : vector<8x128xf32>
    %c0_5 = arith.constant 0 : index
    %c0_6 = arith.constant 0 : index
    %7 = vector.load %arg4[%c0_5, %c0_6] : memref<8x128xf32, #tpu.memory_space<vmem>>, vector<8x128xf32>
    tpu.vector_store %arg4[%c0_5, %c0_6], %6 {strides = array<i32>} : memref<8x128xf32, #tpu.memory_space<vmem>>, vector<8x128xf32>,
    return
  }
  func.func @transform_0(%arg0: i32) -> (i32, i32) {
    %c0_i32 = arith.constant 0 : i32
    %c0_i32_0 = arith.constant 0 : i32
    return %arg0, %c0_i32 : i32, i32
  }
  func.func @transform_1(%arg0: i32) -> (i32, i32) {
    %c0_i32 = arith.constant 0 : i32
    %c0_i32_0 = arith.constant 0 : i32
    %c0_i32_1 = arith.constant 0 : i32
    return %c0_i32, %c0_i32_0 : i32, i32
  }
  func.func @transform_2(%arg0: i32) -> (i32, i32) {
    %c0_i32 = arith.constant 0 : i32
    %c0_i32_0 = arith.constant 0 : i32
    %c0_i32_1 = arith.constant 0 : i32
    return %c0_i32, %c0_i32_0 : i32, i32
  }
  func.func @transform_3(%arg0: i32) -> (i32, i32) {
    %c0_i32 = arith.constant 0 : i32
    %c0_i32_0 = arith.constant 0 : i32
    return %arg0, %c0_i32 : i32, i32
  }
}

</mosaic_0001>

<llo_original>
// kernel: patch_discriminator_forward.8
$region0: #{patch_discriminator_forward.8}
  #allocation0 [shape = 'u32[]', space=smem, size = 0x4, offset = 0x4, fixed_abs, tag = 'smem constant byte address 0x4 - core index']
  #allocation1 [shape = 'u32[72,128]{1,0:T(1,128)}', space=vmem, size = 0x9000, scoped, tag = 'internal scratch']
  %s0 = inlined_call_operand.vmem [shape: f32[128,48], index: 0, kind: input, shape index: {}]
  %s1 = inlined_call_operand.vmem [shape: f32[48,128], index: 1, kind: input, shape index: {}]
  %s2 = inlined_call_operand.vmem [shape: f32[1,128], index: 2, kind: input, shape index: {}]
  %s3 = inlined_call_operand.vmem [shape: f32[128,128], index: 3, kind: output, shape index: {}]
  %s4 = sld [smem:[#allocation0]]
  $region22: #{patch_discriminator_forward.8} parent=0
    _
  %s6 = ssub.s32 1, %s4
  %s7 = scalar_select 0, %s6, %s4
  // Predicated region
  $region2: #{patch_discriminator_forward.8} parent=0 // pred_check
    _
  $region3: #{patch_discriminator_forward.8} parent=0 // pred_check_branch
    %9 = sbr.rel (0) target = $region5
  $region4: #{patch_discriminator_forward.8} parent=0 // pred_region
    _
  $region5: #{patch_discriminator_forward.8} parent=0 // pred_fallthru
    _
  // Predicated region
  $region6: #{patch_discriminator_forward.8} parent=0 // pred_check
    _
  $region7: #{patch_discriminator_forward.8} parent=0 // pred_check_branch
    %11 = sbr.rel (0) target = $region9
  $region8: #{patch_discriminator_forward.8} parent=0 // pred_region
    _
  $region9: #{patch_discriminator_forward.8} parent=0 // pred_fallthru
    _
  // Predicated region
  $region10: #{patch_discriminator_forward.8} parent=0 // pred_check
    _
  $region11: #{patch_discriminator_forward.8} parent=0 // pred_check_branch
    %13 = sbr.rel (0) target = $region13
  $region12: #{patch_discriminator_forward.8} parent=0 // pred_region
    _
  $region13: #{patch_discriminator_forward.8} parent=0 // pred_fallthru
    _
  %v14 = vld [vmem:[%s0] sm:$0xff]
  %v15 = vld [vmem:[%s0 + $0x8] sm:$0xff]
  %v16 = vld [vmem:[%s0 + $0x10] sm:$0xff]
  %v17 = vld [vmem:[%s0 + $0x18] sm:$0xff]
  %v18 = vld [vmem:[%s0 + $0x20] sm:$0xff]
  %v19 = vld [vmem:[%s0 + $0x28] sm:$0xff]
  %v20 = vld [vmem:[%s0 + $0x30] sm:$0xff]
  %v21 = vld [vmem:[%s0 + $0x38] sm:$0xff]
  %v22 = vld [vmem:[%s0 + $0x40] sm:$0xff]
  %v23 = vld [vmem:[%s0 + $0x48] sm:$0xff]
  %v24 = vld [vmem:[%s0 + $0x50] sm:$0xff]
  %v25 = vld [vmem:[%s0 + $0x58] sm:$0xff]
  %v26 = vld [vmem:[%s0 + $0x60] sm:$0xff]
  %v27 = vld [vmem:[%s0 + $0x68] sm:$0xff]
  %v28 = vld [vmem:[%s0 + $0x70] sm:$0xff]
  %v29 = vld [vmem:[%s0 + $0x78] sm:$0xff]
  %v30 = vld [vmem:[%s1] sm:$0xff]
  %v31 = vld [vmem:[%s1 + $0x8] sm:$0xff]
  %v32 = vld [vmem:[%s1 + $0x10] sm:$0xff]
  %v33 = vld [vmem:[%s1 + $0x18] sm:$0xff]
  %v34 = vld [vmem:[%s1 + $0x20] sm:$0xff]
  %v35 = vld [vmem:[%s1 + $0x28] sm:$0xff]
  %v36 = vld [vmem:[%s2] sm:$0x1]
  %v38 = vperm.slane %v36, 0
  %vm40 = vcmask 392192
  %v42 = vsel %vm40, %v14, 0
  %v45 = vsel %vm40, %v15, 0
  %v48 = vsel %vm40, %v16, 0
  %v51 = vsel %vm40, %v17, 0
  %v54 = vsel %vm40, %v18, 0
  %v57 = vsel %vm40, %v19, 0
  %v60 = vsel %vm40, %v20, 0
  %v63 = vsel %vm40, %v21, 0
  %v66 = vsel %vm40, %v22, 0
  %v69 = vsel %vm40, %v23, 0
  %v72 = vsel %vm40, %v24, 0
  %v75 = vsel %vm40, %v25, 0
  %v78 = vsel %vm40, %v26, 0
  %v81 = vsel %vm40, %v27, 0
  %v84 = vsel %vm40, %v28, 0
  %v87 = vsel %vm40, %v29, 0
  %89 = vmatpush.msra.mxu0 0.0
  %90 = vmatpush.msra.mxu0 0.0
  %91 = vmatpush.msra.mxu0 0.0
  %92 = vmatpush.msra.mxu0 0.0
  %93 = vmatpush.msra.mxu0 0.0
  %94 = vmatpush.msra.mxu0 0.0
  %95 = vmatpush.msra.mxu0 0.0
  %96 = vmatpush.msra.mxu0 0.0
  %97 = vmatpush.msra.mxu0 0.0
  %98 = vmatpush.msra.mxu0 0.0
  %99 = vmatpush.msra.mxu0 %v35
  %100 = vmatpush.msra.mxu0 %v34
  %101 = vmatpush.msra.mxu0 %v33
  %102 = vmatpush.msra.mxu0 %v32
  %103 = vmatpush.msra.mxu0 %v31
  %104 = vmatpush.msra.mxu0 %v30
  %105 = vmatmul.f32.gmra.mxu0 %v42
  %v106 = vpop.f32.mrf.mxu0
  %v107 = vadd.f32 %v38, %v106
  %108 = vmatmul.f32.gmra.mxu0 %v45
  %v109 = vpop.f32.mrf.mxu0
  %v110 = vadd.f32 %v38, %v109
  %111 = vmatmul.f32.gmra.mxu0 %v48
  %v112 = vpop.f32.mrf.mxu0
  %v113 = vadd.f32 %v38, %v112
  %114 = vmatmul.f32.gmra.mxu0 %v51
  %v115 = vpop.f32.mrf.mxu0
  %v116 = vadd.f32 %v38, %v115
  %117 = vmatmul.f32.gmra.mxu0 %v54
  %v118 = vpop.f32.mrf.mxu0
  %v119 = vadd.f32 %v38, %v118
  %120 = vmatmul.f32.gmra.mxu0 %v57
  %v121 = vpop.f32.mrf.mxu0
  %v122 = vadd.f32 %v38, %v121
  %123 = vmatmul.f32.gmra.mxu0 %v60
  %v124 = vpop.f32.mrf.mxu0
  %v125 = vadd.f32 %v38, %v124
  %126 = vmatmul.f32.gmra.mxu0 %v63
  %v127 = vpop.f32.mrf.mxu0
  %v128 = vadd.f32 %v38, %v127
  %129 = vmatmul.f32.gmra.mxu0 %v66
  %v130 = vpop.f32.mrf.mxu0
  %v131 = vadd.f32 %v38, %v130
  %132 = vmatmul.f32.gmra.mxu0 %v69
  %v133 = vpop.f32.mrf.mxu0
  %v134 = vadd.f32 %v38, %v133
  %135 = vmatmul.f32.gmra.mxu0 %v72
  %v136 = vpop.f32.mrf.mxu0
  %v137 = vadd.f32 %v38, %v136
  %138 = vmatmul.f32.gmra.mxu0 %v75
  %v139 = vpop.f32.mrf.mxu0
  %v140 = vadd.f32 %v38, %v139
  %141 = vmatmul.f32.gmra.mxu0 %v78
  %v142 = vpop.f32.mrf.mxu0
  %v143 = vadd.f32 %v38, %v142
  %144 = vmatmul.f32.gmra.mxu0 %v81
  %v145 = vpop.f32.mrf.mxu0
  %v146 = vadd.f32 %v38, %v145
  %147 = vmatmul.f32.gmra.mxu0 %v84
  %v148 = vpop.f32.mrf.mxu0
  %v149 = vadd.f32 %v38, %v148
  %150 = vmatmul.f32.gmra.mxu0 %v87
  %v151 = vpop.f32.mrf.mxu0
  %v152 = vadd.f32 %v38, %v151
  %153 = vdwg.mxu0
  %vm154 = vcmp.ge.f32.partialorder %v107, 0.0
  %vm155 = vcmp.ge.f32.partialorder %v110, 0.0
  %vm156 = vcmp.ge.f32.partialorder %v113, 0.0
  %vm157 = vcmp.ge.f32.partialorder %v116, 0.0
  %vm158 = vcmp.ge.f32.partialorder %v119, 0.0
  %vm159 = vcmp.ge.f32.partialorder %v122, 0.0
  %vm160 = vcmp.ge.f32.partialorder %v125, 0.0
  %vm161 = vcmp.ge.f32.partialorder %v128, 0.0
  %vm162 = vcmp.ge.f32.partialorder %v131, 0.0
  %vm163 = vcmp.ge.f32.partialorder %v134, 0.0
  %vm164 = vcmp.ge.f32.partialorder %v137, 0.0
  %vm165 = vcmp.ge.f32.partialorder %v140, 0.0
  %vm166 = vcmp.ge.f32.partialorder %v143, 0.0
  %vm167 = vcmp.ge.f32.partialorder %v146, 0.0
  %vm168 = vcmp.ge.f32.partialorder %v149, 0.0
  %vm169 = vcmp.ge.f32.partialorder %v152, 0.0
  %v170 = vmul.f32 %v107, 0.2
  %v171 = vmul.f32 %v110, 0.2
  %v172 = vmul.f32 %v113, 0.2
  %v173 = vmul.f32 %v116, 0.2
  %v174 = vmul.f32 %v119, 0.2
  %v175 = vmul.f32 %v122, 0.2
  %v176 = vmul.f32 %v125, 0.2
  %v177 = vmul.f32 %v128, 0.2
  %v178 = vmul.f32 %v131, 0.2
  %v179 = vmul.f32 %v134, 0.2
  %v180 = vmul.f32 %v137, 0.2
  %v181 = vmul.f32 %v140, 0.2
  %v182 = vmul.f32 %v143, 0.2
  %v183 = vmul.f32 %v146, 0.2
  %v184 = vmul.f32 %v149, 0.2
  %v185 = vmul.f32 %v152, 0.2
  %v186 = vsel %vm154, %v107, %v170
  %v187 = vsel %vm155, %v110, %v171
  %v188 = vsel %vm156, %v113, %v172
  %v189 = vsel %vm157, %v116, %v173
  %v190 = vsel %vm158, %v119, %v174
  %v191 = vsel %vm159, %v122, %v175
  %v192 = vsel %vm160, %v125, %v176
  %v193 = vsel %vm161, %v128, %v177
  %v194 = vsel %vm162, %v131, %v178
  %v195 = vsel %vm163, %v134, %v179
  %v196 = vsel %vm164, %v137, %v180
  %v197 = vsel %vm165, %v140, %v181
  %v198 = vsel %vm166, %v143, %v182
  %v199 = vsel %vm167, %v146, %v183
  %v200 = vsel %vm168, %v149, %v184
  %v201 = vsel %vm169, %v152, %v185
  %202 = vst [vmem:[%s3] sm:$0xff] %v186
  %203 = vst [vmem:[%s3 + $0x8] sm:$0xff] %v187
  %204 = vst [vmem:[%s3 + $0x10] sm:$0xff] %v188
  %205 = vst [vmem:[%s3 + $0x18] sm:$0xff] %v189
  %206 = vst [vmem:[%s3 + $0x20] sm:$0xff] %v190
  %207 = vst [vmem:[%s3 + $0x28] sm:$0xff] %v191
  %208 = vst [vmem:[%s3 + $0x30] sm:$0xff] %v192
  %209 = vst [vmem:[%s3 + $0x38] sm:$0xff] %v193
  %210 = vst [vmem:[%s3 + $0x40] sm:$0xff] %v194
  %211 = vst [vmem:[%s3 + $0x48] sm:$0xff] %v195
  %212 = vst [vmem:[%s3 + $0x50] sm:$0xff] %v196
  %213 = vst [vmem:[%s3 + $0x58] sm:$0xff] %v197
  %214 = vst [vmem:[%s3 + $0x60] sm:$0xff] %v198
  %215 = vst [vmem:[%s3 + $0x68] sm:$0xff] %v199
  %216 = vst [vmem:[%s3 + $0x70] sm:$0xff] %v200
  %217 = vst [vmem:[%s3 + $0x78] sm:$0xff] %v201
  // Predicated region
  $region14: #{patch_discriminator_forward.8} parent=0 // pred_check
    _
  $region15: #{patch_discriminator_forward.8} parent=0 // pred_check_branch
    %219 = sbr.rel (0) target = $region17
  $region16: #{patch_discriminator_forward.8} parent=0 // pred_region
    _
  $region17: #{patch_discriminator_forward.8} parent=0 // pred_fallthru
    _
  // Predicated region
  $region18: #{patch_discriminator_forward.8} parent=0 // pred_check
    _
  $region19: #{patch_discriminator_forward.8} parent=0 // pred_check_branch
    %221 = sbr.rel (0) target = $region21
  $region20: #{patch_discriminator_forward.8} parent=0 // pred_region
    _
  $region21: #{patch_discriminator_forward.8} parent=0 // pred_fallthru
    _

// kernel: patch_discriminator_forward.10
$region0: #{patch_discriminator_forward.10}
  #allocation0 [shape = 'u32[]', space=smem, size = 0x4, offset = 0x4, fixed_abs, tag = 'smem constant byte address 0x4 - core index']
  #allocation1 [shape = 'u32[72,128]{1,0:T(1,128)}', space=vmem, size = 0x9000, scoped, tag = 'internal scratch']
  %s0 = inlined_call_operand.vmem [shape: f32[32,128], index: 0, kind: input, shape index: {}]
  %s1 = inlined_call_operand.vmem [shape: f32[1,128], index: 1, kind: input, shape index: {}]
  %s2 = inlined_call_operand.vmem [shape: f32[1,128], index: 2, kind: input, shape index: {}]
  %s3 = inlined_call_operand.vmem [shape: f32[32,128], index: 3, kind: output, shape index: {}]
  %s4 = sld [smem:[#allocation0]]
  $region22: #{patch_discriminator_forward.10} parent=0
    _
  %s6 = ssub.s32 1, %s4
  %s7 = scalar_select 0, %s6, %s4
  // Predicated region
  $region2: #{patch_discriminator_forward.10} parent=0 // pred_check
    _
  $region3: #{patch_discriminator_forward.10} parent=0 // pred_check_branch
    %9 = sbr.rel (0) target = $region5
  $region4: #{patch_discriminator_forward.10} parent=0 // pred_region
    _
  $region5: #{patch_discriminator_forward.10} parent=0 // pred_fallthru
    _
  // Predicated region
  $region6: #{patch_discriminator_forward.10} parent=0 // pred_check
    _
  $region7: #{patch_discriminator_forward.10} parent=0 // pred_check_branch
    %11 = sbr.rel (0) target = $region9
  $region8: #{patch_discriminator_forward.10} parent=0 // pred_region
    _
  $region9: #{patch_discriminator_forward.10} parent=0 // pred_fallthru
    _
  // Predicated region
  $region10: #{patch_discriminator_forward.10} parent=0 // pred_check
    _
  $region11: #{patch_discriminator_forward.10} parent=0 // pred_check_branch
    %13 = sbr.rel (0) target = $region13
  $region12: #{patch_discriminator_forward.10} parent=0 // pred_region
    _
  $region13: #{patch_discriminator_forward.10} parent=0 // pred_fallthru
    _
  %v14 = vld [vmem:[%s0] sm:$0xff]
  %v15 = vld [vmem:[%s0 + $0x8] sm:$0xff]
  %v16 = vld [vmem:[%s0 + $0x10] sm:$0xff]
  %v17 = vld [vmem:[%s0 + $0x18] sm:$0xff]
  %v18 = vld [vmem:[%s1] sm:$0x1]
  %v20 = vperm.slane %v18, 0
  %v22 = vmul.f32 %v14, %v20
  %v23 = vmul.f32 %v15, %v20
  %v24 = vmul.f32 %v16, %v20
  %v25 = vmul.f32 %v17, %v20
  %v26 = vld [vmem:[%s2] sm:$0x1]
  %v28 = vperm.slane %v26, 0
  %v30 = vadd.f32 %v22, %v28
  %v31 = vadd.f32 %v23, %v28
  %v32 = vadd.f32 %v24, %v28
  %v33 = vadd.f32 %v25, %v28
  %vm34 = vcmp.ge.f32.partialorder %v30, 0.0
  %vm35 = vcmp.ge.f32.partialorder %v31, 0.0
  %vm36 = vcmp.ge.f32.partialorder %v32, 0.0
  %vm37 = vcmp.ge.f32.partialorder %v33, 0.0
  %v38 = vmul.f32 %v30, 0.2
  %v39 = vmul.f32 %v31, 0.2
  %v40 = vmul.f32 %v32, 0.2
  %v41 = vmul.f32 %v33, 0.2
  %v42 = vsel %vm34, %v30, %v38
  %v43 = vsel %vm35, %v31, %v39
  %v44 = vsel %vm36, %v32, %v40
  %v45 = vsel %vm37, %v33, %v41
  %46 = vst [vmem:[%s3] sm:$0xff] %v42
  %47 = vst [vmem:[%s3 + $0x8] sm:$0xff] %v43
  %48 = vst [vmem:[%s3 + $0x10] sm:$0xff] %v44
  %49 = vst [vmem:[%s3 + $0x18] sm:$0xff] %v45
  // Predicated region
  $region14: #{patch_discriminator_forward.10} parent=0 // pred_check
    _
  $region15: #{patch_discriminator_forward.10} parent=0 // pred_check_branch
    %51 = sbr.rel (0) target = $region17
  $region16: #{patch_discriminator_forward.10} parent=0 // pred_region
    _
  $region17: #{patch_discriminator_forward.10} parent=0 // pred_fallthru
    _
  // Predicated region
  $region18: #{patch_discriminator_forward.10} parent=0 // pred_check
    _
  $region19: #{patch_discriminator_forward.10} parent=0 // pred_check_branch
    %53 = sbr.rel (0) target = $region21
  $region20: #{patch_discriminator_forward.10} parent=0 // pred_region
    _
  $region21: #{patch_discriminator_forward.10} parent=0 // pred_fallthru
    _

// kernel: patch_discriminator_forward.9
$region0: #{patch_discriminator_forward.9}
  #allocation0 [shape = 'u32[]', space=smem, size = 0x4, offset = 0x4, fixed_abs, tag = 'smem constant byte address 0x4 - core index']
  #allocation1 [shape = 'u32[72,128]{1,0:T(1,128)}', space=vmem, size = 0x9000, scoped, tag = 'internal scratch']
  %s0 = inlined_call_operand.vmem [shape: f32[32,1024], index: 0, kind: input, shape index: {}]
  %s1 = inlined_call_operand.vmem [shape: f32[1024,128], index: 1, kind: input, shape index: {}]
  %s2 = inlined_call_operand.vmem [shape: f32[1,128], index: 2, kind: input, shape index: {}]
  %s3 = inlined_call_operand.vmem [shape: f32[32,128], index: 3, kind: output, shape index: {0}]
  %s4 = inlined_call_operand.vmem [shape: f32[1,2,128], index: 4, kind: output, shape index: {1}]
  %5 = xla_tuple %s3, %s4
  %s6 = sld [smem:[#allocation0]]
  $region30: #{patch_discriminator_forward.9} parent=0
    _
  %s8 = ssub.s32 1, %s6
  %s9 = scalar_select 0, %s8, %s6
  // Predicated region
  $region2: #{patch_discriminator_forward.9} parent=0 // pred_check
    _
  $region3: #{patch_discriminator_forward.9} parent=0 // pred_check_branch
    %11 = sbr.rel (0) target = $region5
  $region4: #{patch_discriminator_forward.9} parent=0 // pred_region
    _
  $region5: #{patch_discriminator_forward.9} parent=0 // pred_fallthru
    _
  // Predicated region
  $region6: #{patch_discriminator_forward.9} parent=0 // pred_check
    _
  $region7: #{patch_discriminator_forward.9} parent=0 // pred_check_branch
    %13 = sbr.rel (0) target = $region9
  $region8: #{patch_discriminator_forward.9} parent=0 // pred_region
    _
  $region9: #{patch_discriminator_forward.9} parent=0 // pred_fallthru
    _
  // Predicated region
  $region10: #{patch_discriminator_forward.9} parent=0 // pred_check
    _
  $region11: #{patch_discriminator_forward.9} parent=0 // pred_check_branch
    %15 = sbr.rel (0) target = $region13
  $region12: #{patch_discriminator_forward.9} parent=0 // pred_region
    _
  $region13: #{patch_discriminator_forward.9} parent=0 // pred_fallthru
    _
  %v16 = vld [vmem:[%s0] sm:$0xff]
  %v17 = vld [vmem:[%s0 + $0x8] sm:$0xff]
  %v18 = vld [vmem:[%s0 + $0x10] sm:$0xff]
  %v19 = vld [vmem:[%s0 + $0x18] sm:$0xff]
  %v20 = vld [vmem:[%s0 + $0x20] sm:$0xff]
  %v21 = vld [vmem:[%s0 + $0x28] sm:$0xff]
  %v22 = vld [vmem:[%s0 + $0x30] sm:$0xff]
  %v23 = vld [vmem:[%s0 + $0x38] sm:$0xff]
  %v24 = vld [vmem:[%s0 + $0x40] sm:$0xff]
  %v25 = vld [vmem:[%s0 + $0x48] sm:$0xff]
  %v26 = vld [vmem:[%s0 + $0x50] sm:$0xff]
  %v27 = vld [vmem:[%s0 + $0x58] sm:$0xff]
  %v28 = vld [vmem:[%s0 + $0x60] sm:$0xff]
  %v29 = vld [vmem:[%s0 + $0x68] sm:$0xff]
  %v30 = vld [vmem:[%s0 + $0x70] sm:$0xff]
  %v31 = vld [vmem:[%s0 + $0x78] sm:$0xff]
  %v32 = vld [vmem:[%s0 + $0x80] sm:$0xff]
  %v33 = vld [vmem:[%s0 + $0x88] sm:$0xff]
  %v34 = vld [vmem:[%s0 + $0x90] sm:$0xff]
  %v35 = vld [vmem:[%s0 + $0x98] sm:$0xff]
  %v36 = vld [vmem:[%s0 + $0xa0] sm:$0xff]
  %v37 = vld [vmem:[%s0 + $0xa8] sm:$0xff]
  %v38 = vld [vmem:[%s0 + $0xb0] sm:$0xff]
  %v39 = vld [vmem:[%s0 + $0xb8] sm:$0xff]
  %v40 = vld [vmem:[%s0 + $0xc0] sm:$0xff]
  %v41 = vld [vmem:[%s0 + $0xc8] sm:$0xff]
  %v42 = vld [vmem:[%s0 + $0xd0] sm:$0xff]
  %v43 = vld [vmem:[%s0 + $0xd8] sm:$0xff]
  %v44 = vld [vmem:[%s0 + $0xe0] sm:$0xff]
  %v45 = vld [vmem:[%s0 + $0xe8] sm:$0xff]
  %v46 = vld [vmem:[%s0 + $0xf0] sm:$0xff]
  %v47 = vld [vmem:[%s0 + $0xf8] sm:$0xff]
  %v48 = vld [vmem:[%s1] sm:$0xff]
  %v49 = vld [vmem:[%s1 + $0x8] sm:$0xff]
  %v50 = vld [vmem:[%s1 + $0x10] sm:$0xff]
  %v51 = vld [vmem:[%s1 + $0x18] sm:$0xff]
  %v52 = vld [vmem:[%s1 + $0x20] sm:$0xff]
  %v53 = vld [vmem:[%s1 + $0x28] sm:$0xff]
  %v54 = vld [vmem:[%s1 + $0x30] sm:$0xff]
  %v55 = vld [vmem:[%s1 + $0x38] sm:$0xff]
  %v56 = vld [vmem:[%s1 + $0x40] sm:$0xff]
  %v57 = vld [vmem:[%s1 + $0x48] sm:$0xff]
  %v58 = vld [vmem:[%s1 + $0x50] sm:$0xff]
  %v59 = vld [vmem:[%s1 + $0x58] sm:$0xff]
  %v60 = vld [vmem:[%s1 + $0x60] sm:$0xff]
  %v61 = vld [vmem:[%s1 + $0x68] sm:$0xff]
  %v62 = vld [vmem:[%s1 + $0x70] sm:$0xff]
  %v63 = vld [vmem:[%s1 + $0x78] sm:$0xff]
  %v64 = vld [vmem:[%s1 + $0x80] sm:$0xff]
  %v65 = vld [vmem:[%s1 + $0x88] sm:$0xff]
  %v66 = vld [vmem:[%s1 + $0x90] sm:$0xff]
  %v67 = vld [vmem:[%s1 + $0x98] sm:$0xff]
  %v68 = vld [vmem:[%s1 + $0xa0] sm:$0xff]
  %v69 = vld [vmem:[%s1 + $0xa8] sm:$0xff]
  %v70 = vld [vmem:[%s1 + $0xb0] sm:$0xff]
  %v71 = vld [vmem:[%s1 + $0xb8] sm:$0xff]
  %v72 = vld [vmem:[%s1 + $0xc0] sm:$0xff]
  %v73 = vld [vmem:[%s1 + $0xc8] sm:$0xff]
  %v74 = vld [vmem:[%s1 + $0xd0] sm:$0xff]
  %v75 = vld [vmem:[%s1 + $0xd8] sm:$0xff]
  %v76 = vld [vmem:[%s1 + $0xe0] sm:$0xff]
  %v77 = vld [vmem:[%s1 + $0xe8] sm:$0xff]
  %v78 = vld [vmem:[%s1 + $0xf0] sm:$0xff]
  %v79 = vld [vmem:[%s1 + $0xf8] sm:$0xff]
  %v80 = vld [vmem:[%s1 + $0x100] sm:$0xff]
  %v81 = vld [vmem:[%s1 + $0x108] sm:$0xff]
  %v82 = vld [vmem:[%s1 + $0x110] sm:$0xff]
  %v83 = vld [vmem:[%s1 + $0x118] sm:$0xff]
  %v84 = vld [vmem:[%s1 + $0x120] sm:$0xff]
  %v85 = vld [vmem:[%s1 + $0x128] sm:$0xff]
  %v86 = vld [vmem:[%s1 + $0x130] sm:$0xff]
  %v87 = vld [vmem:[%s1 + $0x138] sm:$0xff]
  %v88 = vld [vmem:[%s1 + $0x140] sm:$0xff]
  %v89 = vld [vmem:[%s1 + $0x148] sm:$0xff]
  %v90 = vld [vmem:[%s1 + $0x150] sm:$0xff]
  %v91 = vld [vmem:[%s1 + $0x158] sm:$0xff]
  %v92 = vld [vmem:[%s1 + $0x160] sm:$0xff]
  %v93 = vld [vmem:[%s1 + $0x168] sm:$0xff]
  %v94 = vld [vmem:[%s1 + $0x170] sm:$0xff]
  %v95 = vld [vmem:[%s1 + $0x178] sm:$0xff]
  %v96 = vld [vmem:[%s1 + $0x180] sm:$0xff]
  %v97 = vld [vmem:[%s1 + $0x188] sm:$0xff]
  %v98 = vld [vmem:[%s1 + $0x190] sm:$0xff]
  %v99 = vld [vmem:[%s1 + $0x198] sm:$0xff]
  %v100 = vld [vmem:[%s1 + $0x1a0] sm:$0xff]
  %v101 = vld [vmem:[%s1 + $0x1a8] sm:$0xff]
  %v102 = vld [vmem:[%s1 + $0x1b0] sm:$0xff]
  %v103 = vld [vmem:[%s1 + $0x1b8] sm:$0xff]
  %v104 = vld [vmem:[%s1 + $0x1c0] sm:$0xff]
  %v105 = vld [vmem:[%s1 + $0x1c8] sm:$0xff]
  %v106 = vld [vmem:[%s1 + $0x1d0] sm:$0xff]
  %v107 = vld [vmem:[%s1 + $0x1d8] sm:$0xff]
  %v108 = vld [vmem:[%s1 + $0x1e0] sm:$0xff]
  %v109 = vld [vmem:[%s1 + $0x1e8] sm:$0xff]
  %v110 = vld [vmem:[%s1 + $0x1f0] sm:$0xff]
  %v111 = vld [vmem:[%s1 + $0x1f8] sm:$0xff]
  %v112 = vld [vmem:[%s1 + $0x200] sm:$0xff]
  %v113 = vld [vmem:[%s1 + $0x208] sm:$0xff]
  %v114 = vld [vmem:[%s1 + $0x210] sm:$0xff]
  %v115 = vld [vmem:[%s1 + $0x218] sm:$0xff]
  %v116 = vld [vmem:[%s1 + $0x220] sm:$0xff]
  %v117 = vld [vmem:[%s1 + $0x228] sm:$0xff]
  %v118 = vld [vmem:[%s1 + $0x230] sm:$0xff]
  %v119 = vld [vmem:[%s1 + $0x238] sm:$0xff]
  %v120 = vld [vmem:[%s1 + $0x240] sm:$0xff]
  %v121 = vld [vmem:[%s1 + $0x248] sm:$0xff]
  %v122 = vld [vmem:[%s1 + $0x250] sm:$0xff]
  %v123 = vld [vmem:[%s1 + $0x258] sm:$0xff]
  %v124 = vld [vmem:[%s1 + $0x260] sm:$0xff]
  %v125 = vld [vmem:[%s1 + $0x268] sm:$0xff]
  %v126 = vld [vmem:[%s1 + $0x270] sm:$0xff]
  %v127 = vld [vmem:[%s1 + $0x278] sm:$0xff]
  %v128 = vld [vmem:[%s1 + $0x280] sm:$0xff]
  %v129 = vld [vmem:[%s1 + $0x288] sm:$0xff]
  %v130 = vld [vmem:[%s1 + $0x290] sm:$0xff]
  %v131 = vld [vmem:[%s1 + $0x298] sm:$0xff]
  %v132 = vld [vmem:[%s1 + $0x2a0] sm:$0xff]
  %v133 = vld [vmem:[%s1 + $0x2a8] sm:$0xff]
  %v134 = vld [vmem:[%s1 + $0x2b0] sm:$0xff]
  %v135 = vld [vmem:[%s1 + $0x2b8] sm:$0xff]
  %v136 = vld [vmem:[%s1 + $0x2c0] sm:$0xff]
  %v137 = vld [vmem:[%s1 + $0x2c8] sm:$0xff]
  %v138 = vld [vmem:[%s1 + $0x2d0] sm:$0xff]
  %v139 = vld [vmem:[%s1 + $0x2d8] sm:$0xff]
  %v140 = vld [vmem:[%s1 + $0x2e0] sm:$0xff]
  %v141 = vld [vmem:[%s1 + $0x2e8] sm:$0xff]
  %v142 = vld [vmem:[%s1 + $0x2f0] sm:$0xff]
  %v143 = vld [vmem:[%s1 + $0x2f8] sm:$0xff]
  %v144 = vld [vmem:[%s1 + $0x300] sm:$0xff]
  %v145 = vld [vmem:[%s1 + $0x308] sm:$0xff]
  %v146 = vld [vmem:[%s1 + $0x310] sm:$0xff]
  %v147 = vld [vmem:[%s1 + $0x318] sm:$0xff]
  %v148 = vld [vmem:[%s1 + $0x320] sm:$0xff]
  %v149 = vld [vmem:[%s1 + $0x328] sm:$0xff]
  %v150 = vld [vmem:[%s1 + $0x330] sm:$0xff]
  %v151 = vld [vmem:[%s1 + $0x338] sm:$0xff]
  %v152 = vld [vmem:[%s1 + $0x340] sm:$0xff]
  %v153 = vld [vmem:[%s1 + $0x348] sm:$0xff]
  %v154 = vld [vmem:[%s1 + $0x350] sm:$0xff]
  %v155 = vld [vmem:[%s1 + $0x358] sm:$0xff]
  %v156 = vld [vmem:[%s1 + $0x360] sm:$0xff]
  %v157 = vld [vmem:[%s1 + $0x368] sm:$0xff]
  %v158 = vld [vmem:[%s1 + $0x370] sm:$0xff]
  %v159 = vld [vmem:[%s1 + $0x378] sm:$0xff]
  %v160 = vld [vmem:[%s1 + $0x380] sm:$0xff]
  %v161 = vld [vmem:[%s1 + $0x388] sm:$0xff]
  %v162 = vld [vmem:[%s1 + $0x390] sm:$0xff]
  %v163 = vld [vmem:[%s1 + $0x398] sm:$0xff]
  %v164 = vld [vmem:[%s1 + $0x3a0] sm:$0xff]
  %v165 = vld [vmem:[%s1 + $0x3a8] sm:$0xff]
  %v166 = vld [vmem:[%s1 + $0x3b0] sm:$0xff]
  %v167 = vld [vmem:[%s1 + $0x3b8] sm:$0xff]
  %v168 = vld [vmem:[%s1 + $0x3c0] sm:$0xff]
  %v169 = vld [vmem:[%s1 + $0x3c8] sm:$0xff]
  %v170 = vld [vmem:[%s1 + $0x3d0] sm:$0xff]
  %v171 = vld [vmem:[%s1 + $0x3d8] sm:$0xff]
  %v172 = vld [vmem:[%s1 + $0x3e0] sm:$0xff]
  %v173 = vld [vmem:[%s1 + $0x3e8] sm:$0xff]
  %v174 = vld [vmem:[%s1 + $0x3f0] sm:$0xff]
  %v175 = vld [vmem:[%s1 + $0x3f8] sm:$0xff]
  %v176 = vld [vmem:[%s2] sm:$0x1]
  %v178 = vperm.slane %v176, 0
  %180 = vmatpush.msra.mxu0 %v63
  %181 = vmatpush.msra.mxu0 %v62
  %182 = vmatpush.msra.mxu0 %v61
  %183 = vmatpush.msra.mxu0 %v60
  %184 = vmatpush.msra.mxu0 %v59
  %185 = vmatpush.msra.mxu0 %v58
  %186 = vmatpush.msra.mxu0 %v57
  %187 = vmatpush.msra.mxu0 %v56
  %188 = vmatpush.msra.mxu0 %v55
  %189 = vmatpush.msra.mxu0 %v54
  %190 = vmatpush.msra.mxu0 %v53
  %191 = vmatpush.msra.mxu0 %v52
  %192 = vmatpush.msra.mxu0 %v51
  %193 = vmatpush.msra.mxu0 %v50
  %194 = vmatpush.msra.mxu0 %v49
  %195 = vmatpush.msra.mxu0 %v48
  %196 = vmatmul.f32.gmra.mxu0 %v16
  %v197 = vpop.f32.mrf.mxu0
  %v198 = vadd.f32 %v178, %v197
  %199 = vmatmul.f32.gmra.mxu0 %v24
  %v200 = vpop.f32.mrf.mxu0
  %v201 = vadd.f32 %v178, %v200
  %202 = vmatmul.f32.gmra.mxu0 %v32
  %v203 = vpop.f32.mrf.mxu0
  %v204 = vadd.f32 %v178, %v203
  %205 = vmatmul.f32.gmra.mxu0 %v40
  %v206 = vpop.f32.mrf.mxu0
  %v207 = vadd.f32 %v178, %v206
  %208 = vdwg.mxu0
  %209 = vmatpush.msra.mxu0 %v79
  %210 = vmatpush.msra.mxu0 %v78
  %211 = vmatpush.msra.mxu0 %v77
  %212 = vmatpush.msra.mxu0 %v76
  %213 = vmatpush.msra.mxu0 %v75
  %214 = vmatpush.msra.mxu0 %v74
  %215 = vmatpush.msra.mxu0 %v73
  %216 = vmatpush.msra.mxu0 %v72
  %217 = vmatpush.msra.mxu0 %v71
  %218 = vmatpush.msra.mxu0 %v70
  %219 = vmatpush.msra.mxu0 %v69
  %220 = vmatpush.msra.mxu0 %v68
  %221 = vmatpush.msra.mxu0 %v67
  %222 = vmatpush.msra.mxu0 %v66
  %223 = vmatpush.msra.mxu0 %v65
  %224 = vmatpush.msra.mxu0 %v64
  %225 = vmatmul.f32.gmra.mxu0 %v17
  %v226 = vpop.f32.mrf.mxu0
  %v227 = vadd.f32 %v198, %v226
  %228 = vmatmul.f32.gmra.mxu0 %v25
  %v229 = vpop.f32.mrf.mxu0
  %v230 = vadd.f32 %v201, %v229
  %231 = vmatmul.f32.gmra.mxu0 %v33
  %v232 = vpop.f32.mrf.mxu0
  %v233 = vadd.f32 %v204, %v232
  %234 = vmatmul.f32.gmra.mxu0 %v41
  %v235 = vpop.f32.mrf.mxu0
  %v236 = vadd.f32 %v207, %v235
  %237 = vdwg.mxu0
  %238 = vmatpush.msra.mxu0 %v95
  %239 = vmatpush.msra.mxu0 %v94
  %240 = vmatpush.msra.mxu0 %v93
  %241 = vmatpush.msra.mxu0 %v92
  %242 = vmatpush.msra.mxu0 %v91
  %243 = vmatpush.msra.mxu0 %v90
  %244 = vmatpush.msra.mxu0 %v89
  %245 = vmatpush.msra.mxu0 %v88
  %246 = vmatpush.msra.mxu0 %v87
  %247 = vmatpush.msra.mxu0 %v86
  %248 = vmatpush.msra.mxu0 %v85
  %249 = vmatpush.msra.mxu0 %v84
  %250 = vmatpush.msra.mxu0 %v83
  %251 = vmatpush.msra.mxu0 %v82
  %252 = vmatpush.msra.mxu0 %v81
  %253 = vmatpush.msra.mxu0 %v80
  %254 = vmatmul.f32.gmra.mxu0 %v18
  %v255 = vpop.f32.mrf.mxu0
  %v256 = vadd.f32 %v227, %v255
  %257 = vmatmul.f32.gmra.mxu0 %v26
  %v258 = vpop.f32.mrf.mxu0
  %v259 = vadd.f32 %v230, %v258
  %260 = vmatmul.f32.gmra.mxu0 %v34
  %v261 = vpop.f32.mrf.mxu0
  %v262 = vadd.f32 %v233, %v261
  %263 = vmatmul.f32.gmra.mxu0 %v42
  %v264 = vpop.f32.mrf.mxu0
  %v265 = vadd.f32 %v236, %v264
  %266 = vdwg.mxu0
  %267 = vmatpush.msra.mxu0 %v111
  %268 = vmatpush.msra.mxu0 %v110
  %269 = vmatpush.msra.mxu0 %v109
  %270 = vmatpush.msra.mxu0 %v108
  %271 = vmatpush.msra.mxu0 %v107
  %272 = vmatpush.msra.mxu0 %v106
  %273 = vmatpush.msra.mxu0 %v105
  %274 = vmatpush.msra.mxu0 %v104
  %275 = vmatpush.msra.mxu0 %v103
  %276 = vmatpush.msra.mxu0 %v102
  %277 = vmatpush.msra.mxu0 %v101
  %278 = vmatpush.msra.mxu0 %v100
  %279 = vmatpush.msra.mxu0 %v99
  %280 = vmatpush.msra.mxu0 %v98
  %281 = vmatpush.msra.mxu0 %v97
  %282 = vmatpush.msra.mxu0 %v96
  %283 = vmatmul.f32.gmra.mxu0 %v19
  %v284 = vpop.f32.mrf.mxu0
  %v285 = vadd.f32 %v256, %v284
  %286 = vmatmul.f32.gmra.mxu0 %v27
  %v287 = vpop.f32.mrf.mxu0
  %v288 = vadd.f32 %v259, %v287
  %289 = vmatmul.f32.gmra.mxu0 %v35
  %v290 = vpop.f32.mrf.mxu0
  %v291 = vadd.f32 %v262, %v290
  %292 = vmatmul.f32.gmra.mxu0 %v43
  %v293 = vpop.f32.mrf.mxu0
  %v294 = vadd.f32 %v265, %v293
  %295 = vdwg.mxu0
  %296 = vmatpush.msra.mxu0 %v127
  %297 = vmatpush.msra.mxu0 %v126
  %298 = vmatpush.msra.mxu0 %v125
  %299 = vmatpush.msra.mxu0 %v124
  %300 = vmatpush.msra.mxu0 %v123
  %301 = vmatpush.msra.mxu0 %v122
  %302 = vmatpush.msra.mxu0 %v121
  %303 = vmatpush.msra.mxu0 %v120
  %304 = vmatpush.msra.mxu0 %v119
  %305 = vmatpush.msra.mxu0 %v118
  %306 = vmatpush.msra.mxu0 %v117
  %307 = vmatpush.msra.mxu0 %v116
  %308 = vmatpush.msra.mxu0 %v115
  %309 = vmatpush.msra.mxu0 %v114
  %310 = vmatpush.msra.mxu0 %v113
  %311 = vmatpush.msra.mxu0 %v112
  %312 = vmatmul.f32.gmra.mxu0 %v20
  %v313 = vpop.f32.mrf.mxu0
  %v314 = vadd.f32 %v285, %v313
  %315 = vmatmul.f32.gmra.mxu0 %v28
  %v316 = vpop.f32.mrf.mxu0
  %v317 = vadd.f32 %v288, %v316
  %318 = vmatmul.f32.gmra.mxu0 %v36
  %v319 = vpop.f32.mrf.mxu0
  %v320 = vadd.f32 %v291, %v319
  %321 = vmatmul.f32.gmra.mxu0 %v44
  %v322 = vpop.f32.mrf.mxu0
  %v323 = vadd.f32 %v294, %v322
  %324 = vdwg.mxu0
  %325 = vmatpush.msra.mxu0 %v143
  %326 = vmatpush.msra.mxu0 %v142
  %327 = vmatpush.msra.mxu0 %v141
  %328 = vmatpush.msra.mxu0 %v140
  %329 = vmatpush.msra.mxu0 %v139
  %330 = vmatpush.msra.mxu0 %v138
  %331 = vmatpush.msra.mxu0 %v137
  %332 = vmatpush.msra.mxu0 %v136
  %333 = vmatpush.msra.mxu0 %v135
  %334 = vmatpush.msra.mxu0 %v134
  %335 = vmatpush.msra.mxu0 %v133
  %336 = vmatpush.msra.mxu0 %v132
  %337 = vmatpush.msra.mxu0 %v131
  %338 = vmatpush.msra.mxu0 %v130
  %339 = vmatpush.msra.mxu0 %v129
  %340 = vmatpush.msra.mxu0 %v128
  %341 = vmatmul.f32.gmra.mxu0 %v21
  %v342 = vpop.f32.mrf.mxu0
  %v343 = vadd.f32 %v314, %v342
  %344 = vmatmul.f32.gmra.mxu0 %v29
  %v345 = vpop.f32.mrf.mxu0
  %v346 = vadd.f32 %v317, %v345
  %347 = vmatmul.f32.gmra.mxu0 %v37
  %v348 = vpop.f32.mrf.mxu0
  %v349 = vadd.f32 %v320, %v348
  %350 = vmatmul.f32.gmra.mxu0 %v45
  %v351 = vpop.f32.mrf.mxu0
  %v352 = vadd.f32 %v323, %v351
  %353 = vdwg.mxu0
  %354 = vmatpush.msra.mxu0 %v159
  %355 = vmatpush.msra.mxu0 %v158
  %356 = vmatpush.msra.mxu0 %v157
  %357 = vmatpush.msra.mxu0 %v156
  %358 = vmatpush.msra.mxu0 %v155
  %359 = vmatpush.msra.mxu0 %v154
  %360 = vmatpush.msra.mxu0 %v153
  %361 = vmatpush.msra.mxu0 %v152
  %362 = vmatpush.msra.mxu0 %v151
  %363 = vmatpush.msra.mxu0 %v150
  %364 = vmatpush.msra.mxu0 %v149
  %365 = vmatpush.msra.mxu0 %v148
  %366 = vmatpush.msra.mxu0 %v147
  %367 = vmatpush.msra.mxu0 %v146
  %368 = vmatpush.msra.mxu0 %v145
  %369 = vmatpush.msra.mxu0 %v144
  %370 = vmatmul.f32.gmra.mxu0 %v22
  %v371 = vpop.f32.mrf.mxu0
  %v372 = vadd.f32 %v343, %v371
  %373 = vmatmul.f32.gmra.mxu0 %v30
  %v374 = vpop.f32.mrf.mxu0
  %v375 = vadd.f32 %v346, %v374
  %376 = vmatmul.f32.gmra.mxu0 %v38
  %v377 = vpop.f32.mrf.mxu0
  %v378 = vadd.f32 %v349, %v377
  %379 = vmatmul.f32.gmra.mxu0 %v46
  %v380 = vpop.f32.mrf.mxu0
  %v381 = vadd.f32 %v352, %v380
  %382 = vdwg.mxu0
  %383 = vmatpush.msra.mxu0 %v175
  %384 = vmatpush.msra.mxu0 %v174
  %385 = vmatpush.msra.mxu0 %v173
  %386 = vmatpush.msra.mxu0 %v172
  %387 = vmatpush.msra.mxu0 %v171
  %388 = vmatpush.msra.mxu0 %v170
  %389 = vmatpush.msra.mxu0 %v169
  %390 = vmatpush.msra.mxu0 %v168
  %391 = vmatpush.msra.mxu0 %v167
  %392 = vmatpush.msra.mxu0 %v166
  %393 = vmatpush.msra.mxu0 %v165
  %394 = vmatpush.msra.mxu0 %v164
  %395 = vmatpush.msra.mxu0 %v163
  %396 = vmatpush.msra.mxu0 %v162
  %397 = vmatpush.msra.mxu0 %v161
  %398 = vmatpush.msra.mxu0 %v160
  %399 = vmatmul.f32.gmra.mxu0 %v23
  %v400 = vpop.f32.mrf.mxu0
  %v401 = vadd.f32 %v372, %v400
  %402 = vmatmul.f32.gmra.mxu0 %v31
  %v403 = vpop.f32.mrf.mxu0
  %v404 = vadd.f32 %v375, %v403
  %405 = vmatmul.f32.gmra.mxu0 %v39
  %v406 = vpop.f32.mrf.mxu0
  %v407 = vadd.f32 %v378, %v406
  %408 = vmatmul.f32.gmra.mxu0 %v47
  %v409 = vpop.f32.mrf.mxu0
  %v410 = vadd.f32 %v381, %v409
  %411 = vdwg.mxu0
  %412 = vst [vmem:[%s3] sm:$0xff] %v401
  %413 = vst [vmem:[%s3 + $0x8] sm:$0xff] %v404
  %414 = vst [vmem:[%s3 + $0x10] sm:$0xff] %v407
  %415 = vst [vmem:[%s3 + $0x18] sm:$0xff] %v410
  %s416 = smul.u32 0, 32
  %v417 = vlaneseq
  %v418 = vshrl.u32 %v417, 7
  %v419 = vadd.s32 %v418, 8
  %v420 = vadd.s32 %v418, 16
  %v421 = vadd.s32 %v418, 24
  %v422 = vstv %s416
  %v423 = vadd.s32 %v422, %v418
  %v424 = vadd.s32 %v422, %v419
  %v425 = vadd.s32 %v422, %v420
  %v426 = vadd.s32 %v422, %v421
  %vm427 = vcmp.lt.s32.totalorder %v423, 32
  %vm428 = vcmp.lt.s32.totalorder %v424, 32
  %vm429 = vcmp.lt.s32.totalorder %v425, 32
  %vm430 = vcmp.lt.s32.totalorder %v426, 32
  %v431 = vsel %vm427, 1, 0
  %v432 = vsel %vm428, 1, 0
  %v433 = vsel %vm429, 1, 0
  %v434 = vsel %vm430, 1, 0
  %v435 = vcvt.s32.f32 %v431
  %v436 = vcvt.s32.f32 %v432
  %v437 = vcvt.s32.f32 %v433
  %v438 = vcvt.s32.f32 %v434
  %v439 = vmul.f32 %v401, %v435
  %v440 = vmul.f32 %v404, %v436
  %v441 = vmul.f32 %v407, %v437
  %v442 = vmul.f32 %v410, %v438
  %v443 = vadd.f32 %v439, %v440
  %v444 = vadd.f32 %v443, %v441
  %v445 = vadd.f32 %v444, %v442
  %v446 = vrot.slane %v445, 4
  %v447 = vadd.f32 %v445, %v446
  %v448 = vrot.slane %v447, 2
  %v449 = vadd.f32 %v447, %v448
  %v450 = vrot.slane %v449, 1
  %v451 = vadd.f32 %v449, %v450
  %v452 = vmul.f32 %v439, %v439
  %v453 = vmul.f32 %v440, %v440
  %v454 = vmul.f32 %v441, %v441
  %v455 = vmul.f32 %v442, %v442
  %v456 = vadd.f32 %v452, %v453
  %v457 = vadd.f32 %v456, %v454
  %v458 = vadd.f32 %v457, %v455
  %v459 = vrot.slane %v458, 4
  %v460 = vadd.f32 %v458, %v459
  %v461 = vrot.slane %v460, 2
  %v462 = vadd.f32 %v460, %v461
  %v463 = vrot.slane %v462, 1
  %v464 = vadd.f32 %v462, %v463
  %vm465 = vcmask 1040384
  %v466 = vsel %vm465, %v451, %v464
  %467 = vst [vmem:[%s4] sm:$0x3] %v466
  // Predicated region
  $region14: #{patch_discriminator_forward.9} parent=0 // pred_check
    _
  $region15: #{patch_discriminator_forward.9} parent=0 // pred_check_branch
    %469 = sbr.rel (0) target = $region17
  $region16: #{patch_discriminator_forward.9} parent=0 // pred_region
    _
  $region17: #{patch_discriminator_forward.9} parent=0 // pred_fallthru
    _
  // Predicated region
  $region18: #{patch_discriminator_forward.9} parent=0 // pred_check
    _
  $region19: #{patch_discriminator_forward.9} parent=0 // pred_check_branch
    %471 = sbr.rel (0) target = $region21
  $region20: #{patch_discriminator_forward.9} parent=0 // pred_region
    _
  $region21: #{patch_discriminator_forward.9} parent=0 // pred_fallthru
    _
  // Predicated region
  $region22: #{patch_discriminator_forward.9} parent=0 // pred_check
    _
  $region23: #{patch_discriminator_forward.9} parent=0 // pred_check_branch
    %473 = sbr.rel (0) target = $region25
  $region24: #{patch_discriminator_forward.9} parent=0 // pred_region
    _
  $region25: #{patch_discriminator_forward.9} parent=0 // pred_fallthru
    _
  // Predicated region
  $region26: #{patch_discriminator_forward.9} parent=0 // pred_check
    _
  $region27: #{patch_discriminator_forward.9} parent=0 // pred_check_branch
    %475 = sbr.rel (0) target = $region29
  $region28: #{patch_discriminator_forward.9} parent=0 // pred_region
    _
  $region29: #{patch_discriminator_forward.9} parent=0 // pred_fallthru
    _

// kernel: patch_discriminator_forward.12
$region0: #{patch_discriminator_forward.12}
  #allocation0 [shape = 'u32[]', space=smem, size = 0x4, offset = 0x4, fixed_abs, tag = 'smem constant byte address 0x4 - core index']
  #allocation1 [shape = 'u32[72,128]{1,0:T(1,128)}', space=vmem, size = 0x9000, scoped, tag = 'internal scratch']
  %s0 = inlined_call_operand.vmem [shape: f32[8,256], index: 0, kind: input, shape index: {}]
  %s1 = inlined_call_operand.vmem [shape: f32[1,256], index: 1, kind: input, shape index: {}]
  %s2 = inlined_call_operand.vmem [shape: f32[1,256], index: 2, kind: input, shape index: {}]
  %s3 = inlined_call_operand.vmem [shape: f32[8,256], index: 3, kind: output, shape index: {}]
  %s4 = sld [smem:[#allocation0]]
  $region22: #{patch_discriminator_forward.12} parent=0
    _
  %s6 = ssub.s32 1, %s4
  %s7 = scalar_select 0, %s6, %s4
  // Predicated region
  $region2: #{patch_discriminator_forward.12} parent=0 // pred_check
    _
  $region3: #{patch_discriminator_forward.12} parent=0 // pred_check_branch
    %9 = sbr.rel (0) target = $region5
  $region4: #{patch_discriminator_forward.12} parent=0 // pred_region
    _
  $region5: #{patch_discriminator_forward.12} parent=0 // pred_fallthru
    _
  // Predicated region
  $region6: #{patch_discriminator_forward.12} parent=0 // pred_check
    _
  $region7: #{patch_discriminator_forward.12} parent=0 // pred_check_branch
    %11 = sbr.rel (0) target = $region9
  $region8: #{patch_discriminator_forward.12} parent=0 // pred_region
    _
  $region9: #{patch_discriminator_forward.12} parent=0 // pred_fallthru
    _
  // Predicated region
  $region10: #{patch_discriminator_forward.12} parent=0 // pred_check
    _
  $region11: #{patch_discriminator_forward.12} parent=0 // pred_check_branch
    %13 = sbr.rel (0) target = $region13
  $region12: #{patch_discriminator_forward.12} parent=0 // pred_region
    _
  $region13: #{patch_discriminator_forward.12} parent=0 // pred_fallthru
    _
  %v14 = vld [vmem:[%s0] sm:$0xff]
  %v15 = vld [vmem:[%s0 + $0x8] sm:$0xff]
  %v16 = vld [vmem:[%s1] sm:$0x3]
  %v18 = vperm.slane %v16, 0
  %v19 = vperm.slane %v16, 1
  %v22 = vmul.f32 %v14, %v18
  %v23 = vmul.f32 %v15, %v19
  %v24 = vld [vmem:[%s2] sm:$0x3]
  %v26 = vperm.slane %v24, 0
  %v27 = vperm.slane %v24, 1
  %v30 = vadd.f32 %v22, %v26
  %v31 = vadd.f32 %v23, %v27
  %vm32 = vcmp.ge.f32.partialorder %v30, 0.0
  %vm33 = vcmp.ge.f32.partialorder %v31, 0.0
  %v34 = vmul.f32 %v30, 0.2
  %v35 = vmul.f32 %v31, 0.2
  %v36 = vsel %vm32, %v30, %v34
  %v37 = vsel %vm33, %v31, %v35
  %38 = vst [vmem:[%s3] sm:$0xff] %v36
  %39 = vst [vmem:[%s3 + $0x8] sm:$0xff] %v37
  // Predicated region
  $region14: #{patch_discriminator_forward.12} parent=0 // pred_check
    _
  $region15: #{patch_discriminator_forward.12} parent=0 // pred_check_branch
    %41 = sbr.rel (0) target = $region17
  $region16: #{patch_discriminator_forward.12} parent=0 // pred_region
    _
  $region17: #{patch_discriminator_forward.12} parent=0 // pred_fallthru
    _
  // Predicated region
  $region18: #{patch_discriminator_forward.12} parent=0 // pred_check
    _
  $region19: #{patch_discriminator_forward.12} parent=0 // pred_check_branch
    %43 = sbr.rel (0) target = $region21
  $region20: #{patch_discriminator_forward.12} parent=0 // pred_region
    _
  $region21: #{patch_discriminator_forward.12} parent=0 // pred_fallthru
    _

// kernel: patch_discriminator_forward.11
$region0: #{patch_discriminator_forward.11}
  #allocation0 [shape = 'u32[]', space=smem, size = 0x4, offset = 0x4, fixed_abs, tag = 'smem constant byte address 0x4 - core index']
  #allocation1 [shape = 'u32[72,128]{1,0:T(1,128)}', space=vmem, size = 0x9000, scoped, tag = 'internal scratch']
  %s0 = inlined_call_operand.vmem [shape: f32[8,2048], index: 0, kind: input, shape index: {}]
  %s1 = inlined_call_operand.vmem [shape: f32[2048,256], index: 1, kind: input, shape index: {}]
  %s2 = inlined_call_operand.vmem [shape: f32[1,256], index: 2, kind: input, shape index: {}]
  %s3 = inlined_call_operand.vmem [shape: f32[8,256], index: 3, kind: output, shape index: {0}]
  %s4 = inlined_call_operand.vmem [shape: f32[1,2,256], index: 4, kind: output, shape index: {1}]
  %5 = xla_tuple %s3, %s4
  %s6 = sld [smem:[#allocation0]]
  $region30: #{patch_discriminator_forward.11} parent=0
    _
  %s8 = ssub.s32 1, %s6
  %s9 = scalar_select 0, %s8, %s6
  // Predicated region
  $region2: #{patch_discriminator_forward.11} parent=0 // pred_check
    _
  $region3: #{patch_discriminator_forward.11} parent=0 // pred_check_branch
    %11 = sbr.rel (0) target = $region5
  $region4: #{patch_discriminator_forward.11} parent=0 // pred_region
    _
  $region5: #{patch_discriminator_forward.11} parent=0 // pred_fallthru
    _
  // Predicated region
  $region6: #{patch_discriminator_forward.11} parent=0 // pred_check
    _
  $region7: #{patch_discriminator_forward.11} parent=0 // pred_check_branch
    %13 = sbr.rel (0) target = $region9
  $region8: #{patch_discriminator_forward.11} parent=0 // pred_region
    _
  $region9: #{patch_discriminator_forward.11} parent=0 // pred_fallthru
    _
  // Predicated region
  $region10: #{patch_discriminator_forward.11} parent=0 // pred_check
    _
  $region11: #{patch_discriminator_forward.11} parent=0 // pred_check_branch
    %15 = sbr.rel (0) target = $region13
  $region12: #{patch_discriminator_forward.11} parent=0 // pred_region
    _
  $region13: #{patch_discriminator_forward.11} parent=0 // pred_fallthru
    _
  %v16 = vld [vmem:[%s0] sm:$0xff]
  %v17 = vld [vmem:[%s0 + $0x8] sm:$0xff]
  %v18 = vld [vmem:[%s0 + $0x10] sm:$0xff]
  %v19 = vld [vmem:[%s0 + $0x18] sm:$0xff]
  %v20 = vld [vmem:[%s0 + $0x20] sm:$0xff]
  %v21 = vld [vmem:[%s0 + $0x28] sm:$0xff]
  %v22 = vld [vmem:[%s0 + $0x30] sm:$0xff]
  %v23 = vld [vmem:[%s0 + $0x38] sm:$0xff]
  %v24 = vld [vmem:[%s0 + $0x40] sm:$0xff]
  %v25 = vld [vmem:[%s0 + $0x48] sm:$0xff]
  %v26 = vld [vmem:[%s0 + $0x50] sm:$0xff]
  %v27 = vld [vmem:[%s0 + $0x58] sm:$0xff]
  %v28 = vld [vmem:[%s0 + $0x60] sm:$0xff]
  %v29 = vld [vmem:[%s0 + $0x68] sm:$0xff]
  %v30 = vld [vmem:[%s0 + $0x70] sm:$0xff]
  %v31 = vld [vmem:[%s0 + $0x78] sm:$0xff]
  %v32 = vld [vmem:[%s1] sm:$0xff]
  %v33 = vld [vmem:[%s1 + $0x8] sm:$0xff]
  %v34 = vld [vmem:[%s1 + $0x10] sm:$0xff]
  %v35 = vld [vmem:[%s1 + $0x18] sm:$0xff]
  %v36 = vld [vmem:[%s1 + $0x20] sm:$0xff]
  %v37 = vld [vmem:[%s1 + $0x28] sm:$0xff]
  %v38 = vld [vmem:[%s1 + $0x30] sm:$0xff]
  %v39 = vld [vmem:[%s1 + $0x38] sm:$0xff]
  %v40 = vld [vmem:[%s1 + $0x40] sm:$0xff]
  %v41 = vld [vmem:[%s1 + $0x48] sm:$0xff]
  %v42 = vld [vmem:[%s1 + $0x50] sm:$0xff]
  %v43 = vld [vmem:[%s1 + $0x58] sm:$0xff]
  %v44 = vld [vmem:[%s1 + $0x60] sm:$0xff]
  %v45 = vld [vmem:[%s1 + $0x68] sm:$0xff]
  %v46 = vld [vmem:[%s1 + $0x70] sm:$0xff]
  %v47 = vld [vmem:[%s1 + $0x78] sm:$0xff]
  %v48 = vld [vmem:[%s1 + $0x80] sm:$0xff]
  %v49 = vld [vmem:[%s1 + $0x88] sm:$0xff]
  %v50 = vld [vmem:[%s1 + $0x90] sm:$0xff]
  %v51 = vld [vmem:[%s1 + $0x98] sm:$0xff]
  %v52 = vld [vmem:[%s1 + $0xa0] sm:$0xff]
  %v53 = vld [vmem:[%s1 + $0xa8] sm:$0xff]
  %v54 = vld [vmem:[%s1 + $0xb0] sm:$0xff]
  %v55 = vld [vmem:[%s1 + $0xb8] sm:$0xff]
  %v56 = vld [vmem:[%s1 + $0xc0] sm:$0xff]
  %v57 = vld [vmem:[%s1 + $0xc8] sm:$0xff]
  %v58 = vld [vmem:[%s1 + $0xd0] sm:$0xff]
  %v59 = vld [vmem:[%s1 + $0xd8] sm:$0xff]
  %v60 = vld [vmem:[%s1 + $0xe0] sm:$0xff]
  %v61 = vld [vmem:[%s1 + $0xe8] sm:$0xff]
  %v62 = vld [vmem:[%s1 + $0xf0] sm:$0xff]
  %v63 = vld [vmem:[%s1 + $0xf8] sm:$0xff]
  %v64 = vld [vmem:[%s1 + $0x100] sm:$0xff]
  %v65 = vld [vmem:[%s1 + $0x108] sm:$0xff]
  %v66 = vld [vmem:[%s1 + $0x110] sm:$0xff]
  %v67 = vld [vmem:[%s1 + $0x118] sm:$0xff]
  %v68 = vld [vmem:[%s1 + $0x120] sm:$0xff]
  %v69 = vld [vmem:[%s1 + $0x128] sm:$0xff]
  %v70 = vld [vmem:[%s1 + $0x130] sm:$0xff]
  %v71 = vld [vmem:[%s1 + $0x138] sm:$0xff]
  %v72 = vld [vmem:[%s1 + $0x140] sm:$0xff]
  %v73 = vld [vmem:[%s1 + $0x148] sm:$0xff]
  %v74 = vld [vmem:[%s1 + $0x150] sm:$0xff]
  %v75 = vld [vmem:[%s1 + $0x158] sm:$0xff]
  %v76 = vld [vmem:[%s1 + $0x160] sm:$0xff]
  %v77 = vld [vmem:[%s1 + $0x168] sm:$0xff]
  %v78 = vld [vmem:[%s1 + $0x170] sm:$0xff]
  %v79 = vld [vmem:[%s1 + $0x178] sm:$0xff]
  %v80 = vld [vmem:[%s1 + $0x180] sm:$0xff]
  %v81 = vld [vmem:[%s1 + $0x188] sm:$0xff]
  %v82 = vld [vmem:[%s1 + $0x190] sm:$0xff]
  %v83 = vld [vmem:[%s1 + $0x198] sm:$0xff]
  %v84 = vld [vmem:[%s1 + $0x1a0] sm:$0xff]
  %v85 = vld [vmem:[%s1 + $0x1a8] sm:$0xff]
  %v86 = vld [vmem:[%s1 + $0x1b0] sm:$0xff]
  %v87 = vld [vmem:[%s1 + $0x1b8] sm:$0xff]
  %v88 = vld [vmem:[%s1 + $0x1c0] sm:$0xff]
  %v89 = vld [vmem:[%s1 + $0x1c8] sm:$0xff]
  %v90 = vld [vmem:[%s1 + $0x1d0] sm:$0xff]
  %v91 = vld [vmem:[%s1 + $0x1d8] sm:$0xff]
  %v92 = vld [vmem:[%s1 + $0x1e0] sm:$0xff]
  %v93 = vld [vmem:[%s1 + $0x1e8] sm:$0xff]
  %v94 = vld [vmem:[%s1 + $0x1f0] sm:$0xff]
  %v95 = vld [vmem:[%s1 + $0x1f8] sm:$0xff]
  %v96 = vld [vmem:[%s1 + $0x200] sm:$0xff]
  %v97 = vld [vmem:[%s1 + $0x208] sm:$0xff]
  %v98 = vld [vmem:[%s1 + $0x210] sm:$0xff]
  %v99 = vld [vmem:[%s1 + $0x218] sm:$0xff]
  %v100 = vld [vmem:[%s1 + $0x220] sm:$0xff]
  %v101 = vld [vmem:[%s1 + $0x228] sm:$0xff]
  %v102 = vld [vmem:[%s1 + $0x230] sm:$0xff]
  %v103 = vld [vmem:[%s1 + $0x238] sm:$0xff]
  %v104 = vld [vmem:[%s1 + $0x240] sm:$0xff]
  %v105 = vld [vmem:[%s1 + $0x248] sm:$0xff]
  %v106 = vld [vmem:[%s1 + $0x250] sm:$0xff]
  %v107 = vld [vmem:[%s1 + $0x258] sm:$0xff]
  %v108 = vld [vmem:[%s1 + $0x260] sm:$0xff]
  %v109 = vld [vmem:[%s1 + $0x268] sm:$0xff]
  %v110 = vld [vmem:[%s1 + $0x270] sm:$0xff]
  %v111 = vld [vmem:[%s1 + $0x278] sm:$0xff]
  %v112 = vld [vmem:[%s1 + $0x280] sm:$0xff]
  %v113 = vld [vmem:[%s1 + $0x288] sm:$0xff]
  %v114 = vld [vmem:[%s1 + $0x290] sm:$0xff]
  %v115 = vld [vmem:[%s1 + $0x298] sm:$0xff]
  %v116 = vld [vmem:[%s1 + $0x2a0] sm:$0xff]
  %v117 = vld [vmem:[%s1 + $0x2a8] sm:$0xff]
  %v118 = vld [vmem:[%s1 + $0x2b0] sm:$0xff]
  %v119 = vld [vmem:[%s1 + $0x2b8] sm:$0xff]
  %v120 = vld [vmem:[%s1 + $0x2c0] sm:$0xff]
  %v121 = vld [vmem:[%s1 + $0x2c8] sm:$0xff]
  %v122 = vld [vmem:[%s1 + $0x2d0] sm:$0xff]
  %v123 = vld [vmem:[%s1 + $0x2d8] sm:$0xff]
  %v124 = vld [vmem:[%s1 + $0x2e0] sm:$0xff]
  %v125 = vld [vmem:[%s1 + $0x2e8] sm:$0xff]
  %v126 = vld [vmem:[%s1 + $0x2f0] sm:$0xff]
  %v127 = vld [vmem:[%s1 + $0x2f8] sm:$0xff]
  %v128 = vld [vmem:[%s1 + $0x300] sm:$0xff]
  %v129 = vld [vmem:[%s1 + $0x308] sm:$0xff]
  %v130 = vld [vmem:[%s1 + $0x310] sm:$0xff]
  %v131 = vld [vmem:[%s1 + $0x318] sm:$0xff]
  %v132 = vld [vmem:[%s1 + $0x320] sm:$0xff]
  %v133 = vld [vmem:[%s1 + $0x328] sm:$0xff]
  %v134 = vld [vmem:[%s1 + $0x330] sm:$0xff]
  %v135 = vld [vmem:[%s1 + $0x338] sm:$0xff]
  %v136 = vld [vmem:[%s1 + $0x340] sm:$0xff]
  %v137 = vld [vmem:[%s1 + $0x348] sm:$0xff]
  %v138 = vld [vmem:[%s1 + $0x350] sm:$0xff]
  %v139 = vld [vmem:[%s1 + $0x358] sm:$0xff]
  %v140 = vld [vmem:[%s1 + $0x360] sm:$0xff]
  %v141 = vld [vmem:[%s1 + $0x368] sm:$0xff]
  %v142 = vld [vmem:[%s1 + $0x370] sm:$0xff]
  %v143 = vld [vmem:[%s1 + $0x378] sm:$0xff]
  %v144 = vld [vmem:[%s1 + $0x380] sm:$0xff]
  %v145 = vld [vmem:[%s1 + $0x388] sm:$0xff]
  %v146 = vld [vmem:[%s1 + $0x390] sm:$0xff]
  %v147 = vld [vmem:[%s1 + $0x398] sm:$0xff]
  %v148 = vld [vmem:[%s1 + $0x3a0] sm:$0xff]
  %v149 = vld [vmem:[%s1 + $0x3a8] sm:$0xff]
  %v150 = vld [vmem:[%s1 + $0x3b0] sm:$0xff]
  %v151 = vld [vmem:[%s1 + $0x3b8] sm:$0xff]
  %v152 = vld [vmem:[%s1 + $0x3c0] sm:$0xff]
  %v153 = vld [vmem:[%s1 + $0x3c8] sm:$0xff]
  %v154 = vld [vmem:[%s1 + $0x3d0] sm:$0xff]
  %v155 = vld [vmem:[%s1 + $0x3d8] sm:$0xff]
  %v156 = vld [vmem:[%s1 + $0x3e0] sm:$0xff]
  %v157 = vld [vmem:[%s1 + $0x3e8] sm:$0xff]
  %v158 = vld [vmem:[%s1 + $0x3f0] sm:$0xff]
  %v159 = vld [vmem:[%s1 + $0x3f8] sm:$0xff]
  %v160 = vld [vmem:[%s1 + $0x400] sm:$0xff]
  %v161 = vld [vmem:[%s1 + $0x408] sm:$0xff]
  %v162 = vld [vmem:[%s1 + $0x410] sm:$0xff]
  %v163 = vld [vmem:[%s1 + $0x418] sm:$0xff]
  %v164 = vld [vmem:[%s1 + $0x420] sm:$0xff]
  %v165 = vld [vmem:[%s1 + $0x428] sm:$0xff]
  %v166 = vld [vmem:[%s1 + $0x430] sm:$0xff]
  %v167 = vld [vmem:[%s1 + $0x438] sm:$0xff]
  %v168 = vld [vmem:[%s1 + $0x440] sm:$0xff]
  %v169 = vld [vmem:[%s1 + $0x448] sm:$0xff]
  %v170 = vld [vmem:[%s1 + $0x450] sm:$0xff]
  %v171 = vld [vmem:[%s1 + $0x458] sm:$0xff]
  %v172 = vld [vmem:[%s1 + $0x460] sm:$0xff]
  %v173 = vld [vmem:[%s1 + $0x468] sm:$0xff]
  %v174 = vld [vmem:[%s1 + $0x470] sm:$0xff]
  %v175 = vld [vmem:[%s1 + $0x478] sm:$0xff]
  %v176 = vld [vmem:[%s1 + $0x480] sm:$0xff]
  %v177 = vld [vmem:[%s1 + $0x488] sm:$0xff]
  %v178 = vld [vmem:[%s1 + $0x490] sm:$0xff]
  %v179 = vld [vmem:[%s1 + $0x498] sm:$0xff]
  %v180 = vld [vmem:[%s1 + $0x4a0] sm:$0xff]
  %v181 = vld [vmem:[%s1 + $0x4a8] sm:$0xff]
  %v182 = vld [vmem:[%s1 + $0x4b0] sm:$0xff]
  %v183 = vld [vmem:[%s1 + $0x4b8] sm:$0xff]
  %v184 = vld [vmem:[%s1 + $0x4c0] sm:$0xff]
  %v185 = vld [vmem:[%s1 + $0x4c8] sm:$0xff]
  %v186 = vld [vmem:[%s1 + $0x4d0] sm:$0xff]
  %v187 = vld [vmem:[%s1 + $0x4d8] sm:$0xff]
  %v188 = vld [vmem:[%s1 + $0x4e0] sm:$0xff]
  %v189 = vld [vmem:[%s1 + $0x4e8] sm:$0xff]
  %v190 = vld [vmem:[%s1 + $0x4f0] sm:$0xff]
  %v191 = vld [vmem:[%s1 + $0x4f8] sm:$0xff]
  %v192 = vld [vmem:[%s1 + $0x500] sm:$0xff]
  %v193 = vld [vmem:[%s1 + $0x508] sm:$0xff]
  %v194 = vld [vmem:[%s1 + $0x510] sm:$0xff]
  %v195 = vld [vmem:[%s1 + $0x518] sm:$0xff]
  %v196 = vld [vmem:[%s1 + $0x520] sm:$0xff]
  %v197 = vld [vmem:[%s1 + $0x528] sm:$0xff]
  %v198 = vld [vmem:[%s1 + $0x530] sm:$0xff]
  %v199 = vld [vmem:[%s1 + $0x538] sm:$0xff]
  %v200 = vld [vmem:[%s1 + $0x540] sm:$0xff]
  %v201 = vld [vmem:[%s1 + $0x548] sm:$0xff]
  %v202 = vld [vmem:[%s1 + $0x550] sm:$0xff]
  %v203 = vld [vmem:[%s1 + $0x558] sm:$0xff]
  %v204 = vld [vmem:[%s1 + $0x560] sm:$0xff]
  %v205 = vld [vmem:[%s1 + $0x568] sm:$0xff]
  %v206 = vld [vmem:[%s1 + $0x570] sm:$0xff]
  %v207 = vld [vmem:[%s1 + $0x578] sm:$0xff]
  %v208 = vld [vmem:[%s1 + $0x580] sm:$0xff]
  %v209 = vld [vmem:[%s1 + $0x588] sm:$0xff]
  %v210 = vld [vmem:[%s1 + $0x590] sm:$0xff]
  %v211 = vld [vmem:[%s1 + $0x598] sm:$0xff]
  %v212 = vld [vmem:[%s1 + $0x5a0] sm:$0xff]
  %v213 = vld [vmem:[%s1 + $0x5a8] sm:$0xff]
  %v214 = vld [vmem:[%s1 + $0x5b0] sm:$0xff]
  %v215 = vld [vmem:[%s1 + $0x5b8] sm:$0xff]
  %v216 = vld [vmem:[%s1 + $0x5c0] sm:$0xff]
  %v217 = vld [vmem:[%s1 + $0x5c8] sm:$0xff]
  %v218 = vld [vmem:[%s1 + $0x5d0] sm:$0xff]
  %v219 = vld [vmem:[%s1 + $0x5d8] sm:$0xff]
  %v220 = vld [vmem:[%s1 + $0x5e0] sm:$0xff]
  %v221 = vld [vmem:[%s1 + $0x5e8] sm:$0xff]
  %v222 = vld [vmem:[%s1 + $0x5f0] sm:$0xff]
  %v223 = vld [vmem:[%s1 + $0x5f8] sm:$0xff]
  %v224 = vld [vmem:[%s1 + $0x600] sm:$0xff]
  %v225 = vld [vmem:[%s1 + $0x608] sm:$0xff]
  %v226 = vld [vmem:[%s1 + $0x610] sm:$0xff]
  %v227 = vld [vmem:[%s1 + $0x618] sm:$0xff]
  %v228 = vld [vmem:[%s1 + $0x620] sm:$0xff]
  %v229 = vld [vmem:[%s1 + $0x628] sm:$0xff]
  %v230 = vld [vmem:[%s1 + $0x630] sm:$0xff]
  %v231 = vld [vmem:[%s1 + $0x638] sm:$0xff]
  %v232 = vld [vmem:[%s1 + $0x640] sm:$0xff]
  %v233 = vld [vmem:[%s1 + $0x648] sm:$0xff]
  %v234 = vld [vmem:[%s1 + $0x650] sm:$0xff]
  %v235 = vld [vmem:[%s1 + $0x658] sm:$0xff]
  %v236 = vld [vmem:[%s1 + $0x660] sm:$0xff]
  %v237 = vld [vmem:[%s1 + $0x668] sm:$0xff]
  %v238 = vld [vmem:[%s1 + $0x670] sm:$0xff]
  %v239 = vld [vmem:[%s1 + $0x678] sm:$0xff]
  %v240 = vld [vmem:[%s1 + $0x680] sm:$0xff]
  %v241 = vld [vmem:[%s1 + $0x688] sm:$0xff]
  %v242 = vld [vmem:[%s1 + $0x690] sm:$0xff]
  %v243 = vld [vmem:[%s1 + $0x698] sm:$0xff]
  %v244 = vld [vmem:[%s1 + $0x6a0] sm:$0xff]
  %v245 = vld [vmem:[%s1 + $0x6a8] sm:$0xff]
  %v246 = vld [vmem:[%s1 + $0x6b0] sm:$0xff]
  %v247 = vld [vmem:[%s1 + $0x6b8] sm:$0xff]
  %v248 = vld [vmem:[%s1 + $0x6c0] sm:$0xff]
  %v249 = vld [vmem:[%s1 + $0x6c8] sm:$0xff]
  %v250 = vld [vmem:[%s1 + $0x6d0] sm:$0xff]
  %v251 = vld [vmem:[%s1 + $0x6d8] sm:$0xff]
  %v252 = vld [vmem:[%s1 + $0x6e0] sm:$0xff]
  %v253 = vld [vmem:[%s1 + $0x6e8] sm:$0xff]
  %v254 = vld [vmem:[%s1 + $0x6f0] sm:$0xff]
  %v255 = vld [vmem:[%s1 + $0x6f8] sm:$0xff]
  %v256 = vld [vmem:[%s1 + $0x700] sm:$0xff]
  %v257 = vld [vmem:[%s1 + $0x708] sm:$0xff]
  %v258 = vld [vmem:[%s1 + $0x710] sm:$0xff]
  %v259 = vld [vmem:[%s1 + $0x718] sm:$0xff]
  %v260 = vld [vmem:[%s1 + $0x720] sm:$0xff]
  %v261 = vld [vmem:[%s1 + $0x728] sm:$0xff]
  %v262 = vld [vmem:[%s1 + $0x730] sm:$0xff]
  %v263 = vld [vmem:[%s1 + $0x738] sm:$0xff]
  %v264 = vld [vmem:[%s1 + $0x740] sm:$0xff]
  %v265 = vld [vmem:[%s1 + $0x748] sm:$0xff]
  %v266 = vld [vmem:[%s1 + $0x750] sm:$0xff]
  %v267 = vld [vmem:[%s1 + $0x758] sm:$0xff]
  %v268 = vld [vmem:[%s1 + $0x760] sm:$0xff]
  %v269 = vld [vmem:[%s1 + $0x768] sm:$0xff]
  %v270 = vld [vmem:[%s1 + $0x770] sm:$0xff]
  %v271 = vld [vmem:[%s1 + $0x778] sm:$0xff]
  %v272 = vld [vmem:[%s1 + $0x780] sm:$0xff]
  %v273 = vld [vmem:[%s1 + $0x788] sm:$0xff]
  %v274 = vld [vmem:[%s1 + $0x790] sm:$0xff]
  %v275 = vld [vmem:[%s1 + $0x798] sm:$0xff]
  %v276 = vld [vmem:[%s1 + $0x7a0] sm:$0xff]
  %v277 = vld [vmem:[%s1 + $0x7a8] sm:$0xff]
  %v278 = vld [vmem:[%s1 + $0x7b0] sm:$0xff]
  %v279 = vld [vmem:[%s1 + $0x7b8] sm:$0xff]
  %v280 = vld [vmem:[%s1 + $0x7c0] sm:$0xff]
  %v281 = vld [vmem:[%s1 + $0x7c8] sm:$0xff]
  %v282 = vld [vmem:[%s1 + $0x7d0] sm:$0xff]
  %v283 = vld [vmem:[%s1 + $0x7d8] sm:$0xff]
  %v284 = vld [vmem:[%s1 + $0x7e0] sm:$0xff]
  %v285 = vld [vmem:[%s1 + $0x7e8] sm:$0xff]
  %v286 = vld [vmem:[%s1 + $0x7f0] sm:$0xff]
  %v287 = vld [vmem:[%s1 + $0x7f8] sm:$0xff]
  %v288 = vld [vmem:[%s1 + $0x800] sm:$0xff]
  %v289 = vld [vmem:[%s1 + $0x808] sm:$0xff]
  %v290 = vld [vmem:[%s1 + $0x810] sm:$0xff]
  %v291 = vld [vmem:[%s1 + $0x818] sm:$0xff]
  %v292 = vld [vmem:[%s1 + $0x820] sm:$0xff]
  %v293 = vld [vmem:[%s1 + $0x828] sm:$0xff]
  %v294 = vld [vmem:[%s1 + $0x830] sm:$0xff]
  %v295 = vld [vmem:[%s1 + $0x838] sm:$0xff]
  %v296 = vld [vmem:[%s1 + $0x840] sm:$0xff]
  %v297 = vld [vmem:[%s1 + $0x848] sm:$0xff]
  %v298 = vld [vmem:[%s1 + $0x850] sm:$0xff]
  %v299 = vld [vmem:[%s1 + $0x858] sm:$0xff]
  %v300 = vld [vmem:[%s1 + $0x860] sm:$0xff]
  %v301 = vld [vmem:[%s1 + $0x868] sm:$0xff]
  %v302 = vld [vmem:[%s1 + $0x870] sm:$0xff]
  %v303 = vld [vmem:[%s1 + $0x878] sm:$0xff]
  %v304 = vld [vmem:[%s1 + $0x880] sm:$0xff]
  %v305 = vld [vmem:[%s1 + $0x888] sm:$0xff]
  %v306 = vld [vmem:[%s1 + $0x890] sm:$0xff]
  %v307 = vld [vmem:[%s1 + $0x898] sm:$0xff]
  %v308 = vld [vmem:[%s1 + $0x8a0] sm:$0xff]
  %v309 = vld [vmem:[%s1 + $0x8a8] sm:$0xff]
  %v310 = vld [vmem:[%s1 + $0x8b0] sm:$0xff]
  %v311 = vld [vmem:[%s1 + $0x8b8] sm:$0xff]
  %v312 = vld [vmem:[%s1 + $0x8c0] sm:$0xff]
  %v313 = vld [vmem:[%s1 + $0x8c8] sm:$0xff]
  %v314 = vld [vmem:[%s1 + $0x8d0] sm:$0xff]
  %v315 = vld [vmem:[%s1 + $0x8d8] sm:$0xff]
  %v316 = vld [vmem:[%s1 + $0x8e0] sm:$0xff]
  %v317 = vld [vmem:[%s1 + $0x8e8] sm:$0xff]
  %v318 = vld [vmem:[%s1 + $0x8f0] sm:$0xff]
  %v319 = vld [vmem:[%s1 + $0x8f8] sm:$0xff]
  %v320 = vld [vmem:[%s1 + $0x900] sm:$0xff]
  %v321 = vld [vmem:[%s1 + $0x908] sm:$0xff]
  %v322 = vld [vmem:[%s1 + $0x910] sm:$0xff]
  %v323 = vld [vmem:[%s1 + $0x918] sm:$0xff]
  %v324 = vld [vmem:[%s1 + $0x920] sm:$0xff]
  %v325 = vld [vmem:[%s1 + $0x928] sm:$0xff]
  %v326 = vld [vmem:[%s1 + $0x930] sm:$0xff]
  %v327 = vld [vmem:[%s1 + $0x938] sm:$0xff]
  %v328 = vld [vmem:[%s1 + $0x940] sm:$0xff]
  %v329 = vld [vmem:[%s1 + $0x948] sm:$0xff]
  %v330 = vld [vmem:[%s1 + $0x950] sm:$0xff]
  %v331 = vld [vmem:[%s1 + $0x958] sm:$0xff]
  %v332 = vld [vmem:[%s1 + $0x960] sm:$0xff]
  %v333 = vld [vmem:[%s1 + $0x968] sm:$0xff]
  %v334 = vld [vmem:[%s1 + $0x970] sm:$0xff]
  %v335 = vld [vmem:[%s1 + $0x978] sm:$0xff]
  %v336 = vld [vmem:[%s1 + $0x980] sm:$0xff]
  %v337 = vld [vmem:[%s1 + $0x988] sm:$0xff]
  %v338 = vld [vmem:[%s1 + $0x990] sm:$0xff]
  %v339 = vld [vmem:[%s1 + $0x998] sm:$0xff]
  %v340 = vld [vmem:[%s1 + $0x9a0] sm:$0xff]
  %v341 = vld [vmem:[%s1 + $0x9a8] sm:$0xff]
  %v342 = vld [vmem:[%s1 + $0x9b0] sm:$0xff]
  %v343 = vld [vmem:[%s1 + $0x9b8] sm:$0xff]
  %v344 = vld [vmem:[%s1 + $0x9c0] sm:$0xff]
  %v345 = vld [vmem:[%s1 + $0x9c8] sm:$0xff]
  %v346 = vld [vmem:[%s1 + $0x9d0] sm:$0xff]
  %v347 = vld [vmem:[%s1 + $0x9d8] sm:$0xff]
  %v348 = vld [vmem:[%s1 + $0x9e0] sm:$0xff]
  %v349 = vld [vmem:[%s1 + $0x9e8] sm:$0xff]
  %v350 = vld [vmem:[%s1 + $0x9f0] sm:$0xff]
  %v351 = vld [vmem:[%s1 + $0x9f8] sm:$0xff]
  %v352 = vld [vmem:[%s1 + $0xa00] sm:$0xff]
  %v353 = vld [vmem:[%s1 + $0xa08] sm:$0xff]
  %v354 = vld [vmem:[%s1 + $0xa10] sm:$0xff]
  %v355 = vld [vmem:[%s1 + $0xa18] sm:$0xff]
  %v356 = vld [vmem:[%s1 + $0xa20] sm:$0xff]
  %v357 = vld [vmem:[%s1 + $0xa28] sm:$0xff]
  %v358 = vld [vmem:[%s1 + $0xa30] sm:$0xff]
  %v359 = vld [vmem:[%s1 + $0xa38] sm:$0xff]
  %v360 = vld [vmem:[%s1 + $0xa40] sm:$0xff]
  %v361 = vld [vmem:[%s1 + $0xa48] sm:$0xff]
  %v362 = vld [vmem:[%s1 + $0xa50] sm:$0xff]
  %v363 = vld [vmem:[%s1 + $0xa58] sm:$0xff]
  %v364 = vld [vmem:[%s1 + $0xa60] sm:$0xff]
  %v365 = vld [vmem:[%s1 + $0xa68] sm:$0xff]
  %v366 = vld [vmem:[%s1 + $0xa70] sm:$0xff]
  %v367 = vld [vmem:[%s1 + $0xa78] sm:$0xff]
  %v368 = vld [vmem:[%s1 + $0xa80] sm:$0xff]
  %v369 = vld [vmem:[%s1 + $0xa88] sm:$0xff]
  %v370 = vld [vmem:[%s1 + $0xa90] sm:$0xff]
  %v371 = vld [vmem:[%s1 + $0xa98] sm:$0xff]
  %v372 = vld [vmem:[%s1 + $0xaa0] sm:$0xff]
  %v373 = vld [vmem:[%s1 + $0xaa8] sm:$0xff]
  %v374 = vld [vmem:[%s1 + $0xab0] sm:$0xff]
  %v375 = vld [vmem:[%s1 + $0xab8] sm:$0xff]
  %v376 = vld [vmem:[%s1 + $0xac0] sm:$0xff]
  %v377 = vld [vmem:[%s1 + $0xac8] sm:$0xff]
  %v378 = vld [vmem:[%s1 + $0xad0] sm:$0xff]
  %v379 = vld [vmem:[%s1 + $0xad8] sm:$0xff]
  %v380 = vld [vmem:[%s1 + $0xae0] sm:$0xff]
  %v381 = vld [vmem:[%s1 + $0xae8] sm:$0xff]
  %v382 = vld [vmem:[%s1 + $0xaf0] sm:$0xff]
  %v383 = vld [vmem:[%s1 + $0xaf8] sm:$0xff]
  %v384 = vld [vmem:[%s1 + $0xb00] sm:$0xff]
  %v385 = vld [vmem:[%s1 + $0xb08] sm:$0xff]
  %v386 = vld [vmem:[%s1 + $0xb10] sm:$0xff]
  %v387 = vld [vmem:[%s1 + $0xb18] sm:$0xff]
  %v388 = vld [vmem:[%s1 + $0xb20] sm:$0xff]
  %v389 = vld [vmem:[%s1 + $0xb28] sm:$0xff]
  %v390 = vld [vmem:[%s1 + $0xb30] sm:$0xff]
  %v391 = vld [vmem:[%s1 + $0xb38] sm:$0xff]
  %v392 = vld [vmem:[%s1 + $0xb40] sm:$0xff]
  %v393 = vld [vmem:[%s1 + $0xb48] sm:$0xff]
  %v394 = vld [vmem:[%s1 + $0xb50] sm:$0xff]
  %v395 = vld [vmem:[%s1 + $0xb58] sm:$0xff]
  %v396 = vld [vmem:[%s1 + $0xb60] sm:$0xff]
  %v397 = vld [vmem:[%s1 + $0xb68] sm:$0xff]
  %v398 = vld [vmem:[%s1 + $0xb70] sm:$0xff]
  %v399 = vld [vmem:[%s1 + $0xb78] sm:$0xff]
  %v400 = vld [vmem:[%s1 + $0xb80] sm:$0xff]
  %v401 = vld [vmem:[%s1 + $0xb88] sm:$0xff]
  %v402 = vld [vmem:[%s1 + $0xb90] sm:$0xff]
  %v403 = vld [vmem:[%s1 + $0xb98] sm:$0xff]
  %v404 = vld [vmem:[%s1 + $0xba0] sm:$0xff]
  %v405 = vld [vmem:[%s1 + $0xba8] sm:$0xff]
  %v406 = vld [vmem:[%s1 + $0xbb0] sm:$0xff]
  %v407 = vld [vmem:[%s1 + $0xbb8] sm:$0xff]
  %v408 = vld [vmem:[%s1 + $0xbc0] sm:$0xff]
  %v409 = vld [vmem:[%s1 + $0xbc8] sm:$0xff]
  %v410 = vld [vmem:[%s1 + $0xbd0] sm:$0xff]
  %v411 = vld [vmem:[%s1 + $0xbd8] sm:$0xff]
  %v412 = vld [vmem:[%s1 + $0xbe0] sm:$0xff]
  %v413 = vld [vmem:[%s1 + $0xbe8] sm:$0xff]
  %v414 = vld [vmem:[%s1 + $0xbf0] sm:$0xff]
  %v415 = vld [vmem:[%s1 + $0xbf8] sm:$0xff]
  %v416 = vld [vmem:[%s1 + $0xc00] sm:$0xff]
  %v417 = vld [vmem:[%s1 + $0xc08] sm:$0xff]
  %v418 = vld [vmem:[%s1 + $0xc10] sm:$0xff]
  %v419 = vld [vmem:[%s1 + $0xc18] sm:$0xff]
  %v420 = vld [vmem:[%s1 + $0xc20] sm:$0xff]
  %v421 = vld [vmem:[%s1 + $0xc28] sm:$0xff]
  %v422 = vld [vmem:[%s1 + $0xc30] sm:$0xff]
  %v423 = vld [vmem:[%s1 + $0xc38] sm:$0xff]
  %v424 = vld [vmem:[%s1 + $0xc40] sm:$0xff]
  %v425 = vld [vmem:[%s1 + $0xc48] sm:$0xff]
  %v426 = vld [vmem:[%s1 + $0xc50] sm:$0xff]
  %v427 = vld [vmem:[%s1 + $0xc58] sm:$0xff]
  %v428 = vld [vmem:[%s1 + $0xc60] sm:$0xff]
  %v429 = vld [vmem:[%s1 + $0xc68] sm:$0xff]
  %v430 = vld [vmem:[%s1 + $0xc70] sm:$0xff]
  %v431 = vld [vmem:[%s1 + $0xc78] sm:$0xff]
  %v432 = vld [vmem:[%s1 + $0xc80] sm:$0xff]
  %v433 = vld [vmem:[%s1 + $0xc88] sm:$0xff]
  %v434 = vld [vmem:[%s1 + $0xc90] sm:$0xff]
  %v435 = vld [vmem:[%s1 + $0xc98] sm:$0xff]
  %v436 = vld [vmem:[%s1 + $0xca0] sm:$0xff]
  %v437 = vld [vmem:[%s1 + $0xca8] sm:$0xff]
  %v438 = vld [vmem:[%s1 + $0xcb0] sm:$0xff]
  %v439 = vld [vmem:[%s1 + $0xcb8] sm:$0xff]
  %v440 = vld [vmem:[%s1 + $0xcc0] sm:$0xff]
  %v441 = vld [vmem:[%s1 + $0xcc8] sm:$0xff]
  %v442 = vld [vmem:[%s1 + $0xcd0] sm:$0xff]
  %v443 = vld [vmem:[%s1 + $0xcd8] sm:$0xff]
  %v444 = vld [vmem:[%s1 + $0xce0] sm:$0xff]
  %v445 = vld [vmem:[%s1 + $0xce8] sm:$0xff]
  %v446 = vld [vmem:[%s1 + $0xcf0] sm:$0xff]
  %v447 = vld [vmem:[%s1 + $0xcf8] sm:$0xff]
  %v448 = vld [vmem:[%s1 + $0xd00] sm:$0xff]
  %v449 = vld [vmem:[%s1 + $0xd08] sm:$0xff]
  %v450 = vld [vmem:[%s1 + $0xd10] sm:$0xff]
  %v451 = vld [vmem:[%s1 + $0xd18] sm:$0xff]
  %v452 = vld [vmem:[%s1 + $0xd20] sm:$0xff]
  %v453 = vld [vmem:[%s1 + $0xd28] sm:$0xff]
  %v454 = vld [vmem:[%s1 + $0xd30] sm:$0xff]
  %v455 = vld [vmem:[%s1 + $0xd38] sm:$0xff]
  %v456 = vld [vmem:[%s1 + $0xd40] sm:$0xff]
  %v457 = vld [vmem:[%s1 + $0xd48] sm:$0xff]
  %v458 = vld [vmem:[%s1 + $0xd50] sm:$0xff]
  %v459 = vld [vmem:[%s1 + $0xd58] sm:$0xff]
  %v460 = vld [vmem:[%s1 + $0xd60] sm:$0xff]
  %v461 = vld [vmem:[%s1 + $0xd68] sm:$0xff]
  %v462 = vld [vmem:[%s1 + $0xd70] sm:$0xff]
  %v463 = vld [vmem:[%s1 + $0xd78] sm:$0xff]
  %v464 = vld [vmem:[%s1 + $0xd80] sm:$0xff]
  %v465 = vld [vmem:[%s1 + $0xd88] sm:$0xff]
  %v466 = vld [vmem:[%s1 + $0xd90] sm:$0xff]
  %v467 = vld [vmem:[%s1 + $0xd98] sm:$0xff]
  %v468 = vld [vmem:[%s1 + $0xda0] sm:$0xff]
  %v469 = vld [vmem:[%s1 + $0xda8] sm:$0xff]
  %v470 = vld [vmem:[%s1 + $0xdb0] sm:$0xff]
  %v471 = vld [vmem:[%s1 + $0xdb8] sm:$0xff]
  %v472 = vld [vmem:[%s1 + $0xdc0] sm:$0xff]
  %v473 = vld [vmem:[%s1 + $0xdc8] sm:$0xff]
  %v474 = vld [vmem:[%s1 + $0xdd0] sm:$0xff]
  %v475 = vld [vmem:[%s1 + $0xdd8] sm:$0xff]
  %v476 = vld [vmem:[%s1 + $0xde0] sm:$0xff]
  %v477 = vld [vmem:[%s1 + $0xde8] sm:$0xff]
  %v478 = vld [vmem:[%s1 + $0xdf0] sm:$0xff]
  %v479 = vld [vmem:[%s1 + $0xdf8] sm:$0xff]
  %v480 = vld [vmem:[%s1 + $0xe00] sm:$0xff]
  %v481 = vld [vmem:[%s1 + $0xe08] sm:$0xff]
  %v482 = vld [vmem:[%s1 + $0xe10] sm:$0xff]
  %v483 = vld [vmem:[%s1 + $0xe18] sm:$0xff]
  %v484 = vld [vmem:[%s1 + $0xe20] sm:$0xff]
  %v485 = vld [vmem:[%s1 + $0xe28] sm:$0xff]
  %v486 = vld [vmem:[%s1 + $0xe30] sm:$0xff]
  %v487 = vld [vmem:[%s1 + $0xe38] sm:$0xff]
  %v488 = vld [vmem:[%s1 + $0xe40] sm:$0xff]
  %v489 = vld [vmem:[%s1 + $0xe48] sm:$0xff]
  %v490 = vld [vmem:[%s1 + $0xe50] sm:$0xff]
  %v491 = vld [vmem:[%s1 + $0xe58] sm:$0xff]
  %v492 = vld [vmem:[%s1 + $0xe60] sm:$0xff]
  %v493 = vld [vmem:[%s1 + $0xe68] sm:$0xff]
  %v494 = vld [vmem:[%s1 + $0xe70] sm:$0xff]
  %v495 = vld [vmem:[%s1 + $0xe78] sm:$0xff]
  %v496 = vld [vmem:[%s1 + $0xe80] sm:$0xff]
  %v497 = vld [vmem:[%s1 + $0xe88] sm:$0xff]
  %v498 = vld [vmem:[%s1 + $0xe90] sm:$0xff]
  %v499 = vld [vmem:[%s1 + $0xe98] sm:$0xff]
  %v500 = vld [vmem:[%s1 + $0xea0] sm:$0xff]
  %v501 = vld [vmem:[%s1 + $0xea8] sm:$0xff]
  %v502 = vld [vmem:[%s1 + $0xeb0] sm:$0xff]
  %v503 = vld [vmem:[%s1 + $0xeb8] sm:$0xff]
  %v504 = vld [vmem:[%s1 + $0xec0] sm:$0xff]
  %v505 = vld [vmem:[%s1 + $0xec8] sm:$0xff]
  %v506 = vld [vmem:[%s1 + $0xed0] sm:$0xff]
  %v507 = vld [vmem:[%s1 + $0xed8] sm:$0xff]
  %v508 = vld [vmem:[%s1 + $0xee0] sm:$0xff]
  %v509 = vld [vmem:[%s1 + $0xee8] sm:$0xff]
  %v510 = vld [vmem:[%s1 + $0xef0] sm:$0xff]
  %v511 = vld [vmem:[%s1 + $0xef8] sm:$0xff]
  %v512 = vld [vmem:[%s1 + $0xf00] sm:$0xff]
  %v513 = vld [vmem:[%s1 + $0xf08] sm:$0xff]
  %v514 = vld [vmem:[%s1 + $0xf10] sm:$0xff]
  %v515 = vld [vmem:[%s1 + $0xf18] sm:$0xff]
  %v516 = vld [vmem:[%s1 + $0xf20] sm:$0xff]
  %v517 = vld [vmem:[%s1 + $0xf28] sm:$0xff]
  %v518 = vld [vmem:[%s1 + $0xf30] sm:$0xff]
  %v519 = vld [vmem:[%s1 + $0xf38] sm:$0xff]
  %v520 = vld [vmem:[%s1 + $0xf40] sm:$0xff]
  %v521 = vld [vmem:[%s1 + $0xf48] sm:$0xff]
  %v522 = vld [vmem:[%s1 + $0xf50] sm:$0xff]
  %v523 = vld [vmem:[%s1 + $0xf58] sm:$0xff]
  %v524 = vld [vmem:[%s1 + $0xf60] sm:$0xff]
  %v525 = vld [vmem:[%s1 + $0xf68] sm:$0xff]
  %v526 = vld [vmem:[%s1 + $0xf70] sm:$0xff]
  %v527 = vld [vmem:[%s1 + $0xf78] sm:$0xff]
  %v528 = vld [vmem:[%s1 + $0xf80] sm:$0xff]
  %v529 = vld [vmem:[%s1 + $0xf88] sm:$0xff]
  %v530 = vld [vmem:[%s1 + $0xf90] sm:$0xff]
  %v531 = vld [vmem:[%s1 + $0xf98] sm:$0xff]
  %v532 = vld [vmem:[%s1 + $0xfa0] sm:$0xff]
  %v533 = vld [vmem:[%s1 + $0xfa8] sm:$0xff]
  %v534 = vld [vmem:[%s1 + $0xfb0] sm:$0xff]
  %v535 = vld [vmem:[%s1 + $0xfb8] sm:$0xff]
  %v536 = vld [vmem:[%s1 + $0xfc0] sm:$0xff]
  %v537 = vld [vmem:[%s1 + $0xfc8] sm:$0xff]
  %v538 = vld [vmem:[%s1 + $0xfd0] sm:$0xff]
  %v539 = vld [vmem:[%s1 + $0xfd8] sm:$0xff]
  %v540 = vld [vmem:[%s1 + $0xfe0] sm:$0xff]
  %v541 = vld [vmem:[%s1 + $0xfe8] sm:$0xff]
  %v542 = vld [vmem:[%s1 + $0xff0] sm:$0xff]
  %v543 = vld [vmem:[%s1 + $0xff8] sm:$0xff]
  %v544 = vld [vmem:[%s2] sm:$0x3]
  %v546 = vperm.slane %v544, 0
  %v547 = vperm.slane %v544, 1
  %550 = vmatpush.msra.mxu0 %v62
  %551 = vmatpush.msra.mxu0 %v60
  %552 = vmatpush.msra.mxu0 %v58
  %553 = vmatpush.msra.mxu0 %v56
  %554 = vmatpush.msra.mxu0 %v54
  %555 = vmatpush.msra.mxu0 %v52
  %556 = vmatpush.msra.mxu0 %v50
  %557 = vmatpush.msra.mxu0 %v48
  %558 = vmatpush.msra.mxu0 %v46
  %559 = vmatpush.msra.mxu0 %v44
  %560 = vmatpush.msra.mxu0 %v42
  %561 = vmatpush.msra.mxu0 %v40
  %562 = vmatpush.msra.mxu0 %v38
  %563 = vmatpush.msra.mxu0 %v36
  %564 = vmatpush.msra.mxu0 %v34
  %565 = vmatpush.msra.mxu0 %v32
  %566 = vmatmul.f32.gmra.mxu0 %v16
  %v567 = vpop.f32.mrf.mxu0
  %v568 = vadd.f32 %v546, %v567
  %569 = vdwg.mxu0
  %570 = vmatpush.msra.mxu0 %v94
  %571 = vmatpush.msra.mxu0 %v92
  %572 = vmatpush.msra.mxu0 %v90
  %573 = vmatpush.msra.mxu0 %v88
  %574 = vmatpush.msra.mxu0 %v86
  %575 = vmatpush.msra.mxu0 %v84
  %576 = vmatpush.msra.mxu0 %v82
  %577 = vmatpush.msra.mxu0 %v80
  %578 = vmatpush.msra.mxu0 %v78
  %579 = vmatpush.msra.mxu0 %v76
  %580 = vmatpush.msra.mxu0 %v74
  %581 = vmatpush.msra.mxu0 %v72
  %582 = vmatpush.msra.mxu0 %v70
  %583 = vmatpush.msra.mxu0 %v68
  %584 = vmatpush.msra.mxu0 %v66
  %585 = vmatpush.msra.mxu0 %v64
  %586 = vmatmul.f32.gmra.mxu0 %v17
  %v587 = vpop.f32.mrf.mxu0
  %v588 = vadd.f32 %v568, %v587
  %589 = vdwg.mxu0
  %590 = vmatpush.msra.mxu0 %v126
  %591 = vmatpush.msra.mxu0 %v124
  %592 = vmatpush.msra.mxu0 %v122
  %593 = vmatpush.msra.mxu0 %v120
  %594 = vmatpush.msra.mxu0 %v118
  %595 = vmatpush.msra.mxu0 %v116
  %596 = vmatpush.msra.mxu0 %v114
  %597 = vmatpush.msra.mxu0 %v112
  %598 = vmatpush.msra.mxu0 %v110
  %599 = vmatpush.msra.mxu0 %v108
  %600 = vmatpush.msra.mxu0 %v106
  %601 = vmatpush.msra.mxu0 %v104
  %602 = vmatpush.msra.mxu0 %v102
  %603 = vmatpush.msra.mxu0 %v100
  %604 = vmatpush.msra.mxu0 %v98
  %605 = vmatpush.msra.mxu0 %v96
  %606 = vmatmul.f32.gmra.mxu0 %v18
  %v607 = vpop.f32.mrf.mxu0
  %v608 = vadd.f32 %v588, %v607
  %609 = vdwg.mxu0
  %610 = vmatpush.msra.mxu0 %v158
  %611 = vmatpush.msra.mxu0 %v156
  %612 = vmatpush.msra.mxu0 %v154
  %613 = vmatpush.msra.mxu0 %v152
  %614 = vmatpush.msra.mxu0 %v150
  %615 = vmatpush.msra.mxu0 %v148
  %616 = vmatpush.msra.mxu0 %v146
  %617 = vmatpush.msra.mxu0 %v144
  %618 = vmatpush.msra.mxu0 %v142
  %619 = vmatpush.msra.mxu0 %v140
  %620 = vmatpush.msra.mxu0 %v138
  %621 = vmatpush.msra.mxu0 %v136
  %622 = vmatpush.msra.mxu0 %v134
  %623 = vmatpush.msra.mxu0 %v132
  %624 = vmatpush.msra.mxu0 %v130
  %625 = vmatpush.msra.mxu0 %v128
  %626 = vmatmul.f32.gmra.mxu0 %v19
  %v627 = vpop.f32.mrf.mxu0
  %v628 = vadd.f32 %v608, %v627
  %629 = vdwg.mxu0
  %630 = vmatpush.msra.mxu0 %v190
  %631 = vmatpush.msra.mxu0 %v188
  %632 = vmatpush.msra.mxu0 %v186
  %633 = vmatpush.msra.mxu0 %v184
  %634 = vmatpush.msra.mxu0 %v182
  %635 = vmatpush.msra.mxu0 %v180
  %636 = vmatpush.msra.mxu0 %v178
  %637 = vmatpush.msra.mxu0 %v176
  %638 = vmatpush.msra.mxu0 %v174
  %639 = vmatpush.msra.mxu0 %v172
  %640 = vmatpush.msra.mxu0 %v170
  %641 = vmatpush.msra.mxu0 %v168
  %642 = vmatpush.msra.mxu0 %v166
  %643 = vmatpush.msra.mxu0 %v164
  %644 = vmatpush.msra.mxu0 %v162
  %645 = vmatpush.msra.mxu0 %v160
  %646 = vmatmul.f32.gmra.mxu0 %v20
  %v647 = vpop.f32.mrf.mxu0
  %v648 = vadd.f32 %v628, %v647
  %649 = vdwg.mxu0
  %650 = vmatpush.msra.mxu0 %v222
  %651 = vmatpush.msra.mxu0 %v220
  %652 = vmatpush.msra.mxu0 %v218
  %653 = vmatpush.msra.mxu0 %v216
  %654 = vmatpush.msra.mxu0 %v214
  %655 = vmatpush.msra.mxu0 %v212
  %656 = vmatpush.msra.mxu0 %v210
  %657 = vmatpush.msra.mxu0 %v208
  %658 = vmatpush.msra.mxu0 %v206
  %659 = vmatpush.msra.mxu0 %v204
  %660 = vmatpush.msra.mxu0 %v202
  %661 = vmatpush.msra.mxu0 %v200
  %662 = vmatpush.msra.mxu0 %v198
  %663 = vmatpush.msra.mxu0 %v196
  %664 = vmatpush.msra.mxu0 %v194
  %665 = vmatpush.msra.mxu0 %v192
  %666 = vmatmul.f32.gmra.mxu0 %v21
  %v667 = vpop.f32.mrf.mxu0
  %v668 = vadd.f32 %v648, %v667
  %669 = vdwg.mxu0
  %670 = vmatpush.msra.mxu0 %v254
  %671 = vmatpush.msra.mxu0 %v252
  %672 = vmatpush.msra.mxu0 %v250
  %673 = vmatpush.msra.mxu0 %v248
  %674 = vmatpush.msra.mxu0 %v246
  %675 = vmatpush.msra.mxu0 %v244
  %676 = vmatpush.msra.mxu0 %v242
  %677 = vmatpush.msra.mxu0 %v240
  %678 = vmatpush.msra.mxu0 %v238
  %679 = vmatpush.msra.mxu0 %v236
  %680 = vmatpush.msra.mxu0 %v234
  %681 = vmatpush.msra.mxu0 %v232
  %682 = vmatpush.msra.mxu0 %v230
  %683 = vmatpush.msra.mxu0 %v228
  %684 = vmatpush.msra.mxu0 %v226
  %685 = vmatpush.msra.mxu0 %v224
  %686 = vmatmul.f32.gmra.mxu0 %v22
  %v687 = vpop.f32.mrf.mxu0
  %v688 = vadd.f32 %v668, %v687
  %689 = vdwg.mxu0
  %690 = vmatpush.msra.mxu0 %v286
  %691 = vmatpush.msra.mxu0 %v284
  %692 = vmatpush.msra.mxu0 %v282
  %693 = vmatpush.msra.mxu0 %v280
  %694 = vmatpush.msra.mxu0 %v278
  %695 = vmatpush.msra.mxu0 %v276
  %696 = vmatpush.msra.mxu0 %v274
  %697 = vmatpush.msra.mxu0 %v272
  %698 = vmatpush.msra.mxu0 %v270
  %699 = vmatpush.msra.mxu0 %v268
  %700 = vmatpush.msra.mxu0 %v266
  %701 = vmatpush.msra.mxu0 %v264
  %702 = vmatpush.msra.mxu0 %v262
  %703 = vmatpush.msra.mxu0 %v260
  %704 = vmatpush.msra.mxu0 %v258
  %705 = vmatpush.msra.mxu0 %v256
  %706 = vmatmul.f32.gmra.mxu0 %v23
  %v707 = vpop.f32.mrf.mxu0
  %v708 = vadd.f32 %v688, %v707
  %709 = vdwg.mxu0
  %710 = vmatpush.msra.mxu0 %v318
  %711 = vmatpush.msra.mxu0 %v316
  %712 = vmatpush.msra.mxu0 %v314
  %713 = vmatpush.msra.mxu0 %v312
  %714 = vmatpush.msra.mxu0 %v310
  %715 = vmatpush.msra.mxu0 %v308
  %716 = vmatpush.msra.mxu0 %v306
  %717 = vmatpush.msra.mxu0 %v304
  %718 = vmatpush.msra.mxu0 %v302
  %719 = vmatpush.msra.mxu0 %v300
  %720 = vmatpush.msra.mxu0 %v298
  %721 = vmatpush.msra.mxu0 %v296
  %722 = vmatpush.msra.mxu0 %v294
  %723 = vmatpush.msra.mxu0 %v292
  %724 = vmatpush.msra.mxu0 %v290
  %725 = vmatpush.msra.mxu0 %v288
  %726 = vmatmul.f32.gmra.mxu0 %v24
  %v727 = vpop.f32.mrf.mxu0
  %v728 = vadd.f32 %v708, %v727
  %729 = vdwg.mxu0
  %730 = vmatpush.msra.mxu0 %v350
  %731 = vmatpush.msra.mxu0 %v348
  %732 = vmatpush.msra.mxu0 %v346
  %733 = vmatpush.msra.mxu0 %v344
  %734 = vmatpush.msra.mxu0 %v342
  %735 = vmatpush.msra.mxu0 %v340
  %736 = vmatpush.msra.mxu0 %v338
  %737 = vmatpush.msra.mxu0 %v336
  %738 = vmatpush.msra.mxu0 %v334
  %739 = vmatpush.msra.mxu0 %v332
  %740 = vmatpush.msra.mxu0 %v330
  %741 = vmatpush.msra.mxu0 %v328
  %742 = vmatpush.msra.mxu0 %v326
  %743 = vmatpush.msra.mxu0 %v324
  %744 = vmatpush.msra.mxu0 %v322
  %745 = vmatpush.msra.mxu0 %v320
  %746 = vmatmul.f32.gmra.mxu0 %v25
  %v747 = vpop.f32.mrf.mxu0
  %v748 = vadd.f32 %v728, %v747
  %749 = vdwg.mxu0
  %750 = vmatpush.msra.mxu0 %v382
  %751 = vmatpush.msra.mxu0 %v380
  %752 = vmatpush.msra.mxu0 %v378
  %753 = vmatpush.msra.mxu0 %v376
  %754 = vmatpush.msra.mxu0 %v374
  %755 = vmatpush.msra.mxu0 %v372
  %756 = vmatpush.msra.mxu0 %v370
  %757 = vmatpush.msra.mxu0 %v368
  %758 = vmatpush.msra.mxu0 %v366
  %759 = vmatpush.msra.mxu0 %v364
  %760 = vmatpush.msra.mxu0 %v362
  %761 = vmatpush.msra.mxu0 %v360
  %762 = vmatpush.msra.mxu0 %v358
  %763 = vmatpush.msra.mxu0 %v356
  %764 = vmatpush.msra.mxu0 %v354
  %765 = vmatpush.msra.mxu0 %v352
  %766 = vmatmul.f32.gmra.mxu0 %v26
  %v767 = vpop.f32.mrf.mxu0
  %v768 = vadd.f32 %v748, %v767
  %769 = vdwg.mxu0
  %770 = vmatpush.msra.mxu0 %v414
  %771 = vmatpush.msra.mxu0 %v412
  %772 = vmatpush.msra.mxu0 %v410
  %773 = vmatpush.msra.mxu0 %v408
  %774 = vmatpush.msra.mxu0 %v406
  %775 = vmatpush.msra.mxu0 %v404
  %776 = vmatpush.msra.mxu0 %v402
  %777 = vmatpush.msra.mxu0 %v400
  %778 = vmatpush.msra.mxu0 %v398
  %779 = vmatpush.msra.mxu0 %v396
  %780 = vmatpush.msra.mxu0 %v394
  %781 = vmatpush.msra.mxu0 %v392
  %782 = vmatpush.msra.mxu0 %v390
  %783 = vmatpush.msra.mxu0 %v388
  %784 = vmatpush.msra.mxu0 %v386
  %785 = vmatpush.msra.mxu0 %v384
  %786 = vmatmul.f32.gmra.mxu0 %v27
  %v787 = vpop.f32.mrf.mxu0
  %v788 = vadd.f32 %v768, %v787
  %789 = vdwg.mxu0
  %790 = vmatpush.msra.mxu0 %v446
  %791 = vmatpush.msra.mxu0 %v444
  %792 = vmatpush.msra.mxu0 %v442
  %793 = vmatpush.msra.mxu0 %v440
  %794 = vmatpush.msra.mxu0 %v438
  %795 = vmatpush.msra.mxu0 %v436
  %796 = vmatpush.msra.mxu0 %v434
  %797 = vmatpush.msra.mxu0 %v432
  %798 = vmatpush.msra.mxu0 %v430
  %799 = vmatpush.msra.mxu0 %v428
  %800 = vmatpush.msra.mxu0 %v426
  %801 = vmatpush.msra.mxu0 %v424
  %802 = vmatpush.msra.mxu0 %v422
  %803 = vmatpush.msra.mxu0 %v420
  %804 = vmatpush.msra.mxu0 %v418
  %805 = vmatpush.msra.mxu0 %v416
  %806 = vmatmul.f32.gmra.mxu0 %v28
  %v807 = vpop.f32.mrf.mxu0
  %v808 = vadd.f32 %v788, %v807
  %809 = vdwg.mxu0
  %810 = vmatpush.msra.mxu0 %v478
  %811 = vmatpush.msra.mxu0 %v476
  %812 = vmatpush.msra.mxu0 %v474
  %813 = vmatpush.msra.mxu0 %v472
  %814 = vmatpush.msra.mxu0 %v470
  %815 = vmatpush.msra.mxu0 %v468
  %816 = vmatpush.msra.mxu0 %v466
  %817 = vmatpush.msra.mxu0 %v464
  %818 = vmatpush.msra.mxu0 %v462
  %819 = vmatpush.msra.mxu0 %v460
  %820 = vmatpush.msra.mxu0 %v458
  %821 = vmatpush.msra.mxu0 %v456
  %822 = vmatpush.msra.mxu0 %v454
  %823 = vmatpush.msra.mxu0 %v452
  %824 = vmatpush.msra.mxu0 %v450
  %825 = vmatpush.msra.mxu0 %v448
  %826 = vmatmul.f32.gmra.mxu0 %v29
  %v827 = vpop.f32.mrf.mxu0
  %v828 = vadd.f32 %v808, %v827
  %829 = vdwg.mxu0
  %830 = vmatpush.msra.mxu0 %v510
  %831 = vmatpush.msra.mxu0 %v508
  %832 = vmatpush.msra.mxu0 %v506
  %833 = vmatpush.msra.mxu0 %v504
  %834 = vmatpush.msra.mxu0 %v502
  %835 = vmatpush.msra.mxu0 %v500
  %836 = vmatpush.msra.mxu0 %v498
  %837 = vmatpush.msra.mxu0 %v496
  %838 = vmatpush.msra.mxu0 %v494
  %839 = vmatpush.msra.mxu0 %v492
  %840 = vmatpush.msra.mxu0 %v490
  %841 = vmatpush.msra.mxu0 %v488
  %842 = vmatpush.msra.mxu0 %v486
  %843 = vmatpush.msra.mxu0 %v484
  %844 = vmatpush.msra.mxu0 %v482
  %845 = vmatpush.msra.mxu0 %v480
  %846 = vmatmul.f32.gmra.mxu0 %v30
  %v847 = vpop.f32.mrf.mxu0
  %v848 = vadd.f32 %v828, %v847
  %849 = vdwg.mxu0
  %850 = vmatpush.msra.mxu0 %v542
  %851 = vmatpush.msra.mxu0 %v540
  %852 = vmatpush.msra.mxu0 %v538
  %853 = vmatpush.msra.mxu0 %v536
  %854 = vmatpush.msra.mxu0 %v534
  %855 = vmatpush.msra.mxu0 %v532
  %856 = vmatpush.msra.mxu0 %v530
  %857 = vmatpush.msra.mxu0 %v528
  %858 = vmatpush.msra.mxu0 %v526
  %859 = vmatpush.msra.mxu0 %v524
  %860 = vmatpush.msra.mxu0 %v522
  %861 = vmatpush.msra.mxu0 %v520
  %862 = vmatpush.msra.mxu0 %v518
  %863 = vmatpush.msra.mxu0 %v516
  %864 = vmatpush.msra.mxu0 %v514
  %865 = vmatpush.msra.mxu0 %v512
  %866 = vmatmul.f32.gmra.mxu0 %v31
  %v867 = vpop.f32.mrf.mxu0
  %v868 = vadd.f32 %v848, %v867
  %869 = vdwg.mxu0
  %870 = vmatpush.msra.mxu0 %v63
  %871 = vmatpush.msra.mxu0 %v61
  %872 = vmatpush.msra.mxu0 %v59
  %873 = vmatpush.msra.mxu0 %v57
  %874 = vmatpush.msra.mxu0 %v55
  %875 = vmatpush.msra.mxu0 %v53
  %876 = vmatpush.msra.mxu0 %v51
  %877 = vmatpush.msra.mxu0 %v49
  %878 = vmatpush.msra.mxu0 %v47
  %879 = vmatpush.msra.mxu0 %v45
  %880 = vmatpush.msra.mxu0 %v43
  %881 = vmatpush.msra.mxu0 %v41
  %882 = vmatpush.msra.mxu0 %v39
  %883 = vmatpush.msra.mxu0 %v37
  %884 = vmatpush.msra.mxu0 %v35
  %885 = vmatpush.msra.mxu0 %v33
  %886 = vmatmul.f32.gmra.mxu0 %v16
  %v887 = vpop.f32.mrf.mxu0
  %v888 = vadd.f32 %v547, %v887
  %889 = vdwg.mxu0
  %890 = vmatpush.msra.mxu0 %v95
  %891 = vmatpush.msra.mxu0 %v93
  %892 = vmatpush.msra.mxu0 %v91
  %893 = vmatpush.msra.mxu0 %v89
  %894 = vmatpush.msra.mxu0 %v87
  %895 = vmatpush.msra.mxu0 %v85
  %896 = vmatpush.msra.mxu0 %v83
  %897 = vmatpush.msra.mxu0 %v81
  %898 = vmatpush.msra.mxu0 %v79
  %899 = vmatpush.msra.mxu0 %v77
  %900 = vmatpush.msra.mxu0 %v75
  %901 = vmatpush.msra.mxu0 %v73
  %902 = vmatpush.msra.mxu0 %v71
  %903 = vmatpush.msra.mxu0 %v69
  %904 = vmatpush.msra.mxu0 %v67
  %905 = vmatpush.msra.mxu0 %v65
  %906 = vmatmul.f32.gmra.mxu0 %v17
  %v907 = vpop.f32.mrf.mxu0
  %v908 = vadd.f32 %v888, %v907
  %909 = vdwg.mxu0
  %910 = vmatpush.msra.mxu0 %v127
  %911 = vmatpush.msra.mxu0 %v125
  %912 = vmatpush.msra.mxu0 %v123
  %913 = vmatpush.msra.mxu0 %v121
  %914 = vmatpush.msra.mxu0 %v119
  %915 = vmatpush.msra.mxu0 %v117
  %916 = vmatpush.msra.mxu0 %v115
  %917 = vmatpush.msra.mxu0 %v113
  %918 = vmatpush.msra.mxu0 %v111
  %919 = vmatpush.msra.mxu0 %v109
  %920 = vmatpush.msra.mxu0 %v107
  %921 = vmatpush.msra.mxu0 %v105
  %922 = vmatpush.msra.mxu0 %v103
  %923 = vmatpush.msra.mxu0 %v101
  %924 = vmatpush.msra.mxu0 %v99
  %925 = vmatpush.msra.mxu0 %v97
  %926 = vmatmul.f32.gmra.mxu0 %v18
  %v927 = vpop.f32.mrf.mxu0
  %v928 = vadd.f32 %v908, %v927
  %929 = vdwg.mxu0
  %930 = vmatpush.msra.mxu0 %v159
  %931 = vmatpush.msra.mxu0 %v157
  %932 = vmatpush.msra.mxu0 %v155
  %933 = vmatpush.msra.mxu0 %v153
  %934 = vmatpush.msra.mxu0 %v151
  %935 = vmatpush.msra.mxu0 %v149
  %936 = vmatpush.msra.mxu0 %v147
  %937 = vmatpush.msra.mxu0 %v145
  %938 = vmatpush.msra.mxu0 %v143
  %939 = vmatpush.msra.mxu0 %v141
  %940 = vmatpush.msra.mxu0 %v139
  %941 = vmatpush.msra.mxu0 %v137
  %942 = vmatpush.msra.mxu0 %v135
  %943 = vmatpush.msra.mxu0 %v133
  %944 = vmatpush.msra.mxu0 %v131
  %945 = vmatpush.msra.mxu0 %v129
  %946 = vmatmul.f32.gmra.mxu0 %v19
  %v947 = vpop.f32.mrf.mxu0
  %v948 = vadd.f32 %v928, %v947
  %949 = vdwg.mxu0
  %950 = vmatpush.msra.mxu0 %v191
  %951 = vmatpush.msra.mxu0 %v189
  %952 = vmatpush.msra.mxu0 %v187
  %953 = vmatpush.msra.mxu0 %v185
  %954 = vmatpush.msra.mxu0 %v183
  %955 = vmatpush.msra.mxu0 %v181
  %956 = vmatpush.msra.mxu0 %v179
  %957 = vmatpush.msra.mxu0 %v177
  %958 = vmatpush.msra.mxu0 %v175
  %959 = vmatpush.msra.mxu0 %v173
  %960 = vmatpush.msra.mxu0 %v171
  %961 = vmatpush.msra.mxu0 %v169
  %962 = vmatpush.msra.mxu0 %v167
  %963 = vmatpush.msra.mxu0 %v165
  %964 = vmatpush.msra.mxu0 %v163
  %965 = vmatpush.msra.mxu0 %v161
  %966 = vmatmul.f32.gmra.mxu0 %v20
  %v967 = vpop.f32.mrf.mxu0
  %v968 = vadd.f32 %v948, %v967
  %969 = vdwg.mxu0
  %970 = vmatpush.msra.mxu0 %v223
  %971 = vmatpush.msra.mxu0 %v221
  %972 = vmatpush.msra.mxu0 %v219
  %973 = vmatpush.msra.mxu0 %v217
  %974 = vmatpush.msra.mxu0 %v215
  %975 = vmatpush.msra.mxu0 %v213
  %976 = vmatpush.msra.mxu0 %v211
  %977 = vmatpush.msra.mxu0 %v209
  %978 = vmatpush.msra.mxu0 %v207
  %979 = vmatpush.msra.mxu0 %v205
  %980 = vmatpush.msra.mxu0 %v203
  %981 = vmatpush.msra.mxu0 %v201
  %982 = vmatpush.msra.mxu0 %v199
  %983 = vmatpush.msra.mxu0 %v197
  %984 = vmatpush.msra.mxu0 %v195
  %985 = vmatpush.msra.mxu0 %v193
  %986 = vmatmul.f32.gmra.mxu0 %v21
  %v987 = vpop.f32.mrf.mxu0
  %v988 = vadd.f32 %v968, %v987
  %989 = vdwg.mxu0
  %990 = vmatpush.msra.mxu0 %v255
  %991 = vmatpush.msra.mxu0 %v253
  %992 = vmatpush.msra.mxu0 %v251
  %993 = vmatpush.msra.mxu0 %v249
  %994 = vmatpush.msra.mxu0 %v247
  %995 = vmatpush.msra.mxu0 %v245
  %996 = vmatpush.msra.mxu0 %v243
  %997 = vmatpush.msra.mxu0 %v241
  %998 = vmatpush.msra.mxu0 %v239
  %999 = vmatpush.msra.mxu0 %v237
  %1000 = vmatpush.msra.mxu0 %v235
  %1001 = vmatpush.msra.mxu0 %v233
  %1002 = vmatpush.msra.mxu0 %v231
  %1003 = vmatpush.msra.mxu0 %v229
  %1004 = vmatpush.msra.mxu0 %v227
  %1005 = vmatpush.msra.mxu0 %v225
  %1006 = vmatmul.f32.gmra.mxu0 %v22
  %v1007 = vpop.f32.mrf.mxu0
  %v1008 = vadd.f32 %v988, %v1007
  %1009 = vdwg.mxu0
  %1010 = vmatpush.msra.mxu0 %v287
  %1011 = vmatpush.msra.mxu0 %v285
  %1012 = vmatpush.msra.mxu0 %v283
  %1013 = vmatpush.msra.mxu0 %v281
  %1014 = vmatpush.msra.mxu0 %v279
  %1015 = vmatpush.msra.mxu0 %v277
  %1016 = vmatpush.msra.mxu0 %v275
  %1017 = vmatpush.msra.mxu0 %v273
  %1018 = vmatpush.msra.mxu0 %v271
  %1019 = vmatpush.msra.mxu0 %v269
  %1020 = vmatpush.msra.mxu0 %v267
  %1021 = vmatpush.msra.mxu0 %v265
  %1022 = vmatpush.msra.mxu0 %v263
  %1023 = vmatpush.msra.mxu0 %v261
  %1024 = vmatpush.msra.mxu0 %v259
  %1025 = vmatpush.msra.mxu0 %v257
  %1026 = vmatmul.f32.gmra.mxu0 %v23
  %v1027 = vpop.f32.mrf.mxu0
  %v1028 = vadd.f32 %v1008, %v1027
  %1029 = vdwg.mxu0
  %1030 = vmatpush.msra.mxu0 %v319
  %1031 = vmatpush.msra.mxu0 %v317
  %1032 = vmatpush.msra.mxu0 %v315
  %1033 = vmatpush.msra.mxu0 %v313
  %1034 = vmatpush.msra.mxu0 %v311
  %1035 = vmatpush.msra.mxu0 %v309
  %1036 = vmatpush.msra.mxu0 %v307
  %1037 = vmatpush.msra.mxu0 %v305
  %1038 = vmatpush.msra.mxu0 %v303
  %1039 = vmatpush.msra.mxu0 %v301
  %1040 = vmatpush.msra.mxu0 %v299
  %1041 = vmatpush.msra.mxu0 %v297
  %1042 = vmatpush.msra.mxu0 %v295
  %1043 = vmatpush.msra.mxu0 %v293
  %1044 = vmatpush.msra.mxu0 %v291
  %1045 = vmatpush.msra.mxu0 %v289
  %1046 = vmatmul.f32.gmra.mxu0 %v24
  %v1047 = vpop.f32.mrf.mxu0
  %v1048 = vadd.f32 %v1028, %v1047
  %1049 = vdwg.mxu0
  %1050 = vmatpush.msra.mxu0 %v351
  %1051 = vmatpush.msra.mxu0 %v349
  %1052 = vmatpush.msra.mxu0 %v347
  %1053 = vmatpush.msra.mxu0 %v345
  %1054 = vmatpush.msra.mxu0 %v343
  %1055 = vmatpush.msra.mxu0 %v341
  %1056 = vmatpush.msra.mxu0 %v339
  %1057 = vmatpush.msra.mxu0 %v337
  %1058 = vmatpush.msra.mxu0 %v335
  %1059 = vmatpush.msra.mxu0 %v333
  %1060 = vmatpush.msra.mxu0 %v331
  %1061 = vmatpush.msra.mxu0 %v329
  %1062 = vmatpush.msra.mxu0 %v327
  %1063 = vmatpush.msra.mxu0 %v325
  %1064 = vmatpush.msra.mxu0 %v323
  %1065 = vmatpush.msra.mxu0 %v321
  %1066 = vmatmul.f32.gmra.mxu0 %v25
  %v1067 = vpop.f32.mrf.mxu0
  %v1068 = vadd.f32 %v1048, %v1067
  %1069 = vdwg.mxu0
  %1070 = vmatpush.msra.mxu0 %v383
  %1071 = vmatpush.msra.mxu0 %v381
  %1072 = vmatpush.msra.mxu0 %v379
  %1073 = vmatpush.msra.mxu0 %v377
  %1074 = vmatpush.msra.mxu0 %v375
  %1075 = vmatpush.msra.mxu0 %v373
  %1076 = vmatpush.msra.mxu0 %v371
  %1077 = vmatpush.msra.mxu0 %v369
  %1078 = vmatpush.msra.mxu0 %v367
  %1079 = vmatpush.msra.mxu0 %v365
  %1080 = vmatpush.msra.mxu0 %v363
  %1081 = vmatpush.msra.mxu0 %v361
  %1082 = vmatpush.msra.mxu0 %v359
  %1083 = vmatpush.msra.mxu0 %v357
  %1084 = vmatpush.msra.mxu0 %v355
  %1085 = vmatpush.msra.mxu0 %v353
  %1086 = vmatmul.f32.gmra.mxu0 %v26
  %v1087 = vpop.f32.mrf.mxu0
  %v1088 = vadd.f32 %v1068, %v1087
  %1089 = vdwg.mxu0
  %1090 = vmatpush.msra.mxu0 %v415
  %1091 = vmatpush.msra.mxu0 %v413
  %1092 = vmatpush.msra.mxu0 %v411
  %1093 = vmatpush.msra.mxu0 %v409
  %1094 = vmatpush.msra.mxu0 %v407
  %1095 = vmatpush.msra.mxu0 %v405
  %1096 = vmatpush.msra.mxu0 %v403
  %1097 = vmatpush.msra.mxu0 %v401
  %1098 = vmatpush.msra.mxu0 %v399
  %1099 = vmatpush.msra.mxu0 %v397
  %1100 = vmatpush.msra.mxu0 %v395
  %1101 = vmatpush.msra.mxu0 %v393
  %1102 = vmatpush.msra.mxu0 %v391
  %1103 = vmatpush.msra.mxu0 %v389
  %1104 = vmatpush.msra.mxu0 %v387
  %1105 = vmatpush.msra.mxu0 %v385
  %1106 = vmatmul.f32.gmra.mxu0 %v27
  %v1107 = vpop.f32.mrf.mxu0
  %v1108 = vadd.f32 %v1088, %v1107
  %1109 = vdwg.mxu0
  %1110 = vmatpush.msra.mxu0 %v447
  %1111 = vmatpush.msra.mxu0 %v445
  %1112 = vmatpush.msra.mxu0 %v443
  %1113 = vmatpush.msra.mxu0 %v441
  %1114 = vmatpush.msra.mxu0 %v439
  %1115 = vmatpush.msra.mxu0 %v437
  %1116 = vmatpush.msra.mxu0 %v435
  %1117 = vmatpush.msra.mxu0 %v433
  %1118 = vmatpush.msra.mxu0 %v431
  %1119 = vmatpush.msra.mxu0 %v429
  %1120 = vmatpush.msra.mxu0 %v427
  %1121 = vmatpush.msra.mxu0 %v425
  %1122 = vmatpush.msra.mxu0 %v423
  %1123 = vmatpush.msra.mxu0 %v421
  %1124 = vmatpush.msra.mxu0 %v419
  %1125 = vmatpush.msra.mxu0 %v417
  %1126 = vmatmul.f32.gmra.mxu0 %v28
  %v1127 = vpop.f32.mrf.mxu0
  %v1128 = vadd.f32 %v1108, %v1127
  %1129 = vdwg.mxu0
  %1130 = vmatpush.msra.mxu0 %v479
  %1131 = vmatpush.msra.mxu0 %v477
  %1132 = vmatpush.msra.mxu0 %v475
  %1133 = vmatpush.msra.mxu0 %v473
  %1134 = vmatpush.msra.mxu0 %v471
  %1135 = vmatpush.msra.mxu0 %v469
  %1136 = vmatpush.msra.mxu0 %v467
  %1137 = vmatpush.msra.mxu0 %v465
  %1138 = vmatpush.msra.mxu0 %v463
  %1139 = vmatpush.msra.mxu0 %v461
  %1140 = vmatpush.msra.mxu0 %v459
  %1141 = vmatpush.msra.mxu0 %v457
  %1142 = vmatpush.msra.mxu0 %v455
  %1143 = vmatpush.msra.mxu0 %v453
  %1144 = vmatpush.msra.mxu0 %v451
  %1145 = vmatpush.msra.mxu0 %v449
  %1146 = vmatmul.f32.gmra.mxu0 %v29
  %v1147 = vpop.f32.mrf.mxu0
  %v1148 = vadd.f32 %v1128, %v1147
  %1149 = vdwg.mxu0
  %1150 = vmatpush.msra.mxu0 %v511
  %1151 = vmatpush.msra.mxu0 %v509
  %1152 = vmatpush.msra.mxu0 %v507
  %1153 = vmatpush.msra.mxu0 %v505
  %1154 = vmatpush.msra.mxu0 %v503
  %1155 = vmatpush.msra.mxu0 %v501
  %1156 = vmatpush.msra.mxu0 %v499
  %1157 = vmatpush.msra.mxu0 %v497
  %1158 = vmatpush.msra.mxu0 %v495
  %1159 = vmatpush.msra.mxu0 %v493
  %1160 = vmatpush.msra.mxu0 %v491
  %1161 = vmatpush.msra.mxu0 %v489
  %1162 = vmatpush.msra.mxu0 %v487
  %1163 = vmatpush.msra.mxu0 %v485
  %1164 = vmatpush.msra.mxu0 %v483
  %1165 = vmatpush.msra.mxu0 %v481
  %1166 = vmatmul.f32.gmra.mxu0 %v30
  %v1167 = vpop.f32.mrf.mxu0
  %v1168 = vadd.f32 %v1148, %v1167
  %1169 = vdwg.mxu0
  %1170 = vmatpush.msra.mxu0 %v543
  %1171 = vmatpush.msra.mxu0 %v541
  %1172 = vmatpush.msra.mxu0 %v539
  %1173 = vmatpush.msra.mxu0 %v537
  %1174 = vmatpush.msra.mxu0 %v535
  %1175 = vmatpush.msra.mxu0 %v533
  %1176 = vmatpush.msra.mxu0 %v531
  %1177 = vmatpush.msra.mxu0 %v529
  %1178 = vmatpush.msra.mxu0 %v527
  %1179 = vmatpush.msra.mxu0 %v525
  %1180 = vmatpush.msra.mxu0 %v523
  %1181 = vmatpush.msra.mxu0 %v521
  %1182 = vmatpush.msra.mxu0 %v519
  %1183 = vmatpush.msra.mxu0 %v517
  %1184 = vmatpush.msra.mxu0 %v515
  %1185 = vmatpush.msra.mxu0 %v513
  %1186 = vmatmul.f32.gmra.mxu0 %v31
  %v1187 = vpop.f32.mrf.mxu0
  %v1188 = vadd.f32 %v1168, %v1187
  %1189 = vdwg.mxu0
  %1190 = vst [vmem:[%s3] sm:$0xff] %v868
  %1191 = vst [vmem:[%s3 + $0x8] sm:$0xff] %v1188
  %s1192 = smul.u32 0, 8
  %v1193 = vlaneseq
  %v1194 = vshrl.u32 %v1193, 7
  %v1195 = vstv %s1192
  %v1196 = vadd.s32 %v1195, %v1194
  %vm1197 = vcmp.lt.s32.totalorder %v1196, 8
  %v1198 = vsel %vm1197, 1, 0
  %v1199 = vcvt.s32.f32 %v1198
  %v1200 = vmul.f32 %v868, %v1199
  %v1201 = vmul.f32 %v1188, %v1199
  %v1202 = vrot.slane %v1200, 4
  %v1203 = vadd.f32 %v1200, %v1202
  %v1204 = vrot.slane %v1203, 2
  %v1205 = vadd.f32 %v1203, %v1204
  %v1206 = vrot.slane %v1205, 1
  %v1207 = vadd.f32 %v1205, %v1206
  %v1208 = vrot.slane %v1201, 4
  %v1209 = vadd.f32 %v1201, %v1208
  %v1210 = vrot.slane %v1209, 2
  %v1211 = vadd.f32 %v1209, %v1210
  %v1212 = vrot.slane %v1211, 1
  %v1213 = vadd.f32 %v1211, %v1212
  %v1214 = vmul.f32 %v1200, %v1200
  %v1215 = vmul.f32 %v1201, %v1201
  %v1216 = vrot.slane %v1214, 4
  %v1217 = vadd.f32 %v1214, %v1216
  %v1218 = vrot.slane %v1217, 2
  %v1219 = vadd.f32 %v1217, %v1218
  %v1220 = vrot.slane %v1219, 1
  %v1221 = vadd.f32 %v1219, %v1220
  %v1222 = vrot.slane %v1215, 4
  %v1223 = vadd.f32 %v1215, %v1222
  %v1224 = vrot.slane %v1223, 2
  %v1225 = vadd.f32 %v1223, %v1224
  %v1226 = vrot.slane %v1225, 1
  %v1227 = vadd.f32 %v1225, %v1226
  %vm1228 = vcmask 1040384
  %v1229 = vsel %vm1228, %v1207, %v1221
  %v1230 = vsel %vm1228, %v1213, %v1227
  %v1233 = vrot.slane %v1230, 6
  %vm1234 = vcmask 1041408
  %v1235 = vsel %vm1234, %v1229, %v1233
  %1237 = vst [vmem:[%s4] sm:$0xf] %v1235
  // Predicated region
  $region14: #{patch_discriminator_forward.11} parent=0 // pred_check
    _
  $region15: #{patch_discriminator_forward.11} parent=0 // pred_check_branch
    %1239 = sbr.rel (0) target = $region17
  $region16: #{patch_discriminator_forward.11} parent=0 // pred_region
    _
  $region17: #{patch_discriminator_forward.11} parent=0 // pred_fallthru
    _
  // Predicated region
  $region18: #{patch_discriminator_forward.11} parent=0 // pred_check
    _
  $region19: #{patch_discriminator_forward.11} parent=0 // pred_check_branch
    %1241 = sbr.rel (0) target = $region21
  $region20: #{patch_discriminator_forward.11} parent=0 // pred_region
    _
  $region21: #{patch_discriminator_forward.11} parent=0 // pred_fallthru
    _
  // Predicated region
  $region22: #{patch_discriminator_forward.11} parent=0 // pred_check
    _
  $region23: #{patch_discriminator_forward.11} parent=0 // pred_check_branch
    %1243 = sbr.rel (0) target = $region25
  $region24: #{patch_discriminator_forward.11} parent=0 // pred_region
    _
  $region25: #{patch_discriminator_forward.11} parent=0 // pred_fallthru
    _
  // Predicated region
  $region26: #{patch_discriminator_forward.11} parent=0 // pred_check
    _
  $region27: #{patch_discriminator_forward.11} parent=0 // pred_check_branch
    %1245 = sbr.rel (0) target = $region29
  $region28: #{patch_discriminator_forward.11} parent=0 // pred_region
    _
  $region29: #{patch_discriminator_forward.11} parent=0 // pred_fallthru
    _

// kernel: patch_discriminator_forward.14
$region0: #{patch_discriminator_forward.14}
  #allocation0 [shape = 'u32[]', space=smem, size = 0x4, offset = 0x4, fixed_abs, tag = 'smem constant byte address 0x4 - core index']
  #allocation1 [shape = 'u32[72,128]{1,0:T(1,128)}', space=vmem, size = 0x9000, scoped, tag = 'internal scratch']
  %s0 = inlined_call_operand.vmem [shape: f32[8,512], index: 0, kind: input, shape index: {}]
  %s1 = inlined_call_operand.vmem [shape: f32[1,512], index: 1, kind: input, shape index: {}]
  %s2 = inlined_call_operand.vmem [shape: f32[1,512], index: 2, kind: input, shape index: {}]
  %s3 = inlined_call_operand.vmem [shape: f32[8,512], index: 3, kind: output, shape index: {}]
  %s4 = sld [smem:[#allocation0]]
  $region22: #{patch_discriminator_forward.14} parent=0
    _
  %s6 = ssub.s32 1, %s4
  %s7 = scalar_select 0, %s6, %s4
  // Predicated region
  $region2: #{patch_discriminator_forward.14} parent=0 // pred_check
    _
  $region3: #{patch_discriminator_forward.14} parent=0 // pred_check_branch
    %9 = sbr.rel (0) target = $region5
  $region4: #{patch_discriminator_forward.14} parent=0 // pred_region
    _
  $region5: #{patch_discriminator_forward.14} parent=0 // pred_fallthru
    _
  // Predicated region
  $region6: #{patch_discriminator_forward.14} parent=0 // pred_check
    _
  $region7: #{patch_discriminator_forward.14} parent=0 // pred_check_branch
    %11 = sbr.rel (0) target = $region9
  $region8: #{patch_discriminator_forward.14} parent=0 // pred_region
    _
  $region9: #{patch_discriminator_forward.14} parent=0 // pred_fallthru
    _
  // Predicated region
  $region10: #{patch_discriminator_forward.14} parent=0 // pred_check
    _
  $region11: #{patch_discriminator_forward.14} parent=0 // pred_check_branch
    %13 = sbr.rel (0) target = $region13
  $region12: #{patch_discriminator_forward.14} parent=0 // pred_region
    _
  $region13: #{patch_discriminator_forward.14} parent=0 // pred_fallthru
    _
  %v14 = vld [vmem:[%s0] sm:$0xff]
  %v15 = vld [vmem:[%s0 + $0x8] sm:$0xff]
  %v16 = vld [vmem:[%s0 + $0x10] sm:$0xff]
  %v17 = vld [vmem:[%s0 + $0x18] sm:$0xff]
  %v18 = vld [vmem:[%s1] sm:$0xf]
  %v20 = vperm.slane %v18, 0
  %v21 = vperm.slane %v18, 1
  %v22 = vperm.slane %v18, 2
  %v23 = vperm.slane %v18, 3
  %v28 = vmul.f32 %v14, %v20
  %v29 = vmul.f32 %v15, %v21
  %v30 = vmul.f32 %v16, %v22
  %v31 = vmul.f32 %v17, %v23
  %v32 = vld [vmem:[%s2] sm:$0xf]
  %v34 = vperm.slane %v32, 0
  %v35 = vperm.slane %v32, 1
  %v36 = vperm.slane %v32, 2
  %v37 = vperm.slane %v32, 3
  %v42 = vadd.f32 %v28, %v34
  %v43 = vadd.f32 %v29, %v35
  %v44 = vadd.f32 %v30, %v36
  %v45 = vadd.f32 %v31, %v37
  %vm46 = vcmp.ge.f32.partialorder %v42, 0.0
  %vm47 = vcmp.ge.f32.partialorder %v43, 0.0
  %vm48 = vcmp.ge.f32.partialorder %v44, 0.0
  %vm49 = vcmp.ge.f32.partialorder %v45, 0.0
  %v50 = vmul.f32 %v42, 0.2
  %v51 = vmul.f32 %v43, 0.2
  %v52 = vmul.f32 %v44, 0.2
  %v53 = vmul.f32 %v45, 0.2
  %v54 = vsel %vm46, %v42, %v50
  %v55 = vsel %vm47, %v43, %v51
  %v56 = vsel %vm48, %v44, %v52
  %v57 = vsel %vm49, %v45, %v53
  %58 = vst [vmem:[%s3] sm:$0xff] %v54
  %59 = vst [vmem:[%s3 + $0x8] sm:$0xff] %v55
  %60 = vst [vmem:[%s3 + $0x10] sm:$0xff] %v56
  %61 = vst [vmem:[%s3 + $0x18] sm:$0xff] %v57
  // Predicated region
  $region14: #{patch_discriminator_forward.14} parent=0 // pred_check
    _
  $region15: #{patch_discriminator_forward.14} parent=0 // pred_check_branch
    %63 = sbr.rel (0) target = $region17
  $region16: #{patch_discriminator_forward.14} parent=0 // pred_region
    _
  $region17: #{patch_discriminator_forward.14} parent=0 // pred_fallthru
    _
  // Predicated region
  $region18: #{patch_discriminator_forward.14} parent=0 // pred_check
    _
  $region19: #{patch_discriminator_forward.14} parent=0 // pred_check_branch
    %65 = sbr.rel (0) target = $region21
  $region20: #{patch_discriminator_forward.14} parent=0 // pred_region
    _
  $region21: #{patch_discriminator_forward.14} parent=0 // pred_fallthru
    _

// kernel: patch_discriminator_forward.15
$region0: #{patch_discriminator_forward.15}
  #allocation0 [shape = 'u32[]', space=smem, size = 0x4, offset = 0x4, fixed_abs, tag = 'smem constant byte address 0x4 - core index']
  #allocation1 [shape = 'u32[72,128]{1,0:T(1,128)}', space=vmem, size = 0x9000, scoped, tag = 'internal scratch']
  %s0 = inlined_call_operand.vmem [shape: f32[8,4608], index: 0, kind: input, shape index: {}]
  %s1 = inlined_call_operand.vmem [shape: f32[4608,128], index: 1, kind: input, shape index: {}]
  %s2 = inlined_call_operand.vmem [shape: f32[1,128], index: 2, kind: input, shape index: {}]
  %s3 = inlined_call_operand.vmem [shape: f32[8,128], index: 3, kind: output, shape index: {}]
  %s4 = sld [smem:[#allocation0]]
  $region22: #{patch_discriminator_forward.15} parent=0
    _
  %s6 = ssub.s32 1, %s4
  %s7 = scalar_select 0, %s6, %s4
  // Predicated region
  $region2: #{patch_discriminator_forward.15} parent=0 // pred_check
    _
  $region3: #{patch_discriminator_forward.15} parent=0 // pred_check_branch
    %9 = sbr.rel (0) target = $region5
  $region4: #{patch_discriminator_forward.15} parent=0 // pred_region
    _
  $region5: #{patch_discriminator_forward.15} parent=0 // pred_fallthru
    _
  // Predicated region
  $region6: #{patch_discriminator_forward.15} parent=0 // pred_check
    _
  $region7: #{patch_discriminator_forward.15} parent=0 // pred_check_branch
    %11 = sbr.rel (0) target = $region9
  $region8: #{patch_discriminator_forward.15} parent=0 // pred_region
    _
  $region9: #{patch_discriminator_forward.15} parent=0 // pred_fallthru
    _
  // Predicated region
  $region10: #{patch_discriminator_forward.15} parent=0 // pred_check
    _
  $region11: #{patch_discriminator_forward.15} parent=0 // pred_check_branch
    %13 = sbr.rel (0) target = $region13
  $region12: #{patch_discriminator_forward.15} parent=0 // pred_region
    _
  $region13: #{patch_discriminator_forward.15} parent=0 // pred_fallthru
    _
  %v14 = vld [vmem:[%s0] sm:$0xff]
  %v15 = vld [vmem:[%s0 + $0x8] sm:$0xff]
  %v16 = vld [vmem:[%s0 + $0x10] sm:$0xff]
  %v17 = vld [vmem:[%s0 + $0x18] sm:$0xff]
  %v18 = vld [vmem:[%s0 + $0x20] sm:$0xff]
  %v19 = vld [vmem:[%s0 + $0x28] sm:$0xff]
  %v20 = vld [vmem:[%s0 + $0x30] sm:$0xff]
  %v21 = vld [vmem:[%s0 + $0x38] sm:$0xff]
  %v22 = vld [vmem:[%s0 + $0x40] sm:$0xff]
  %v23 = vld [vmem:[%s0 + $0x48] sm:$0xff]
  %v24 = vld [vmem:[%s0 + $0x50] sm:$0xff]
  %v25 = vld [vmem:[%s0 + $0x58] sm:$0xff]
  %v26 = vld [vmem:[%s0 + $0x60] sm:$0xff]
  %v27 = vld [vmem:[%s0 + $0x68] sm:$0xff]
  %v28 = vld [vmem:[%s0 + $0x70] sm:$0xff]
  %v29 = vld [vmem:[%s0 + $0x78] sm:$0xff]
  %v30 = vld [vmem:[%s0 + $0x80] sm:$0xff]
  %v31 = vld [vmem:[%s0 + $0x88] sm:$0xff]
  %v32 = vld [vmem:[%s0 + $0x90] sm:$0xff]
  %v33 = vld [vmem:[%s0 + $0x98] sm:$0xff]
  %v34 = vld [vmem:[%s0 + $0xa0] sm:$0xff]
  %v35 = vld [vmem:[%s0 + $0xa8] sm:$0xff]
  %v36 = vld [vmem:[%s0 + $0xb0] sm:$0xff]
  %v37 = vld [vmem:[%s0 + $0xb8] sm:$0xff]
  %v38 = vld [vmem:[%s0 + $0xc0] sm:$0xff]
  %v39 = vld [vmem:[%s0 + $0xc8] sm:$0xff]
  %v40 = vld [vmem:[%s0 + $0xd0] sm:$0xff]
  %v41 = vld [vmem:[%s0 + $0xd8] sm:$0xff]
  %v42 = vld [vmem:[%s0 + $0xe0] sm:$0xff]
  %v43 = vld [vmem:[%s0 + $0xe8] sm:$0xff]
  %v44 = vld [vmem:[%s0 + $0xf0] sm:$0xff]
  %v45 = vld [vmem:[%s0 + $0xf8] sm:$0xff]
  %v46 = vld [vmem:[%s0 + $0x100] sm:$0xff]
  %v47 = vld [vmem:[%s0 + $0x108] sm:$0xff]
  %v48 = vld [vmem:[%s0 + $0x110] sm:$0xff]
  %v49 = vld [vmem:[%s0 + $0x118] sm:$0xff]
  %v50 = vld [vmem:[%s1] sm:$0xff]
  %v51 = vld [vmem:[%s1 + $0x8] sm:$0xff]
  %v52 = vld [vmem:[%s1 + $0x10] sm:$0xff]
  %v53 = vld [vmem:[%s1 + $0x18] sm:$0xff]
  %v54 = vld [vmem:[%s1 + $0x20] sm:$0xff]
  %v55 = vld [vmem:[%s1 + $0x28] sm:$0xff]
  %v56 = vld [vmem:[%s1 + $0x30] sm:$0xff]
  %v57 = vld [vmem:[%s1 + $0x38] sm:$0xff]
  %v58 = vld [vmem:[%s1 + $0x40] sm:$0xff]
  %v59 = vld [vmem:[%s1 + $0x48] sm:$0xff]
  %v60 = vld [vmem:[%s1 + $0x50] sm:$0xff]
  %v61 = vld [vmem:[%s1 + $0x58] sm:$0xff]
  %v62 = vld [vmem:[%s1 + $0x60] sm:$0xff]
  %v63 = vld [vmem:[%s1 + $0x68] sm:$0xff]
  %v64 = vld [vmem:[%s1 + $0x70] sm:$0xff]
  %v65 = vld [vmem:[%s1 + $0x78] sm:$0xff]
  %v66 = vld [vmem:[%s1 + $0x80] sm:$0xff]
  %v67 = vld [vmem:[%s1 + $0x88] sm:$0xff]
  %v68 = vld [vmem:[%s1 + $0x90] sm:$0xff]
  %v69 = vld [vmem:[%s1 + $0x98] sm:$0xff]
  %v70 = vld [vmem:[%s1 + $0xa0] sm:$0xff]
  %v71 = vld [vmem:[%s1 + $0xa8] sm:$0xff]
  %v72 = vld [vmem:[%s1 + $0xb0] sm:$0xff]
  %v73 = vld [vmem:[%s1 + $0xb8] sm:$0xff]
  %v74 = vld [vmem:[%s1 + $0xc0] sm:$0xff]
  %v75 = vld [vmem:[%s1 + $0xc8] sm:$0xff]
  %v76 = vld [vmem:[%s1 + $0xd0] sm:$0xff]
  %v77 = vld [vmem:[%s1 + $0xd8] sm:$0xff]
  %v78 = vld [vmem:[%s1 + $0xe0] sm:$0xff]
  %v79 = vld [vmem:[%s1 + $0xe8] sm:$0xff]
  %v80 = vld [vmem:[%s1 + $0xf0] sm:$0xff]
  %v81 = vld [vmem:[%s1 + $0xf8] sm:$0xff]
  %v82 = vld [vmem:[%s1 + $0x100] sm:$0xff]
  %v83 = vld [vmem:[%s1 + $0x108] sm:$0xff]
  %v84 = vld [vmem:[%s1 + $0x110] sm:$0xff]
  %v85 = vld [vmem:[%s1 + $0x118] sm:$0xff]
  %v86 = vld [vmem:[%s1 + $0x120] sm:$0xff]
  %v87 = vld [vmem:[%s1 + $0x128] sm:$0xff]
  %v88 = vld [vmem:[%s1 + $0x130] sm:$0xff]
  %v89 = vld [vmem:[%s1 + $0x138] sm:$0xff]
  %v90 = vld [vmem:[%s1 + $0x140] sm:$0xff]
  %v91 = vld [vmem:[%s1 + $0x148] sm:$0xff]
  %v92 = vld [vmem:[%s1 + $0x150] sm:$0xff]
  %v93 = vld [vmem:[%s1 + $0x158] sm:$0xff]
  %v94 = vld [vmem:[%s1 + $0x160] sm:$0xff]
  %v95 = vld [vmem:[%s1 + $0x168] sm:$0xff]
  %v96 = vld [vmem:[%s1 + $0x170] sm:$0xff]
  %v97 = vld [vmem:[%s1 + $0x178] sm:$0xff]
  %v98 = vld [vmem:[%s1 + $0x180] sm:$0xff]
  %v99 = vld [vmem:[%s1 + $0x188] sm:$0xff]
  %v100 = vld [vmem:[%s1 + $0x190] sm:$0xff]
  %v101 = vld [vmem:[%s1 + $0x198] sm:$0xff]
  %v102 = vld [vmem:[%s1 + $0x1a0] sm:$0xff]
  %v103 = vld [vmem:[%s1 + $0x1a8] sm:$0xff]
  %v104 = vld [vmem:[%s1 + $0x1b0] sm:$0xff]
  %v105 = vld [vmem:[%s1 + $0x1b8] sm:$0xff]
  %v106 = vld [vmem:[%s1 + $0x1c0] sm:$0xff]
  %v107 = vld [vmem:[%s1 + $0x1c8] sm:$0xff]
  %v108 = vld [vmem:[%s1 + $0x1d0] sm:$0xff]
  %v109 = vld [vmem:[%s1 + $0x1d8] sm:$0xff]
  %v110 = vld [vmem:[%s1 + $0x1e0] sm:$0xff]
  %v111 = vld [vmem:[%s1 + $0x1e8] sm:$0xff]
  %v112 = vld [vmem:[%s1 + $0x1f0] sm:$0xff]
  %v113 = vld [vmem:[%s1 + $0x1f8] sm:$0xff]
  %v114 = vld [vmem:[%s1 + $0x200] sm:$0xff]
  %v115 = vld [vmem:[%s1 + $0x208] sm:$0xff]
  %v116 = vld [vmem:[%s1 + $0x210] sm:$0xff]
  %v117 = vld [vmem:[%s1 + $0x218] sm:$0xff]
  %v118 = vld [vmem:[%s1 + $0x220] sm:$0xff]
  %v119 = vld [vmem:[%s1 + $0x228] sm:$0xff]
  %v120 = vld [vmem:[%s1 + $0x230] sm:$0xff]
  %v121 = vld [vmem:[%s1 + $0x238] sm:$0xff]
  %v122 = vld [vmem:[%s1 + $0x240] sm:$0xff]
  %v123 = vld [vmem:[%s1 + $0x248] sm:$0xff]
  %v124 = vld [vmem:[%s1 + $0x250] sm:$0xff]
  %v125 = vld [vmem:[%s1 + $0x258] sm:$0xff]
  %v126 = vld [vmem:[%s1 + $0x260] sm:$0xff]
  %v127 = vld [vmem:[%s1 + $0x268] sm:$0xff]
  %v128 = vld [vmem:[%s1 + $0x270] sm:$0xff]
  %v129 = vld [vmem:[%s1 + $0x278] sm:$0xff]
  %v130 = vld [vmem:[%s1 + $0x280] sm:$0xff]
  %v131 = vld [vmem:[%s1 + $0x288] sm:$0xff]
  %v132 = vld [vmem:[%s1 + $0x290] sm:$0xff]
  %v133 = vld [vmem:[%s1 + $0x298] sm:$0xff]
  %v134 = vld [vmem:[%s1 + $0x2a0] sm:$0xff]
  %v135 = vld [vmem:[%s1 + $0x2a8] sm:$0xff]
  %v136 = vld [vmem:[%s1 + $0x2b0] sm:$0xff]
  %v137 = vld [vmem:[%s1 + $0x2b8] sm:$0xff]
  %v138 = vld [vmem:[%s1 + $0x2c0] sm:$0xff]
  %v139 = vld [vmem:[%s1 + $0x2c8] sm:$0xff]
  %v140 = vld [vmem:[%s1 + $0x2d0] sm:$0xff]
  %v141 = vld [vmem:[%s1 + $0x2d8] sm:$0xff]
  %v142 = vld [vmem:[%s1 + $0x2e0] sm:$0xff]
  %v143 = vld [vmem:[%s1 + $0x2e8] sm:$0xff]
  %v144 = vld [vmem:[%s1 + $0x2f0] sm:$0xff]
  %v145 = vld [vmem:[%s1 + $0x2f8] sm:$0xff]
  %v146 = vld [vmem:[%s1 + $0x300] sm:$0xff]
  %v147 = vld [vmem:[%s1 + $0x308] sm:$0xff]
  %v148 = vld [vmem:[%s1 + $0x310] sm:$0xff]
  %v149 = vld [vmem:[%s1 + $0x318] sm:$0xff]
  %v150 = vld [vmem:[%s1 + $0x320] sm:$0xff]
  %v151 = vld [vmem:[%s1 + $0x328] sm:$0xff]
  %v152 = vld [vmem:[%s1 + $0x330] sm:$0xff]
  %v153 = vld [vmem:[%s1 + $0x338] sm:$0xff]
  %v154 = vld [vmem:[%s1 + $0x340] sm:$0xff]
  %v155 = vld [vmem:[%s1 + $0x348] sm:$0xff]
  %v156 = vld [vmem:[%s1 + $0x350] sm:$0xff]
  %v157 = vld [vmem:[%s1 + $0x358] sm:$0xff]
  %v158 = vld [vmem:[%s1 + $0x360] sm:$0xff]
  %v159 = vld [vmem:[%s1 + $0x368] sm:$0xff]
  %v160 = vld [vmem:[%s1 + $0x370] sm:$0xff]
  %v161 = vld [vmem:[%s1 + $0x378] sm:$0xff]
  %v162 = vld [vmem:[%s1 + $0x380] sm:$0xff]
  %v163 = vld [vmem:[%s1 + $0x388] sm:$0xff]
  %v164 = vld [vmem:[%s1 + $0x390] sm:$0xff]
  %v165 = vld [vmem:[%s1 + $0x398] sm:$0xff]
  %v166 = vld [vmem:[%s1 + $0x3a0] sm:$0xff]
  %v167 = vld [vmem:[%s1 + $0x3a8] sm:$0xff]
  %v168 = vld [vmem:[%s1 + $0x3b0] sm:$0xff]
  %v169 = vld [vmem:[%s1 + $0x3b8] sm:$0xff]
  %v170 = vld [vmem:[%s1 + $0x3c0] sm:$0xff]
  %v171 = vld [vmem:[%s1 + $0x3c8] sm:$0xff]
  %v172 = vld [vmem:[%s1 + $0x3d0] sm:$0xff]
  %v173 = vld [vmem:[%s1 + $0x3d8] sm:$0xff]
  %v174 = vld [vmem:[%s1 + $0x3e0] sm:$0xff]
  %v175 = vld [vmem:[%s1 + $0x3e8] sm:$0xff]
  %v176 = vld [vmem:[%s1 + $0x3f0] sm:$0xff]
  %v177 = vld [vmem:[%s1 + $0x3f8] sm:$0xff]
  %v178 = vld [vmem:[%s1 + $0x400] sm:$0xff]
  %v179 = vld [vmem:[%s1 + $0x408] sm:$0xff]
  %v180 = vld [vmem:[%s1 + $0x410] sm:$0xff]
  %v181 = vld [vmem:[%s1 + $0x418] sm:$0xff]
  %v182 = vld [vmem:[%s1 + $0x420] sm:$0xff]
  %v183 = vld [vmem:[%s1 + $0x428] sm:$0xff]
  %v184 = vld [vmem:[%s1 + $0x430] sm:$0xff]
  %v185 = vld [vmem:[%s1 + $0x438] sm:$0xff]
  %v186 = vld [vmem:[%s1 + $0x440] sm:$0xff]
  %v187 = vld [vmem:[%s1 + $0x448] sm:$0xff]
  %v188 = vld [vmem:[%s1 + $0x450] sm:$0xff]
  %v189 = vld [vmem:[%s1 + $0x458] sm:$0xff]
  %v190 = vld [vmem:[%s1 + $0x460] sm:$0xff]
  %v191 = vld [vmem:[%s1 + $0x468] sm:$0xff]
  %v192 = vld [vmem:[%s1 + $0x470] sm:$0xff]
  %v193 = vld [vmem:[%s1 + $0x478] sm:$0xff]
  %v194 = vld [vmem:[%s1 + $0x480] sm:$0xff]
  %v195 = vld [vmem:[%s1 + $0x488] sm:$0xff]
  %v196 = vld [vmem:[%s1 + $0x490] sm:$0xff]
  %v197 = vld [vmem:[%s1 + $0x498] sm:$0xff]
  %v198 = vld [vmem:[%s1 + $0x4a0] sm:$0xff]
  %v199 = vld [vmem:[%s1 + $0x4a8] sm:$0xff]
  %v200 = vld [vmem:[%s1 + $0x4b0] sm:$0xff]
  %v201 = vld [vmem:[%s1 + $0x4b8] sm:$0xff]
  %v202 = vld [vmem:[%s1 + $0x4c0] sm:$0xff]
  %v203 = vld [vmem:[%s1 + $0x4c8] sm:$0xff]
  %v204 = vld [vmem:[%s1 + $0x4d0] sm:$0xff]
  %v205 = vld [vmem:[%s1 + $0x4d8] sm:$0xff]
  %v206 = vld [vmem:[%s1 + $0x4e0] sm:$0xff]
  %v207 = vld [vmem:[%s1 + $0x4e8] sm:$0xff]
  %v208 = vld [vmem:[%s1 + $0x4f0] sm:$0xff]
  %v209 = vld [vmem:[%s1 + $0x4f8] sm:$0xff]
  %v210 = vld [vmem:[%s1 + $0x500] sm:$0xff]
  %v211 = vld [vmem:[%s1 + $0x508] sm:$0xff]
  %v212 = vld [vmem:[%s1 + $0x510] sm:$0xff]
  %v213 = vld [vmem:[%s1 + $0x518] sm:$0xff]
  %v214 = vld [vmem:[%s1 + $0x520] sm:$0xff]
  %v215 = vld [vmem:[%s1 + $0x528] sm:$0xff]
  %v216 = vld [vmem:[%s1 + $0x530] sm:$0xff]
  %v217 = vld [vmem:[%s1 + $0x538] sm:$0xff]
  %v218 = vld [vmem:[%s1 + $0x540] sm:$0xff]
  %v219 = vld [vmem:[%s1 + $0x548] sm:$0xff]
  %v220 = vld [vmem:[%s1 + $0x550] sm:$0xff]
  %v221 = vld [vmem:[%s1 + $0x558] sm:$0xff]
  %v222 = vld [vmem:[%s1 + $0x560] sm:$0xff]
  %v223 = vld [vmem:[%s1 + $0x568] sm:$0xff]
  %v224 = vld [vmem:[%s1 + $0x570] sm:$0xff]
  %v225 = vld [vmem:[%s1 + $0x578] sm:$0xff]
  %v226 = vld [vmem:[%s1 + $0x580] sm:$0xff]
  %v227 = vld [vmem:[%s1 + $0x588] sm:$0xff]
  %v228 = vld [vmem:[%s1 + $0x590] sm:$0xff]
  %v229 = vld [vmem:[%s1 + $0x598] sm:$0xff]
  %v230 = vld [vmem:[%s1 + $0x5a0] sm:$0xff]
  %v231 = vld [vmem:[%s1 + $0x5a8] sm:$0xff]
  %v232 = vld [vmem:[%s1 + $0x5b0] sm:$0xff]
  %v233 = vld [vmem:[%s1 + $0x5b8] sm:$0xff]
  %v234 = vld [vmem:[%s1 + $0x5c0] sm:$0xff]
  %v235 = vld [vmem:[%s1 + $0x5c8] sm:$0xff]
  %v236 = vld [vmem:[%s1 + $0x5d0] sm:$0xff]
  %v237 = vld [vmem:[%s1 + $0x5d8] sm:$0xff]
  %v238 = vld [vmem:[%s1 + $0x5e0] sm:$0xff]
  %v239 = vld [vmem:[%s1 + $0x5e8] sm:$0xff]
  %v240 = vld [vmem:[%s1 + $0x5f0] sm:$0xff]
  %v241 = vld [vmem:[%s1 + $0x5f8] sm:$0xff]
  %v242 = vld [vmem:[%s1 + $0x600] sm:$0xff]
  %v243 = vld [vmem:[%s1 + $0x608] sm:$0xff]
  %v244 = vld [vmem:[%s1 + $0x610] sm:$0xff]
  %v245 = vld [vmem:[%s1 + $0x618] sm:$0xff]
  %v246 = vld [vmem:[%s1 + $0x620] sm:$0xff]
  %v247 = vld [vmem:[%s1 + $0x628] sm:$0xff]
  %v248 = vld [vmem:[%s1 + $0x630] sm:$0xff]
  %v249 = vld [vmem:[%s1 + $0x638] sm:$0xff]
  %v250 = vld [vmem:[%s1 + $0x640] sm:$0xff]
  %v251 = vld [vmem:[%s1 + $0x648] sm:$0xff]
  %v252 = vld [vmem:[%s1 + $0x650] sm:$0xff]
  %v253 = vld [vmem:[%s1 + $0x658] sm:$0xff]
  %v254 = vld [vmem:[%s1 + $0x660] sm:$0xff]
  %v255 = vld [vmem:[%s1 + $0x668] sm:$0xff]
  %v256 = vld [vmem:[%s1 + $0x670] sm:$0xff]
  %v257 = vld [vmem:[%s1 + $0x678] sm:$0xff]
  %v258 = vld [vmem:[%s1 + $0x680] sm:$0xff]
  %v259 = vld [vmem:[%s1 + $0x688] sm:$0xff]
  %v260 = vld [vmem:[%s1 + $0x690] sm:$0xff]
  %v261 = vld [vmem:[%s1 + $0x698] sm:$0xff]
  %v262 = vld [vmem:[%s1 + $0x6a0] sm:$0xff]
  %v263 = vld [vmem:[%s1 + $0x6a8] sm:$0xff]
  %v264 = vld [vmem:[%s1 + $0x6b0] sm:$0xff]
  %v265 = vld [vmem:[%s1 + $0x6b8] sm:$0xff]
  %v266 = vld [vmem:[%s1 + $0x6c0] sm:$0xff]
  %v267 = vld [vmem:[%s1 + $0x6c8] sm:$0xff]
  %v268 = vld [vmem:[%s1 + $0x6d0] sm:$0xff]
  %v269 = vld [vmem:[%s1 + $0x6d8] sm:$0xff]
  %v270 = vld [vmem:[%s1 + $0x6e0] sm:$0xff]
  %v271 = vld [vmem:[%s1 + $0x6e8] sm:$0xff]
  %v272 = vld [vmem:[%s1 + $0x6f0] sm:$0xff]
  %v273 = vld [vmem:[%s1 + $0x6f8] sm:$0xff]
  %v274 = vld [vmem:[%s1 + $0x700] sm:$0xff]
  %v275 = vld [vmem:[%s1 + $0x708] sm:$0xff]
  %v276 = vld [vmem:[%s1 + $0x710] sm:$0xff]
  %v277 = vld [vmem:[%s1 + $0x718] sm:$0xff]
  %v278 = vld [vmem:[%s1 + $0x720] sm:$0xff]
  %v279 = vld [vmem:[%s1 + $0x728] sm:$0xff]
  %v280 = vld [vmem:[%s1 + $0x730] sm:$0xff]
  %v281 = vld [vmem:[%s1 + $0x738] sm:$0xff]
  %v282 = vld [vmem:[%s1 + $0x740] sm:$0xff]
  %v283 = vld [vmem:[%s1 + $0x748] sm:$0xff]
  %v284 = vld [vmem:[%s1 + $0x750] sm:$0xff]
  %v285 = vld [vmem:[%s1 + $0x758] sm:$0xff]
  %v286 = vld [vmem:[%s1 + $0x760] sm:$0xff]
  %v287 = vld [vmem:[%s1 + $0x768] sm:$0xff]
  %v288 = vld [vmem:[%s1 + $0x770] sm:$0xff]
  %v289 = vld [vmem:[%s1 + $0x778] sm:$0xff]
  %v290 = vld [vmem:[%s1 + $0x780] sm:$0xff]
  %v291 = vld [vmem:[%s1 + $0x788] sm:$0xff]
  %v292 = vld [vmem:[%s1 + $0x790] sm:$0xff]
  %v293 = vld [vmem:[%s1 + $0x798] sm:$0xff]
  %v294 = vld [vmem:[%s1 + $0x7a0] sm:$0xff]
  %v295 = vld [vmem:[%s1 + $0x7a8] sm:$0xff]
  %v296 = vld [vmem:[%s1 + $0x7b0] sm:$0xff]
  %v297 = vld [vmem:[%s1 + $0x7b8] sm:$0xff]
  %v298 = vld [vmem:[%s1 + $0x7c0] sm:$0xff]
  %v299 = vld [vmem:[%s1 + $0x7c8] sm:$0xff]
  %v300 = vld [vmem:[%s1 + $0x7d0] sm:$0xff]
  %v301 = vld [vmem:[%s1 + $0x7d8] sm:$0xff]
  %v302 = vld [vmem:[%s1 + $0x7e0] sm:$0xff]
  %v303 = vld [vmem:[%s1 + $0x7e8] sm:$0xff]
  %v304 = vld [vmem:[%s1 + $0x7f0] sm:$0xff]
  %v305 = vld [vmem:[%s1 + $0x7f8] sm:$0xff]
  %v306 = vld [vmem:[%s1 + $0x800] sm:$0xff]
  %v307 = vld [vmem:[%s1 + $0x808] sm:$0xff]
  %v308 = vld [vmem:[%s1 + $0x810] sm:$0xff]
  %v309 = vld [vmem:[%s1 + $0x818] sm:$0xff]
  %v310 = vld [vmem:[%s1 + $0x820] sm:$0xff]
  %v311 = vld [vmem:[%s1 + $0x828] sm:$0xff]
  %v312 = vld [vmem:[%s1 + $0x830] sm:$0xff]
  %v313 = vld [vmem:[%s1 + $0x838] sm:$0xff]
  %v314 = vld [vmem:[%s1 + $0x840] sm:$0xff]
  %v315 = vld [vmem:[%s1 + $0x848] sm:$0xff]
  %v316 = vld [vmem:[%s1 + $0x850] sm:$0xff]
  %v317 = vld [vmem:[%s1 + $0x858] sm:$0xff]
  %v318 = vld [vmem:[%s1 + $0x860] sm:$0xff]
  %v319 = vld [vmem:[%s1 + $0x868] sm:$0xff]
  %v320 = vld [vmem:[%s1 + $0x870] sm:$0xff]
  %v321 = vld [vmem:[%s1 + $0x878] sm:$0xff]
  %v322 = vld [vmem:[%s1 + $0x880] sm:$0xff]
  %v323 = vld [vmem:[%s1 + $0x888] sm:$0xff]
  %v324 = vld [vmem:[%s1 + $0x890] sm:$0xff]
  %v325 = vld [vmem:[%s1 + $0x898] sm:$0xff]
  %v326 = vld [vmem:[%s1 + $0x8a0] sm:$0xff]
  %v327 = vld [vmem:[%s1 + $0x8a8] sm:$0xff]
  %v328 = vld [vmem:[%s1 + $0x8b0] sm:$0xff]
  %v329 = vld [vmem:[%s1 + $0x8b8] sm:$0xff]
  %v330 = vld [vmem:[%s1 + $0x8c0] sm:$0xff]
  %v331 = vld [vmem:[%s1 + $0x8c8] sm:$0xff]
  %v332 = vld [vmem:[%s1 + $0x8d0] sm:$0xff]
  %v333 = vld [vmem:[%s1 + $0x8d8] sm:$0xff]
  %v334 = vld [vmem:[%s1 + $0x8e0] sm:$0xff]
  %v335 = vld [vmem:[%s1 + $0x8e8] sm:$0xff]
  %v336 = vld [vmem:[%s1 + $0x8f0] sm:$0xff]
  %v337 = vld [vmem:[%s1 + $0x8f8] sm:$0xff]
  %v338 = vld [vmem:[%s1 + $0x900] sm:$0xff]
  %v339 = vld [vmem:[%s1 + $0x908] sm:$0xff]
  %v340 = vld [vmem:[%s1 + $0x910] sm:$0xff]
  %v341 = vld [vmem:[%s1 + $0x918] sm:$0xff]
  %v342 = vld [vmem:[%s1 + $0x920] sm:$0xff]
  %v343 = vld [vmem:[%s1 + $0x928] sm:$0xff]
  %v344 = vld [vmem:[%s1 + $0x930] sm:$0xff]
  %v345 = vld [vmem:[%s1 + $0x938] sm:$0xff]
  %v346 = vld [vmem:[%s1 + $0x940] sm:$0xff]
  %v347 = vld [vmem:[%s1 + $0x948] sm:$0xff]
  %v348 = vld [vmem:[%s1 + $0x950] sm:$0xff]
  %v349 = vld [vmem:[%s1 + $0x958] sm:$0xff]
  %v350 = vld [vmem:[%s1 + $0x960] sm:$0xff]
  %v351 = vld [vmem:[%s1 + $0x968] sm:$0xff]
  %v352 = vld [vmem:[%s1 + $0x970] sm:$0xff]
  %v353 = vld [vmem:[%s1 + $0x978] sm:$0xff]
  %v354 = vld [vmem:[%s1 + $0x980] sm:$0xff]
  %v355 = vld [vmem:[%s1 + $0x988] sm:$0xff]
  %v356 = vld [vmem:[%s1 + $0x990] sm:$0xff]
  %v357 = vld [vmem:[%s1 + $0x998] sm:$0xff]
  %v358 = vld [vmem:[%s1 + $0x9a0] sm:$0xff]
  %v359 = vld [vmem:[%s1 + $0x9a8] sm:$0xff]
  %v360 = vld [vmem:[%s1 + $0x9b0] sm:$0xff]
  %v361 = vld [vmem:[%s1 + $0x9b8] sm:$0xff]
  %v362 = vld [vmem:[%s1 + $0x9c0] sm:$0xff]
  %v363 = vld [vmem:[%s1 + $0x9c8] sm:$0xff]
  %v364 = vld [vmem:[%s1 + $0x9d0] sm:$0xff]
  %v365 = vld [vmem:[%s1 + $0x9d8] sm:$0xff]
  %v366 = vld [vmem:[%s1 + $0x9e0] sm:$0xff]
  %v367 = vld [vmem:[%s1 + $0x9e8] sm:$0xff]
  %v368 = vld [vmem:[%s1 + $0x9f0] sm:$0xff]
  %v369 = vld [vmem:[%s1 + $0x9f8] sm:$0xff]
  %v370 = vld [vmem:[%s1 + $0xa00] sm:$0xff]
  %v371 = vld [vmem:[%s1 + $0xa08] sm:$0xff]
  %v372 = vld [vmem:[%s1 + $0xa10] sm:$0xff]
  %v373 = vld [vmem:[%s1 + $0xa18] sm:$0xff]
  %v374 = vld [vmem:[%s1 + $0xa20] sm:$0xff]
  %v375 = vld [vmem:[%s1 + $0xa28] sm:$0xff]
  %v376 = vld [vmem:[%s1 + $0xa30] sm:$0xff]
  %v377 = vld [vmem:[%s1 + $0xa38] sm:$0xff]
  %v378 = vld [vmem:[%s1 + $0xa40] sm:$0xff]
  %v379 = vld [vmem:[%s1 + $0xa48] sm:$0xff]
  %v380 = vld [vmem:[%s1 + $0xa50] sm:$0xff]
  %v381 = vld [vmem:[%s1 + $0xa58] sm:$0xff]
  %v382 = vld [vmem:[%s1 + $0xa60] sm:$0xff]
  %v383 = vld [vmem:[%s1 + $0xa68] sm:$0xff]
  %v384 = vld [vmem:[%s1 + $0xa70] sm:$0xff]
  %v385 = vld [vmem:[%s1 + $0xa78] sm:$0xff]
  %v386 = vld [vmem:[%s1 + $0xa80] sm:$0xff]
  %v387 = vld [vmem:[%s1 + $0xa88] sm:$0xff]
  %v388 = vld [vmem:[%s1 + $0xa90] sm:$0xff]
  %v389 = vld [vmem:[%s1 + $0xa98] sm:$0xff]
  %v390 = vld [vmem:[%s1 + $0xaa0] sm:$0xff]
  %v391 = vld [vmem:[%s1 + $0xaa8] sm:$0xff]
  %v392 = vld [vmem:[%s1 + $0xab0] sm:$0xff]
  %v393 = vld [vmem:[%s1 + $0xab8] sm:$0xff]
  %v394 = vld [vmem:[%s1 + $0xac0] sm:$0xff]
  %v395 = vld [vmem:[%s1 + $0xac8] sm:$0xff]
  %v396 = vld [vmem:[%s1 + $0xad0] sm:$0xff]
  %v397 = vld [vmem:[%s1 + $0xad8] sm:$0xff]
  %v398 = vld [vmem:[%s1 + $0xae0] sm:$0xff]
  %v399 = vld [vmem:[%s1 + $0xae8] sm:$0xff]
  %v400 = vld [vmem:[%s1 + $0xaf0] sm:$0xff]
  %v401 = vld [vmem:[%s1 + $0xaf8] sm:$0xff]
  %v402 = vld [vmem:[%s1 + $0xb00] sm:$0xff]
  %v403 = vld [vmem:[%s1 + $0xb08] sm:$0xff]
  %v404 = vld [vmem:[%s1 + $0xb10] sm:$0xff]
  %v405 = vld [vmem:[%s1 + $0xb18] sm:$0xff]
  %v406 = vld [vmem:[%s1 + $0xb20] sm:$0xff]
  %v407 = vld [vmem:[%s1 + $0xb28] sm:$0xff]
  %v408 = vld [vmem:[%s1 + $0xb30] sm:$0xff]
  %v409 = vld [vmem:[%s1 + $0xb38] sm:$0xff]
  %v410 = vld [vmem:[%s1 + $0xb40] sm:$0xff]
  %v411 = vld [vmem:[%s1 + $0xb48] sm:$0xff]
  %v412 = vld [vmem:[%s1 + $0xb50] sm:$0xff]
  %v413 = vld [vmem:[%s1 + $0xb58] sm:$0xff]
  %v414 = vld [vmem:[%s1 + $0xb60] sm:$0xff]
  %v415 = vld [vmem:[%s1 + $0xb68] sm:$0xff]
  %v416 = vld [vmem:[%s1 + $0xb70] sm:$0xff]
  %v417 = vld [vmem:[%s1 + $0xb78] sm:$0xff]
  %v418 = vld [vmem:[%s1 + $0xb80] sm:$0xff]
  %v419 = vld [vmem:[%s1 + $0xb88] sm:$0xff]
  %v420 = vld [vmem:[%s1 + $0xb90] sm:$0xff]
  %v421 = vld [vmem:[%s1 + $0xb98] sm:$0xff]
  %v422 = vld [vmem:[%s1 + $0xba0] sm:$0xff]
  %v423 = vld [vmem:[%s1 + $0xba8] sm:$0xff]
  %v424 = vld [vmem:[%s1 + $0xbb0] sm:$0xff]
  %v425 = vld [vmem:[%s1 + $0xbb8] sm:$0xff]
  %v426 = vld [vmem:[%s1 + $0xbc0] sm:$0xff]
  %v427 = vld [vmem:[%s1 + $0xbc8] sm:$0xff]
  %v428 = vld [vmem:[%s1 + $0xbd0] sm:$0xff]
  %v429 = vld [vmem:[%s1 + $0xbd8] sm:$0xff]
  %v430 = vld [vmem:[%s1 + $0xbe0] sm:$0xff]
  %v431 = vld [vmem:[%s1 + $0xbe8] sm:$0xff]
  %v432 = vld [vmem:[%s1 + $0xbf0] sm:$0xff]
  %v433 = vld [vmem:[%s1 + $0xbf8] sm:$0xff]
  %v434 = vld [vmem:[%s1 + $0xc00] sm:$0xff]
  %v435 = vld [vmem:[%s1 + $0xc08] sm:$0xff]
  %v436 = vld [vmem:[%s1 + $0xc10] sm:$0xff]
  %v437 = vld [vmem:[%s1 + $0xc18] sm:$0xff]
  %v438 = vld [vmem:[%s1 + $0xc20] sm:$0xff]
  %v439 = vld [vmem:[%s1 + $0xc28] sm:$0xff]
  %v440 = vld [vmem:[%s1 + $0xc30] sm:$0xff]
  %v441 = vld [vmem:[%s1 + $0xc38] sm:$0xff]
  %v442 = vld [vmem:[%s1 + $0xc40] sm:$0xff]
  %v443 = vld [vmem:[%s1 + $0xc48] sm:$0xff]
  %v444 = vld [vmem:[%s1 + $0xc50] sm:$0xff]
  %v445 = vld [vmem:[%s1 + $0xc58] sm:$0xff]
  %v446 = vld [vmem:[%s1 + $0xc60] sm:$0xff]
  %v447 = vld [vmem:[%s1 + $0xc68] sm:$0xff]
  %v448 = vld [vmem:[%s1 + $0xc70] sm:$0xff]
  %v449 = vld [vmem:[%s1 + $0xc78] sm:$0xff]
  %v450 = vld [vmem:[%s1 + $0xc80] sm:$0xff]
  %v451 = vld [vmem:[%s1 + $0xc88] sm:$0xff]
  %v452 = vld [vmem:[%s1 + $0xc90] sm:$0xff]
  %v453 = vld [vmem:[%s1 + $0xc98] sm:$0xff]
  %v454 = vld [vmem:[%s1 + $0xca0] sm:$0xff]
  %v455 = vld [vmem:[%s1 + $0xca8] sm:$0xff]
  %v456 = vld [vmem:[%s1 + $0xcb0] sm:$0xff]
  %v457 = vld [vmem:[%s1 + $0xcb8] sm:$0xff]
  %v458 = vld [vmem:[%s1 + $0xcc0] sm:$0xff]
  %v459 = vld [vmem:[%s1 + $0xcc8] sm:$0xff]
  %v460 = vld [vmem:[%s1 + $0xcd0] sm:$0xff]
  %v461 = vld [vmem:[%s1 + $0xcd8] sm:$0xff]
  %v462 = vld [vmem:[%s1 + $0xce0] sm:$0xff]
  %v463 = vld [vmem:[%s1 + $0xce8] sm:$0xff]
  %v464 = vld [vmem:[%s1 + $0xcf0] sm:$0xff]
  %v465 = vld [vmem:[%s1 + $0xcf8] sm:$0xff]
  %v466 = vld [vmem:[%s1 + $0xd00] sm:$0xff]
  %v467 = vld [vmem:[%s1 + $0xd08] sm:$0xff]
  %v468 = vld [vmem:[%s1 + $0xd10] sm:$0xff]
  %v469 = vld [vmem:[%s1 + $0xd18] sm:$0xff]
  %v470 = vld [vmem:[%s1 + $0xd20] sm:$0xff]
  %v471 = vld [vmem:[%s1 + $0xd28] sm:$0xff]
  %v472 = vld [vmem:[%s1 + $0xd30] sm:$0xff]
  %v473 = vld [vmem:[%s1 + $0xd38] sm:$0xff]
  %v474 = vld [vmem:[%s1 + $0xd40] sm:$0xff]
  %v475 = vld [vmem:[%s1 + $0xd48] sm:$0xff]
  %v476 = vld [vmem:[%s1 + $0xd50] sm:$0xff]
  %v477 = vld [vmem:[%s1 + $0xd58] sm:$0xff]
  %v478 = vld [vmem:[%s1 + $0xd60] sm:$0xff]
  %v479 = vld [vmem:[%s1 + $0xd68] sm:$0xff]
  %v480 = vld [vmem:[%s1 + $0xd70] sm:$0xff]
  %v481 = vld [vmem:[%s1 + $0xd78] sm:$0xff]
  %v482 = vld [vmem:[%s1 + $0xd80] sm:$0xff]
  %v483 = vld [vmem:[%s1 + $0xd88] sm:$0xff]
  %v484 = vld [vmem:[%s1 + $0xd90] sm:$0xff]
  %v485 = vld [vmem:[%s1 + $0xd98] sm:$0xff]
  %v486 = vld [vmem:[%s1 + $0xda0] sm:$0xff]
  %v487 = vld [vmem:[%s1 + $0xda8] sm:$0xff]
  %v488 = vld [vmem:[%s1 + $0xdb0] sm:$0xff]
  %v489 = vld [vmem:[%s1 + $0xdb8] sm:$0xff]
  %v490 = vld [vmem:[%s1 + $0xdc0] sm:$0xff]
  %v491 = vld [vmem:[%s1 + $0xdc8] sm:$0xff]
  %v492 = vld [vmem:[%s1 + $0xdd0] sm:$0xff]
  %v493 = vld [vmem:[%s1 + $0xdd8] sm:$0xff]
  %v494 = vld [vmem:[%s1 + $0xde0] sm:$0xff]
  %v495 = vld [vmem:[%s1 + $0xde8] sm:$0xff]
  %v496 = vld [vmem:[%s1 + $0xdf0] sm:$0xff]
  %v497 = vld [vmem:[%s1 + $0xdf8] sm:$0xff]
  %v498 = vld [vmem:[%s1 + $0xe00] sm:$0xff]
  %v499 = vld [vmem:[%s1 + $0xe08] sm:$0xff]
  %v500 = vld [vmem:[%s1 + $0xe10] sm:$0xff]
  %v501 = vld [vmem:[%s1 + $0xe18] sm:$0xff]
  %v502 = vld [vmem:[%s1 + $0xe20] sm:$0xff]
  %v503 = vld [vmem:[%s1 + $0xe28] sm:$0xff]
  %v504 = vld [vmem:[%s1 + $0xe30] sm:$0xff]
  %v505 = vld [vmem:[%s1 + $0xe38] sm:$0xff]
  %v506 = vld [vmem:[%s1 + $0xe40] sm:$0xff]
  %v507 = vld [vmem:[%s1 + $0xe48] sm:$0xff]
  %v508 = vld [vmem:[%s1 + $0xe50] sm:$0xff]
  %v509 = vld [vmem:[%s1 + $0xe58] sm:$0xff]
  %v510 = vld [vmem:[%s1 + $0xe60] sm:$0xff]
  %v511 = vld [vmem:[%s1 + $0xe68] sm:$0xff]
  %v512 = vld [vmem:[%s1 + $0xe70] sm:$0xff]
  %v513 = vld [vmem:[%s1 + $0xe78] sm:$0xff]
  %v514 = vld [vmem:[%s1 + $0xe80] sm:$0xff]
  %v515 = vld [vmem:[%s1 + $0xe88] sm:$0xff]
  %v516 = vld [vmem:[%s1 + $0xe90] sm:$0xff]
  %v517 = vld [vmem:[%s1 + $0xe98] sm:$0xff]
  %v518 = vld [vmem:[%s1 + $0xea0] sm:$0xff]
  %v519 = vld [vmem:[%s1 + $0xea8] sm:$0xff]
  %v520 = vld [vmem:[%s1 + $0xeb0] sm:$0xff]
  %v521 = vld [vmem:[%s1 + $0xeb8] sm:$0xff]
  %v522 = vld [vmem:[%s1 + $0xec0] sm:$0xff]
  %v523 = vld [vmem:[%s1 + $0xec8] sm:$0xff]
  %v524 = vld [vmem:[%s1 + $0xed0] sm:$0xff]
  %v525 = vld [vmem:[%s1 + $0xed8] sm:$0xff]
  %v526 = vld [vmem:[%s1 + $0xee0] sm:$0xff]
  %v527 = vld [vmem:[%s1 + $0xee8] sm:$0xff]
  %v528 = vld [vmem:[%s1 + $0xef0] sm:$0xff]
  %v529 = vld [vmem:[%s1 + $0xef8] sm:$0xff]
  %v530 = vld [vmem:[%s1 + $0xf00] sm:$0xff]
  %v531 = vld [vmem:[%s1 + $0xf08] sm:$0xff]
  %v532 = vld [vmem:[%s1 + $0xf10] sm:$0xff]
  %v533 = vld [vmem:[%s1 + $0xf18] sm:$0xff]
  %v534 = vld [vmem:[%s1 + $0xf20] sm:$0xff]
  %v535 = vld [vmem:[%s1 + $0xf28] sm:$0xff]
  %v536 = vld [vmem:[%s1 + $0xf30] sm:$0xff]
  %v537 = vld [vmem:[%s1 + $0xf38] sm:$0xff]
  %v538 = vld [vmem:[%s1 + $0xf40] sm:$0xff]
  %v539 = vld [vmem:[%s1 + $0xf48] sm:$0xff]
  %v540 = vld [vmem:[%s1 + $0xf50] sm:$0xff]
  %v541 = vld [vmem:[%s1 + $0xf58] sm:$0xff]
  %v542 = vld [vmem:[%s1 + $0xf60] sm:$0xff]
  %v543 = vld [vmem:[%s1 + $0xf68] sm:$0xff]
  %v544 = vld [vmem:[%s1 + $0xf70] sm:$0xff]
  %v545 = vld [vmem:[%s1 + $0xf78] sm:$0xff]
  %v546 = vld [vmem:[%s1 + $0xf80] sm:$0xff]
  %v547 = vld [vmem:[%s1 + $0xf88] sm:$0xff]
  %v548 = vld [vmem:[%s1 + $0xf90] sm:$0xff]
  %v549 = vld [vmem:[%s1 + $0xf98] sm:$0xff]
  %v550 = vld [vmem:[%s1 + $0xfa0] sm:$0xff]
  %v551 = vld [vmem:[%s1 + $0xfa8] sm:$0xff]
  %v552 = vld [vmem:[%s1 + $0xfb0] sm:$0xff]
  %v553 = vld [vmem:[%s1 + $0xfb8] sm:$0xff]
  %v554 = vld [vmem:[%s1 + $0xfc0] sm:$0xff]
  %v555 = vld [vmem:[%s1 + $0xfc8] sm:$0xff]
  %v556 = vld [vmem:[%s1 + $0xfd0] sm:$0xff]
  %v557 = vld [vmem:[%s1 + $0xfd8] sm:$0xff]
  %v558 = vld [vmem:[%s1 + $0xfe0] sm:$0xff]
  %v559 = vld [vmem:[%s1 + $0xfe8] sm:$0xff]
  %v560 = vld [vmem:[%s1 + $0xff0] sm:$0xff]
  %v561 = vld [vmem:[%s1 + $0xff8] sm:$0xff]
  %v562 = vld [vmem:[%s1 + $0x1000] sm:$0xff]
  %v563 = vld [vmem:[%s1 + $0x1008] sm:$0xff]
  %v564 = vld [vmem:[%s1 + $0x1010] sm:$0xff]
  %v565 = vld [vmem:[%s1 + $0x1018] sm:$0xff]
  %v566 = vld [vmem:[%s1 + $0x1020] sm:$0xff]
  %v567 = vld [vmem:[%s1 + $0x1028] sm:$0xff]
  %v568 = vld [vmem:[%s1 + $0x1030] sm:$0xff]
  %v569 = vld [vmem:[%s1 + $0x1038] sm:$0xff]
  %v570 = vld [vmem:[%s1 + $0x1040] sm:$0xff]
  %v571 = vld [vmem:[%s1 + $0x1048] sm:$0xff]
  %v572 = vld [vmem:[%s1 + $0x1050] sm:$0xff]
  %v573 = vld [vmem:[%s1 + $0x1058] sm:$0xff]
  %v574 = vld [vmem:[%s1 + $0x1060] sm:$0xff]
  %v575 = vld [vmem:[%s1 + $0x1068] sm:$0xff]
  %v576 = vld [vmem:[%s1 + $0x1070] sm:$0xff]
  %v577 = vld [vmem:[%s1 + $0x1078] sm:$0xff]
  %v578 = vld [vmem:[%s1 + $0x1080] sm:$0xff]
  %v579 = vld [vmem:[%s1 + $0x1088] sm:$0xff]
  %v580 = vld [vmem:[%s1 + $0x1090] sm:$0xff]
  %v581 = vld [vmem:[%s1 + $0x1098] sm:$0xff]
  %v582 = vld [vmem:[%s1 + $0x10a0] sm:$0xff]
  %v583 = vld [vmem:[%s1 + $0x10a8] sm:$0xff]
  %v584 = vld [vmem:[%s1 + $0x10b0] sm:$0xff]
  %v585 = vld [vmem:[%s1 + $0x10b8] sm:$0xff]
  %v586 = vld [vmem:[%s1 + $0x10c0] sm:$0xff]
  %v587 = vld [vmem:[%s1 + $0x10c8] sm:$0xff]
  %v588 = vld [vmem:[%s1 + $0x10d0] sm:$0xff]
  %v589 = vld [vmem:[%s1 + $0x10d8] sm:$0xff]
  %v590 = vld [vmem:[%s1 + $0x10e0] sm:$0xff]
  %v591 = vld [vmem:[%s1 + $0x10e8] sm:$0xff]
  %v592 = vld [vmem:[%s1 + $0x10f0] sm:$0xff]
  %v593 = vld [vmem:[%s1 + $0x10f8] sm:$0xff]
  %v594 = vld [vmem:[%s1 + $0x1100] sm:$0xff]
  %v595 = vld [vmem:[%s1 + $0x1108] sm:$0xff]
  %v596 = vld [vmem:[%s1 + $0x1110] sm:$0xff]
  %v597 = vld [vmem:[%s1 + $0x1118] sm:$0xff]
  %v598 = vld [vmem:[%s1 + $0x1120] sm:$0xff]
  %v599 = vld [vmem:[%s1 + $0x1128] sm:$0xff]
  %v600 = vld [vmem:[%s1 + $0x1130] sm:$0xff]
  %v601 = vld [vmem:[%s1 + $0x1138] sm:$0xff]
  %v602 = vld [vmem:[%s1 + $0x1140] sm:$0xff]
  %v603 = vld [vmem:[%s1 + $0x1148] sm:$0xff]
  %v604 = vld [vmem:[%s1 + $0x1150] sm:$0xff]
  %v605 = vld [vmem:[%s1 + $0x1158] sm:$0xff]
  %v606 = vld [vmem:[%s1 + $0x1160] sm:$0xff]
  %v607 = vld [vmem:[%s1 + $0x1168] sm:$0xff]
  %v608 = vld [vmem:[%s1 + $0x1170] sm:$0xff]
  %v609 = vld [vmem:[%s1 + $0x1178] sm:$0xff]
  %v610 = vld [vmem:[%s1 + $0x1180] sm:$0xff]
  %v611 = vld [vmem:[%s1 + $0x1188] sm:$0xff]
  %v612 = vld [vmem:[%s1 + $0x1190] sm:$0xff]
  %v613 = vld [vmem:[%s1 + $0x1198] sm:$0xff]
  %v614 = vld [vmem:[%s1 + $0x11a0] sm:$0xff]
  %v615 = vld [vmem:[%s1 + $0x11a8] sm:$0xff]
  %v616 = vld [vmem:[%s1 + $0x11b0] sm:$0xff]
  %v617 = vld [vmem:[%s1 + $0x11b8] sm:$0xff]
  %v618 = vld [vmem:[%s1 + $0x11c0] sm:$0xff]
  %v619 = vld [vmem:[%s1 + $0x11c8] sm:$0xff]
  %v620 = vld [vmem:[%s1 + $0x11d0] sm:$0xff]
  %v621 = vld [vmem:[%s1 + $0x11d8] sm:$0xff]
  %v622 = vld [vmem:[%s1 + $0x11e0] sm:$0xff]
  %v623 = vld [vmem:[%s1 + $0x11e8] sm:$0xff]
  %v624 = vld [vmem:[%s1 + $0x11f0] sm:$0xff]
  %v625 = vld [vmem:[%s1 + $0x11f8] sm:$0xff]
  %v626 = vld [vmem:[%s2] sm:$0x1]
  %v628 = vperm.slane %v626, 0
  %630 = vmatpush.msra.mxu0 %v65
  %631 = vmatpush.msra.mxu0 %v64
  %632 = vmatpush.msra.mxu0 %v63
  %633 = vmatpush.msra.mxu0 %v62
  %634 = vmatpush.msra.mxu0 %v61
  %635 = vmatpush.msra.mxu0 %v60
  %636 = vmatpush.msra.mxu0 %v59
  %637 = vmatpush.msra.mxu0 %v58
  %638 = vmatpush.msra.mxu0 %v57
  %639 = vmatpush.msra.mxu0 %v56
  %640 = vmatpush.msra.mxu0 %v55
  %641 = vmatpush.msra.mxu0 %v54
  %642 = vmatpush.msra.mxu0 %v53
  %643 = vmatpush.msra.mxu0 %v52
  %644 = vmatpush.msra.mxu0 %v51
  %645 = vmatpush.msra.mxu0 %v50
  %646 = vmatmul.f32.gmra.mxu0 %v14
  %v647 = vpop.f32.mrf.mxu0
  %v648 = vadd.f32 %v628, %v647
  %649 = vdwg.mxu0
  %650 = vmatpush.msra.mxu0 %v81
  %651 = vmatpush.msra.mxu0 %v80
  %652 = vmatpush.msra.mxu0 %v79
  %653 = vmatpush.msra.mxu0 %v78
  %654 = vmatpush.msra.mxu0 %v77
  %655 = vmatpush.msra.mxu0 %v76
  %656 = vmatpush.msra.mxu0 %v75
  %657 = vmatpush.msra.mxu0 %v74
  %658 = vmatpush.msra.mxu0 %v73
  %659 = vmatpush.msra.mxu0 %v72
  %660 = vmatpush.msra.mxu0 %v71
  %661 = vmatpush.msra.mxu0 %v70
  %662 = vmatpush.msra.mxu0 %v69
  %663 = vmatpush.msra.mxu0 %v68
  %664 = vmatpush.msra.mxu0 %v67
  %665 = vmatpush.msra.mxu0 %v66
  %666 = vmatmul.f32.gmra.mxu0 %v15
  %v667 = vpop.f32.mrf.mxu0
  %v668 = vadd.f32 %v648, %v667
  %669 = vdwg.mxu0
  %670 = vmatpush.msra.mxu0 %v97
  %671 = vmatpush.msra.mxu0 %v96
  %672 = vmatpush.msra.mxu0 %v95
  %673 = vmatpush.msra.mxu0 %v94
  %674 = vmatpush.msra.mxu0 %v93
  %675 = vmatpush.msra.mxu0 %v92
  %676 = vmatpush.msra.mxu0 %v91
  %677 = vmatpush.msra.mxu0 %v90
  %678 = vmatpush.msra.mxu0 %v89
  %679 = vmatpush.msra.mxu0 %v88
  %680 = vmatpush.msra.mxu0 %v87
  %681 = vmatpush.msra.mxu0 %v86
  %682 = vmatpush.msra.mxu0 %v85
  %683 = vmatpush.msra.mxu0 %v84
  %684 = vmatpush.msra.mxu0 %v83
  %685 = vmatpush.msra.mxu0 %v82
  %686 = vmatmul.f32.gmra.mxu0 %v16
  %v687 = vpop.f32.mrf.mxu0
  %v688 = vadd.f32 %v668, %v687
  %689 = vdwg.mxu0
  %690 = vmatpush.msra.mxu0 %v113
  %691 = vmatpush.msra.mxu0 %v112
  %692 = vmatpush.msra.mxu0 %v111
  %693 = vmatpush.msra.mxu0 %v110
  %694 = vmatpush.msra.mxu0 %v109
  %695 = vmatpush.msra.mxu0 %v108
  %696 = vmatpush.msra.mxu0 %v107
  %697 = vmatpush.msra.mxu0 %v106
  %698 = vmatpush.msra.mxu0 %v105
  %699 = vmatpush.msra.mxu0 %v104
  %700 = vmatpush.msra.mxu0 %v103
  %701 = vmatpush.msra.mxu0 %v102
  %702 = vmatpush.msra.mxu0 %v101
  %703 = vmatpush.msra.mxu0 %v100
  %704 = vmatpush.msra.mxu0 %v99
  %705 = vmatpush.msra.mxu0 %v98
  %706 = vmatmul.f32.gmra.mxu0 %v17
  %v707 = vpop.f32.mrf.mxu0
  %v708 = vadd.f32 %v688, %v707
  %709 = vdwg.mxu0
  %710 = vmatpush.msra.mxu0 %v129
  %711 = vmatpush.msra.mxu0 %v128
  %712 = vmatpush.msra.mxu0 %v127
  %713 = vmatpush.msra.mxu0 %v126
  %714 = vmatpush.msra.mxu0 %v125
  %715 = vmatpush.msra.mxu0 %v124
  %716 = vmatpush.msra.mxu0 %v123
  %717 = vmatpush.msra.mxu0 %v122
  %718 = vmatpush.msra.mxu0 %v121
  %719 = vmatpush.msra.mxu0 %v120
  %720 = vmatpush.msra.mxu0 %v119
  %721 = vmatpush.msra.mxu0 %v118
  %722 = vmatpush.msra.mxu0 %v117
  %723 = vmatpush.msra.mxu0 %v116
  %724 = vmatpush.msra.mxu0 %v115
  %725 = vmatpush.msra.mxu0 %v114
  %726 = vmatmul.f32.gmra.mxu0 %v18
  %v727 = vpop.f32.mrf.mxu0
  %v728 = vadd.f32 %v708, %v727
  %729 = vdwg.mxu0
  %730 = vmatpush.msra.mxu0 %v145
  %731 = vmatpush.msra.mxu0 %v144
  %732 = vmatpush.msra.mxu0 %v143
  %733 = vmatpush.msra.mxu0 %v142
  %734 = vmatpush.msra.mxu0 %v141
  %735 = vmatpush.msra.mxu0 %v140
  %736 = vmatpush.msra.mxu0 %v139
  %737 = vmatpush.msra.mxu0 %v138
  %738 = vmatpush.msra.mxu0 %v137
  %739 = vmatpush.msra.mxu0 %v136
  %740 = vmatpush.msra.mxu0 %v135
  %741 = vmatpush.msra.mxu0 %v134
  %742 = vmatpush.msra.mxu0 %v133
  %743 = vmatpush.msra.mxu0 %v132
  %744 = vmatpush.msra.mxu0 %v131
  %745 = vmatpush.msra.mxu0 %v130
  %746 = vmatmul.f32.gmra.mxu0 %v19
  %v747 = vpop.f32.mrf.mxu0
  %v748 = vadd.f32 %v728, %v747
  %749 = vdwg.mxu0
  %750 = vmatpush.msra.mxu0 %v161
  %751 = vmatpush.msra.mxu0 %v160
  %752 = vmatpush.msra.mxu0 %v159
  %753 = vmatpush.msra.mxu0 %v158
  %754 = vmatpush.msra.mxu0 %v157
  %755 = vmatpush.msra.mxu0 %v156
  %756 = vmatpush.msra.mxu0 %v155
  %757 = vmatpush.msra.mxu0 %v154
  %758 = vmatpush.msra.mxu0 %v153
  %759 = vmatpush.msra.mxu0 %v152
  %760 = vmatpush.msra.mxu0 %v151
  %761 = vmatpush.msra.mxu0 %v150
  %762 = vmatpush.msra.mxu0 %v149
  %763 = vmatpush.msra.mxu0 %v148
  %764 = vmatpush.msra.mxu0 %v147
  %765 = vmatpush.msra.mxu0 %v146
  %766 = vmatmul.f32.gmra.mxu0 %v20
  %v767 = vpop.f32.mrf.mxu0
  %v768 = vadd.f32 %v748, %v767
  %769 = vdwg.mxu0
  %770 = vmatpush.msra.mxu0 %v177
  %771 = vmatpush.msra.mxu0 %v176
  %772 = vmatpush.msra.mxu0 %v175
  %773 = vmatpush.msra.mxu0 %v174
  %774 = vmatpush.msra.mxu0 %v173
  %775 = vmatpush.msra.mxu0 %v172
  %776 = vmatpush.msra.mxu0 %v171
  %777 = vmatpush.msra.mxu0 %v170
  %778 = vmatpush.msra.mxu0 %v169
  %779 = vmatpush.msra.mxu0 %v168
  %780 = vmatpush.msra.mxu0 %v167
  %781 = vmatpush.msra.mxu0 %v166
  %782 = vmatpush.msra.mxu0 %v165
  %783 = vmatpush.msra.mxu0 %v164
  %784 = vmatpush.msra.mxu0 %v163
  %785 = vmatpush.msra.mxu0 %v162
  %786 = vmatmul.f32.gmra.mxu0 %v21
  %v787 = vpop.f32.mrf.mxu0
  %v788 = vadd.f32 %v768, %v787
  %789 = vdwg.mxu0
  %790 = vmatpush.msra.mxu0 %v193
  %791 = vmatpush.msra.mxu0 %v192
  %792 = vmatpush.msra.mxu0 %v191
  %793 = vmatpush.msra.mxu0 %v190
  %794 = vmatpush.msra.mxu0 %v189
  %795 = vmatpush.msra.mxu0 %v188
  %796 = vmatpush.msra.mxu0 %v187
  %797 = vmatpush.msra.mxu0 %v186
  %798 = vmatpush.msra.mxu0 %v185
  %799 = vmatpush.msra.mxu0 %v184
  %800 = vmatpush.msra.mxu0 %v183
  %801 = vmatpush.msra.mxu0 %v182
  %802 = vmatpush.msra.mxu0 %v181
  %803 = vmatpush.msra.mxu0 %v180
  %804 = vmatpush.msra.mxu0 %v179
  %805 = vmatpush.msra.mxu0 %v178
  %806 = vmatmul.f32.gmra.mxu0 %v22
  %v807 = vpop.f32.mrf.mxu0
  %v808 = vadd.f32 %v788, %v807
  %809 = vdwg.mxu0
  %810 = vmatpush.msra.mxu0 %v209
  %811 = vmatpush.msra.mxu0 %v208
  %812 = vmatpush.msra.mxu0 %v207
  %813 = vmatpush.msra.mxu0 %v206
  %814 = vmatpush.msra.mxu0 %v205
  %815 = vmatpush.msra.mxu0 %v204
  %816 = vmatpush.msra.mxu0 %v203
  %817 = vmatpush.msra.mxu0 %v202
  %818 = vmatpush.msra.mxu0 %v201
  %819 = vmatpush.msra.mxu0 %v200
  %820 = vmatpush.msra.mxu0 %v199
  %821 = vmatpush.msra.mxu0 %v198
  %822 = vmatpush.msra.mxu0 %v197
  %823 = vmatpush.msra.mxu0 %v196
  %824 = vmatpush.msra.mxu0 %v195
  %825 = vmatpush.msra.mxu0 %v194
  %826 = vmatmul.f32.gmra.mxu0 %v23
  %v827 = vpop.f32.mrf.mxu0
  %v828 = vadd.f32 %v808, %v827
  %829 = vdwg.mxu0
  %830 = vmatpush.msra.mxu0 %v225
  %831 = vmatpush.msra.mxu0 %v224
  %832 = vmatpush.msra.mxu0 %v223
  %833 = vmatpush.msra.mxu0 %v222
  %834 = vmatpush.msra.mxu0 %v221
  %835 = vmatpush.msra.mxu0 %v220
  %836 = vmatpush.msra.mxu0 %v219
  %837 = vmatpush.msra.mxu0 %v218
  %838 = vmatpush.msra.mxu0 %v217
  %839 = vmatpush.msra.mxu0 %v216
  %840 = vmatpush.msra.mxu0 %v215
  %841 = vmatpush.msra.mxu0 %v214
  %842 = vmatpush.msra.mxu0 %v213
  %843 = vmatpush.msra.mxu0 %v212
  %844 = vmatpush.msra.mxu0 %v211
  %845 = vmatpush.msra.mxu0 %v210
  %846 = vmatmul.f32.gmra.mxu0 %v24
  %v847 = vpop.f32.mrf.mxu0
  %v848 = vadd.f32 %v828, %v847
  %849 = vdwg.mxu0
  %850 = vmatpush.msra.mxu0 %v241
  %851 = vmatpush.msra.mxu0 %v240
  %852 = vmatpush.msra.mxu0 %v239
  %853 = vmatpush.msra.mxu0 %v238
  %854 = vmatpush.msra.mxu0 %v237
  %855 = vmatpush.msra.mxu0 %v236
  %856 = vmatpush.msra.mxu0 %v235
  %857 = vmatpush.msra.mxu0 %v234
  %858 = vmatpush.msra.mxu0 %v233
  %859 = vmatpush.msra.mxu0 %v232
  %860 = vmatpush.msra.mxu0 %v231
  %861 = vmatpush.msra.mxu0 %v230
  %862 = vmatpush.msra.mxu0 %v229
  %863 = vmatpush.msra.mxu0 %v228
  %864 = vmatpush.msra.mxu0 %v227
  %865 = vmatpush.msra.mxu0 %v226
  %866 = vmatmul.f32.gmra.mxu0 %v25
  %v867 = vpop.f32.mrf.mxu0
  %v868 = vadd.f32 %v848, %v867
  %869 = vdwg.mxu0
  %870 = vmatpush.msra.mxu0 %v257
  %871 = vmatpush.msra.mxu0 %v256
  %872 = vmatpush.msra.mxu0 %v255
  %873 = vmatpush.msra.mxu0 %v254
  %874 = vmatpush.msra.mxu0 %v253
  %875 = vmatpush.msra.mxu0 %v252
  %876 = vmatpush.msra.mxu0 %v251
  %877 = vmatpush.msra.mxu0 %v250
  %878 = vmatpush.msra.mxu0 %v249
  %879 = vmatpush.msra.mxu0 %v248
  %880 = vmatpush.msra.mxu0 %v247
  %881 = vmatpush.msra.mxu0 %v246
  %882 = vmatpush.msra.mxu0 %v245
  %883 = vmatpush.msra.mxu0 %v244
  %884 = vmatpush.msra.mxu0 %v243
  %885 = vmatpush.msra.mxu0 %v242
  %886 = vmatmul.f32.gmra.mxu0 %v26
  %v887 = vpop.f32.mrf.mxu0
  %v888 = vadd.f32 %v868, %v887
  %889 = vdwg.mxu0
  %890 = vmatpush.msra.mxu0 %v273
  %891 = vmatpush.msra.mxu0 %v272
  %892 = vmatpush.msra.mxu0 %v271
  %893 = vmatpush.msra.mxu0 %v270
  %894 = vmatpush.msra.mxu0 %v269
  %895 = vmatpush.msra.mxu0 %v268
  %896 = vmatpush.msra.mxu0 %v267
  %897 = vmatpush.msra.mxu0 %v266
  %898 = vmatpush.msra.mxu0 %v265
  %899 = vmatpush.msra.mxu0 %v264
  %900 = vmatpush.msra.mxu0 %v263
  %901 = vmatpush.msra.mxu0 %v262
  %902 = vmatpush.msra.mxu0 %v261
  %903 = vmatpush.msra.mxu0 %v260
  %904 = vmatpush.msra.mxu0 %v259
  %905 = vmatpush.msra.mxu0 %v258
  %906 = vmatmul.f32.gmra.mxu0 %v27
  %v907 = vpop.f32.mrf.mxu0
  %v908 = vadd.f32 %v888, %v907
  %909 = vdwg.mxu0
  %910 = vmatpush.msra.mxu0 %v289
  %911 = vmatpush.msra.mxu0 %v288
  %912 = vmatpush.msra.mxu0 %v287
  %913 = vmatpush.msra.mxu0 %v286
  %914 = vmatpush.msra.mxu0 %v285
  %915 = vmatpush.msra.mxu0 %v284
  %916 = vmatpush.msra.mxu0 %v283
  %917 = vmatpush.msra.mxu0 %v282
  %918 = vmatpush.msra.mxu0 %v281
  %919 = vmatpush.msra.mxu0 %v280
  %920 = vmatpush.msra.mxu0 %v279
  %921 = vmatpush.msra.mxu0 %v278
  %922 = vmatpush.msra.mxu0 %v277
  %923 = vmatpush.msra.mxu0 %v276
  %924 = vmatpush.msra.mxu0 %v275
  %925 = vmatpush.msra.mxu0 %v274
  %926 = vmatmul.f32.gmra.mxu0 %v28
  %v927 = vpop.f32.mrf.mxu0
  %v928 = vadd.f32 %v908, %v927
  %929 = vdwg.mxu0
  %930 = vmatpush.msra.mxu0 %v305
  %931 = vmatpush.msra.mxu0 %v304
  %932 = vmatpush.msra.mxu0 %v303
  %933 = vmatpush.msra.mxu0 %v302
  %934 = vmatpush.msra.mxu0 %v301
  %935 = vmatpush.msra.mxu0 %v300
  %936 = vmatpush.msra.mxu0 %v299
  %937 = vmatpush.msra.mxu0 %v298
  %938 = vmatpush.msra.mxu0 %v297
  %939 = vmatpush.msra.mxu0 %v296
  %940 = vmatpush.msra.mxu0 %v295
  %941 = vmatpush.msra.mxu0 %v294
  %942 = vmatpush.msra.mxu0 %v293
  %943 = vmatpush.msra.mxu0 %v292
  %944 = vmatpush.msra.mxu0 %v291
  %945 = vmatpush.msra.mxu0 %v290
  %946 = vmatmul.f32.gmra.mxu0 %v29
  %v947 = vpop.f32.mrf.mxu0
  %v948 = vadd.f32 %v928, %v947
  %949 = vdwg.mxu0
  %950 = vmatpush.msra.mxu0 %v321
  %951 = vmatpush.msra.mxu0 %v320
  %952 = vmatpush.msra.mxu0 %v319
  %953 = vmatpush.msra.mxu0 %v318
  %954 = vmatpush.msra.mxu0 %v317
  %955 = vmatpush.msra.mxu0 %v316
  %956 = vmatpush.msra.mxu0 %v315
  %957 = vmatpush.msra.mxu0 %v314
  %958 = vmatpush.msra.mxu0 %v313
  %959 = vmatpush.msra.mxu0 %v312
  %960 = vmatpush.msra.mxu0 %v311
  %961 = vmatpush.msra.mxu0 %v310
  %962 = vmatpush.msra.mxu0 %v309
  %963 = vmatpush.msra.mxu0 %v308
  %964 = vmatpush.msra.mxu0 %v307
  %965 = vmatpush.msra.mxu0 %v306
  %966 = vmatmul.f32.gmra.mxu0 %v30
  %v967 = vpop.f32.mrf.mxu0
  %v968 = vadd.f32 %v948, %v967
  %969 = vdwg.mxu0
  %970 = vmatpush.msra.mxu0 %v337
  %971 = vmatpush.msra.mxu0 %v336
  %972 = vmatpush.msra.mxu0 %v335
  %973 = vmatpush.msra.mxu0 %v334
  %974 = vmatpush.msra.mxu0 %v333
  %975 = vmatpush.msra.mxu0 %v332
  %976 = vmatpush.msra.mxu0 %v331
  %977 = vmatpush.msra.mxu0 %v330
  %978 = vmatpush.msra.mxu0 %v329
  %979 = vmatpush.msra.mxu0 %v328
  %980 = vmatpush.msra.mxu0 %v327
  %981 = vmatpush.msra.mxu0 %v326
  %982 = vmatpush.msra.mxu0 %v325
  %983 = vmatpush.msra.mxu0 %v324
  %984 = vmatpush.msra.mxu0 %v323
  %985 = vmatpush.msra.mxu0 %v322
  %986 = vmatmul.f32.gmra.mxu0 %v31
  %v987 = vpop.f32.mrf.mxu0
  %v988 = vadd.f32 %v968, %v987
  %989 = vdwg.mxu0
  %990 = vmatpush.msra.mxu0 %v353
  %991 = vmatpush.msra.mxu0 %v352
  %992 = vmatpush.msra.mxu0 %v351
  %993 = vmatpush.msra.mxu0 %v350
  %994 = vmatpush.msra.mxu0 %v349
  %995 = vmatpush.msra.mxu0 %v348
  %996 = vmatpush.msra.mxu0 %v347
  %997 = vmatpush.msra.mxu0 %v346
  %998 = vmatpush.msra.mxu0 %v345
  %999 = vmatpush.msra.mxu0 %v344
  %1000 = vmatpush.msra.mxu0 %v343
  %1001 = vmatpush.msra.mxu0 %v342
  %1002 = vmatpush.msra.mxu0 %v341
  %1003 = vmatpush.msra.mxu0 %v340
  %1004 = vmatpush.msra.mxu0 %v339
  %1005 = vmatpush.msra.mxu0 %v338
  %1006 = vmatmul.f32.gmra.mxu0 %v32
  %v1007 = vpop.f32.mrf.mxu0
  %v1008 = vadd.f32 %v988, %v1007
  %1009 = vdwg.mxu0
  %1010 = vmatpush.msra.mxu0 %v369
  %1011 = vmatpush.msra.mxu0 %v368
  %1012 = vmatpush.msra.mxu0 %v367
  %1013 = vmatpush.msra.mxu0 %v366
  %1014 = vmatpush.msra.mxu0 %v365
  %1015 = vmatpush.msra.mxu0 %v364
  %1016 = vmatpush.msra.mxu0 %v363
  %1017 = vmatpush.msra.mxu0 %v362
  %1018 = vmatpush.msra.mxu0 %v361
  %1019 = vmatpush.msra.mxu0 %v360
  %1020 = vmatpush.msra.mxu0 %v359
  %1021 = vmatpush.msra.mxu0 %v358
  %1022 = vmatpush.msra.mxu0 %v357
  %1023 = vmatpush.msra.mxu0 %v356
  %1024 = vmatpush.msra.mxu0 %v355
  %1025 = vmatpush.msra.mxu0 %v354
  %1026 = vmatmul.f32.gmra.mxu0 %v33
  %v1027 = vpop.f32.mrf.mxu0
  %v1028 = vadd.f32 %v1008, %v1027
  %1029 = vdwg.mxu0
  %1030 = vmatpush.msra.mxu0 %v385
  %1031 = vmatpush.msra.mxu0 %v384
  %1032 = vmatpush.msra.mxu0 %v383
  %1033 = vmatpush.msra.mxu0 %v382
  %1034 = vmatpush.msra.mxu0 %v381
  %1035 = vmatpush.msra.mxu0 %v380
  %1036 = vmatpush.msra.mxu0 %v379
  %1037 = vmatpush.msra.mxu0 %v378
  %1038 = vmatpush.msra.mxu0 %v377
  %1039 = vmatpush.msra.mxu0 %v376
  %1040 = vmatpush.msra.mxu0 %v375
  %1041 = vmatpush.msra.mxu0 %v374
  %1042 = vmatpush.msra.mxu0 %v373
  %1043 = vmatpush.msra.mxu0 %v372
  %1044 = vmatpush.msra.mxu0 %v371
  %1045 = vmatpush.msra.mxu0 %v370
  %1046 = vmatmul.f32.gmra.mxu0 %v34
  %v1047 = vpop.f32.mrf.mxu0
  %v1048 = vadd.f32 %v1028, %v1047
  %1049 = vdwg.mxu0
  %1050 = vmatpush.msra.mxu0 %v401
  %1051 = vmatpush.msra.mxu0 %v400
  %1052 = vmatpush.msra.mxu0 %v399
  %1053 = vmatpush.msra.mxu0 %v398
  %1054 = vmatpush.msra.mxu0 %v397
  %1055 = vmatpush.msra.mxu0 %v396
  %1056 = vmatpush.msra.mxu0 %v395
  %1057 = vmatpush.msra.mxu0 %v394
  %1058 = vmatpush.msra.mxu0 %v393
  %1059 = vmatpush.msra.mxu0 %v392
  %1060 = vmatpush.msra.mxu0 %v391
  %1061 = vmatpush.msra.mxu0 %v390
  %1062 = vmatpush.msra.mxu0 %v389
  %1063 = vmatpush.msra.mxu0 %v388
  %1064 = vmatpush.msra.mxu0 %v387
  %1065 = vmatpush.msra.mxu0 %v386
  %1066 = vmatmul.f32.gmra.mxu0 %v35
  %v1067 = vpop.f32.mrf.mxu0
  %v1068 = vadd.f32 %v1048, %v1067
  %1069 = vdwg.mxu0
  %1070 = vmatpush.msra.mxu0 %v417
  %1071 = vmatpush.msra.mxu0 %v416
  %1072 = vmatpush.msra.mxu0 %v415
  %1073 = vmatpush.msra.mxu0 %v414
  %1074 = vmatpush.msra.mxu0 %v413
  %1075 = vmatpush.msra.mxu0 %v412
  %1076 = vmatpush.msra.mxu0 %v411
  %1077 = vmatpush.msra.mxu0 %v410
  %1078 = vmatpush.msra.mxu0 %v409
  %1079 = vmatpush.msra.mxu0 %v408
  %1080 = vmatpush.msra.mxu0 %v407
  %1081 = vmatpush.msra.mxu0 %v406
  %1082 = vmatpush.msra.mxu0 %v405
  %1083 = vmatpush.msra.mxu0 %v404
  %1084 = vmatpush.msra.mxu0 %v403
  %1085 = vmatpush.msra.mxu0 %v402
  %1086 = vmatmul.f32.gmra.mxu0 %v36
  %v1087 = vpop.f32.mrf.mxu0
  %v1088 = vadd.f32 %v1068, %v1087
  %1089 = vdwg.mxu0
  %1090 = vmatpush.msra.mxu0 %v433
  %1091 = vmatpush.msra.mxu0 %v432
  %1092 = vmatpush.msra.mxu0 %v431
  %1093 = vmatpush.msra.mxu0 %v430
  %1094 = vmatpush.msra.mxu0 %v429
  %1095 = vmatpush.msra.mxu0 %v428
  %1096 = vmatpush.msra.mxu0 %v427
  %1097 = vmatpush.msra.mxu0 %v426
  %1098 = vmatpush.msra.mxu0 %v425
  %1099 = vmatpush.msra.mxu0 %v424
  %1100 = vmatpush.msra.mxu0 %v423
  %1101 = vmatpush.msra.mxu0 %v422
  %1102 = vmatpush.msra.mxu0 %v421
  %1103 = vmatpush.msra.mxu0 %v420
  %1104 = vmatpush.msra.mxu0 %v419
  %1105 = vmatpush.msra.mxu0 %v418
  %1106 = vmatmul.f32.gmra.mxu0 %v37
  %v1107 = vpop.f32.mrf.mxu0
  %v1108 = vadd.f32 %v1088, %v1107
  %1109 = vdwg.mxu0
  %1110 = vmatpush.msra.mxu0 %v449
  %1111 = vmatpush.msra.mxu0 %v448
  %1112 = vmatpush.msra.mxu0 %v447
  %1113 = vmatpush.msra.mxu0 %v446
  %1114 = vmatpush.msra.mxu0 %v445
  %1115 = vmatpush.msra.mxu0 %v444
  %1116 = vmatpush.msra.mxu0 %v443
  %1117 = vmatpush.msra.mxu0 %v442
  %1118 = vmatpush.msra.mxu0 %v441
  %1119 = vmatpush.msra.mxu0 %v440
  %1120 = vmatpush.msra.mxu0 %v439
  %1121 = vmatpush.msra.mxu0 %v438
  %1122 = vmatpush.msra.mxu0 %v437
  %1123 = vmatpush.msra.mxu0 %v436
  %1124 = vmatpush.msra.mxu0 %v435
  %1125 = vmatpush.msra.mxu0 %v434
  %1126 = vmatmul.f32.gmra.mxu0 %v38
  %v1127 = vpop.f32.mrf.mxu0
  %v1128 = vadd.f32 %v1108, %v1127
  %1129 = vdwg.mxu0
  %1130 = vmatpush.msra.mxu0 %v465
  %1131 = vmatpush.msra.mxu0 %v464
  %1132 = vmatpush.msra.mxu0 %v463
  %1133 = vmatpush.msra.mxu0 %v462
  %1134 = vmatpush.msra.mxu0 %v461
  %1135 = vmatpush.msra.mxu0 %v460
  %1136 = vmatpush.msra.mxu0 %v459
  %1137 = vmatpush.msra.mxu0 %v458
  %1138 = vmatpush.msra.mxu0 %v457
  %1139 = vmatpush.msra.mxu0 %v456
  %1140 = vmatpush.msra.mxu0 %v455
  %1141 = vmatpush.msra.mxu0 %v454
  %1142 = vmatpush.msra.mxu0 %v453
  %1143 = vmatpush.msra.mxu0 %v452
  %1144 = vmatpush.msra.mxu0 %v451
  %1145 = vmatpush.msra.mxu0 %v450
  %1146 = vmatmul.f32.gmra.mxu0 %v39
  %v1147 = vpop.f32.mrf.mxu0
  %v1148 = vadd.f32 %v1128, %v1147
  %1149 = vdwg.mxu0
  %1150 = vmatpush.msra.mxu0 %v481
  %1151 = vmatpush.msra.mxu0 %v480
  %1152 = vmatpush.msra.mxu0 %v479
  %1153 = vmatpush.msra.mxu0 %v478
  %1154 = vmatpush.msra.mxu0 %v477
  %1155 = vmatpush.msra.mxu0 %v476
  %1156 = vmatpush.msra.mxu0 %v475
  %1157 = vmatpush.msra.mxu0 %v474
  %1158 = vmatpush.msra.mxu0 %v473
  %1159 = vmatpush.msra.mxu0 %v472
  %1160 = vmatpush.msra.mxu0 %v471
  %1161 = vmatpush.msra.mxu0 %v470
  %1162 = vmatpush.msra.mxu0 %v469
  %1163 = vmatpush.msra.mxu0 %v468
  %1164 = vmatpush.msra.mxu0 %v467
  %1165 = vmatpush.msra.mxu0 %v466
  %1166 = vmatmul.f32.gmra.mxu0 %v40
  %v1167 = vpop.f32.mrf.mxu0
  %v1168 = vadd.f32 %v1148, %v1167
  %1169 = vdwg.mxu0
  %1170 = vmatpush.msra.mxu0 %v497
  %1171 = vmatpush.msra.mxu0 %v496
  %1172 = vmatpush.msra.mxu0 %v495
  %1173 = vmatpush.msra.mxu0 %v494
  %1174 = vmatpush.msra.mxu0 %v493
  %1175 = vmatpush.msra.mxu0 %v492
  %1176 = vmatpush.msra.mxu0 %v491
  %1177 = vmatpush.msra.mxu0 %v490
  %1178 = vmatpush.msra.mxu0 %v489
  %1179 = vmatpush.msra.mxu0 %v488
  %1180 = vmatpush.msra.mxu0 %v487
  %1181 = vmatpush.msra.mxu0 %v486
  %1182 = vmatpush.msra.mxu0 %v485
  %1183 = vmatpush.msra.mxu0 %v484
  %1184 = vmatpush.msra.mxu0 %v483
  %1185 = vmatpush.msra.mxu0 %v482
  %1186 = vmatmul.f32.gmra.mxu0 %v41
  %v1187 = vpop.f32.mrf.mxu0
  %v1188 = vadd.f32 %v1168, %v1187
  %1189 = vdwg.mxu0
  %1190 = vmatpush.msra.mxu0 %v513
  %1191 = vmatpush.msra.mxu0 %v512
  %1192 = vmatpush.msra.mxu0 %v511
  %1193 = vmatpush.msra.mxu0 %v510
  %1194 = vmatpush.msra.mxu0 %v509
  %1195 = vmatpush.msra.mxu0 %v508
  %1196 = vmatpush.msra.mxu0 %v507
  %1197 = vmatpush.msra.mxu0 %v506
  %1198 = vmatpush.msra.mxu0 %v505
  %1199 = vmatpush.msra.mxu0 %v504
  %1200 = vmatpush.msra.mxu0 %v503
  %1201 = vmatpush.msra.mxu0 %v502
  %1202 = vmatpush.msra.mxu0 %v501
  %1203 = vmatpush.msra.mxu0 %v500
  %1204 = vmatpush.msra.mxu0 %v499
  %1205 = vmatpush.msra.mxu0 %v498
  %1206 = vmatmul.f32.gmra.mxu0 %v42
  %v1207 = vpop.f32.mrf.mxu0
  %v1208 = vadd.f32 %v1188, %v1207
  %1209 = vdwg.mxu0
  %1210 = vmatpush.msra.mxu0 %v529
  %1211 = vmatpush.msra.mxu0 %v528
  %1212 = vmatpush.msra.mxu0 %v527
  %1213 = vmatpush.msra.mxu0 %v526
  %1214 = vmatpush.msra.mxu0 %v525
  %1215 = vmatpush.msra.mxu0 %v524
  %1216 = vmatpush.msra.mxu0 %v523
  %1217 = vmatpush.msra.mxu0 %v522
  %1218 = vmatpush.msra.mxu0 %v521
  %1219 = vmatpush.msra.mxu0 %v520
  %1220 = vmatpush.msra.mxu0 %v519
  %1221 = vmatpush.msra.mxu0 %v518
  %1222 = vmatpush.msra.mxu0 %v517
  %1223 = vmatpush.msra.mxu0 %v516
  %1224 = vmatpush.msra.mxu0 %v515
  %1225 = vmatpush.msra.mxu0 %v514
  %1226 = vmatmul.f32.gmra.mxu0 %v43
  %v1227 = vpop.f32.mrf.mxu0
  %v1228 = vadd.f32 %v1208, %v1227
  %1229 = vdwg.mxu0
  %1230 = vmatpush.msra.mxu0 %v545
  %1231 = vmatpush.msra.mxu0 %v544
  %1232 = vmatpush.msra.mxu0 %v543
  %1233 = vmatpush.msra.mxu0 %v542
  %1234 = vmatpush.msra.mxu0 %v541
  %1235 = vmatpush.msra.mxu0 %v540
  %1236 = vmatpush.msra.mxu0 %v539
  %1237 = vmatpush.msra.mxu0 %v538
  %1238 = vmatpush.msra.mxu0 %v537
  %1239 = vmatpush.msra.mxu0 %v536
  %1240 = vmatpush.msra.mxu0 %v535
  %1241 = vmatpush.msra.mxu0 %v534
  %1242 = vmatpush.msra.mxu0 %v533
  %1243 = vmatpush.msra.mxu0 %v532
  %1244 = vmatpush.msra.mxu0 %v531
  %1245 = vmatpush.msra.mxu0 %v530
  %1246 = vmatmul.f32.gmra.mxu0 %v44
  %v1247 = vpop.f32.mrf.mxu0
  %v1248 = vadd.f32 %v1228, %v1247
  %1249 = vdwg.mxu0
  %1250 = vmatpush.msra.mxu0 %v561
  %1251 = vmatpush.msra.mxu0 %v560
  %1252 = vmatpush.msra.mxu0 %v559
  %1253 = vmatpush.msra.mxu0 %v558
  %1254 = vmatpush.msra.mxu0 %v557
  %1255 = vmatpush.msra.mxu0 %v556
  %1256 = vmatpush.msra.mxu0 %v555
  %1257 = vmatpush.msra.mxu0 %v554
  %1258 = vmatpush.msra.mxu0 %v553
  %1259 = vmatpush.msra.mxu0 %v552
  %1260 = vmatpush.msra.mxu0 %v551
  %1261 = vmatpush.msra.mxu0 %v550
  %1262 = vmatpush.msra.mxu0 %v549
  %1263 = vmatpush.msra.mxu0 %v548
  %1264 = vmatpush.msra.mxu0 %v547
  %1265 = vmatpush.msra.mxu0 %v546
  %1266 = vmatmul.f32.gmra.mxu0 %v45
  %v1267 = vpop.f32.mrf.mxu0
  %v1268 = vadd.f32 %v1248, %v1267
  %1269 = vdwg.mxu0
  %1270 = vmatpush.msra.mxu0 %v577
  %1271 = vmatpush.msra.mxu0 %v576
  %1272 = vmatpush.msra.mxu0 %v575
  %1273 = vmatpush.msra.mxu0 %v574
  %1274 = vmatpush.msra.mxu0 %v573
  %1275 = vmatpush.msra.mxu0 %v572
  %1276 = vmatpush.msra.mxu0 %v571
  %1277 = vmatpush.msra.mxu0 %v570
  %1278 = vmatpush.msra.mxu0 %v569
  %1279 = vmatpush.msra.mxu0 %v568
  %1280 = vmatpush.msra.mxu0 %v567
  %1281 = vmatpush.msra.mxu0 %v566
  %1282 = vmatpush.msra.mxu0 %v565
  %1283 = vmatpush.msra.mxu0 %v564
  %1284 = vmatpush.msra.mxu0 %v563
  %1285 = vmatpush.msra.mxu0 %v562
  %1286 = vmatmul.f32.gmra.mxu0 %v46
  %v1287 = vpop.f32.mrf.mxu0
  %v1288 = vadd.f32 %v1268, %v1287
  %1289 = vdwg.mxu0
  %1290 = vmatpush.msra.mxu0 %v593
  %1291 = vmatpush.msra.mxu0 %v592
  %1292 = vmatpush.msra.mxu0 %v591
  %1293 = vmatpush.msra.mxu0 %v590
  %1294 = vmatpush.msra.mxu0 %v589
  %1295 = vmatpush.msra.mxu0 %v588
  %1296 = vmatpush.msra.mxu0 %v587
  %1297 = vmatpush.msra.mxu0 %v586
  %1298 = vmatpush.msra.mxu0 %v585
  %1299 = vmatpush.msra.mxu0 %v584
  %1300 = vmatpush.msra.mxu0 %v583
  %1301 = vmatpush.msra.mxu0 %v582
  %1302 = vmatpush.msra.mxu0 %v581
  %1303 = vmatpush.msra.mxu0 %v580
  %1304 = vmatpush.msra.mxu0 %v579
  %1305 = vmatpush.msra.mxu0 %v578
  %1306 = vmatmul.f32.gmra.mxu0 %v47
  %v1307 = vpop.f32.mrf.mxu0
  %v1308 = vadd.f32 %v1288, %v1307
  %1309 = vdwg.mxu0
  %1310 = vmatpush.msra.mxu0 %v609
  %1311 = vmatpush.msra.mxu0 %v608
  %1312 = vmatpush.msra.mxu0 %v607
  %1313 = vmatpush.msra.mxu0 %v606
  %1314 = vmatpush.msra.mxu0 %v605
  %1315 = vmatpush.msra.mxu0 %v604
  %1316 = vmatpush.msra.mxu0 %v603
  %1317 = vmatpush.msra.mxu0 %v602
  %1318 = vmatpush.msra.mxu0 %v601
  %1319 = vmatpush.msra.mxu0 %v600
  %1320 = vmatpush.msra.mxu0 %v599
  %1321 = vmatpush.msra.mxu0 %v598
  %1322 = vmatpush.msra.mxu0 %v597
  %1323 = vmatpush.msra.mxu0 %v596
  %1324 = vmatpush.msra.mxu0 %v595
  %1325 = vmatpush.msra.mxu0 %v594
  %1326 = vmatmul.f32.gmra.mxu0 %v48
  %v1327 = vpop.f32.mrf.mxu0
  %v1328 = vadd.f32 %v1308, %v1327
  %1329 = vdwg.mxu0
  %1330 = vmatpush.msra.mxu0 %v625
  %1331 = vmatpush.msra.mxu0 %v624
  %1332 = vmatpush.msra.mxu0 %v623
  %1333 = vmatpush.msra.mxu0 %v622
  %1334 = vmatpush.msra.mxu0 %v621
  %1335 = vmatpush.msra.mxu0 %v620
  %1336 = vmatpush.msra.mxu0 %v619
  %1337 = vmatpush.msra.mxu0 %v618
  %1338 = vmatpush.msra.mxu0 %v617
  %1339 = vmatpush.msra.mxu0 %v616
  %1340 = vmatpush.msra.mxu0 %v615
  %1341 = vmatpush.msra.mxu0 %v614
  %1342 = vmatpush.msra.mxu0 %v613
  %1343 = vmatpush.msra.mxu0 %v612
  %1344 = vmatpush.msra.mxu0 %v611
  %1345 = vmatpush.msra.mxu0 %v610
  %1346 = vmatmul.f32.gmra.mxu0 %v49
  %v1347 = vpop.f32.mrf.mxu0
  %v1348 = vadd.f32 %v1328, %v1347
  %1349 = vdwg.mxu0
  %v1350 = vtanh.pop %v1348
  %1351 = vst [vmem:[%s3] sm:$0xff] %v1350
  // Predicated region
  $region14: #{patch_discriminator_forward.15} parent=0 // pred_check
    _
  $region15: #{patch_discriminator_forward.15} parent=0 // pred_check_branch
    %1353 = sbr.rel (0) target = $region17
  $region16: #{patch_discriminator_forward.15} parent=0 // pred_region
    _
  $region17: #{patch_discriminator_forward.15} parent=0 // pred_fallthru
    _
  // Predicated region
  $region18: #{patch_discriminator_forward.15} parent=0 // pred_check
    _
  $region19: #{patch_discriminator_forward.15} parent=0 // pred_check_branch
    %1355 = sbr.rel (0) target = $region21
  $region20: #{patch_discriminator_forward.15} parent=0 // pred_region
    _
  $region21: #{patch_discriminator_forward.15} parent=0 // pred_fallthru
    _

// kernel: patch_discriminator_forward.13
$region0: #{patch_discriminator_forward.13}
  #allocation0 [shape = 'u32[]', space=smem, size = 0x4, offset = 0x4, fixed_abs, tag = 'smem constant byte address 0x4 - core index']
  #allocation1 [shape = 'u32[72,128]{1,0:T(1,128)}', space=vmem, size = 0x9000, scoped, tag = 'internal scratch']
  %s0 = inlined_call_operand.vmem [shape: f32[8,4096], index: 0, kind: input, shape index: {}]
  %s1 = inlined_call_operand.vmem [shape: f32[4096,512], index: 1, kind: input, shape index: {}]
  %s2 = inlined_call_operand.vmem [shape: f32[1,512], index: 2, kind: input, shape index: {}]
  %s3 = inlined_call_operand.vmem [shape: f32[8,512], index: 3, kind: output, shape index: {0}]
  %s4 = inlined_call_operand.vmem [shape: f32[1,2,512], index: 4, kind: output, shape index: {1}]
  %5 = xla_tuple %s3, %s4
  %s6 = sld [smem:[#allocation0]]
  $region30: #{patch_discriminator_forward.13} parent=0
    _
  %s8 = ssub.s32 1, %s6
  %s9 = scalar_select 0, %s8, %s6
  // Predicated region
  $region2: #{patch_discriminator_forward.13} parent=0 // pred_check
    _
  $region3: #{patch_discriminator_forward.13} parent=0 // pred_check_branch
    %11 = sbr.rel (0) target = $region5
  $region4: #{patch_discriminator_forward.13} parent=0 // pred_region
    _
  $region5: #{patch_discriminator_forward.13} parent=0 // pred_fallthru
    _
  // Predicated region
  $region6: #{patch_discriminator_forward.13} parent=0 // pred_check
    _
  $region7: #{patch_discriminator_forward.13} parent=0 // pred_check_branch
    %13 = sbr.rel (0) target = $region9
  $region8: #{patch_discriminator_forward.13} parent=0 // pred_region
    _
  $region9: #{patch_discriminator_forward.13} parent=0 // pred_fallthru
    _
  // Predicated region
  $region10: #{patch_discriminator_forward.13} parent=0 // pred_check
    _
  $region11: #{patch_discriminator_forward.13} parent=0 // pred_check_branch
    %15 = sbr.rel (0) target = $region13
  $region12: #{patch_discriminator_forward.13} parent=0 // pred_region
    _
  $region13: #{patch_discriminator_forward.13} parent=0 // pred_fallthru
    _
  %v16 = vld [vmem:[%s0] sm:$0xff]
  %v17 = vld [vmem:[%s0 + $0x8] sm:$0xff]
  %v18 = vld [vmem:[%s0 + $0x10] sm:$0xff]
  %v19 = vld [vmem:[%s0 + $0x18] sm:$0xff]
  %v20 = vld [vmem:[%s0 + $0x20] sm:$0xff]
  %v21 = vld [vmem:[%s0 + $0x28] sm:$0xff]
  %v22 = vld [vmem:[%s0 + $0x30] sm:$0xff]
  %v23 = vld [vmem:[%s0 + $0x38] sm:$0xff]
  %v24 = vld [vmem:[%s0 + $0x40] sm:$0xff]
  %v25 = vld [vmem:[%s0 + $0x48] sm:$0xff]
  %v26 = vld [vmem:[%s0 + $0x50] sm:$0xff]
  %v27 = vld [vmem:[%s0 + $0x58] sm:$0xff]
  %v28 = vld [vmem:[%s0 + $0x60] sm:$0xff]
  %v29 = vld [vmem:[%s0 + $0x68] sm:$0xff]
  %v30 = vld [vmem:[%s0 + $0x70] sm:$0xff]
  %v31 = vld [vmem:[%s0 + $0x78] sm:$0xff]
  %v32 = vld [vmem:[%s0 + $0x80] sm:$0xff]
  %v33 = vld [vmem:[%s0 + $0x88] sm:$0xff]
  %v34 = vld [vmem:[%s0 + $0x90] sm:$0xff]
  %v35 = vld [vmem:[%s0 + $0x98] sm:$0xff]
  %v36 = vld [vmem:[%s0 + $0xa0] sm:$0xff]
  %v37 = vld [vmem:[%s0 + $0xa8] sm:$0xff]
  %v38 = vld [vmem:[%s0 + $0xb0] sm:$0xff]
  %v39 = vld [vmem:[%s0 + $0xb8] sm:$0xff]
  %v40 = vld [vmem:[%s0 + $0xc0] sm:$0xff]
  %v41 = vld [vmem:[%s0 + $0xc8] sm:$0xff]
  %v42 = vld [vmem:[%s0 + $0xd0] sm:$0xff]
  %v43 = vld [vmem:[%s0 + $0xd8] sm:$0xff]
  %v44 = vld [vmem:[%s0 + $0xe0] sm:$0xff]
  %v45 = vld [vmem:[%s0 + $0xe8] sm:$0xff]
  %v46 = vld [vmem:[%s0 + $0xf0] sm:$0xff]
  %v47 = vld [vmem:[%s0 + $0xf8] sm:$0xff]
  %v48 = vld [vmem:[%s1] sm:$0xff]
  %v49 = vld [vmem:[%s1 + $0x8] sm:$0xff]
  %v50 = vld [vmem:[%s1 + $0x10] sm:$0xff]
  %v51 = vld [vmem:[%s1 + $0x18] sm:$0xff]
  %v52 = vld [vmem:[%s1 + $0x20] sm:$0xff]
  %v53 = vld [vmem:[%s1 + $0x28] sm:$0xff]
  %v54 = vld [vmem:[%s1 + $0x30] sm:$0xff]
  %v55 = vld [vmem:[%s1 + $0x38] sm:$0xff]
  %v56 = vld [vmem:[%s1 + $0x40] sm:$0xff]
  %v57 = vld [vmem:[%s1 + $0x48] sm:$0xff]
  %v58 = vld [vmem:[%s1 + $0x50] sm:$0xff]
  %v59 = vld [vmem:[%s1 + $0x58] sm:$0xff]
  %v60 = vld [vmem:[%s1 + $0x60] sm:$0xff]
  %v61 = vld [vmem:[%s1 + $0x68] sm:$0xff]
  %v62 = vld [vmem:[%s1 + $0x70] sm:$0xff]
  %v63 = vld [vmem:[%s1 + $0x78] sm:$0xff]
  %v64 = vld [vmem:[%s1 + $0x80] sm:$0xff]
  %v65 = vld [vmem:[%s1 + $0x88] sm:$0xff]
  %v66 = vld [vmem:[%s1 + $0x90] sm:$0xff]
  %v67 = vld [vmem:[%s1 + $0x98] sm:$0xff]
  %v68 = vld [vmem:[%s1 + $0xa0] sm:$0xff]
  %v69 = vld [vmem:[%s1 + $0xa8] sm:$0xff]
  %v70 = vld [vmem:[%s1 + $0xb0] sm:$0xff]
  %v71 = vld [vmem:[%s1 + $0xb8] sm:$0xff]
  %v72 = vld [vmem:[%s1 + $0xc0] sm:$0xff]
  %v73 = vld [vmem:[%s1 + $0xc8] sm:$0xff]
  %v74 = vld [vmem:[%s1 + $0xd0] sm:$0xff]
  %v75 = vld [vmem:[%s1 + $0xd8] sm:$0xff]
  %v76 = vld [vmem:[%s1 + $0xe0] sm:$0xff]
  %v77 = vld [vmem:[%s1 + $0xe8] sm:$0xff]
  %v78 = vld [vmem:[%s1 + $0xf0] sm:$0xff]
  %v79 = vld [vmem:[%s1 + $0xf8] sm:$0xff]
  %v80 = vld [vmem:[%s1 + $0x100] sm:$0xff]
  %v81 = vld [vmem:[%s1 + $0x108] sm:$0xff]
  %v82 = vld [vmem:[%s1 + $0x110] sm:$0xff]
  %v83 = vld [vmem:[%s1 + $0x118] sm:$0xff]
  %v84 = vld [vmem:[%s1 + $0x120] sm:$0xff]
  %v85 = vld [vmem:[%s1 + $0x128] sm:$0xff]
  %v86 = vld [vmem:[%s1 + $0x130] sm:$0xff]
  %v87 = vld [vmem:[%s1 + $0x138] sm:$0xff]
  %v88 = vld [vmem:[%s1 + $0x140] sm:$0xff]
  %v89 = vld [vmem:[%s1 + $0x148] sm:$0xff]
  %v90 = vld [vmem:[%s1 + $0x150] sm:$0xff]
  %v91 = vld [vmem:[%s1 + $0x158] sm:$0xff]
  %v92 = vld [vmem:[%s1 + $0x160] sm:$0xff]
  %v93 = vld [vmem:[%s1 + $0x168] sm:$0xff]
  %v94 = vld [vmem:[%s1 + $0x170] sm:$0xff]
  %v95 = vld [vmem:[%s1 + $0x178] sm:$0xff]
  %v96 = vld [vmem:[%s1 + $0x180] sm:$0xff]
  %v97 = vld [vmem:[%s1 + $0x188] sm:$0xff]
  %v98 = vld [vmem:[%s1 + $0x190] sm:$0xff]
  %v99 = vld [vmem:[%s1 + $0x198] sm:$0xff]
  %v100 = vld [vmem:[%s1 + $0x1a0] sm:$0xff]
  %v101 = vld [vmem:[%s1 + $0x1a8] sm:$0xff]
  %v102 = vld [vmem:[%s1 + $0x1b0] sm:$0xff]
  %v103 = vld [vmem:[%s1 + $0x1b8] sm:$0xff]
  %v104 = vld [vmem:[%s1 + $0x1c0] sm:$0xff]
  %v105 = vld [vmem:[%s1 + $0x1c8] sm:$0xff]
  %v106 = vld [vmem:[%s1 + $0x1d0] sm:$0xff]
  %v107 = vld [vmem:[%s1 + $0x1d8] sm:$0xff]
  %v108 = vld [vmem:[%s1 + $0x1e0] sm:$0xff]
  %v109 = vld [vmem:[%s1 + $0x1e8] sm:$0xff]
  %v110 = vld [vmem:[%s1 + $0x1f0] sm:$0xff]
  %v111 = vld [vmem:[%s1 + $0x1f8] sm:$0xff]
  %v112 = vld [vmem:[%s1 + $0x200] sm:$0xff]
  %v113 = vld [vmem:[%s1 + $0x208] sm:$0xff]
  %v114 = vld [vmem:[%s1 + $0x210] sm:$0xff]
  %v115 = vld [vmem:[%s1 + $0x218] sm:$0xff]
  %v116 = vld [vmem:[%s1 + $0x220] sm:$0xff]
  %v117 = vld [vmem:[%s1 + $0x228] sm:$0xff]
  %v118 = vld [vmem:[%s1 + $0x230] sm:$0xff]
  %v119 = vld [vmem:[%s1 + $0x238] sm:$0xff]
  %v120 = vld [vmem:[%s1 + $0x240] sm:$0xff]
  %v121 = vld [vmem:[%s1 + $0x248] sm:$0xff]
  %v122 = vld [vmem:[%s1 + $0x250] sm:$0xff]
  %v123 = vld [vmem:[%s1 + $0x258] sm:$0xff]
  %v124 = vld [vmem:[%s1 + $0x260] sm:$0xff]
  %v125 = vld [vmem:[%s1 + $0x268] sm:$0xff]
  %v126 = vld [vmem:[%s1 + $0x270] sm:$0xff]
  %v127 = vld [vmem:[%s1 + $0x278] sm:$0xff]
  %v128 = vld [vmem:[%s1 + $0x280] sm:$0xff]
  %v129 = vld [vmem:[%s1 + $0x288] sm:$0xff]
  %v130 = vld [vmem:[%s1 + $0x290] sm:$0xff]
  %v131 = vld [vmem:[%s1 + $0x298] sm:$0xff]
  %v132 = vld [vmem:[%s1 + $0x2a0] sm:$0xff]
  %v133 = vld [vmem:[%s1 + $0x2a8] sm:$0xff]
  %v134 = vld [vmem:[%s1 + $0x2b0] sm:$0xff]
  %v135 = vld [vmem:[%s1 + $0x2b8] sm:$0xff]
  %v136 = vld [vmem:[%s1 + $0x2c0] sm:$0xff]
  %v137 = vld [vmem:[%s1 + $0x2c8] sm:$0xff]
  %v138 = vld [vmem:[%s1 + $0x2d0] sm:$0xff]
  %v139 = vld [vmem:[%s1 + $0x2d8] sm:$0xff]
  %v140 = vld [vmem:[%s1 + $0x2e0] sm:$0xff]
  %v141 = vld [vmem:[%s1 + $0x2e8] sm:$0xff]
  %v142 = vld [vmem:[%s1 + $0x2f0] sm:$0xff]
  %v143 = vld [vmem:[%s1 + $0x2f8] sm:$0xff]
  %v144 = vld [vmem:[%s1 + $0x300] sm:$0xff]
  %v145 = vld [vmem:[%s1 + $0x308] sm:$0xff]
  %v146 = vld [vmem:[%s1 + $0x310] sm:$0xff]
  %v147 = vld [vmem:[%s1 + $0x318] sm:$0xff]
  %v148 = vld [vmem:[%s1 + $0x320] sm:$0xff]
  %v149 = vld [vmem:[%s1 + $0x328] sm:$0xff]
  %v150 = vld [vmem:[%s1 + $0x330] sm:$0xff]
  %v151 = vld [vmem:[%s1 + $0x338] sm:$0xff]
  %v152 = vld [vmem:[%s1 + $0x340] sm:$0xff]
  %v153 = vld [vmem:[%s1 + $0x348] sm:$0xff]
  %v154 = vld [vmem:[%s1 + $0x350] sm:$0xff]
  %v155 = vld [vmem:[%s1 + $0x358] sm:$0xff]
  %v156 = vld [vmem:[%s1 + $0x360] sm:$0xff]
  %v157 = vld [vmem:[%s1 + $0x368] sm:$0xff]
  %v158 = vld [vmem:[%s1 + $0x370] sm:$0xff]
  %v159 = vld [vmem:[%s1 + $0x378] sm:$0xff]
  %v160 = vld [vmem:[%s1 + $0x380] sm:$0xff]
  %v161 = vld [vmem:[%s1 + $0x388] sm:$0xff]
  %v162 = vld [vmem:[%s1 + $0x390] sm:$0xff]
  %v163 = vld [vmem:[%s1 + $0x398] sm:$0xff]
  %v164 = vld [vmem:[%s1 + $0x3a0] sm:$0xff]
  %v165 = vld [vmem:[%s1 + $0x3a8] sm:$0xff]
  %v166 = vld [vmem:[%s1 + $0x3b0] sm:$0xff]
  %v167 = vld [vmem:[%s1 + $0x3b8] sm:$0xff]
  %v168 = vld [vmem:[%s1 + $0x3c0] sm:$0xff]
  %v169 = vld [vmem:[%s1 + $0x3c8] sm:$0xff]
  %v170 = vld [vmem:[%s1 + $0x3d0] sm:$0xff]
  %v171 = vld [vmem:[%s1 + $0x3d8] sm:$0xff]
  %v172 = vld [vmem:[%s1 + $0x3e0] sm:$0xff]
  %v173 = vld [vmem:[%s1 + $0x3e8] sm:$0xff]
  %v174 = vld [vmem:[%s1 + $0x3f0] sm:$0xff]
  %v175 = vld [vmem:[%s1 + $0x3f8] sm:$0xff]
  %v176 = vld [vmem:[%s1 + $0x400] sm:$0xff]
  %v177 = vld [vmem:[%s1 + $0x408] sm:$0xff]
  %v178 = vld [vmem:[%s1 + $0x410] sm:$0xff]
  %v179 = vld [vmem:[%s1 + $0x418] sm:$0xff]
  %v180 = vld [vmem:[%s1 + $0x420] sm:$0xff]
  %v181 = vld [vmem:[%s1 + $0x428] sm:$0xff]
  %v182 = vld [vmem:[%s1 + $0x430] sm:$0xff]
  %v183 = vld [vmem:[%s1 + $0x438] sm:$0xff]
  %v184 = vld [vmem:[%s1 + $0x440] sm:$0xff]
  %v185 = vld [vmem:[%s1 + $0x448] sm:$0xff]
  %v186 = vld [vmem:[%s1 + $0x450] sm:$0xff]
  %v187 = vld [vmem:[%s1 + $0x458] sm:$0xff]
  %v188 = vld [vmem:[%s1 + $0x460] sm:$0xff]
  %v189 = vld [vmem:[%s1 + $0x468] sm:$0xff]
  %v190 = vld [vmem:[%s1 + $0x470] sm:$0xff]
  %v191 = vld [vmem:[%s1 + $0x478] sm:$0xff]
  %v192 = vld [vmem:[%s1 + $0x480] sm:$0xff]
  %v193 = vld [vmem:[%s1 + $0x488] sm:$0xff]
  %v194 = vld [vmem:[%s1 + $0x490] sm:$0xff]
  %v195 = vld [vmem:[%s1 + $0x498] sm:$0xff]
  %v196 = vld [vmem:[%s1 + $0x4a0] sm:$0xff]
  %v197 = vld [vmem:[%s1 + $0x4a8] sm:$0xff]
  %v198 = vld [vmem:[%s1 + $0x4b0] sm:$0xff]
  %v199 = vld [vmem:[%s1 + $0x4b8] sm:$0xff]
  %v200 = vld [vmem:[%s1 + $0x4c0] sm:$0xff]
  %v201 = vld [vmem:[%s1 + $0x4c8] sm:$0xff]
  %v202 = vld [vmem:[%s1 + $0x4d0] sm:$0xff]
  %v203 = vld [vmem:[%s1 + $0x4d8] sm:$0xff]
  %v204 = vld [vmem:[%s1 + $0x4e0] sm:$0xff]
  %v205 = vld [vmem:[%s1 + $0x4e8] sm:$0xff]
  %v206 = vld [vmem:[%s1 + $0x4f0] sm:$0xff]
  %v207 = vld [vmem:[%s1 + $0x4f8] sm:$0xff]
  %v208 = vld [vmem:[%s1 + $0x500] sm:$0xff]
  %v209 = vld [vmem:[%s1 + $0x508] sm:$0xff]
  %v210 = vld [vmem:[%s1 + $0x510] sm:$0xff]
  %v211 = vld [vmem:[%s1 + $0x518] sm:$0xff]
  %v212 = vld [vmem:[%s1 + $0x520] sm:$0xff]
  %v213 = vld [vmem:[%s1 + $0x528] sm:$0xff]
  %v214 = vld [vmem:[%s1 + $0x530] sm:$0xff]
  %v215 = vld [vmem:[%s1 + $0x538] sm:$0xff]
  %v216 = vld [vmem:[%s1 + $0x540] sm:$0xff]
  %v217 = vld [vmem:[%s1 + $0x548] sm:$0xff]
  %v218 = vld [vmem:[%s1 + $0x550] sm:$0xff]
  %v219 = vld [vmem:[%s1 + $0x558] sm:$0xff]
  %v220 = vld [vmem:[%s1 + $0x560] sm:$0xff]
  %v221 = vld [vmem:[%s1 + $0x568] sm:$0xff]
  %v222 = vld [vmem:[%s1 + $0x570] sm:$0xff]
  %v223 = vld [vmem:[%s1 + $0x578] sm:$0xff]
  %v224 = vld [vmem:[%s1 + $0x580] sm:$0xff]
  %v225 = vld [vmem:[%s1 + $0x588] sm:$0xff]
  %v226 = vld [vmem:[%s1 + $0x590] sm:$0xff]
  %v227 = vld [vmem:[%s1 + $0x598] sm:$0xff]
  %v228 = vld [vmem:[%s1 + $0x5a0] sm:$0xff]
  %v229 = vld [vmem:[%s1 + $0x5a8] sm:$0xff]
  %v230 = vld [vmem:[%s1 + $0x5b0] sm:$0xff]
  %v231 = vld [vmem:[%s1 + $0x5b8] sm:$0xff]
  %v232 = vld [vmem:[%s1 + $0x5c0] sm:$0xff]
  %v233 = vld [vmem:[%s1 + $0x5c8] sm:$0xff]
  %v234 = vld [vmem:[%s1 + $0x5d0] sm:$0xff]
  %v235 = vld [vmem:[%s1 + $0x5d8] sm:$0xff]
  %v236 = vld [vmem:[%s1 + $0x5e0] sm:$0xff]
  %v237 = vld [vmem:[%s1 + $0x5e8] sm:$0xff]
  %v238 = vld [vmem:[%s1 + $0x5f0] sm:$0xff]
  %v239 = vld [vmem:[%s1 + $0x5f8] sm:$0xff]
  %v240 = vld [vmem:[%s1 + $0x600] sm:$0xff]
  %v241 = vld [vmem:[%s1 + $0x608] sm:$0xff]
  %v242 = vld [vmem:[%s1 + $0x610] sm:$0xff]
  %v243 = vld [vmem:[%s1 + $0x618] sm:$0xff]
  %v244 = vld [vmem:[%s1 + $0x620] sm:$0xff]
  %v245 = vld [vmem:[%s1 + $0x628] sm:$0xff]
  %v246 = vld [vmem:[%s1 + $0x630] sm:$0xff]
  %v247 = vld [vmem:[%s1 + $0x638] sm:$0xff]
  %v248 = vld [vmem:[%s1 + $0x640] sm:$0xff]
  %v249 = vld [vmem:[%s1 + $0x648] sm:$0xff]
  %v250 = vld [vmem:[%s1 + $0x650] sm:$0xff]
  %v251 = vld [vmem:[%s1 + $0x658] sm:$0xff]
  %v252 = vld [vmem:[%s1 + $0x660] sm:$0xff]
  %v253 = vld [vmem:[%s1 + $0x668] sm:$0xff]
  %v254 = vld [vmem:[%s1 + $0x670] sm:$0xff]
  %v255 = vld [vmem:[%s1 + $0x678] sm:$0xff]
  %v256 = vld [vmem:[%s1 + $0x680] sm:$0xff]
  %v257 = vld [vmem:[%s1 + $0x688] sm:$0xff]
  %v258 = vld [vmem:[%s1 + $0x690] sm:$0xff]
  %v259 = vld [vmem:[%s1 + $0x698] sm:$0xff]
  %v260 = vld [vmem:[%s1 + $0x6a0] sm:$0xff]
  %v261 = vld [vmem:[%s1 + $0x6a8] sm:$0xff]
  %v262 = vld [vmem:[%s1 + $0x6b0] sm:$0xff]
  %v263 = vld [vmem:[%s1 + $0x6b8] sm:$0xff]
  %v264 = vld [vmem:[%s1 + $0x6c0] sm:$0xff]
  %v265 = vld [vmem:[%s1 + $0x6c8] sm:$0xff]
  %v266 = vld [vmem:[%s1 + $0x6d0] sm:$0xff]
  %v267 = vld [vmem:[%s1 + $0x6d8] sm:$0xff]
  %v268 = vld [vmem:[%s1 + $0x6e0] sm:$0xff]
  %v269 = vld [vmem:[%s1 + $0x6e8] sm:$0xff]
  %v270 = vld [vmem:[%s1 + $0x6f0] sm:$0xff]
  %v271 = vld [vmem:[%s1 + $0x6f8] sm:$0xff]
  %v272 = vld [vmem:[%s1 + $0x700] sm:$0xff]
  %v273 = vld [vmem:[%s1 + $0x708] sm:$0xff]
  %v274 = vld [vmem:[%s1 + $0x710] sm:$0xff]
  %v275 = vld [vmem:[%s1 + $0x718] sm:$0xff]
  %v276 = vld [vmem:[%s1 + $0x720] sm:$0xff]
  %v277 = vld [vmem:[%s1 + $0x728] sm:$0xff]
  %v278 = vld [vmem:[%s1 + $0x730] sm:$0xff]
  %v279 = vld [vmem:[%s1 + $0x738] sm:$0xff]
  %v280 = vld [vmem:[%s1 + $0x740] sm:$0xff]
  %v281 = vld [vmem:[%s1 + $0x748] sm:$0xff]
  %v282 = vld [vmem:[%s1 + $0x750] sm:$0xff]
  %v283 = vld [vmem:[%s1 + $0x758] sm:$0xff]
  %v284 = vld [vmem:[%s1 + $0x760] sm:$0xff]
  %v285 = vld [vmem:[%s1 + $0x768] sm:$0xff]
  %v286 = vld [vmem:[%s1 + $0x770] sm:$0xff]
  %v287 = vld [vmem:[%s1 + $0x778] sm:$0xff]
  %v288 = vld [vmem:[%s1 + $0x780] sm:$0xff]
  %v289 = vld [vmem:[%s1 + $0x788] sm:$0xff]
  %v290 = vld [vmem:[%s1 + $0x790] sm:$0xff]
  %v291 = vld [vmem:[%s1 + $0x798] sm:$0xff]
  %v292 = vld [vmem:[%s1 + $0x7a0] sm:$0xff]
  %v293 = vld [vmem:[%s1 + $0x7a8] sm:$0xff]
  %v294 = vld [vmem:[%s1 + $0x7b0] sm:$0xff]
  %v295 = vld [vmem:[%s1 + $0x7b8] sm:$0xff]
  %v296 = vld [vmem:[%s1 + $0x7c0] sm:$0xff]
  %v297 = vld [vmem:[%s1 + $0x7c8] sm:$0xff]
  %v298 = vld [vmem:[%s1 + $0x7d0] sm:$0xff]
  %v299 = vld [vmem:[%s1 + $0x7d8] sm:$0xff]
  %v300 = vld [vmem:[%s1 + $0x7e0] sm:$0xff]
  %v301 = vld [vmem:[%s1 + $0x7e8] sm:$0xff]
  %v302 = vld [vmem:[%s1 + $0x7f0] sm:$0xff]
  %v303 = vld [vmem:[%s1 + $0x7f8] sm:$0xff]
  %v304 = vld [vmem:[%s1 + $0x800] sm:$0xff]
  %v305 = vld [vmem:[%s1 + $0x808] sm:$0xff]
  %v306 = vld [vmem:[%s1 + $0x810] sm:$0xff]
  %v307 = vld [vmem:[%s1 + $0x818] sm:$0xff]
  %v308 = vld [vmem:[%s1 + $0x820] sm:$0xff]
  %v309 = vld [vmem:[%s1 + $0x828] sm:$0xff]
  %v310 = vld [vmem:[%s1 + $0x830] sm:$0xff]
  %v311 = vld [vmem:[%s1 + $0x838] sm:$0xff]
  %v312 = vld [vmem:[%s1 + $0x840] sm:$0xff]
  %v313 = vld [vmem:[%s1 + $0x848] sm:$0xff]
  %v314 = vld [vmem:[%s1 + $0x850] sm:$0xff]
  %v315 = vld [vmem:[%s1 + $0x858] sm:$0xff]
  %v316 = vld [vmem:[%s1 + $0x860] sm:$0xff]
  %v317 = vld [vmem:[%s1 + $0x868] sm:$0xff]
  %v318 = vld [vmem:[%s1 + $0x870] sm:$0xff]
  %v319 = vld [vmem:[%s1 + $0x878] sm:$0xff]
  %v320 = vld [vmem:[%s1 + $0x880] sm:$0xff]
  %v321 = vld [vmem:[%s1 + $0x888] sm:$0xff]
  %v322 = vld [vmem:[%s1 + $0x890] sm:$0xff]
  %v323 = vld [vmem:[%s1 + $0x898] sm:$0xff]
  %v324 = vld [vmem:[%s1 + $0x8a0] sm:$0xff]
  %v325 = vld [vmem:[%s1 + $0x8a8] sm:$0xff]
  %v326 = vld [vmem:[%s1 + $0x8b0] sm:$0xff]
  %v327 = vld [vmem:[%s1 + $0x8b8] sm:$0xff]
  %v328 = vld [vmem:[%s1 + $0x8c0] sm:$0xff]
  %v329 = vld [vmem:[%s1 + $0x8c8] sm:$0xff]
  %v330 = vld [vmem:[%s1 + $0x8d0] sm:$0xff]
  %v331 = vld [vmem:[%s1 + $0x8d8] sm:$0xff]
  %v332 = vld [vmem:[%s1 + $0x8e0] sm:$0xff]
  %v333 = vld [vmem:[%s1 + $0x8e8] sm:$0xff]
  %v334 = vld [vmem:[%s1 + $0x8f0] sm:$0xff]
  %v335 = vld [vmem:[%s1 + $0x8f8] sm:$0xff]
  %v336 = vld [vmem:[%s1 + $0x900] sm:$0xff]
  %v337 = vld [vmem:[%s1 + $0x908] sm:$0xff]
  %v338 = vld [vmem:[%s1 + $0x910] sm:$0xff]
  %v339 = vld [vmem:[%s1 + $0x918] sm:$0xff]
  %v340 = vld [vmem:[%s1 + $0x920] sm:$0xff]
  %v341 = vld [vmem:[%s1 + $0x928] sm:$0xff]
  %v342 = vld [vmem:[%s1 + $0x930] sm:$0xff]
  %v343 = vld [vmem:[%s1 + $0x938] sm:$0xff]
  %v344 = vld [vmem:[%s1 + $0x940] sm:$0xff]
  %v345 = vld [vmem:[%s1 + $0x948] sm:$0xff]
  %v346 = vld [vmem:[%s1 + $0x950] sm:$0xff]
  %v347 = vld [vmem:[%s1 + $0x958] sm:$0xff]
  %v348 = vld [vmem:[%s1 + $0x960] sm:$0xff]
  %v349 = vld [vmem:[%s1 + $0x968] sm:$0xff]
  %v350 = vld [vmem:[%s1 + $0x970] sm:$0xff]
  %v351 = vld [vmem:[%s1 + $0x978] sm:$0xff]
  %v352 = vld [vmem:[%s1 + $0x980] sm:$0xff]
  %v353 = vld [vmem:[%s1 + $0x988] sm:$0xff]
  %v354 = vld [vmem:[%s1 + $0x990] sm:$0xff]
  %v355 = vld [vmem:[%s1 + $0x998] sm:$0xff]
  %v356 = vld [vmem:[%s1 + $0x9a0] sm:$0xff]
  %v357 = vld [vmem:[%s1 + $0x9a8] sm:$0xff]
  %v358 = vld [vmem:[%s1 + $0x9b0] sm:$0xff]
  %v359 = vld [vmem:[%s1 + $0x9b8] sm:$0xff]
  %v360 = vld [vmem:[%s1 + $0x9c0] sm:$0xff]
  %v361 = vld [vmem:[%s1 + $0x9c8] sm:$0xff]
  %v362 = vld [vmem:[%s1 + $0x9d0] sm:$0xff]
  %v363 = vld [vmem:[%s1 + $0x9d8] sm:$0xff]
  %v364 = vld [vmem:[%s1 + $0x9e0] sm:$0xff]
  %v365 = vld [vmem:[%s1 + $0x9e8] sm:$0xff]
  %v366 = vld [vmem:[%s1 + $0x9f0] sm:$0xff]
  %v367 = vld [vmem:[%s1 + $0x9f8] sm:$0xff]
  %v368 = vld [vmem:[%s1 + $0xa00] sm:$0xff]
  %v369 = vld [vmem:[%s1 + $0xa08] sm:$0xff]
  %v370 = vld [vmem:[%s1 + $0xa10] sm:$0xff]
  %v371 = vld [vmem:[%s1 + $0xa18] sm:$0xff]
  %v372 = vld [vmem:[%s1 + $0xa20] sm:$0xff]
  %v373 = vld [vmem:[%s1 + $0xa28] sm:$0xff]
  %v374 = vld [vmem:[%s1 + $0xa30] sm:$0xff]
  %v375 = vld [vmem:[%s1 + $0xa38] sm:$0xff]
  %v376 = vld [vmem:[%s1 + $0xa40] sm:$0xff]
  %v377 = vld [vmem:[%s1 + $0xa48] sm:$0xff]
  %v378 = vld [vmem:[%s1 + $0xa50] sm:$0xff]
  %v379 = vld [vmem:[%s1 + $0xa58] sm:$0xff]
  %v380 = vld [vmem:[%s1 + $0xa60] sm:$0xff]
  %v381 = vld [vmem:[%s1 + $0xa68] sm:$0xff]
  %v382 = vld [vmem:[%s1 + $0xa70] sm:$0xff]
  %v383 = vld [vmem:[%s1 + $0xa78] sm:$0xff]
  %v384 = vld [vmem:[%s1 + $0xa80] sm:$0xff]
  %v385 = vld [vmem:[%s1 + $0xa88] sm:$0xff]
  %v386 = vld [vmem:[%s1 + $0xa90] sm:$0xff]
  %v387 = vld [vmem:[%s1 + $0xa98] sm:$0xff]
  %v388 = vld [vmem:[%s1 + $0xaa0] sm:$0xff]
  %v389 = vld [vmem:[%s1 + $0xaa8] sm:$0xff]
  %v390 = vld [vmem:[%s1 + $0xab0] sm:$0xff]
  %v391 = vld [vmem:[%s1 + $0xab8] sm:$0xff]
  %v392 = vld [vmem:[%s1 + $0xac0] sm:$0xff]
  %v393 = vld [vmem:[%s1 + $0xac8] sm:$0xff]
  %v394 = vld [vmem:[%s1 + $0xad0] sm:$0xff]
  %v395 = vld [vmem:[%s1 + $0xad8] sm:$0xff]
  %v396 = vld [vmem:[%s1 + $0xae0] sm:$0xff]
  %v397 = vld [vmem:[%s1 + $0xae8] sm:$0xff]
  %v398 = vld [vmem:[%s1 + $0xaf0] sm:$0xff]
  %v399 = vld [vmem:[%s1 + $0xaf8] sm:$0xff]
  %v400 = vld [vmem:[%s1 + $0xb00] sm:$0xff]
  %v401 = vld [vmem:[%s1 + $0xb08] sm:$0xff]
  %v402 = vld [vmem:[%s1 + $0xb10] sm:$0xff]
  %v403 = vld [vmem:[%s1 + $0xb18] sm:$0xff]
  %v404 = vld [vmem:[%s1 + $0xb20] sm:$0xff]
  %v405 = vld [vmem:[%s1 + $0xb28] sm:$0xff]
  %v406 = vld [vmem:[%s1 + $0xb30] sm:$0xff]
  %v407 = vld [vmem:[%s1 + $0xb38] sm:$0xff]
  %v408 = vld [vmem:[%s1 + $0xb40] sm:$0xff]
  %v409 = vld [vmem:[%s1 + $0xb48] sm:$0xff]
  %v410 = vld [vmem:[%s1 + $0xb50] sm:$0xff]
  %v411 = vld [vmem:[%s1 + $0xb58] sm:$0xff]
  %v412 = vld [vmem:[%s1 + $0xb60] sm:$0xff]
  %v413 = vld [vmem:[%s1 + $0xb68] sm:$0xff]
  %v414 = vld [vmem:[%s1 + $0xb70] sm:$0xff]
  %v415 = vld [vmem:[%s1 + $0xb78] sm:$0xff]
  %v416 = vld [vmem:[%s1 + $0xb80] sm:$0xff]
  %v417 = vld [vmem:[%s1 + $0xb88] sm:$0xff]
  %v418 = vld [vmem:[%s1 + $0xb90] sm:$0xff]
  %v419 = vld [vmem:[%s1 + $0xb98] sm:$0xff]
  %v420 = vld [vmem:[%s1 + $0xba0] sm:$0xff]
  %v421 = vld [vmem:[%s1 + $0xba8] sm:$0xff]
  %v422 = vld [vmem:[%s1 + $0xbb0] sm:$0xff]
  %v423 = vld [vmem:[%s1 + $0xbb8] sm:$0xff]
  %v424 = vld [vmem:[%s1 + $0xbc0] sm:$0xff]
  %v425 = vld [vmem:[%s1 + $0xbc8] sm:$0xff]
  %v426 = vld [vmem:[%s1 + $0xbd0] sm:$0xff]
  %v427 = vld [vmem:[%s1 + $0xbd8] sm:$0xff]
  %v428 = vld [vmem:[%s1 + $0xbe0] sm:$0xff]
  %v429 = vld [vmem:[%s1 + $0xbe8] sm:$0xff]
  %v430 = vld [vmem:[%s1 + $0xbf0] sm:$0xff]
  %v431 = vld [vmem:[%s1 + $0xbf8] sm:$0xff]
  %v432 = vld [vmem:[%s1 + $0xc00] sm:$0xff]
  %v433 = vld [vmem:[%s1 + $0xc08] sm:$0xff]
  %v434 = vld [vmem:[%s1 + $0xc10] sm:$0xff]
  %v435 = vld [vmem:[%s1 + $0xc18] sm:$0xff]
  %v436 = vld [vmem:[%s1 + $0xc20] sm:$0xff]
  %v437 = vld [vmem:[%s1 + $0xc28] sm:$0xff]
  %v438 = vld [vmem:[%s1 + $0xc30] sm:$0xff]
  %v439 = vld [vmem:[%s1 + $0xc38] sm:$0xff]
  %v440 = vld [vmem:[%s1 + $0xc40] sm:$0xff]
  %v441 = vld [vmem:[%s1 + $0xc48] sm:$0xff]
  %v442 = vld [vmem:[%s1 + $0xc50] sm:$0xff]
  %v443 = vld [vmem:[%s1 + $0xc58] sm:$0xff]
  %v444 = vld [vmem:[%s1 + $0xc60] sm:$0xff]
  %v445 = vld [vmem:[%s1 + $0xc68] sm:$0xff]
  %v446 = vld [vmem:[%s1 + $0xc70] sm:$0xff]
  %v447 = vld [vmem:[%s1 + $0xc78] sm:$0xff]
  %v448 = vld [vmem:[%s1 + $0xc80] sm:$0xff]
  %v449 = vld [vmem:[%s1 + $0xc88] sm:$0xff]
  %v450 = vld [vmem:[%s1 + $0xc90] sm:$0xff]
  %v451 = vld [vmem:[%s1 + $0xc98] sm:$0xff]
  %v452 = vld [vmem:[%s1 + $0xca0] sm:$0xff]
  %v453 = vld [vmem:[%s1 + $0xca8] sm:$0xff]
  %v454 = vld [vmem:[%s1 + $0xcb0] sm:$0xff]
  %v455 = vld [vmem:[%s1 + $0xcb8] sm:$0xff]
  %v456 = vld [vmem:[%s1 + $0xcc0] sm:$0xff]
  %v457 = vld [vmem:[%s1 + $0xcc8] sm:$0xff]
  %v458 = vld [vmem:[%s1 + $0xcd0] sm:$0xff]
  %v459 = vld [vmem:[%s1 + $0xcd8] sm:$0xff]
  %v460 = vld [vmem:[%s1 + $0xce0] sm:$0xff]
  %v461 = vld [vmem:[%s1 + $0xce8] sm:$0xff]
  %v462 = vld [vmem:[%s1 + $0xcf0] sm:$0xff]
  %v463 = vld [vmem:[%s1 + $0xcf8] sm:$0xff]
  %v464 = vld [vmem:[%s1 + $0xd00] sm:$0xff]
  %v465 = vld [vmem:[%s1 + $0xd08] sm:$0xff]
  %v466 = vld [vmem:[%s1 + $0xd10] sm:$0xff]
  %v467 = vld [vmem:[%s1 + $0xd18] sm:$0xff]
  %v468 = vld [vmem:[%s1 + $0xd20] sm:$0xff]
  %v469 = vld [vmem:[%s1 + $0xd28] sm:$0xff]
  %v470 = vld [vmem:[%s1 + $0xd30] sm:$0xff]
  %v471 = vld [vmem:[%s1 + $0xd38] sm:$0xff]
  %v472 = vld [vmem:[%s1 + $0xd40] sm:$0xff]
  %v473 = vld [vmem:[%s1 + $0xd48] sm:$0xff]
  %v474 = vld [vmem:[%s1 + $0xd50] sm:$0xff]
  %v475 = vld [vmem:[%s1 + $0xd58] sm:$0xff]
  %v476 = vld [vmem:[%s1 + $0xd60] sm:$0xff]
  %v477 = vld [vmem:[%s1 + $0xd68] sm:$0xff]
  %v478 = vld [vmem:[%s1 + $0xd70] sm:$0xff]
  %v479 = vld [vmem:[%s1 + $0xd78] sm:$0xff]
  %v480 = vld [vmem:[%s1 + $0xd80] sm:$0xff]
  %v481 = vld [vmem:[%s1 + $0xd88] sm:$0xff]
  %v482 = vld [vmem:[%s1 + $0xd90] sm:$0xff]
  %v483 = vld [vmem:[%s1 + $0xd98] sm:$0xff]
  %v484 = vld [vmem:[%s1 + $0xda0] sm:$0xff]
  %v485 = vld [vmem:[%s1 + $0xda8] sm:$0xff]
  %v486 = vld [vmem:[%s1 + $0xdb0] sm:$0xff]
  %v487 = vld [vmem:[%s1 + $0xdb8] sm:$0xff]
  %v488 = vld [vmem:[%s1 + $0xdc0] sm:$0xff]
  %v489 = vld [vmem:[%s1 + $0xdc8] sm:$0xff]
  %v490 = vld [vmem:[%s1 + $0xdd0] sm:$0xff]
  %v491 = vld [vmem:[%s1 + $0xdd8] sm:$0xff]
  %v492 = vld [vmem:[%s1 + $0xde0] sm:$0xff]
  %v493 = vld [vmem:[%s1 + $0xde8] sm:$0xff]
  %v494 = vld [vmem:[%s1 + $0xdf0] sm:$0xff]
  %v495 = vld [vmem:[%s1 + $0xdf8] sm:$0xff]
  %v496 = vld [vmem:[%s1 + $0xe00] sm:$0xff]
  %v497 = vld [vmem:[%s1 + $0xe08] sm:$0xff]
  %v498 = vld [vmem:[%s1 + $0xe10] sm:$0xff]
  %v499 = vld [vmem:[%s1 + $0xe18] sm:$0xff]
  %v500 = vld [vmem:[%s1 + $0xe20] sm:$0xff]
  %v501 = vld [vmem:[%s1 + $0xe28] sm:$0xff]
  %v502 = vld [vmem:[%s1 + $0xe30] sm:$0xff]
  %v503 = vld [vmem:[%s1 + $0xe38] sm:$0xff]
  %v504 = vld [vmem:[%s1 + $0xe40] sm:$0xff]
  %v505 = vld [vmem:[%s1 + $0xe48] sm:$0xff]
  %v506 = vld [vmem:[%s1 + $0xe50] sm:$0xff]
  %v507 = vld [vmem:[%s1 + $0xe58] sm:$0xff]
  %v508 = vld [vmem:[%s1 + $0xe60] sm:$0xff]
  %v509 = vld [vmem:[%s1 + $0xe68] sm:$0xff]
  %v510 = vld [vmem:[%s1 + $0xe70] sm:$0xff]
  %v511 = vld [vmem:[%s1 + $0xe78] sm:$0xff]
  %v512 = vld [vmem:[%s1 + $0xe80] sm:$0xff]
  %v513 = vld [vmem:[%s1 + $0xe88] sm:$0xff]
  %v514 = vld [vmem:[%s1 + $0xe90] sm:$0xff]
  %v515 = vld [vmem:[%s1 + $0xe98] sm:$0xff]
  %v516 = vld [vmem:[%s1 + $0xea0] sm:$0xff]
  %v517 = vld [vmem:[%s1 + $0xea8] sm:$0xff]
  %v518 = vld [vmem:[%s1 + $0xeb0] sm:$0xff]
  %v519 = vld [vmem:[%s1 + $0xeb8] sm:$0xff]
  %v520 = vld [vmem:[%s1 + $0xec0] sm:$0xff]
  %v521 = vld [vmem:[%s1 + $0xec8] sm:$0xff]
  %v522 = vld [vmem:[%s1 + $0xed0] sm:$0xff]
  %v523 = vld [vmem:[%s1 + $0xed8] sm:$0xff]
  %v524 = vld [vmem:[%s1 + $0xee0] sm:$0xff]
  %v525 = vld [vmem:[%s1 + $0xee8] sm:$0xff]
  %v526 = vld [vmem:[%s1 + $0xef0] sm:$0xff]
  %v527 = vld [vmem:[%s1 + $0xef8] sm:$0xff]
  %v528 = vld [vmem:[%s1 + $0xf00] sm:$0xff]
  %v529 = vld [vmem:[%s1 + $0xf08] sm:$0xff]
  %v530 = vld [vmem:[%s1 + $0xf10] sm:$0xff]
  %v531 = vld [vmem:[%s1 + $0xf18] sm:$0xff]
  %v532 = vld [vmem:[%s1 + $0xf20] sm:$0xff]
  %v533 = vld [vmem:[%s1 + $0xf28] sm:$0xff]
  %v534 = vld [vmem:[%s1 + $0xf30] sm:$0xff]
  %v535 = vld [vmem:[%s1 + $0xf38] sm:$0xff]
  %v536 = vld [vmem:[%s1 + $0xf40] sm:$0xff]
  %v537 = vld [vmem:[%s1 + $0xf48] sm:$0xff]
  %v538 = vld [vmem:[%s1 + $0xf50] sm:$0xff]
  %v539 = vld [vmem:[%s1 + $0xf58] sm:$0xff]
  %v540 = vld [vmem:[%s1 + $0xf60] sm:$0xff]
  %v541 = vld [vmem:[%s1 + $0xf68] sm:$0xff]
  %v542 = vld [vmem:[%s1 + $0xf70] sm:$0xff]
  %v543 = vld [vmem:[%s1 + $0xf78] sm:$0xff]
  %v544 = vld [vmem:[%s1 + $0xf80] sm:$0xff]
  %v545 = vld [vmem:[%s1 + $0xf88] sm:$0xff]
  %v546 = vld [vmem:[%s1 + $0xf90] sm:$0xff]
  %v547 = vld [vmem:[%s1 + $0xf98] sm:$0xff]
  %v548 = vld [vmem:[%s1 + $0xfa0] sm:$0xff]
  %v549 = vld [vmem:[%s1 + $0xfa8] sm:$0xff]
  %v550 = vld [vmem:[%s1 + $0xfb0] sm:$0xff]
  %v551 = vld [vmem:[%s1 + $0xfb8] sm:$0xff]
  %v552 = vld [vmem:[%s1 + $0xfc0] sm:$0xff]
  %v553 = vld [vmem:[%s1 + $0xfc8] sm:$0xff]
  %v554 = vld [vmem:[%s1 + $0xfd0] sm:$0xff]
  %v555 = vld [vmem:[%s1 + $0xfd8] sm:$0xff]
  %v556 = vld [vmem:[%s1 + $0xfe0] sm:$0xff]
  %v557 = vld [vmem:[%s1 + $0xfe8] sm:$0xff]
  %v558 = vld [vmem:[%s1 + $0xff0] sm:$0xff]
  %v559 = vld [vmem:[%s1 + $0xff8] sm:$0xff]
  %v560 = vld [vmem:[%s1 + $0x1000] sm:$0xff]
  %v561 = vld [vmem:[%s1 + $0x1008] sm:$0xff]
  %v562 = vld [vmem:[%s1 + $0x1010] sm:$0xff]
  %v563 = vld [vmem:[%s1 + $0x1018] sm:$0xff]
  %v564 = vld [vmem:[%s1 + $0x1020] sm:$0xff]
  %v565 = vld [vmem:[%s1 + $0x1028] sm:$0xff]
  %v566 = vld [vmem:[%s1 + $0x1030] sm:$0xff]
  %v567 = vld [vmem:[%s1 + $0x1038] sm:$0xff]
  %v568 = vld [vmem:[%s1 + $0x1040] sm:$0xff]
  %v569 = vld [vmem:[%s1 + $0x1048] sm:$0xff]
  %v570 = vld [vmem:[%s1 + $0x1050] sm:$0xff]
  %v571 = vld [vmem:[%s1 + $0x1058] sm:$0xff]
  %v572 = vld [vmem:[%s1 + $0x1060] sm:$0xff]
  %v573 = vld [vmem:[%s1 + $0x1068] sm:$0xff]
  %v574 = vld [vmem:[%s1 + $0x1070] sm:$0xff]
  %v575 = vld [vmem:[%s1 + $0x1078] sm:$0xff]
  %v576 = vld [vmem:[%s1 + $0x1080] sm:$0xff]
  %v577 = vld [vmem:[%s1 + $0x1088] sm:$0xff]
  %v578 = vld [vmem:[%s1 + $0x1090] sm:$0xff]
  %v579 = vld [vmem:[%s1 + $0x1098] sm:$0xff]
  %v580 = vld [vmem:[%s1 + $0x10a0] sm:$0xff]
  %v581 = vld [vmem:[%s1 + $0x10a8] sm:$0xff]
  %v582 = vld [vmem:[%s1 + $0x10b0] sm:$0xff]
  %v583 = vld [vmem:[%s1 + $0x10b8] sm:$0xff]
  %v584 = vld [vmem:[%s1 + $0x10c0] sm:$0xff]
  %v585 = vld [vmem:[%s1 + $0x10c8] sm:$0xff]
  %v586 = vld [vmem:[%s1 + $0x10d0] sm:$0xff]
  %v587 = vld [vmem:[%s1 + $0x10d8] sm:$0xff]
  %v588 = vld [vmem:[%s1 + $0x10e0] sm:$0xff]
  %v589 = vld [vmem:[%s1 + $0x10e8] sm:$0xff]
  %v590 = vld [vmem:[%s1 + $0x10f0] sm:$0xff]
  %v591 = vld [vmem:[%s1 + $0x10f8] sm:$0xff]
  %v592 = vld [vmem:[%s1 + $0x1100] sm:$0xff]
  %v593 = vld [vmem:[%s1 + $0x1108] sm:$0xff]
  %v594 = vld [vmem:[%s1 + $0x1110] sm:$0xff]
  %v595 = vld [vmem:[%s1 + $0x1118] sm:$0xff]
  %v596 = vld [vmem:[%s1 + $0x1120] sm:$0xff]
  %v597 = vld [vmem:[%s1 + $0x1128] sm:$0xff]
  %v598 = vld [vmem:[%s1 + $0x1130] sm:$0xff]
  %v599 = vld [vmem:[%s1 + $0x1138] sm:$0xff]
  %v600 = vld [vmem:[%s1 + $0x1140] sm:$0xff]
  %v601 = vld [vmem:[%s1 + $0x1148] sm:$0xff]
  %v602 = vld [vmem:[%s1 + $0x1150] sm:$0xff]
  %v603 = vld [vmem:[%s1 + $0x1158] sm:$0xff]
  %v604 = vld [vmem:[%s1 + $0x1160] sm:$0xff]
  %v605 = vld [vmem:[%s1 + $0x1168] sm:$0xff]
  %v606 = vld [vmem:[%s1 + $0x1170] sm:$0xff]
  %v607 = vld [vmem:[%s1 + $0x1178] sm:$0xff]
  %v608 = vld [vmem:[%s1 + $0x1180] sm:$0xff]
  %v609 = vld [vmem:[%s1 + $0x1188] sm:$0xff]
  %v610 = vld [vmem:[%s1 + $0x1190] sm:$0xff]
  %v611 = vld [vmem:[%s1 + $0x1198] sm:$0xff]
  %v612 = vld [vmem:[%s1 + $0x11a0] sm:$0xff]
  %v613 = vld [vmem:[%s1 + $0x11a8] sm:$0xff]
  %v614 = vld [vmem:[%s1 + $0x11b0] sm:$0xff]
  %v615 = vld [vmem:[%s1 + $0x11b8] sm:$0xff]
  %v616 = vld [vmem:[%s1 + $0x11c0] sm:$0xff]
  %v617 = vld [vmem:[%s1 + $0x11c8] sm:$0xff]
  %v618 = vld [vmem:[%s1 + $0x11d0] sm:$0xff]
  %v619 = vld [vmem:[%s1 + $0x11d8] sm:$0xff]
  %v620 = vld [vmem:[%s1 + $0x11e0] sm:$0xff]
  %v621 = vld [vmem:[%s1 + $0x11e8] sm:$0xff]
  %v622 = vld [vmem:[%s1 + $0x11f0] sm:$0xff]
  %v623 = vld [vmem:[%s1 + $0x11f8] sm:$0xff]
  %v624 = vld [vmem:[%s1 + $0x1200] sm:$0xff]
  %v625 = vld [vmem:[%s1 + $0x1208] sm:$0xff]
  %v626 = vld [vmem:[%s1 + $0x1210] sm:$0xff]
  %v627 = vld [vmem:[%s1 + $0x1218] sm:$0xff]
  %v628 = vld [vmem:[%s1 + $0x1220] sm:$0xff]
  %v629 = vld [vmem:[%s1 + $0x1228] sm:$0xff]
  %v630 = vld [vmem:[%s1 + $0x1230] sm:$0xff]
  %v631 = vld [vmem:[%s1 + $0x1238] sm:$0xff]
  %v632 = vld [vmem:[%s1 + $0x1240] sm:$0xff]
  %v633 = vld [vmem:[%s1 + $0x1248] sm:$0xff]
  %v634 = vld [vmem:[%s1 + $0x1250] sm:$0xff]
  %v635 = vld [vmem:[%s1 + $0x1258] sm:$0xff]
  %v636 = vld [vmem:[%s1 + $0x1260] sm:$0xff]
  %v637 = vld [vmem:[%s1 + $0x1268] sm:$0xff]
  %v638 = vld [vmem:[%s1 + $0x1270] sm:$0xff]
  %v639 = vld [vmem:[%s1 + $0x1278] sm:$0xff]
  %v640 = vld [vmem:[%s1 + $0x1280] sm:$0xff]
  %v641 = vld [vmem:[%s1 + $0x1288] sm:$0xff]
  %v642 = vld [vmem:[%s1 + $0x1290] sm:$0xff]
  %v643 = vld [vmem:[%s1 + $0x1298] sm:$0xff]
  %v644 = vld [vmem:[%s1 + $0x12a0] sm:$0xff]
  %v645 = vld [vmem:[%s1 + $0x12a8] sm:$0xff]
  %v646 = vld [vmem:[%s1 + $0x12b0] sm:$0xff]
  %v647 = vld [vmem:[%s1 + $0x12b8] sm:$0xff]
  %v648 = vld [vmem:[%s1 + $0x12c0] sm:$0xff]
  %v649 = vld [vmem:[%s1 + $0x12c8] sm:$0xff]
  %v650 = vld [vmem:[%s1 + $0x12d0] sm:$0xff]
  %v651 = vld [vmem:[%s1 + $0x12d8] sm:$0xff]
  %v652 = vld [vmem:[%s1 + $0x12e0] sm:$0xff]
  %v653 = vld [vmem:[%s1 + $0x12e8] sm:$0xff]
  %v654 = vld [vmem:[%s1 + $0x12f0] sm:$0xff]
  %v655 = vld [vmem:[%s1 + $0x12f8] sm:$0xff]
  %v656 = vld [vmem:[%s1 + $0x1300] sm:$0xff]
  %v657 = vld [vmem:[%s1 + $0x1308] sm:$0xff]
  %v658 = vld [vmem:[%s1 + $0x1310] sm:$0xff]
  %v659 = vld [vmem:[%s1 + $0x1318] sm:$0xff]
  %v660 = vld [vmem:[%s1 + $0x1320] sm:$0xff]
  %v661 = vld [vmem:[%s1 + $0x1328] sm:$0xff]
  %v662 = vld [vmem:[%s1 + $0x1330] sm:$0xff]
  %v663 = vld [vmem:[%s1 + $0x1338] sm:$0xff]
  %v664 = vld [vmem:[%s1 + $0x1340] sm:$0xff]
  %v665 = vld [vmem:[%s1 + $0x1348] sm:$0xff]
  %v666 = vld [vmem:[%s1 + $0x1350] sm:$0xff]
  %v667 = vld [vmem:[%s1 + $0x1358] sm:$0xff]
  %v668 = vld [vmem:[%s1 + $0x1360] sm:$0xff]
  %v669 = vld [vmem:[%s1 + $0x1368] sm:$0xff]
  %v670 = vld [vmem:[%s1 + $0x1370] sm:$0xff]
  %v671 = vld [vmem:[%s1 + $0x1378] sm:$0xff]
  %v672 = vld [vmem:[%s1 + $0x1380] sm:$0xff]
  %v673 = vld [vmem:[%s1 + $0x1388] sm:$0xff]
  %v674 = vld [vmem:[%s1 + $0x1390] sm:$0xff]
  %v675 = vld [vmem:[%s1 + $0x1398] sm:$0xff]
  %v676 = vld [vmem:[%s1 + $0x13a0] sm:$0xff]
  %v677 = vld [vmem:[%s1 + $0x13a8] sm:$0xff]
  %v678 = vld [vmem:[%s1 + $0x13b0] sm:$0xff]
  %v679 = vld [vmem:[%s1 + $0x13b8] sm:$0xff]
  %v680 = vld [vmem:[%s1 + $0x13c0] sm:$0xff]
  %v681 = vld [vmem:[%s1 + $0x13c8] sm:$0xff]
  %v682 = vld [vmem:[%s1 + $0x13d0] sm:$0xff]
  %v683 = vld [vmem:[%s1 + $0x13d8] sm:$0xff]
  %v684 = vld [vmem:[%s1 + $0x13e0] sm:$0xff]
  %v685 = vld [vmem:[%s1 + $0x13e8] sm:$0xff]
  %v686 = vld [vmem:[%s1 + $0x13f0] sm:$0xff]
  %v687 = vld [vmem:[%s1 + $0x13f8] sm:$0xff]
  %v688 = vld [vmem:[%s1 + $0x1400] sm:$0xff]
  %v689 = vld [vmem:[%s1 + $0x1408] sm:$0xff]
  %v690 = vld [vmem:[%s1 + $0x1410] sm:$0xff]
  %v691 = vld [vmem:[%s1 + $0x1418] sm:$0xff]
  %v692 = vld [vmem:[%s1 + $0x1420] sm:$0xff]
  %v693 = vld [vmem:[%s1 + $0x1428] sm:$0xff]
  %v694 = vld [vmem:[%s1 + $0x1430] sm:$0xff]
  %v695 = vld [vmem:[%s1 + $0x1438] sm:$0xff]
  %v696 = vld [vmem:[%s1 + $0x1440] sm:$0xff]
  %v697 = vld [vmem:[%s1 + $0x1448] sm:$0xff]
  %v698 = vld [vmem:[%s1 + $0x1450] sm:$0xff]
  %v699 = vld [vmem:[%s1 + $0x1458] sm:$0xff]
  %v700 = vld [vmem:[%s1 + $0x1460] sm:$0xff]
  %v701 = vld [vmem:[%s1 + $0x1468] sm:$0xff]
  %v702 = vld [vmem:[%s1 + $0x1470] sm:$0xff]
  %v703 = vld [vmem:[%s1 + $0x1478] sm:$0xff]
  %v704 = vld [vmem:[%s1 + $0x1480] sm:$0xff]
  %v705 = vld [vmem:[%s1 + $0x1488] sm:$0xff]
  %v706 = vld [vmem:[%s1 + $0x1490] sm:$0xff]
  %v707 = vld [vmem:[%s1 + $0x1498] sm:$0xff]
  %v708 = vld [vmem:[%s1 + $0x14a0] sm:$0xff]
  %v709 = vld [vmem:[%s1 + $0x14a8] sm:$0xff]
  %v710 = vld [vmem:[%s1 + $0x14b0] sm:$0xff]
  %v711 = vld [vmem:[%s1 + $0x14b8] sm:$0xff]
  %v712 = vld [vmem:[%s1 + $0x14c0] sm:$0xff]
  %v713 = vld [vmem:[%s1 + $0x14c8] sm:$0xff]
  %v714 = vld [vmem:[%s1 + $0x14d0] sm:$0xff]
  %v715 = vld [vmem:[%s1 + $0x14d8] sm:$0xff]
  %v716 = vld [vmem:[%s1 + $0x14e0] sm:$0xff]
  %v717 = vld [vmem:[%s1 + $0x14e8] sm:$0xff]
  %v718 = vld [vmem:[%s1 + $0x14f0] sm:$0xff]
  %v719 = vld [vmem:[%s1 + $0x14f8] sm:$0xff]
  %v720 = vld [vmem:[%s1 + $0x1500] sm:$0xff]
  %v721 = vld [vmem:[%s1 + $0x1508] sm:$0xff]
  %v722 = vld [vmem:[%s1 + $0x1510] sm:$0xff]
  %v723 = vld [vmem:[%s1 + $0x1518] sm:$0xff]
  %v724 = vld [vmem:[%s1 + $0x1520] sm:$0xff]
  %v725 = vld [vmem:[%s1 + $0x1528] sm:$0xff]
  %v726 = vld [vmem:[%s1 + $0x1530] sm:$0xff]
  %v727 = vld [vmem:[%s1 + $0x1538] sm:$0xff]
  %v728 = vld [vmem:[%s1 + $0x1540] sm:$0xff]
  %v729 = vld [vmem:[%s1 + $0x1548] sm:$0xff]
  %v730 = vld [vmem:[%s1 + $0x1550] sm:$0xff]
  %v731 = vld [vmem:[%s1 + $0x1558] sm:$0xff]
  %v732 = vld [vmem:[%s1 + $0x1560] sm:$0xff]
  %v733 = vld [vmem:[%s1 + $0x1568] sm:$0xff]
  %v734 = vld [vmem:[%s1 + $0x1570] sm:$0xff]
  %v735 = vld [vmem:[%s1 + $0x1578] sm:$0xff]
  %v736 = vld [vmem:[%s1 + $0x1580] sm:$0xff]
  %v737 = vld [vmem:[%s1 + $0x1588] sm:$0xff]
  %v738 = vld [vmem:[%s1 + $0x1590] sm:$0xff]
  %v739 = vld [vmem:[%s1 + $0x1598] sm:$0xff]
  %v740 = vld [vmem:[%s1 + $0x15a0] sm:$0xff]
  %v741 = vld [vmem:[%s1 + $0x15a8] sm:$0xff]
  %v742 = vld [vmem:[%s1 + $0x15b0] sm:$0xff]
  %v743 = vld [vmem:[%s1 + $0x15b8] sm:$0xff]
  %v744 = vld [vmem:[%s1 + $0x15c0] sm:$0xff]
  %v745 = vld [vmem:[%s1 + $0x15c8] sm:$0xff]
  %v746 = vld [vmem:[%s1 + $0x15d0] sm:$0xff]
  %v747 = vld [vmem:[%s1 + $0x15d8] sm:$0xff]
  %v748 = vld [vmem:[%s1 + $0x15e0] sm:$0xff]
  %v749 = vld [vmem:[%s1 + $0x15e8] sm:$0xff]
  %v750 = vld [vmem:[%s1 + $0x15f0] sm:$0xff]
  %v751 = vld [vmem:[%s1 + $0x15f8] sm:$0xff]
  %v752 = vld [vmem:[%s1 + $0x1600] sm:$0xff]
  %v753 = vld [vmem:[%s1 + $0x1608] sm:$0xff]
  %v754 = vld [vmem:[%s1 + $0x1610] sm:$0xff]
  %v755 = vld [vmem:[%s1 + $0x1618] sm:$0xff]
  %v756 = vld [vmem:[%s1 + $0x1620] sm:$0xff]
  %v757 = vld [vmem:[%s1 + $0x1628] sm:$0xff]
  %v758 = vld [vmem:[%s1 + $0x1630] sm:$0xff]
  %v759 = vld [vmem:[%s1 + $0x1638] sm:$0xff]
  %v760 = vld [vmem:[%s1 + $0x1640] sm:$0xff]
  %v761 = vld [vmem:[%s1 + $0x1648] sm:$0xff]
  %v762 = vld [vmem:[%s1 + $0x1650] sm:$0xff]
  %v763 = vld [vmem:[%s1 + $0x1658] sm:$0xff]
  %v764 = vld [vmem:[%s1 + $0x1660] sm:$0xff]
  %v765 = vld [vmem:[%s1 + $0x1668] sm:$0xff]
  %v766 = vld [vmem:[%s1 + $0x1670] sm:$0xff]
  %v767 = vld [vmem:[%s1 + $0x1678] sm:$0xff]
  %v768 = vld [vmem:[%s1 + $0x1680] sm:$0xff]
  %v769 = vld [vmem:[%s1 + $0x1688] sm:$0xff]
  %v770 = vld [vmem:[%s1 + $0x1690] sm:$0xff]
  %v771 = vld [vmem:[%s1 + $0x1698] sm:$0xff]
  %v772 = vld [vmem:[%s1 + $0x16a0] sm:$0xff]
  %v773 = vld [vmem:[%s1 + $0x16a8] sm:$0xff]
  %v774 = vld [vmem:[%s1 + $0x16b0] sm:$0xff]
  %v775 = vld [vmem:[%s1 + $0x16b8] sm:$0xff]
  %v776 = vld [vmem:[%s1 + $0x16c0] sm:$0xff]
  %v777 = vld [vmem:[%s1 + $0x16c8] sm:$0xff]
  %v778 = vld [vmem:[%s1 + $0x16d0] sm:$0xff]
  %v779 = vld [vmem:[%s1 + $0x16d8] sm:$0xff]
  %v780 = vld [vmem:[%s1 + $0x16e0] sm:$0xff]
  %v781 = vld [vmem:[%s1 + $0x16e8] sm:$0xff]
  %v782 = vld [vmem:[%s1 + $0x16f0] sm:$0xff]
  %v783 = vld [vmem:[%s1 + $0x16f8] sm:$0xff]
  %v784 = vld [vmem:[%s1 + $0x1700] sm:$0xff]
  %v785 = vld [vmem:[%s1 + $0x1708] sm:$0xff]
  %v786 = vld [vmem:[%s1 + $0x1710] sm:$0xff]
  %v787 = vld [vmem:[%s1 + $0x1718] sm:$0xff]
  %v788 = vld [vmem:[%s1 + $0x1720] sm:$0xff]
  %v789 = vld [vmem:[%s1 + $0x1728] sm:$0xff]
  %v790 = vld [vmem:[%s1 + $0x1730] sm:$0xff]
  %v791 = vld [vmem:[%s1 + $0x1738] sm:$0xff]
  %v792 = vld [vmem:[%s1 + $0x1740] sm:$0xff]
  %v793 = vld [vmem:[%s1 + $0x1748] sm:$0xff]
  %v794 = vld [vmem:[%s1 + $0x1750] sm:$0xff]
  %v795 = vld [vmem:[%s1 + $0x1758] sm:$0xff]
  %v796 = vld [vmem:[%s1 + $0x1760] sm:$0xff]
  %v797 = vld [vmem:[%s1 + $0x1768] sm:$0xff]
  %v798 = vld [vmem:[%s1 + $0x1770] sm:$0xff]
  %v799 = vld [vmem:[%s1 + $0x1778] sm:$0xff]
  %v800 = vld [vmem:[%s1 + $0x1780] sm:$0xff]
  %v801 = vld [vmem:[%s1 + $0x1788] sm:$0xff]
  %v802 = vld [vmem:[%s1 + $0x1790] sm:$0xff]
  %v803 = vld [vmem:[%s1 + $0x1798] sm:$0xff]
  %v804 = vld [vmem:[%s1 + $0x17a0] sm:$0xff]
  %v805 = vld [vmem:[%s1 + $0x17a8] sm:$0xff]
  %v806 = vld [vmem:[%s1 + $0x17b0] sm:$0xff]
  %v807 = vld [vmem:[%s1 + $0x17b8] sm:$0xff]
  %v808 = vld [vmem:[%s1 + $0x17c0] sm:$0xff]
  %v809 = vld [vmem:[%s1 + $0x17c8] sm:$0xff]
  %v810 = vld [vmem:[%s1 + $0x17d0] sm:$0xff]
  %v811 = vld [vmem:[%s1 + $0x17d8] sm:$0xff]
  %v812 = vld [vmem:[%s1 + $0x17e0] sm:$0xff]
  %v813 = vld [vmem:[%s1 + $0x17e8] sm:$0xff]
  %v814 = vld [vmem:[%s1 + $0x17f0] sm:$0xff]
  %v815 = vld [vmem:[%s1 + $0x17f8] sm:$0xff]
  %v816 = vld [vmem:[%s1 + $0x1800] sm:$0xff]
  %v817 = vld [vmem:[%s1 + $0x1808] sm:$0xff]
  %v818 = vld [vmem:[%s1 + $0x1810] sm:$0xff]
  %v819 = vld [vmem:[%s1 + $0x1818] sm:$0xff]
  %v820 = vld [vmem:[%s1 + $0x1820] sm:$0xff]
  %v821 = vld [vmem:[%s1 + $0x1828] sm:$0xff]
  %v822 = vld [vmem:[%s1 + $0x1830] sm:$0xff]
  %v823 = vld [vmem:[%s1 + $0x1838] sm:$0xff]
  %v824 = vld [vmem:[%s1 + $0x1840] sm:$0xff]
  %v825 = vld [vmem:[%s1 + $0x1848] sm:$0xff]
  %v826 = vld [vmem:[%s1 + $0x1850] sm:$0xff]
  %v827 = vld [vmem:[%s1 + $0x1858] sm:$0xff]
  %v828 = vld [vmem:[%s1 + $0x1860] sm:$0xff]
  %v829 = vld [vmem:[%s1 + $0x1868] sm:$0xff]
  %v830 = vld [vmem:[%s1 + $0x1870] sm:$0xff]
  %v831 = vld [vmem:[%s1 + $0x1878] sm:$0xff]
  %v832 = vld [vmem:[%s1 + $0x1880] sm:$0xff]
  %v833 = vld [vmem:[%s1 + $0x1888] sm:$0xff]
  %v834 = vld [vmem:[%s1 + $0x1890] sm:$0xff]
  %v835 = vld [vmem:[%s1 + $0x1898] sm:$0xff]
  %v836 = vld [vmem:[%s1 + $0x18a0] sm:$0xff]
  %v837 = vld [vmem:[%s1 + $0x18a8] sm:$0xff]
  %v838 = vld [vmem:[%s1 + $0x18b0] sm:$0xff]
  %v839 = vld [vmem:[%s1 + $0x18b8] sm:$0xff]
  %v840 = vld [vmem:[%s1 + $0x18c0] sm:$0xff]
  %v841 = vld [vmem:[%s1 + $0x18c8] sm:$0xff]
  %v842 = vld [vmem:[%s1 + $0x18d0] sm:$0xff]
  %v843 = vld [vmem:[%s1 + $0x18d8] sm:$0xff]
  %v844 = vld [vmem:[%s1 + $0x18e0] sm:$0xff]
  %v845 = vld [vmem:[%s1 + $0x18e8] sm:$0xff]
  %v846 = vld [vmem:[%s1 + $0x18f0] sm:$0xff]
  %v847 = vld [vmem:[%s1 + $0x18f8] sm:$0xff]
  %v848 = vld [vmem:[%s1 + $0x1900] sm:$0xff]
  %v849 = vld [vmem:[%s1 + $0x1908] sm:$0xff]
  %v850 = vld [vmem:[%s1 + $0x1910] sm:$0xff]
  %v851 = vld [vmem:[%s1 + $0x1918] sm:$0xff]
  %v852 = vld [vmem:[%s1 + $0x1920] sm:$0xff]
  %v853 = vld [vmem:[%s1 + $0x1928] sm:$0xff]
  %v854 = vld [vmem:[%s1 + $0x1930] sm:$0xff]
  %v855 = vld [vmem:[%s1 + $0x1938] sm:$0xff]
  %v856 = vld [vmem:[%s1 + $0x1940] sm:$0xff]
  %v857 = vld [vmem:[%s1 + $0x1948] sm:$0xff]
  %v858 = vld [vmem:[%s1 + $0x1950] sm:$0xff]
  %v859 = vld [vmem:[%s1 + $0x1958] sm:$0xff]
  %v860 = vld [vmem:[%s1 + $0x1960] sm:$0xff]
  %v861 = vld [vmem:[%s1 + $0x1968] sm:$0xff]
  %v862 = vld [vmem:[%s1 + $0x1970] sm:$0xff]
  %v863 = vld [vmem:[%s1 + $0x1978] sm:$0xff]
  %v864 = vld [vmem:[%s1 + $0x1980] sm:$0xff]
  %v865 = vld [vmem:[%s1 + $0x1988] sm:$0xff]
  %v866 = vld [vmem:[%s1 + $0x1990] sm:$0xff]
  %v867 = vld [vmem:[%s1 + $0x1998] sm:$0xff]
  %v868 = vld [vmem:[%s1 + $0x19a0] sm:$0xff]
  %v869 = vld [vmem:[%s1 + $0x19a8] sm:$0xff]
  %v870 = vld [vmem:[%s1 + $0x19b0] sm:$0xff]
  %v871 = vld [vmem:[%s1 + $0x19b8] sm:$0xff]
  %v872 = vld [vmem:[%s1 + $0x19c0] sm:$0xff]
  %v873 = vld [vmem:[%s1 + $0x19c8] sm:$0xff]
  %v874 = vld [vmem:[%s1 + $0x19d0] sm:$0xff]
  %v875 = vld [vmem:[%s1 + $0x19d8] sm:$0xff]
  %v876 = vld [vmem:[%s1 + $0x19e0] sm:$0xff]
  %v877 = vld [vmem:[%s1 + $0x19e8] sm:$0xff]
  %v878 = vld [vmem:[%s1 + $0x19f0] sm:$0xff]
  %v879 = vld [vmem:[%s1 + $0x19f8] sm:$0xff]
  %v880 = vld [vmem:[%s1 + $0x1a00] sm:$0xff]
  %v881 = vld [vmem:[%s1 + $0x1a08] sm:$0xff]
  %v882 = vld [vmem:[%s1 + $0x1a10] sm:$0xff]
  %v883 = vld [vmem:[%s1 + $0x1a18] sm:$0xff]
  %v884 = vld [vmem:[%s1 + $0x1a20] sm:$0xff]
  %v885 = vld [vmem:[%s1 + $0x1a28] sm:$0xff]
  %v886 = vld [vmem:[%s1 + $0x1a30] sm:$0xff]
  %v887 = vld [vmem:[%s1 + $0x1a38] sm:$0xff]
  %v888 = vld [vmem:[%s1 + $0x1a40] sm:$0xff]
  %v889 = vld [vmem:[%s1 + $0x1a48] sm:$0xff]
  %v890 = vld [vmem:[%s1 + $0x1a50] sm:$0xff]
  %v891 = vld [vmem:[%s1 + $0x1a58] sm:$0xff]
  %v892 = vld [vmem:[%s1 + $0x1a60] sm:$0xff]
  %v893 = vld [vmem:[%s1 + $0x1a68] sm:$0xff]
  %v894 = vld [vmem:[%s1 + $0x1a70] sm:$0xff]
  %v895 = vld [vmem:[%s1 + $0x1a78] sm:$0xff]
  %v896 = vld [vmem:[%s1 + $0x1a80] sm:$0xff]
  %v897 = vld [vmem:[%s1 + $0x1a88] sm:$0xff]
  %v898 = vld [vmem:[%s1 + $0x1a90] sm:$0xff]
  %v899 = vld [vmem:[%s1 + $0x1a98] sm:$0xff]
  %v900 = vld [vmem:[%s1 + $0x1aa0] sm:$0xff]
  %v901 = vld [vmem:[%s1 + $0x1aa8] sm:$0xff]
  %v902 = vld [vmem:[%s1 + $0x1ab0] sm:$0xff]
  %v903 = vld [vmem:[%s1 + $0x1ab8] sm:$0xff]
  %v904 = vld [vmem:[%s1 + $0x1ac0] sm:$0xff]
  %v905 = vld [vmem:[%s1 + $0x1ac8] sm:$0xff]
  %v906 = vld [vmem:[%s1 + $0x1ad0] sm:$0xff]
  %v907 = vld [vmem:[%s1 + $0x1ad8] sm:$0xff]
  %v908 = vld [vmem:[%s1 + $0x1ae0] sm:$0xff]
  %v909 = vld [vmem:[%s1 + $0x1ae8] sm:$0xff]
  %v910 = vld [vmem:[%s1 + $0x1af0] sm:$0xff]
  %v911 = vld [vmem:[%s1 + $0x1af8] sm:$0xff]
  %v912 = vld [vmem:[%s1 + $0x1b00] sm:$0xff]
  %v913 = vld [vmem:[%s1 + $0x1b08] sm:$0xff]
  %v914 = vld [vmem:[%s1 + $0x1b10] sm:$0xff]
  %v915 = vld [vmem:[%s1 + $0x1b18] sm:$0xff]
  %v916 = vld [vmem:[%s1 + $0x1b20] sm:$0xff]
  %v917 = vld [vmem:[%s1 + $0x1b28] sm:$0xff]
  %v918 = vld [vmem:[%s1 + $0x1b30] sm:$0xff]
  %v919 = vld [vmem:[%s1 + $0x1b38] sm:$0xff]
  %v920 = vld [vmem:[%s1 + $0x1b40] sm:$0xff]
  %v921 = vld [vmem:[%s1 + $0x1b48] sm:$0xff]
  %v922 = vld [vmem:[%s1 + $0x1b50] sm:$0xff]
  %v923 = vld [vmem:[%s1 + $0x1b58] sm:$0xff]
  %v924 = vld [vmem:[%s1 + $0x1b60] sm:$0xff]
  %v925 = vld [vmem:[%s1 + $0x1b68] sm:$0xff]
  %v926 = vld [vmem:[%s1 + $0x1b70] sm:$0xff]
  %v927 = vld [vmem:[%s1 + $0x1b78] sm:$0xff]
  %v928 = vld [vmem:[%s1 + $0x1b80] sm:$0xff]
  %v929 = vld [vmem:[%s1 + $0x1b88] sm:$0xff]
  %v930 = vld [vmem:[%s1 + $0x1b90] sm:$0xff]
  %v931 = vld [vmem:[%s1 + $0x1b98] sm:$0xff]
  %v932 = vld [vmem:[%s1 + $0x1ba0] sm:$0xff]
  %v933 = vld [vmem:[%s1 + $0x1ba8] sm:$0xff]
  %v934 = vld [vmem:[%s1 + $0x1bb0] sm:$0xff]
  %v935 = vld [vmem:[%s1 + $0x1bb8] sm:$0xff]
  %v936 = vld [vmem:[%s1 + $0x1bc0] sm:$0xff]
  %v937 = vld [vmem:[%s1 + $0x1bc8] sm:$0xff]
  %v938 = vld [vmem:[%s1 + $0x1bd0] sm:$0xff]
  %v939 = vld [vmem:[%s1 + $0x1bd8] sm:$0xff]
  %v940 = vld [vmem:[%s1 + $0x1be0] sm:$0xff]
  %v941 = vld [vmem:[%s1 + $0x1be8] sm:$0xff]
  %v942 = vld [vmem:[%s1 + $0x1bf0] sm:$0xff]
  %v943 = vld [vmem:[%s1 + $0x1bf8] sm:$0xff]
  %v944 = vld [vmem:[%s1 + $0x1c00] sm:$0xff]
  %v945 = vld [vmem:[%s1 + $0x1c08] sm:$0xff]
  %v946 = vld [vmem:[%s1 + $0x1c10] sm:$0xff]
  %v947 = vld [vmem:[%s1 + $0x1c18] sm:$0xff]
  %v948 = vld [vmem:[%s1 + $0x1c20] sm:$0xff]
  %v949 = vld [vmem:[%s1 + $0x1c28] sm:$0xff]
  %v950 = vld [vmem:[%s1 + $0x1c30] sm:$0xff]
  %v951 = vld [vmem:[%s1 + $0x1c38] sm:$0xff]
  %v952 = vld [vmem:[%s1 + $0x1c40] sm:$0xff]
  %v953 = vld [vmem:[%s1 + $0x1c48] sm:$0xff]
  %v954 = vld [vmem:[%s1 + $0x1c50] sm:$0xff]
  %v955 = vld [vmem:[%s1 + $0x1c58] sm:$0xff]
  %v956 = vld [vmem:[%s1 + $0x1c60] sm:$0xff]
  %v957 = vld [vmem:[%s1 + $0x1c68] sm:$0xff]
  %v958 = vld [vmem:[%s1 + $0x1c70] sm:$0xff]
  %v959 = vld [vmem:[%s1 + $0x1c78] sm:$0xff]
  %v960 = vld [vmem:[%s1 + $0x1c80] sm:$0xff]
  %v961 = vld [vmem:[%s1 + $0x1c88] sm:$0xff]
  %v962 = vld [vmem:[%s1 + $0x1c90] sm:$0xff]
  %v963 = vld [vmem:[%s1 + $0x1c98] sm:$0xff]
  %v964 = vld [vmem:[%s1 + $0x1ca0] sm:$0xff]
  %v965 = vld [vmem:[%s1 + $0x1ca8] sm:$0xff]
  %v966 = vld [vmem:[%s1 + $0x1cb0] sm:$0xff]
  %v967 = vld [vmem:[%s1 + $0x1cb8] sm:$0xff]
  %v968 = vld [vmem:[%s1 + $0x1cc0] sm:$0xff]
  %v969 = vld [vmem:[%s1 + $0x1cc8] sm:$0xff]
  %v970 = vld [vmem:[%s1 + $0x1cd0] sm:$0xff]
  %v971 = vld [vmem:[%s1 + $0x1cd8] sm:$0xff]
  %v972 = vld [vmem:[%s1 + $0x1ce0] sm:$0xff]
  %v973 = vld [vmem:[%s1 + $0x1ce8] sm:$0xff]
  %v974 = vld [vmem:[%s1 + $0x1cf0] sm:$0xff]
  %v975 = vld [vmem:[%s1 + $0x1cf8] sm:$0xff]
  %v976 = vld [vmem:[%s1 + $0x1d00] sm:$0xff]
  %v977 = vld [vmem:[%s1 + $0x1d08] sm:$0xff]
  %v978 = vld [vmem:[%s1 + $0x1d10] sm:$0xff]
  %v979 = vld [vmem:[%s1 + $0x1d18] sm:$0xff]
  %v980 = vld [vmem:[%s1 + $0x1d20] sm:$0xff]
  %v981 = vld [vmem:[%s1 + $0x1d28] sm:$0xff]
  %v982 = vld [vmem:[%s1 + $0x1d30] sm:$0xff]
  %v983 = vld [vmem:[%s1 + $0x1d38] sm:$0xff]
  %v984 = vld [vmem:[%s1 + $0x1d40] sm:$0xff]
  %v985 = vld [vmem:[%s1 + $0x1d48] sm:$0xff]
  %v986 = vld [vmem:[%s1 + $0x1d50] sm:$0xff]
  %v987 = vld [vmem:[%s1 + $0x1d58] sm:$0xff]
  %v988 = vld [vmem:[%s1 + $0x1d60] sm:$0xff]
  %v989 = vld [vmem:[%s1 + $0x1d68] sm:$0xff]
  %v990 = vld [vmem:[%s1 + $0x1d70] sm:$0xff]
  %v991 = vld [vmem:[%s1 + $0x1d78] sm:$0xff]
  %v992 = vld [vmem:[%s1 + $0x1d80] sm:$0xff]
  %v993 = vld [vmem:[%s1 + $0x1d88] sm:$0xff]
  %v994 = vld [vmem:[%s1 + $0x1d90] sm:$0xff]
  %v995 = vld [vmem:[%s1 + $0x1d98] sm:$0xff]
  %v996 = vld [vmem:[%s1 + $0x1da0] sm:$0xff]
  %v997 = vld [vmem:[%s1 + $0x1da8] sm:$0xff]
  %v998 = vld [vmem:[%s1 + $0x1db0] sm:$0xff]
  %v999 = vld [vmem:[%s1 + $0x1db8] sm:$0xff]
  %v1000 = vld [vmem:[%s1 + $0x1dc0] sm:$0xff]
  %v1001 = vld [vmem:[%s1 + $0x1dc8] sm:$0xff]
  %v1002 = vld [vmem:[%s1 + $0x1dd0] sm:$0xff]
  %v1003 = vld [vmem:[%s1 + $0x1dd8] sm:$0xff]
  %v1004 = vld [vmem:[%s1 + $0x1de0] sm:$0xff]
  %v1005 = vld [vmem:[%s1 + $0x1de8] sm:$0xff]
  %v1006 = vld [vmem:[%s1 + $0x1df0] sm:$0xff]
  %v1007 = vld [vmem:[%s1 + $0x1df8] sm:$0xff]
  %v1008 = vld [vmem:[%s1 + $0x1e00] sm:$0xff]
  %v1009 = vld [vmem:[%s1 + $0x1e08] sm:$0xff]
  %v1010 = vld [vmem:[%s1 + $0x1e10] sm:$0xff]
  %v1011 = vld [vmem:[%s1 + $0x1e18] sm:$0xff]
  %v1012 = vld [vmem:[%s1 + $0x1e20] sm:$0xff]
  %v1013 = vld [vmem:[%s1 + $0x1e28] sm:$0xff]
  %v1014 = vld [vmem:[%s1 + $0x1e30] sm:$0xff]
  %v1015 = vld [vmem:[%s1 + $0x1e38] sm:$0xff]
  %v1016 = vld [vmem:[%s1 + $0x1e40] sm:$0xff]
  %v1017 = vld [vmem:[%s1 + $0x1e48] sm:$0xff]
  %v1018 = vld [vmem:[%s1 + $0x1e50] sm:$0xff]
  %v1019 = vld [vmem:[%s1 + $0x1e58] sm:$0xff]
  %v1020 = vld [vmem:[%s1 + $0x1e60] sm:$0xff]
  %v1021 = vld [vmem:[%s1 + $0x1e68] sm:$0xff]
  %v1022 = vld [vmem:[%s1 + $0x1e70] sm:$0xff]
  %v1023 = vld [vmem:[%s1 + $0x1e78] sm:$0xff]
  %v1024 = vld [vmem:[%s1 + $0x1e80] sm:$0xff]
  %v1025 = vld [vmem:[%s1 + $0x1e88] sm:$0xff]
  %v1026 = vld [vmem:[%s1 + $0x1e90] sm:$0xff]
  %v1027 = vld [vmem:[%s1 + $0x1e98] sm:$0xff]
  %v1028 = vld [vmem:[%s1 + $0x1ea0] sm:$0xff]
  %v1029 = vld [vmem:[%s1 + $0x1ea8] sm:$0xff]
  %v1030 = vld [vmem:[%s1 + $0x1eb0] sm:$0xff]
  %v1031 = vld [vmem:[%s1 + $0x1eb8] sm:$0xff]
  %v1032 = vld [vmem:[%s1 + $0x1ec0] sm:$0xff]
  %v1033 = vld [vmem:[%s1 + $0x1ec8] sm:$0xff]
  %v1034 = vld [vmem:[%s1 + $0x1ed0] sm:$0xff]
  %v1035 = vld [vmem:[%s1 + $0x1ed8] sm:$0xff]
  %v1036 = vld [vmem:[%s1 + $0x1ee0] sm:$0xff]
  %v1037 = vld [vmem:[%s1 + $0x1ee8] sm:$0xff]
  %v1038 = vld [vmem:[%s1 + $0x1ef0] sm:$0xff]
  %v1039 = vld [vmem:[%s1 + $0x1ef8] sm:$0xff]
  %v1040 = vld [vmem:[%s1 + $0x1f00] sm:$0xff]
  %v1041 = vld [vmem:[%s1 + $0x1f08] sm:$0xff]
  %v1042 = vld [vmem:[%s1 + $0x1f10] sm:$0xff]
  %v1043 = vld [vmem:[%s1 + $0x1f18] sm:$0xff]
  %v1044 = vld [vmem:[%s1 + $0x1f20] sm:$0xff]
  %v1045 = vld [vmem:[%s1 + $0x1f28] sm:$0xff]
  %v1046 = vld [vmem:[%s1 + $0x1f30] sm:$0xff]
  %v1047 = vld [vmem:[%s1 + $0x1f38] sm:$0xff]
  %v1048 = vld [vmem:[%s1 + $0x1f40] sm:$0xff]
  %v1049 = vld [vmem:[%s1 + $0x1f48] sm:$0xff]
  %v1050 = vld [vmem:[%s1 + $0x1f50] sm:$0xff]
  %v1051 = vld [vmem:[%s1 + $0x1f58] sm:$0xff]
  %v1052 = vld [vmem:[%s1 + $0x1f60] sm:$0xff]
  %v1053 = vld [vmem:[%s1 + $0x1f68] sm:$0xff]
  %v1054 = vld [vmem:[%s1 + $0x1f70] sm:$0xff]
  %v1055 = vld [vmem:[%s1 + $0x1f78] sm:$0xff]
  %v1056 = vld [vmem:[%s1 + $0x1f80] sm:$0xff]
  %v1057 = vld [vmem:[%s1 + $0x1f88] sm:$0xff]
  %v1058 = vld [vmem:[%s1 + $0x1f90] sm:$0xff]
  %v1059 = vld [vmem:[%s1 + $0x1f98] sm:$0xff]
  %v1060 = vld [vmem:[%s1 + $0x1fa0] sm:$0xff]
  %v1061 = vld [vmem:[%s1 + $0x1fa8] sm:$0xff]
  %v1062 = vld [vmem:[%s1 + $0x1fb0] sm:$0xff]
  %v1063 = vld [vmem:[%s1 + $0x1fb8] sm:$0xff]
  %v1064 = vld [vmem:[%s1 + $0x1fc0] sm:$0xff]
  %v1065 = vld [vmem:[%s1 + $0x1fc8] sm:$0xff]
  %v1066 = vld [vmem:[%s1 + $0x1fd0] sm:$0xff]
  %v1067 = vld [vmem:[%s1 + $0x1fd8] sm:$0xff]
  %v1068 = vld [vmem:[%s1 + $0x1fe0] sm:$0xff]
  %v1069 = vld [vmem:[%s1 + $0x1fe8] sm:$0xff]
  %v1070 = vld [vmem:[%s1 + $0x1ff0] sm:$0xff]
  %v1071 = vld [vmem:[%s1 + $0x1ff8] sm:$0xff]
  %v1072 = vld [vmem:[%s1 + $0x2000] sm:$0xff]
  %v1073 = vld [vmem:[%s1 + $0x2008] sm:$0xff]
  %v1074 = vld [vmem:[%s1 + $0x2010] sm:$0xff]
  %v1075 = vld [vmem:[%s1 + $0x2018] sm:$0xff]
  %v1076 = vld [vmem:[%s1 + $0x2020] sm:$0xff]
  %v1077 = vld [vmem:[%s1 + $0x2028] sm:$0xff]
  %v1078 = vld [vmem:[%s1 + $0x2030] sm:$0xff]
  %v1079 = vld [vmem:[%s1 + $0x2038] sm:$0xff]
  %v1080 = vld [vmem:[%s1 + $0x2040] sm:$0xff]
  %v1081 = vld [vmem:[%s1 + $0x2048] sm:$0xff]
  %v1082 = vld [vmem:[%s1 + $0x2050] sm:$0xff]
  %v1083 = vld [vmem:[%s1 + $0x2058] sm:$0xff]
  %v1084 = vld [vmem:[%s1 + $0x2060] sm:$0xff]
  %v1085 = vld [vmem:[%s1 + $0x2068] sm:$0xff]
  %v1086 = vld [vmem:[%s1 + $0x2070] sm:$0xff]
  %v1087 = vld [vmem:[%s1 + $0x2078] sm:$0xff]
  %v1088 = vld [vmem:[%s1 + $0x2080] sm:$0xff]
  %v1089 = vld [vmem:[%s1 + $0x2088] sm:$0xff]
  %v1090 = vld [vmem:[%s1 + $0x2090] sm:$0xff]
  %v1091 = vld [vmem:[%s1 + $0x2098] sm:$0xff]
  %v1092 = vld [vmem:[%s1 + $0x20a0] sm:$0xff]
  %v1093 = vld [vmem:[%s1 + $0x20a8] sm:$0xff]
  %v1094 = vld [vmem:[%s1 + $0x20b0] sm:$0xff]
  %v1095 = vld [vmem:[%s1 + $0x20b8] sm:$0xff]
  %v1096 = vld [vmem:[%s1 + $0x20c0] sm:$0xff]
  %v1097 = vld [vmem:[%s1 + $0x20c8] sm:$0xff]
  %v1098 = vld [vmem:[%s1 + $0x20d0] sm:$0xff]
  %v1099 = vld [vmem:[%s1 + $0x20d8] sm:$0xff]
  %v1100 = vld [vmem:[%s1 + $0x20e0] sm:$0xff]
  %v1101 = vld [vmem:[%s1 + $0x20e8] sm:$0xff]
  %v1102 = vld [vmem:[%s1 + $0x20f0] sm:$0xff]
  %v1103 = vld [vmem:[%s1 + $0x20f8] sm:$0xff]
  %v1104 = vld [vmem:[%s1 + $0x2100] sm:$0xff]
  %v1105 = vld [vmem:[%s1 + $0x2108] sm:$0xff]
  %v1106 = vld [vmem:[%s1 + $0x2110] sm:$0xff]
  %v1107 = vld [vmem:[%s1 + $0x2118] sm:$0xff]
  %v1108 = vld [vmem:[%s1 + $0x2120] sm:$0xff]
  %v1109 = vld [vmem:[%s1 + $0x2128] sm:$0xff]
  %v1110 = vld [vmem:[%s1 + $0x2130] sm:$0xff]
  %v1111 = vld [vmem:[%s1 + $0x2138] sm:$0xff]
  %v1112 = vld [vmem:[%s1 + $0x2140] sm:$0xff]
  %v1113 = vld [vmem:[%s1 + $0x2148] sm:$0xff]
  %v1114 = vld [vmem:[%s1 + $0x2150] sm:$0xff]
  %v1115 = vld [vmem:[%s1 + $0x2158] sm:$0xff]
  %v1116 = vld [vmem:[%s1 + $0x2160] sm:$0xff]
  %v1117 = vld [vmem:[%s1 + $0x2168] sm:$0xff]
  %v1118 = vld [vmem:[%s1 + $0x2170] sm:$0xff]
  %v1119 = vld [vmem:[%s1 + $0x2178] sm:$0xff]
  %v1120 = vld [vmem:[%s1 + $0x2180] sm:$0xff]
  %v1121 = vld [vmem:[%s1 + $0x2188] sm:$0xff]
  %v1122 = vld [vmem:[%s1 + $0x2190] sm:$0xff]
  %v1123 = vld [vmem:[%s1 + $0x2198] sm:$0xff]
  %v1124 = vld [vmem:[%s1 + $0x21a0] sm:$0xff]
  %v1125 = vld [vmem:[%s1 + $0x21a8] sm:$0xff]
  %v1126 = vld [vmem:[%s1 + $0x21b0] sm:$0xff]
  %v1127 = vld [vmem:[%s1 + $0x21b8] sm:$0xff]
  %v1128 = vld [vmem:[%s1 + $0x21c0] sm:$0xff]
  %v1129 = vld [vmem:[%s1 + $0x21c8] sm:$0xff]
  %v1130 = vld [vmem:[%s1 + $0x21d0] sm:$0xff]
  %v1131 = vld [vmem:[%s1 + $0x21d8] sm:$0xff]
  %v1132 = vld [vmem:[%s1 + $0x21e0] sm:$0xff]
  %v1133 = vld [vmem:[%s1 + $0x21e8] sm:$0xff]
  %v1134 = vld [vmem:[%s1 + $0x21f0] sm:$0xff]
  %v1135 = vld [vmem:[%s1 + $0x21f8] sm:$0xff]
  %v1136 = vld [vmem:[%s1 + $0x2200] sm:$0xff]
  %v1137 = vld [vmem:[%s1 + $0x2208] sm:$0xff]
  %v1138 = vld [vmem:[%s1 + $0x2210] sm:$0xff]
  %v1139 = vld [vmem:[%s1 + $0x2218] sm:$0xff]
  %v1140 = vld [vmem:[%s1 + $0x2220] sm:$0xff]
  %v1141 = vld [vmem:[%s1 + $0x2228] sm:$0xff]
  %v1142 = vld [vmem:[%s1 + $0x2230] sm:$0xff]
  %v1143 = vld [vmem:[%s1 + $0x2238] sm:$0xff]
  %v1144 = vld [vmem:[%s1 + $0x2240] sm:$0xff]
  %v1145 = vld [vmem:[%s1 + $0x2248] sm:$0xff]
  %v1146 = vld [vmem:[%s1 + $0x2250] sm:$0xff]
  %v1147 = vld [vmem:[%s1 + $0x2258] sm:$0xff]
  %v1148 = vld [vmem:[%s1 + $0x2260] sm:$0xff]
  %v1149 = vld [vmem:[%s1 + $0x2268] sm:$0xff]
  %v1150 = vld [vmem:[%s1 + $0x2270] sm:$0xff]
  %v1151 = vld [vmem:[%s1 + $0x2278] sm:$0xff]
  %v1152 = vld [vmem:[%s1 + $0x2280] sm:$0xff]
  %v1153 = vld [vmem:[%s1 + $0x2288] sm:$0xff]
  %v1154 = vld [vmem:[%s1 + $0x2290] sm:$0xff]
  %v1155 = vld [vmem:[%s1 + $0x2298] sm:$0xff]
  %v1156 = vld [vmem:[%s1 + $0x22a0] sm:$0xff]
  %v1157 = vld [vmem:[%s1 + $0x22a8] sm:$0xff]
  %v1158 = vld [vmem:[%s1 + $0x22b0] sm:$0xff]
  %v1159 = vld [vmem:[%s1 + $0x22b8] sm:$0xff]
  %v1160 = vld [vmem:[%s1 + $0x22c0] sm:$0xff]
  %v1161 = vld [vmem:[%s1 + $0x22c8] sm:$0xff]
  %v1162 = vld [vmem:[%s1 + $0x22d0] sm:$0xff]
  %v1163 = vld [vmem:[%s1 + $0x22d8] sm:$0xff]
  %v1164 = vld [vmem:[%s1 + $0x22e0] sm:$0xff]
  %v1165 = vld [vmem:[%s1 + $0x22e8] sm:$0xff]
  %v1166 = vld [vmem:[%s1 + $0x22f0] sm:$0xff]
  %v1167 = vld [vmem:[%s1 + $0x22f8] sm:$0xff]
  %v1168 = vld [vmem:[%s1 + $0x2300] sm:$0xff]
  %v1169 = vld [vmem:[%s1 + $0x2308] sm:$0xff]
  %v1170 = vld [vmem:[%s1 + $0x2310] sm:$0xff]
  %v1171 = vld [vmem:[%s1 + $0x2318] sm:$0xff]
  %v1172 = vld [vmem:[%s1 + $0x2320] sm:$0xff]
  %v1173 = vld [vmem:[%s1 + $0x2328] sm:$0xff]
  %v1174 = vld [vmem:[%s1 + $0x2330] sm:$0xff]
  %v1175 = vld [vmem:[%s1 + $0x2338] sm:$0xff]
  %v1176 = vld [vmem:[%s1 + $0x2340] sm:$0xff]
  %v1177 = vld [vmem:[%s1 + $0x2348] sm:$0xff]
  %v1178 = vld [vmem:[%s1 + $0x2350] sm:$0xff]
  %v1179 = vld [vmem:[%s1 + $0x2358] sm:$0xff]
  %v1180 = vld [vmem:[%s1 + $0x2360] sm:$0xff]
  %v1181 = vld [vmem:[%s1 + $0x2368] sm:$0xff]
  %v1182 = vld [vmem:[%s1 + $0x2370] sm:$0xff]
  %v1183 = vld [vmem:[%s1 + $0x2378] sm:$0xff]
  %v1184 = vld [vmem:[%s1 + $0x2380] sm:$0xff]
  %v1185 = vld [vmem:[%s1 + $0x2388] sm:$0xff]
  %v1186 = vld [vmem:[%s1 + $0x2390] sm:$0xff]
  %v1187 = vld [vmem:[%s1 + $0x2398] sm:$0xff]
  %v1188 = vld [vmem:[%s1 + $0x23a0] sm:$0xff]
  %v1189 = vld [vmem:[%s1 + $0x23a8] sm:$0xff]
  %v1190 = vld [vmem:[%s1 + $0x23b0] sm:$0xff]
  %v1191 = vld [vmem:[%s1 + $0x23b8] sm:$0xff]
  %v1192 = vld [vmem:[%s1 + $0x23c0] sm:$0xff]
  %v1193 = vld [vmem:[%s1 + $0x23c8] sm:$0xff]
  %v1194 = vld [vmem:[%s1 + $0x23d0] sm:$0xff]
  %v1195 = vld [vmem:[%s1 + $0x23d8] sm:$0xff]
  %v1196 = vld [vmem:[%s1 + $0x23e0] sm:$0xff]
  %v1197 = vld [vmem:[%s1 + $0x23e8] sm:$0xff]
  %v1198 = vld [vmem:[%s1 + $0x23f0] sm:$0xff]
  %v1199 = vld [vmem:[%s1 + $0x23f8] sm:$0xff]
  %v1200 = vld [vmem:[%s1 + $0x2400] sm:$0xff]
  %v1201 = vld [vmem:[%s1 + $0x2408] sm:$0xff]
  %v1202 = vld [vmem:[%s1 + $0x2410] sm:$0xff]
  %v1203 = vld [vmem:[%s1 + $0x2418] sm:$0xff]
  %v1204 = vld [vmem:[%s1 + $0x2420] sm:$0xff]
  %v1205 = vld [vmem:[%s1 + $0x2428] sm:$0xff]
  %v1206 = vld [vmem:[%s1 + $0x2430] sm:$0xff]
  %v1207 = vld [vmem:[%s1 + $0x2438] sm:$0xff]
  %v1208 = vld [vmem:[%s1 + $0x2440] sm:$0xff]
  %v1209 = vld [vmem:[%s1 + $0x2448] sm:$0xff]
  %v1210 = vld [vmem:[%s1 + $0x2450] sm:$0xff]
  %v1211 = vld [vmem:[%s1 + $0x2458] sm:$0xff]
  %v1212 = vld [vmem:[%s1 + $0x2460] sm:$0xff]
  %v1213 = vld [vmem:[%s1 + $0x2468] sm:$0xff]
  %v1214 = vld [vmem:[%s1 + $0x2470] sm:$0xff]
  %v1215 = vld [vmem:[%s1 + $0x2478] sm:$0xff]
  %v1216 = vld [vmem:[%s1 + $0x2480] sm:$0xff]
  %v1217 = vld [vmem:[%s1 + $0x2488] sm:$0xff]
  %v1218 = vld [vmem:[%s1 + $0x2490] sm:$0xff]
  %v1219 = vld [vmem:[%s1 + $0x2498] sm:$0xff]
  %v1220 = vld [vmem:[%s1 + $0x24a0] sm:$0xff]
  %v1221 = vld [vmem:[%s1 + $0x24a8] sm:$0xff]
  %v1222 = vld [vmem:[%s1 + $0x24b0] sm:$0xff]
  %v1223 = vld [vmem:[%s1 + $0x24b8] sm:$0xff]
  %v1224 = vld [vmem:[%s1 + $0x24c0] sm:$0xff]
  %v1225 = vld [vmem:[%s1 + $0x24c8] sm:$0xff]
  %v1226 = vld [vmem:[%s1 + $0x24d0] sm:$0xff]
  %v1227 = vld [vmem:[%s1 + $0x24d8] sm:$0xff]
  %v1228 = vld [vmem:[%s1 + $0x24e0] sm:$0xff]
  %v1229 = vld [vmem:[%s1 + $0x24e8] sm:$0xff]
  %v1230 = vld [vmem:[%s1 + $0x24f0] sm:$0xff]
  %v1231 = vld [vmem:[%s1 + $0x24f8] sm:$0xff]
  %v1232 = vld [vmem:[%s1 + $0x2500] sm:$0xff]
  %v1233 = vld [vmem:[%s1 + $0x2508] sm:$0xff]
  %v1234 = vld [vmem:[%s1 + $0x2510] sm:$0xff]
  %v1235 = vld [vmem:[%s1 + $0x2518] sm:$0xff]
  %v1236 = vld [vmem:[%s1 + $0x2520] sm:$0xff]
  %v1237 = vld [vmem:[%s1 + $0x2528] sm:$0xff]
  %v1238 = vld [vmem:[%s1 + $0x2530] sm:$0xff]
  %v1239 = vld [vmem:[%s1 + $0x2538] sm:$0xff]
  %v1240 = vld [vmem:[%s1 + $0x2540] sm:$0xff]
  %v1241 = vld [vmem:[%s1 + $0x2548] sm:$0xff]
  %v1242 = vld [vmem:[%s1 + $0x2550] sm:$0xff]
  %v1243 = vld [vmem:[%s1 + $0x2558] sm:$0xff]
  %v1244 = vld [vmem:[%s1 + $0x2560] sm:$0xff]
  %v1245 = vld [vmem:[%s1 + $0x2568] sm:$0xff]
  %v1246 = vld [vmem:[%s1 + $0x2570] sm:$0xff]
  %v1247 = vld [vmem:[%s1 + $0x2578] sm:$0xff]
  %v1248 = vld [vmem:[%s1 + $0x2580] sm:$0xff]
  %v1249 = vld [vmem:[%s1 + $0x2588] sm:$0xff]
  %v1250 = vld [vmem:[%s1 + $0x2590] sm:$0xff]
  %v1251 = vld [vmem:[%s1 + $0x2598] sm:$0xff]
  %v1252 = vld [vmem:[%s1 + $0x25a0] sm:$0xff]
  %v1253 = vld [vmem:[%s1 + $0x25a8] sm:$0xff]
  %v1254 = vld [vmem:[%s1 + $0x25b0] sm:$0xff]
  %v1255 = vld [vmem:[%s1 + $0x25b8] sm:$0xff]
  %v1256 = vld [vmem:[%s1 + $0x25c0] sm:$0xff]
  %v1257 = vld [vmem:[%s1 + $0x25c8] sm:$0xff]
  %v1258 = vld [vmem:[%s1 + $0x25d0] sm:$0xff]
  %v1259 = vld [vmem:[%s1 + $0x25d8] sm:$0xff]
  %v1260 = vld [vmem:[%s1 + $0x25e0] sm:$0xff]
  %v1261 = vld [vmem:[%s1 + $0x25e8] sm:$0xff]
  %v1262 = vld [vmem:[%s1 + $0x25f0] sm:$0xff]
  %v1263 = vld [vmem:[%s1 + $0x25f8] sm:$0xff]
  %v1264 = vld [vmem:[%s1 + $0x2600] sm:$0xff]
  %v1265 = vld [vmem:[%s1 + $0x2608] sm:$0xff]
  %v1266 = vld [vmem:[%s1 + $0x2610] sm:$0xff]
  %v1267 = vld [vmem:[%s1 + $0x2618] sm:$0xff]
  %v1268 = vld [vmem:[%s1 + $0x2620] sm:$0xff]
  %v1269 = vld [vmem:[%s1 + $0x2628] sm:$0xff]
  %v1270 = vld [vmem:[%s1 + $0x2630] sm:$0xff]
  %v1271 = vld [vmem:[%s1 + $0x2638] sm:$0xff]
  %v1272 = vld [vmem:[%s1 + $0x2640] sm:$0xff]
  %v1273 = vld [vmem:[%s1 + $0x2648] sm:$0xff]
  %v1274 = vld [vmem:[%s1 + $0x2650] sm:$0xff]
  %v1275 = vld [vmem:[%s1 + $0x2658] sm:$0xff]
  %v1276 = vld [vmem:[%s1 + $0x2660] sm:$0xff]
  %v1277 = vld [vmem:[%s1 + $0x2668] sm:$0xff]
  %v1278 = vld [vmem:[%s1 + $0x2670] sm:$0xff]
  %v1279 = vld [vmem:[%s1 + $0x2678] sm:$0xff]
  %v1280 = vld [vmem:[%s1 + $0x2680] sm:$0xff]
  %v1281 = vld [vmem:[%s1 + $0x2688] sm:$0xff]
  %v1282 = vld [vmem:[%s1 + $0x2690] sm:$0xff]
  %v1283 = vld [vmem:[%s1 + $0x2698] sm:$0xff]
  %v1284 = vld [vmem:[%s1 + $0x26a0] sm:$0xff]
  %v1285 = vld [vmem:[%s1 + $0x26a8] sm:$0xff]
  %v1286 = vld [vmem:[%s1 + $0x26b0] sm:$0xff]
  %v1287 = vld [vmem:[%s1 + $0x26b8] sm:$0xff]
  %v1288 = vld [vmem:[%s1 + $0x26c0] sm:$0xff]
  %v1289 = vld [vmem:[%s1 + $0x26c8] sm:$0xff]
  %v1290 = vld [vmem:[%s1 + $0x26d0] sm:$0xff]
  %v1291 = vld [vmem:[%s1 + $0x26d8] sm:$0xff]
  %v1292 = vld [vmem:[%s1 + $0x26e0] sm:$0xff]
  %v1293 = vld [vmem:[%s1 + $0x26e8] sm:$0xff]
  %v1294 = vld [vmem:[%s1 + $0x26f0] sm:$0xff]
  %v1295 = vld [vmem:[%s1 + $0x26f8] sm:$0xff]
  %v1296 = vld [vmem:[%s1 + $0x2700] sm:$0xff]
  %v1297 = vld [vmem:[%s1 + $0x2708] sm:$0xff]
  %v1298 = vld [vmem:[%s1 + $0x2710] sm:$0xff]
  %v1299 = vld [vmem:[%s1 + $0x2718] sm:$0xff]
  %v1300 = vld [vmem:[%s1 + $0x2720] sm:$0xff]
  %v1301 = vld [vmem:[%s1 + $0x2728] sm:$0xff]
  %v1302 = vld [vmem:[%s1 + $0x2730] sm:$0xff]
  %v1303 = vld [vmem:[%s1 + $0x2738] sm:$0xff]
  %v1304 = vld [vmem:[%s1 + $0x2740] sm:$0xff]
  %v1305 = vld [vmem:[%s1 + $0x2748] sm:$0xff]
  %v1306 = vld [vmem:[%s1 + $0x2750] sm:$0xff]
  %v1307 = vld [vmem:[%s1 + $0x2758] sm:$0xff]
  %v1308 = vld [vmem:[%s1 + $0x2760] sm:$0xff]
  %v1309 = vld [vmem:[%s1 + $0x2768] sm:$0xff]
  %v1310 = vld [vmem:[%s1 + $0x2770] sm:$0xff]
  %v1311 = vld [vmem:[%s1 + $0x2778] sm:$0xff]
  %v1312 = vld [vmem:[%s1 + $0x2780] sm:$0xff]
  %v1313 = vld [vmem:[%s1 + $0x2788] sm:$0xff]
  %v1314 = vld [vmem:[%s1 + $0x2790] sm:$0xff]
  %v1315 = vld [vmem:[%s1 + $0x2798] sm:$0xff]
  %v1316 = vld [vmem:[%s1 + $0x27a0] sm:$0xff]
  %v1317 = vld [vmem:[%s1 + $0x27a8] sm:$0xff]
  %v1318 = vld [vmem:[%s1 + $0x27b0] sm:$0xff]
  %v1319 = vld [vmem:[%s1 + $0x27b8] sm:$0xff]
  %v1320 = vld [vmem:[%s1 + $0x27c0] sm:$0xff]
  %v1321 = vld [vmem:[%s1 + $0x27c8] sm:$0xff]
  %v1322 = vld [vmem:[%s1 + $0x27d0] sm:$0xff]
  %v1323 = vld [vmem:[%s1 + $0x27d8] sm:$0xff]
  %v1324 = vld [vmem:[%s1 + $0x27e0] sm:$0xff]
  %v1325 = vld [vmem:[%s1 + $0x27e8] sm:$0xff]
  %v1326 = vld [vmem:[%s1 + $0x27f0] sm:$0xff]
  %v1327 = vld [vmem:[%s1 + $0x27f8] sm:$0xff]
  %v1328 = vld [vmem:[%s1 + $0x2800] sm:$0xff]
  %v1329 = vld [vmem:[%s1 + $0x2808] sm:$0xff]
  %v1330 = vld [vmem:[%s1 + $0x2810] sm:$0xff]
  %v1331 = vld [vmem:[%s1 + $0x2818] sm:$0xff]
  %v1332 = vld [vmem:[%s1 + $0x2820] sm:$0xff]
  %v1333 = vld [vmem:[%s1 + $0x2828] sm:$0xff]
  %v1334 = vld [vmem:[%s1 + $0x2830] sm:$0xff]
  %v1335 = vld [vmem:[%s1 + $0x2838] sm:$0xff]
  %v1336 = vld [vmem:[%s1 + $0x2840] sm:$0xff]
  %v1337 = vld [vmem:[%s1 + $0x2848] sm:$0xff]
  %v1338 = vld [vmem:[%s1 + $0x2850] sm:$0xff]
  %v1339 = vld [vmem:[%s1 + $0x2858] sm:$0xff]
  %v1340 = vld [vmem:[%s1 + $0x2860] sm:$0xff]
  %v1341 = vld [vmem:[%s1 + $0x2868] sm:$0xff]
  %v1342 = vld [vmem:[%s1 + $0x2870] sm:$0xff]
  %v1343 = vld [vmem:[%s1 + $0x2878] sm:$0xff]
  %v1344 = vld [vmem:[%s1 + $0x2880] sm:$0xff]
  %v1345 = vld [vmem:[%s1 + $0x2888] sm:$0xff]
  %v1346 = vld [vmem:[%s1 + $0x2890] sm:$0xff]
  %v1347 = vld [vmem:[%s1 + $0x2898] sm:$0xff]
  %v1348 = vld [vmem:[%s1 + $0x28a0] sm:$0xff]
  %v1349 = vld [vmem:[%s1 + $0x28a8] sm:$0xff]
  %v1350 = vld [vmem:[%s1 + $0x28b0] sm:$0xff]
  %v1351 = vld [vmem:[%s1 + $0x28b8] sm:$0xff]
  %v1352 = vld [vmem:[%s1 + $0x28c0] sm:$0xff]
  %v1353 = vld [vmem:[%s1 + $0x28c8] sm:$0xff]
  %v1354 = vld [vmem:[%s1 + $0x28d0] sm:$0xff]
  %v1355 = vld [vmem:[%s1 + $0x28d8] sm:$0xff]
  %v1356 = vld [vmem:[%s1 + $0x28e0] sm:$0xff]
  %v1357 = vld [vmem:[%s1 + $0x28e8] sm:$0xff]
  %v1358 = vld [vmem:[%s1 + $0x28f0] sm:$0xff]
  %v1359 = vld [vmem:[%s1 + $0x28f8] sm:$0xff]
  %v1360 = vld [vmem:[%s1 + $0x2900] sm:$0xff]
  %v1361 = vld [vmem:[%s1 + $0x2908] sm:$0xff]
  %v1362 = vld [vmem:[%s1 + $0x2910] sm:$0xff]
  %v1363 = vld [vmem:[%s1 + $0x2918] sm:$0xff]
  %v1364 = vld [vmem:[%s1 + $0x2920] sm:$0xff]
  %v1365 = vld [vmem:[%s1 + $0x2928] sm:$0xff]
  %v1366 = vld [vmem:[%s1 + $0x2930] sm:$0xff]
  %v1367 = vld [vmem:[%s1 + $0x2938] sm:$0xff]
  %v1368 = vld [vmem:[%s1 + $0x2940] sm:$0xff]
  %v1369 = vld [vmem:[%s1 + $0x2948] sm:$0xff]
  %v1370 = vld [vmem:[%s1 + $0x2950] sm:$0xff]
  %v1371 = vld [vmem:[%s1 + $0x2958] sm:$0xff]
  %v1372 = vld [vmem:[%s1 + $0x2960] sm:$0xff]
  %v1373 = vld [vmem:[%s1 + $0x2968] sm:$0xff]
  %v1374 = vld [vmem:[%s1 + $0x2970] sm:$0xff]
  %v1375 = vld [vmem:[%s1 + $0x2978] sm:$0xff]
  %v1376 = vld [vmem:[%s1 + $0x2980] sm:$0xff]
  %v1377 = vld [vmem:[%s1 + $0x2988] sm:$0xff]
  %v1378 = vld [vmem:[%s1 + $0x2990] sm:$0xff]
  %v1379 = vld [vmem:[%s1 + $0x2998] sm:$0xff]
  %v1380 = vld [vmem:[%s1 + $0x29a0] sm:$0xff]
  %v1381 = vld [vmem:[%s1 + $0x29a8] sm:$0xff]
  %v1382 = vld [vmem:[%s1 + $0x29b0] sm:$0xff]
  %v1383 = vld [vmem:[%s1 + $0x29b8] sm:$0xff]
  %v1384 = vld [vmem:[%s1 + $0x29c0] sm:$0xff]
  %v1385 = vld [vmem:[%s1 + $0x29c8] sm:$0xff]
  %v1386 = vld [vmem:[%s1 + $0x29d0] sm:$0xff]
  %v1387 = vld [vmem:[%s1 + $0x29d8] sm:$0xff]
  %v1388 = vld [vmem:[%s1 + $0x29e0] sm:$0xff]
  %v1389 = vld [vmem:[%s1 + $0x29e8] sm:$0xff]
  %v1390 = vld [vmem:[%s1 + $0x29f0] sm:$0xff]
  %v1391 = vld [vmem:[%s1 + $0x29f8] sm:$0xff]
  %v1392 = vld [vmem:[%s1 + $0x2a00] sm:$0xff]
  %v1393 = vld [vmem:[%s1 + $0x2a08] sm:$0xff]
  %v1394 = vld [vmem:[%s1 + $0x2a10] sm:$0xff]
  %v1395 = vld [vmem:[%s1 + $0x2a18] sm:$0xff]
  %v1396 = vld [vmem:[%s1 + $0x2a20] sm:$0xff]
  %v1397 = vld [vmem:[%s1 + $0x2a28] sm:$0xff]
  %v1398 = vld [vmem:[%s1 + $0x2a30] sm:$0xff]
  %v1399 = vld [vmem:[%s1 + $0x2a38] sm:$0xff]
  %v1400 = vld [vmem:[%s1 + $0x2a40] sm:$0xff]
  %v1401 = vld [vmem:[%s1 + $0x2a48] sm:$0xff]
  %v1402 = vld [vmem:[%s1 + $0x2a50] sm:$0xff]
  %v1403 = vld [vmem:[%s1 + $0x2a58] sm:$0xff]
  %v1404 = vld [vmem:[%s1 + $0x2a60] sm:$0xff]
  %v1405 = vld [vmem:[%s1 + $0x2a68] sm:$0xff]
  %v1406 = vld [vmem:[%s1 + $0x2a70] sm:$0xff]
  %v1407 = vld [vmem:[%s1 + $0x2a78] sm:$0xff]
  %v1408 = vld [vmem:[%s1 + $0x2a80] sm:$0xff]
  %v1409 = vld [vmem:[%s1 + $0x2a88] sm:$0xff]
  %v1410 = vld [vmem:[%s1 + $0x2a90] sm:$0xff]
  %v1411 = vld [vmem:[%s1 + $0x2a98] sm:$0xff]
  %v1412 = vld [vmem:[%s1 + $0x2aa0] sm:$0xff]
  %v1413 = vld [vmem:[%s1 + $0x2aa8] sm:$0xff]
  %v1414 = vld [vmem:[%s1 + $0x2ab0] sm:$0xff]
  %v1415 = vld [vmem:[%s1 + $0x2ab8] sm:$0xff]
  %v1416 = vld [vmem:[%s1 + $0x2ac0] sm:$0xff]
  %v1417 = vld [vmem:[%s1 + $0x2ac8] sm:$0xff]
  %v1418 = vld [vmem:[%s1 + $0x2ad0] sm:$0xff]
  %v1419 = vld [vmem:[%s1 + $0x2ad8] sm:$0xff]
  %v1420 = vld [vmem:[%s1 + $0x2ae0] sm:$0xff]
  %v1421 = vld [vmem:[%s1 + $0x2ae8] sm:$0xff]
  %v1422 = vld [vmem:[%s1 + $0x2af0] sm:$0xff]
  %v1423 = vld [vmem:[%s1 + $0x2af8] sm:$0xff]
  %v1424 = vld [vmem:[%s1 + $0x2b00] sm:$0xff]
  %v1425 = vld [vmem:[%s1 + $0x2b08] sm:$0xff]
  %v1426 = vld [vmem:[%s1 + $0x2b10] sm:$0xff]
  %v1427 = vld [vmem:[%s1 + $0x2b18] sm:$0xff]
  %v1428 = vld [vmem:[%s1 + $0x2b20] sm:$0xff]
  %v1429 = vld [vmem:[%s1 + $0x2b28] sm:$0xff]
  %v1430 = vld [vmem:[%s1 + $0x2b30] sm:$0xff]
  %v1431 = vld [vmem:[%s1 + $0x2b38] sm:$0xff]
  %v1432 = vld [vmem:[%s1 + $0x2b40] sm:$0xff]
  %v1433 = vld [vmem:[%s1 + $0x2b48] sm:$0xff]
  %v1434 = vld [vmem:[%s1 + $0x2b50] sm:$0xff]
  %v1435 = vld [vmem:[%s1 + $0x2b58] sm:$0xff]
  %v1436 = vld [vmem:[%s1 + $0x2b60] sm:$0xff]
  %v1437 = vld [vmem:[%s1 + $0x2b68] sm:$0xff]
  %v1438 = vld [vmem:[%s1 + $0x2b70] sm:$0xff]
  %v1439 = vld [vmem:[%s1 + $0x2b78] sm:$0xff]
  %v1440 = vld [vmem:[%s1 + $0x2b80] sm:$0xff]
  %v1441 = vld [vmem:[%s1 + $0x2b88] sm:$0xff]
  %v1442 = vld [vmem:[%s1 + $0x2b90] sm:$0xff]
  %v1443 = vld [vmem:[%s1 + $0x2b98] sm:$0xff]
  %v1444 = vld [vmem:[%s1 + $0x2ba0] sm:$0xff]
  %v1445 = vld [vmem:[%s1 + $0x2ba8] sm:$0xff]
  %v1446 = vld [vmem:[%s1 + $0x2bb0] sm:$0xff]
  %v1447 = vld [vmem:[%s1 + $0x2bb8] sm:$0xff]
  %v1448 = vld [vmem:[%s1 + $0x2bc0] sm:$0xff]
  %v1449 = vld [vmem:[%s1 + $0x2bc8] sm:$0xff]
  %v1450 = vld [vmem:[%s1 + $0x2bd0] sm:$0xff]
  %v1451 = vld [vmem:[%s1 + $0x2bd8] sm:$0xff]
  %v1452 = vld [vmem:[%s1 + $0x2be0] sm:$0xff]
  %v1453 = vld [vmem:[%s1 + $0x2be8] sm:$0xff]
  %v1454 = vld [vmem:[%s1 + $0x2bf0] sm:$0xff]
  %v1455 = vld [vmem:[%s1 + $0x2bf8] sm:$0xff]
  %v1456 = vld [vmem:[%s1 + $0x2c00] sm:$0xff]
  %v1457 = vld [vmem:[%s1 + $0x2c08] sm:$0xff]
  %v1458 = vld [vmem:[%s1 + $0x2c10] sm:$0xff]
  %v1459 = vld [vmem:[%s1 + $0x2c18] sm:$0xff]
  %v1460 = vld [vmem:[%s1 + $0x2c20] sm:$0xff]
  %v1461 = vld [vmem:[%s1 + $0x2c28] sm:$0xff]
  %v1462 = vld [vmem:[%s1 + $0x2c30] sm:$0xff]
  %v1463 = vld [vmem:[%s1 + $0x2c38] sm:$0xff]
  %v1464 = vld [vmem:[%s1 + $0x2c40] sm:$0xff]
  %v1465 = vld [vmem:[%s1 + $0x2c48] sm:$0xff]
  %v1466 = vld [vmem:[%s1 + $0x2c50] sm:$0xff]
  %v1467 = vld [vmem:[%s1 + $0x2c58] sm:$0xff]
  %v1468 = vld [vmem:[%s1 + $0x2c60] sm:$0xff]
  %v1469 = vld [vmem:[%s1 + $0x2c68] sm:$0xff]
  %v1470 = vld [vmem:[%s1 + $0x2c70] sm:$0xff]
  %v1471 = vld [vmem:[%s1 + $0x2c78] sm:$0xff]
  %v1472 = vld [vmem:[%s1 + $0x2c80] sm:$0xff]
  %v1473 = vld [vmem:[%s1 + $0x2c88] sm:$0xff]
  %v1474 = vld [vmem:[%s1 + $0x2c90] sm:$0xff]
  %v1475 = vld [vmem:[%s1 + $0x2c98] sm:$0xff]
  %v1476 = vld [vmem:[%s1 + $0x2ca0] sm:$0xff]
  %v1477 = vld [vmem:[%s1 + $0x2ca8] sm:$0xff]
  %v1478 = vld [vmem:[%s1 + $0x2cb0] sm:$0xff]
  %v1479 = vld [vmem:[%s1 + $0x2cb8] sm:$0xff]
  %v1480 = vld [vmem:[%s1 + $0x2cc0] sm:$0xff]
  %v1481 = vld [vmem:[%s1 + $0x2cc8] sm:$0xff]
  %v1482 = vld [vmem:[%s1 + $0x2cd0] sm:$0xff]
  %v1483 = vld [vmem:[%s1 + $0x2cd8] sm:$0xff]
  %v1484 = vld [vmem:[%s1 + $0x2ce0] sm:$0xff]
  %v1485 = vld [vmem:[%s1 + $0x2ce8] sm:$0xff]
  %v1486 = vld [vmem:[%s1 + $0x2cf0] sm:$0xff]
  %v1487 = vld [vmem:[%s1 + $0x2cf8] sm:$0xff]
  %v1488 = vld [vmem:[%s1 + $0x2d00] sm:$0xff]
  %v1489 = vld [vmem:[%s1 + $0x2d08] sm:$0xff]
  %v1490 = vld [vmem:[%s1 + $0x2d10] sm:$0xff]
  %v1491 = vld [vmem:[%s1 + $0x2d18] sm:$0xff]
  %v1492 = vld [vmem:[%s1 + $0x2d20] sm:$0xff]
  %v1493 = vld [vmem:[%s1 + $0x2d28] sm:$0xff]
  %v1494 = vld [vmem:[%s1 + $0x2d30] sm:$0xff]
  %v1495 = vld [vmem:[%s1 + $0x2d38] sm:$0xff]
  %v1496 = vld [vmem:[%s1 + $0x2d40] sm:$0xff]
  %v1497 = vld [vmem:[%s1 + $0x2d48] sm:$0xff]
  %v1498 = vld [vmem:[%s1 + $0x2d50] sm:$0xff]
  %v1499 = vld [vmem:[%s1 + $0x2d58] sm:$0xff]
  %v1500 = vld [vmem:[%s1 + $0x2d60] sm:$0xff]
  %v1501 = vld [vmem:[%s1 + $0x2d68] sm:$0xff]
  %v1502 = vld [vmem:[%s1 + $0x2d70] sm:$0xff]
  %v1503 = vld [vmem:[%s1 + $0x2d78] sm:$0xff]
  %v1504 = vld [vmem:[%s1 + $0x2d80] sm:$0xff]
  %v1505 = vld [vmem:[%s1 + $0x2d88] sm:$0xff]
  %v1506 = vld [vmem:[%s1 + $0x2d90] sm:$0xff]
  %v1507 = vld [vmem:[%s1 + $0x2d98] sm:$0xff]
  %v1508 = vld [vmem:[%s1 + $0x2da0] sm:$0xff]
  %v1509 = vld [vmem:[%s1 + $0x2da8] sm:$0xff]
  %v1510 = vld [vmem:[%s1 + $0x2db0] sm:$0xff]
  %v1511 = vld [vmem:[%s1 + $0x2db8] sm:$0xff]
  %v1512 = vld [vmem:[%s1 + $0x2dc0] sm:$0xff]
  %v1513 = vld [vmem:[%s1 + $0x2dc8] sm:$0xff]
  %v1514 = vld [vmem:[%s1 + $0x2dd0] sm:$0xff]
  %v1515 = vld [vmem:[%s1 + $0x2dd8] sm:$0xff]
  %v1516 = vld [vmem:[%s1 + $0x2de0] sm:$0xff]
  %v1517 = vld [vmem:[%s1 + $0x2de8] sm:$0xff]
  %v1518 = vld [vmem:[%s1 + $0x2df0] sm:$0xff]
  %v1519 = vld [vmem:[%s1 + $0x2df8] sm:$0xff]
  %v1520 = vld [vmem:[%s1 + $0x2e00] sm:$0xff]
  %v1521 = vld [vmem:[%s1 + $0x2e08] sm:$0xff]
  %v1522 = vld [vmem:[%s1 + $0x2e10] sm:$0xff]
  %v1523 = vld [vmem:[%s1 + $0x2e18] sm:$0xff]
  %v1524 = vld [vmem:[%s1 + $0x2e20] sm:$0xff]
  %v1525 = vld [vmem:[%s1 + $0x2e28] sm:$0xff]
  %v1526 = vld [vmem:[%s1 + $0x2e30] sm:$0xff]
  %v1527 = vld [vmem:[%s1 + $0x2e38] sm:$0xff]
  %v1528 = vld [vmem:[%s1 + $0x2e40] sm:$0xff]
  %v1529 = vld [vmem:[%s1 + $0x2e48] sm:$0xff]
  %v1530 = vld [vmem:[%s1 + $0x2e50] sm:$0xff]
  %v1531 = vld [vmem:[%s1 + $0x2e58] sm:$0xff]
  %v1532 = vld [vmem:[%s1 + $0x2e60] sm:$0xff]
  %v1533 = vld [vmem:[%s1 + $0x2e68] sm:$0xff]
  %v1534 = vld [vmem:[%s1 + $0x2e70] sm:$0xff]
  %v1535 = vld [vmem:[%s1 + $0x2e78] sm:$0xff]
  %v1536 = vld [vmem:[%s1 + $0x2e80] sm:$0xff]
  %v1537 = vld [vmem:[%s1 + $0x2e88] sm:$0xff]
  %v1538 = vld [vmem:[%s1 + $0x2e90] sm:$0xff]
  %v1539 = vld [vmem:[%s1 + $0x2e98] sm:$0xff]
  %v1540 = vld [vmem:[%s1 + $0x2ea0] sm:$0xff]
  %v1541 = vld [vmem:[%s1 + $0x2ea8] sm:$0xff]
  %v1542 = vld [vmem:[%s1 + $0x2eb0] sm:$0xff]
  %v1543 = vld [vmem:[%s1 + $0x2eb8] sm:$0xff]
  %v1544 = vld [vmem:[%s1 + $0x2ec0] sm:$0xff]
  %v1545 = vld [vmem:[%s1 + $0x2ec8] sm:$0xff]
  %v1546 = vld [vmem:[%s1 + $0x2ed0] sm:$0xff]
  %v1547 = vld [vmem:[%s1 + $0x2ed8] sm:$0xff]
  %v1548 = vld [vmem:[%s1 + $0x2ee0] sm:$0xff]
  %v1549 = vld [vmem:[%s1 + $0x2ee8] sm:$0xff]
  %v1550 = vld [vmem:[%s1 + $0x2ef0] sm:$0xff]
  %v1551 = vld [vmem:[%s1 + $0x2ef8] sm:$0xff]
  %v1552 = vld [vmem:[%s1 + $0x2f00] sm:$0xff]
  %v1553 = vld [vmem:[%s1 + $0x2f08] sm:$0xff]
  %v1554 = vld [vmem:[%s1 + $0x2f10] sm:$0xff]
  %v1555 = vld [vmem:[%s1 + $0x2f18] sm:$0xff]
  %v1556 = vld [vmem:[%s1 + $0x2f20] sm:$0xff]
  %v1557 = vld [vmem:[%s1 + $0x2f28] sm:$0xff]
  %v1558 = vld [vmem:[%s1 + $0x2f30] sm:$0xff]
  %v1559 = vld [vmem:[%s1 + $0x2f38] sm:$0xff]
  %v1560 = vld [vmem:[%s1 + $0x2f40] sm:$0xff]
  %v1561 = vld [vmem:[%s1 + $0x2f48] sm:$0xff]
  %v1562 = vld [vmem:[%s1 + $0x2f50] sm:$0xff]
  %v1563 = vld [vmem:[%s1 + $0x2f58] sm:$0xff]
  %v1564 = vld [vmem:[%s1 + $0x2f60] sm:$0xff]
  %v1565 = vld [vmem:[%s1 + $0x2f68] sm:$0xff]
  %v1566 = vld [vmem:[%s1 + $0x2f70] sm:$0xff]
  %v1567 = vld [vmem:[%s1 + $0x2f78] sm:$0xff]
  %v1568 = vld [vmem:[%s1 + $0x2f80] sm:$0xff]
  %v1569 = vld [vmem:[%s1 + $0x2f88] sm:$0xff]
  %v1570 = vld [vmem:[%s1 + $0x2f90] sm:$0xff]
  %v1571 = vld [vmem:[%s1 + $0x2f98] sm:$0xff]
  %v1572 = vld [vmem:[%s1 + $0x2fa0] sm:$0xff]
  %v1573 = vld [vmem:[%s1 + $0x2fa8] sm:$0xff]
  %v1574 = vld [vmem:[%s1 + $0x2fb0] sm:$0xff]
  %v1575 = vld [vmem:[%s1 + $0x2fb8] sm:$0xff]
  %v1576 = vld [vmem:[%s1 + $0x2fc0] sm:$0xff]
  %v1577 = vld [vmem:[%s1 + $0x2fc8] sm:$0xff]
  %v1578 = vld [vmem:[%s1 + $0x2fd0] sm:$0xff]
  %v1579 = vld [vmem:[%s1 + $0x2fd8] sm:$0xff]
  %v1580 = vld [vmem:[%s1 + $0x2fe0] sm:$0xff]
  %v1581 = vld [vmem:[%s1 + $0x2fe8] sm:$0xff]
  %v1582 = vld [vmem:[%s1 + $0x2ff0] sm:$0xff]
  %v1583 = vld [vmem:[%s1 + $0x2ff8] sm:$0xff]
  %v1584 = vld [vmem:[%s1 + $0x3000] sm:$0xff]
  %v1585 = vld [vmem:[%s1 + $0x3008] sm:$0xff]
  %v1586 = vld [vmem:[%s1 + $0x3010] sm:$0xff]
  %v1587 = vld [vmem:[%s1 + $0x3018] sm:$0xff]
  %v1588 = vld [vmem:[%s1 + $0x3020] sm:$0xff]
  %v1589 = vld [vmem:[%s1 + $0x3028] sm:$0xff]
  %v1590 = vld [vmem:[%s1 + $0x3030] sm:$0xff]
  %v1591 = vld [vmem:[%s1 + $0x3038] sm:$0xff]
  %v1592 = vld [vmem:[%s1 + $0x3040] sm:$0xff]
  %v1593 = vld [vmem:[%s1 + $0x3048] sm:$0xff]
  %v1594 = vld [vmem:[%s1 + $0x3050] sm:$0xff]
  %v1595 = vld [vmem:[%s1 + $0x3058] sm:$0xff]
  %v1596 = vld [vmem:[%s1 + $0x3060] sm:$0xff]
  %v1597 = vld [vmem:[%s1 + $0x3068] sm:$0xff]
  %v1598 = vld [vmem:[%s1 + $0x3070] sm:$0xff]
  %v1599 = vld [vmem:[%s1 + $0x3078] sm:$0xff]
  %v1600 = vld [vmem:[%s1 + $0x3080] sm:$0xff]
  %v1601 = vld [vmem:[%s1 + $0x3088] sm:$0xff]
  %v1602 = vld [vmem:[%s1 + $0x3090] sm:$0xff]
  %v1603 = vld [vmem:[%s1 + $0x3098] sm:$0xff]
  %v1604 = vld [vmem:[%s1 + $0x30a0] sm:$0xff]
  %v1605 = vld [vmem:[%s1 + $0x30a8] sm:$0xff]
  %v1606 = vld [vmem:[%s1 + $0x30b0] sm:$0xff]
  %v1607 = vld [vmem:[%s1 + $0x30b8] sm:$0xff]
  %v1608 = vld [vmem:[%s1 + $0x30c0] sm:$0xff]
  %v1609 = vld [vmem:[%s1 + $0x30c8] sm:$0xff]
  %v1610 = vld [vmem:[%s1 + $0x30d0] sm:$0xff]
  %v1611 = vld [vmem:[%s1 + $0x30d8] sm:$0xff]
  %v1612 = vld [vmem:[%s1 + $0x30e0] sm:$0xff]
  %v1613 = vld [vmem:[%s1 + $0x30e8] sm:$0xff]
  %v1614 = vld [vmem:[%s1 + $0x30f0] sm:$0xff]
  %v1615 = vld [vmem:[%s1 + $0x30f8] sm:$0xff]
  %v1616 = vld [vmem:[%s1 + $0x3100] sm:$0xff]
  %v1617 = vld [vmem:[%s1 + $0x3108] sm:$0xff]
  %v1618 = vld [vmem:[%s1 + $0x3110] sm:$0xff]
  %v1619 = vld [vmem:[%s1 + $0x3118] sm:$0xff]
  %v1620 = vld [vmem:[%s1 + $0x3120] sm:$0xff]
  %v1621 = vld [vmem:[%s1 + $0x3128] sm:$0xff]
  %v1622 = vld [vmem:[%s1 + $0x3130] sm:$0xff]
  %v1623 = vld [vmem:[%s1 + $0x3138] sm:$0xff]
  %v1624 = vld [vmem:[%s1 + $0x3140] sm:$0xff]
  %v1625 = vld [vmem:[%s1 + $0x3148] sm:$0xff]
  %v1626 = vld [vmem:[%s1 + $0x3150] sm:$0xff]
  %v1627 = vld [vmem:[%s1 + $0x3158] sm:$0xff]
  %v1628 = vld [vmem:[%s1 + $0x3160] sm:$0xff]
  %v1629 = vld [vmem:[%s1 + $0x3168] sm:$0xff]
  %v1630 = vld [vmem:[%s1 + $0x3170] sm:$0xff]
  %v1631 = vld [vmem:[%s1 + $0x3178] sm:$0xff]
  %v1632 = vld [vmem:[%s1 + $0x3180] sm:$0xff]
  %v1633 = vld [vmem:[%s1 + $0x3188] sm:$0xff]
  %v1634 = vld [vmem:[%s1 + $0x3190] sm:$0xff]
  %v1635 = vld [vmem:[%s1 + $0x3198] sm:$0xff]
  %v1636 = vld [vmem:[%s1 + $0x31a0] sm:$0xff]
  %v1637 = vld [vmem:[%s1 + $0x31a8] sm:$0xff]
  %v1638 = vld [vmem:[%s1 + $0x31b0] sm:$0xff]
  %v1639 = vld [vmem:[%s1 + $0x31b8] sm:$0xff]
  %v1640 = vld [vmem:[%s1 + $0x31c0] sm:$0xff]
  %v1641 = vld [vmem:[%s1 + $0x31c8] sm:$0xff]
  %v1642 = vld [vmem:[%s1 + $0x31d0] sm:$0xff]
  %v1643 = vld [vmem:[%s1 + $0x31d8] sm:$0xff]
  %v1644 = vld [vmem:[%s1 + $0x31e0] sm:$0xff]
  %v1645 = vld [vmem:[%s1 + $0x31e8] sm:$0xff]
  %v1646 = vld [vmem:[%s1 + $0x31f0] sm:$0xff]
  %v1647 = vld [vmem:[%s1 + $0x31f8] sm:$0xff]
  %v1648 = vld [vmem:[%s1 + $0x3200] sm:$0xff]
  %v1649 = vld [vmem:[%s1 + $0x3208] sm:$0xff]
  %v1650 = vld [vmem:[%s1 + $0x3210] sm:$0xff]
  %v1651 = vld [vmem:[%s1 + $0x3218] sm:$0xff]
  %v1652 = vld [vmem:[%s1 + $0x3220] sm:$0xff]
  %v1653 = vld [vmem:[%s1 + $0x3228] sm:$0xff]
  %v1654 = vld [vmem:[%s1 + $0x3230] sm:$0xff]
  %v1655 = vld [vmem:[%s1 + $0x3238] sm:$0xff]
  %v1656 = vld [vmem:[%s1 + $0x3240] sm:$0xff]
  %v1657 = vld [vmem:[%s1 + $0x3248] sm:$0xff]
  %v1658 = vld [vmem:[%s1 + $0x3250] sm:$0xff]
  %v1659 = vld [vmem:[%s1 + $0x3258] sm:$0xff]
  %v1660 = vld [vmem:[%s1 + $0x3260] sm:$0xff]
  %v1661 = vld [vmem:[%s1 + $0x3268] sm:$0xff]
  %v1662 = vld [vmem:[%s1 + $0x3270] sm:$0xff]
  %v1663 = vld [vmem:[%s1 + $0x3278] sm:$0xff]
  %v1664 = vld [vmem:[%s1 + $0x3280] sm:$0xff]
  %v1665 = vld [vmem:[%s1 + $0x3288] sm:$0xff]
  %v1666 = vld [vmem:[%s1 + $0x3290] sm:$0xff]
  %v1667 = vld [vmem:[%s1 + $0x3298] sm:$0xff]
  %v1668 = vld [vmem:[%s1 + $0x32a0] sm:$0xff]
  %v1669 = vld [vmem:[%s1 + $0x32a8] sm:$0xff]
  %v1670 = vld [vmem:[%s1 + $0x32b0] sm:$0xff]
  %v1671 = vld [vmem:[%s1 + $0x32b8] sm:$0xff]
  %v1672 = vld [vmem:[%s1 + $0x32c0] sm:$0xff]
  %v1673 = vld [vmem:[%s1 + $0x32c8] sm:$0xff]
  %v1674 = vld [vmem:[%s1 + $0x32d0] sm:$0xff]
  %v1675 = vld [vmem:[%s1 + $0x32d8] sm:$0xff]
  %v1676 = vld [vmem:[%s1 + $0x32e0] sm:$0xff]
  %v1677 = vld [vmem:[%s1 + $0x32e8] sm:$0xff]
  %v1678 = vld [vmem:[%s1 + $0x32f0] sm:$0xff]
  %v1679 = vld [vmem:[%s1 + $0x32f8] sm:$0xff]
  %v1680 = vld [vmem:[%s1 + $0x3300] sm:$0xff]
  %v1681 = vld [vmem:[%s1 + $0x3308] sm:$0xff]
  %v1682 = vld [vmem:[%s1 + $0x3310] sm:$0xff]
  %v1683 = vld [vmem:[%s1 + $0x3318] sm:$0xff]
  %v1684 = vld [vmem:[%s1 + $0x3320] sm:$0xff]
  %v1685 = vld [vmem:[%s1 + $0x3328] sm:$0xff]
  %v1686 = vld [vmem:[%s1 + $0x3330] sm:$0xff]
  %v1687 = vld [vmem:[%s1 + $0x3338] sm:$0xff]
  %v1688 = vld [vmem:[%s1 + $0x3340] sm:$0xff]
  %v1689 = vld [vmem:[%s1 + $0x3348] sm:$0xff]
  %v1690 = vld [vmem:[%s1 + $0x3350] sm:$0xff]
  %v1691 = vld [vmem:[%s1 + $0x3358] sm:$0xff]
  %v1692 = vld [vmem:[%s1 + $0x3360] sm:$0xff]
  %v1693 = vld [vmem:[%s1 + $0x3368] sm:$0xff]
  %v1694 = vld [vmem:[%s1 + $0x3370] sm:$0xff]
  %v1695 = vld [vmem:[%s1 + $0x3378] sm:$0xff]
  %v1696 = vld [vmem:[%s1 + $0x3380] sm:$0xff]
  %v1697 = vld [vmem:[%s1 + $0x3388] sm:$0xff]
  %v1698 = vld [vmem:[%s1 + $0x3390] sm:$0xff]
  %v1699 = vld [vmem:[%s1 + $0x3398] sm:$0xff]
  %v1700 = vld [vmem:[%s1 + $0x33a0] sm:$0xff]
  %v1701 = vld [vmem:[%s1 + $0x33a8] sm:$0xff]
  %v1702 = vld [vmem:[%s1 + $0x33b0] sm:$0xff]
  %v1703 = vld [vmem:[%s1 + $0x33b8] sm:$0xff]
  %v1704 = vld [vmem:[%s1 + $0x33c0] sm:$0xff]
  %v1705 = vld [vmem:[%s1 + $0x33c8] sm:$0xff]
  %v1706 = vld [vmem:[%s1 + $0x33d0] sm:$0xff]
  %v1707 = vld [vmem:[%s1 + $0x33d8] sm:$0xff]
  %v1708 = vld [vmem:[%s1 + $0x33e0] sm:$0xff]
  %v1709 = vld [vmem:[%s1 + $0x33e8] sm:$0xff]
  %v1710 = vld [vmem:[%s1 + $0x33f0] sm:$0xff]
  %v1711 = vld [vmem:[%s1 + $0x33f8] sm:$0xff]
  %v1712 = vld [vmem:[%s1 + $0x3400] sm:$0xff]
  %v1713 = vld [vmem:[%s1 + $0x3408] sm:$0xff]
  %v1714 = vld [vmem:[%s1 + $0x3410] sm:$0xff]
  %v1715 = vld [vmem:[%s1 + $0x3418] sm:$0xff]
  %v1716 = vld [vmem:[%s1 + $0x3420] sm:$0xff]
  %v1717 = vld [vmem:[%s1 + $0x3428] sm:$0xff]
  %v1718 = vld [vmem:[%s1 + $0x3430] sm:$0xff]
  %v1719 = vld [vmem:[%s1 + $0x3438] sm:$0xff]
  %v1720 = vld [vmem:[%s1 + $0x3440] sm:$0xff]
  %v1721 = vld [vmem:[%s1 + $0x3448] sm:$0xff]
  %v1722 = vld [vmem:[%s1 + $0x3450] sm:$0xff]
  %v1723 = vld [vmem:[%s1 + $0x3458] sm:$0xff]
  %v1724 = vld [vmem:[%s1 + $0x3460] sm:$0xff]
  %v1725 = vld [vmem:[%s1 + $0x3468] sm:$0xff]
  %v1726 = vld [vmem:[%s1 + $0x3470] sm:$0xff]
  %v1727 = vld [vmem:[%s1 + $0x3478] sm:$0xff]
  %v1728 = vld [vmem:[%s1 + $0x3480] sm:$0xff]
  %v1729 = vld [vmem:[%s1 + $0x3488] sm:$0xff]
  %v1730 = vld [vmem:[%s1 + $0x3490] sm:$0xff]
  %v1731 = vld [vmem:[%s1 + $0x3498] sm:$0xff]
  %v1732 = vld [vmem:[%s1 + $0x34a0] sm:$0xff]
  %v1733 = vld [vmem:[%s1 + $0x34a8] sm:$0xff]
  %v1734 = vld [vmem:[%s1 + $0x34b0] sm:$0xff]
  %v1735 = vld [vmem:[%s1 + $0x34b8] sm:$0xff]
  %v1736 = vld [vmem:[%s1 + $0x34c0] sm:$0xff]
  %v1737 = vld [vmem:[%s1 + $0x34c8] sm:$0xff]
  %v1738 = vld [vmem:[%s1 + $0x34d0] sm:$0xff]
  %v1739 = vld [vmem:[%s1 + $0x34d8] sm:$0xff]
  %v1740 = vld [vmem:[%s1 + $0x34e0] sm:$0xff]
  %v1741 = vld [vmem:[%s1 + $0x34e8] sm:$0xff]
  %v1742 = vld [vmem:[%s1 + $0x34f0] sm:$0xff]
  %v1743 = vld [vmem:[%s1 + $0x34f8] sm:$0xff]
  %v1744 = vld [vmem:[%s1 + $0x3500] sm:$0xff]
  %v1745 = vld [vmem:[%s1 + $0x3508] sm:$0xff]
  %v1746 = vld [vmem:[%s1 + $0x3510] sm:$0xff]
  %v1747 = vld [vmem:[%s1 + $0x3518] sm:$0xff]
  %v1748 = vld [vmem:[%s1 + $0x3520] sm:$0xff]
  %v1749 = vld [vmem:[%s1 + $0x3528] sm:$0xff]
  %v1750 = vld [vmem:[%s1 + $0x3530] sm:$0xff]
  %v1751 = vld [vmem:[%s1 + $0x3538] sm:$0xff]
  %v1752 = vld [vmem:[%s1 + $0x3540] sm:$0xff]
  %v1753 = vld [vmem:[%s1 + $0x3548] sm:$0xff]
  %v1754 = vld [vmem:[%s1 + $0x3550] sm:$0xff]
  %v1755 = vld [vmem:[%s1 + $0x3558] sm:$0xff]
  %v1756 = vld [vmem:[%s1 + $0x3560] sm:$0xff]
  %v1757 = vld [vmem:[%s1 + $0x3568] sm:$0xff]
  %v1758 = vld [vmem:[%s1 + $0x3570] sm:$0xff]
  %v1759 = vld [vmem:[%s1 + $0x3578] sm:$0xff]
  %v1760 = vld [vmem:[%s1 + $0x3580] sm:$0xff]
  %v1761 = vld [vmem:[%s1 + $0x3588] sm:$0xff]
  %v1762 = vld [vmem:[%s1 + $0x3590] sm:$0xff]
  %v1763 = vld [vmem:[%s1 + $0x3598] sm:$0xff]
  %v1764 = vld [vmem:[%s1 + $0x35a0] sm:$0xff]
  %v1765 = vld [vmem:[%s1 + $0x35a8] sm:$0xff]
  %v1766 = vld [vmem:[%s1 + $0x35b0] sm:$0xff]
  %v1767 = vld [vmem:[%s1 + $0x35b8] sm:$0xff]
  %v1768 = vld [vmem:[%s1 + $0x35c0] sm:$0xff]
  %v1769 = vld [vmem:[%s1 + $0x35c8] sm:$0xff]
  %v1770 = vld [vmem:[%s1 + $0x35d0] sm:$0xff]
  %v1771 = vld [vmem:[%s1 + $0x35d8] sm:$0xff]
  %v1772 = vld [vmem:[%s1 + $0x35e0] sm:$0xff]
  %v1773 = vld [vmem:[%s1 + $0x35e8] sm:$0xff]
  %v1774 = vld [vmem:[%s1 + $0x35f0] sm:$0xff]
  %v1775 = vld [vmem:[%s1 + $0x35f8] sm:$0xff]
  %v1776 = vld [vmem:[%s1 + $0x3600] sm:$0xff]
  %v1777 = vld [vmem:[%s1 + $0x3608] sm:$0xff]
  %v1778 = vld [vmem:[%s1 + $0x3610] sm:$0xff]
  %v1779 = vld [vmem:[%s1 + $0x3618] sm:$0xff]
  %v1780 = vld [vmem:[%s1 + $0x3620] sm:$0xff]
  %v1781 = vld [vmem:[%s1 + $0x3628] sm:$0xff]
  %v1782 = vld [vmem:[%s1 + $0x3630] sm:$0xff]
  %v1783 = vld [vmem:[%s1 + $0x3638] sm:$0xff]
  %v1784 = vld [vmem:[%s1 + $0x3640] sm:$0xff]
  %v1785 = vld [vmem:[%s1 + $0x3648] sm:$0xff]
  %v1786 = vld [vmem:[%s1 + $0x3650] sm:$0xff]
  %v1787 = vld [vmem:[%s1 + $0x3658] sm:$0xff]
  %v1788 = vld [vmem:[%s1 + $0x3660] sm:$0xff]
  %v1789 = vld [vmem:[%s1 + $0x3668] sm:$0xff]
  %v1790 = vld [vmem:[%s1 + $0x3670] sm:$0xff]
  %v1791 = vld [vmem:[%s1 + $0x3678] sm:$0xff]
  %v1792 = vld [vmem:[%s1 + $0x3680] sm:$0xff]
  %v1793 = vld [vmem:[%s1 + $0x3688] sm:$0xff]
  %v1794 = vld [vmem:[%s1 + $0x3690] sm:$0xff]
  %v1795 = vld [vmem:[%s1 + $0x3698] sm:$0xff]
  %v1796 = vld [vmem:[%s1 + $0x36a0] sm:$0xff]
  %v1797 = vld [vmem:[%s1 + $0x36a8] sm:$0xff]
  %v1798 = vld [vmem:[%s1 + $0x36b0] sm:$0xff]
  %v1799 = vld [vmem:[%s1 + $0x36b8] sm:$0xff]
  %v1800 = vld [vmem:[%s1 + $0x36c0] sm:$0xff]
  %v1801 = vld [vmem:[%s1 + $0x36c8] sm:$0xff]
  %v1802 = vld [vmem:[%s1 + $0x36d0] sm:$0xff]
  %v1803 = vld [vmem:[%s1 + $0x36d8] sm:$0xff]
  %v1804 = vld [vmem:[%s1 + $0x36e0] sm:$0xff]
  %v1805 = vld [vmem:[%s1 + $0x36e8] sm:$0xff]
  %v1806 = vld [vmem:[%s1 + $0x36f0] sm:$0xff]
  %v1807 = vld [vmem:[%s1 + $0x36f8] sm:$0xff]
  %v1808 = vld [vmem:[%s1 + $0x3700] sm:$0xff]
  %v1809 = vld [vmem:[%s1 + $0x3708] sm:$0xff]
  %v1810 = vld [vmem:[%s1 + $0x3710] sm:$0xff]
  %v1811 = vld [vmem:[%s1 + $0x3718] sm:$0xff]
  %v1812 = vld [vmem:[%s1 + $0x3720] sm:$0xff]
  %v1813 = vld [vmem:[%s1 + $0x3728] sm:$0xff]
  %v1814 = vld [vmem:[%s1 + $0x3730] sm:$0xff]
  %v1815 = vld [vmem:[%s1 + $0x3738] sm:$0xff]
  %v1816 = vld [vmem:[%s1 + $0x3740] sm:$0xff]
  %v1817 = vld [vmem:[%s1 + $0x3748] sm:$0xff]
  %v1818 = vld [vmem:[%s1 + $0x3750] sm:$0xff]
  %v1819 = vld [vmem:[%s1 + $0x3758] sm:$0xff]
  %v1820 = vld [vmem:[%s1 + $0x3760] sm:$0xff]
  %v1821 = vld [vmem:[%s1 + $0x3768] sm:$0xff]
  %v1822 = vld [vmem:[%s1 + $0x3770] sm:$0xff]
  %v1823 = vld [vmem:[%s1 + $0x3778] sm:$0xff]
  %v1824 = vld [vmem:[%s1 + $0x3780] sm:$0xff]
  %v1825 = vld [vmem:[%s1 + $0x3788] sm:$0xff]
  %v1826 = vld [vmem:[%s1 + $0x3790] sm:$0xff]
  %v1827 = vld [vmem:[%s1 + $0x3798] sm:$0xff]
  %v1828 = vld [vmem:[%s1 + $0x37a0] sm:$0xff]
  %v1829 = vld [vmem:[%s1 + $0x37a8] sm:$0xff]
  %v1830 = vld [vmem:[%s1 + $0x37b0] sm:$0xff]
  %v1831 = vld [vmem:[%s1 + $0x37b8] sm:$0xff]
  %v1832 = vld [vmem:[%s1 + $0x37c0] sm:$0xff]
  %v1833 = vld [vmem:[%s1 + $0x37c8] sm:$0xff]
  %v1834 = vld [vmem:[%s1 + $0x37d0] sm:$0xff]
  %v1835 = vld [vmem:[%s1 + $0x37d8] sm:$0xff]
  %v1836 = vld [vmem:[%s1 + $0x37e0] sm:$0xff]
  %v1837 = vld [vmem:[%s1 + $0x37e8] sm:$0xff]
  %v1838 = vld [vmem:[%s1 + $0x37f0] sm:$0xff]
  %v1839 = vld [vmem:[%s1 + $0x37f8] sm:$0xff]
  %v1840 = vld [vmem:[%s1 + $0x3800] sm:$0xff]
  %v1841 = vld [vmem:[%s1 + $0x3808] sm:$0xff]
  %v1842 = vld [vmem:[%s1 + $0x3810] sm:$0xff]
  %v1843 = vld [vmem:[%s1 + $0x3818] sm:$0xff]
  %v1844 = vld [vmem:[%s1 + $0x3820] sm:$0xff]
  %v1845 = vld [vmem:[%s1 + $0x3828] sm:$0xff]
  %v1846 = vld [vmem:[%s1 + $0x3830] sm:$0xff]
  %v1847 = vld [vmem:[%s1 + $0x3838] sm:$0xff]
  %v1848 = vld [vmem:[%s1 + $0x3840] sm:$0xff]
  %v1849 = vld [vmem:[%s1 + $0x3848] sm:$0xff]
  %v1850 = vld [vmem:[%s1 + $0x3850] sm:$0xff]
  %v1851 = vld [vmem:[%s1 + $0x3858] sm:$0xff]
  %v1852 = vld [vmem:[%s1 + $0x3860] sm:$0xff]
  %v1853 = vld [vmem:[%s1 + $0x3868] sm:$0xff]
  %v1854 = vld [vmem:[%s1 + $0x3870] sm:$0xff]
  %v1855 = vld [vmem:[%s1 + $0x3878] sm:$0xff]
  %v1856 = vld [vmem:[%s1 + $0x3880] sm:$0xff]
  %v1857 = vld [vmem:[%s1 + $0x3888] sm:$0xff]
  %v1858 = vld [vmem:[%s1 + $0x3890] sm:$0xff]
  %v1859 = vld [vmem:[%s1 + $0x3898] sm:$0xff]
  %v1860 = vld [vmem:[%s1 + $0x38a0] sm:$0xff]
  %v1861 = vld [vmem:[%s1 + $0x38a8] sm:$0xff]
  %v1862 = vld [vmem:[%s1 + $0x38b0] sm:$0xff]
  %v1863 = vld [vmem:[%s1 + $0x38b8] sm:$0xff]
  %v1864 = vld [vmem:[%s1 + $0x38c0] sm:$0xff]
  %v1865 = vld [vmem:[%s1 + $0x38c8] sm:$0xff]
  %v1866 = vld [vmem:[%s1 + $0x38d0] sm:$0xff]
  %v1867 = vld [vmem:[%s1 + $0x38d8] sm:$0xff]
  %v1868 = vld [vmem:[%s1 + $0x38e0] sm:$0xff]
  %v1869 = vld [vmem:[%s1 + $0x38e8] sm:$0xff]
  %v1870 = vld [vmem:[%s1 + $0x38f0] sm:$0xff]
  %v1871 = vld [vmem:[%s1 + $0x38f8] sm:$0xff]
  %v1872 = vld [vmem:[%s1 + $0x3900] sm:$0xff]
  %v1873 = vld [vmem:[%s1 + $0x3908] sm:$0xff]
  %v1874 = vld [vmem:[%s1 + $0x3910] sm:$0xff]
  %v1875 = vld [vmem:[%s1 + $0x3918] sm:$0xff]
  %v1876 = vld [vmem:[%s1 + $0x3920] sm:$0xff]
  %v1877 = vld [vmem:[%s1 + $0x3928] sm:$0xff]
  %v1878 = vld [vmem:[%s1 + $0x3930] sm:$0xff]
  %v1879 = vld [vmem:[%s1 + $0x3938] sm:$0xff]
  %v1880 = vld [vmem:[%s1 + $0x3940] sm:$0xff]
  %v1881 = vld [vmem:[%s1 + $0x3948] sm:$0xff]
  %v1882 = vld [vmem:[%s1 + $0x3950] sm:$0xff]
  %v1883 = vld [vmem:[%s1 + $0x3958] sm:$0xff]
  %v1884 = vld [vmem:[%s1 + $0x3960] sm:$0xff]
  %v1885 = vld [vmem:[%s1 + $0x3968] sm:$0xff]
  %v1886 = vld [vmem:[%s1 + $0x3970] sm:$0xff]
  %v1887 = vld [vmem:[%s1 + $0x3978] sm:$0xff]
  %v1888 = vld [vmem:[%s1 + $0x3980] sm:$0xff]
  %v1889 = vld [vmem:[%s1 + $0x3988] sm:$0xff]
  %v1890 = vld [vmem:[%s1 + $0x3990] sm:$0xff]
  %v1891 = vld [vmem:[%s1 + $0x3998] sm:$0xff]
  %v1892 = vld [vmem:[%s1 + $0x39a0] sm:$0xff]
  %v1893 = vld [vmem:[%s1 + $0x39a8] sm:$0xff]
  %v1894 = vld [vmem:[%s1 + $0x39b0] sm:$0xff]
  %v1895 = vld [vmem:[%s1 + $0x39b8] sm:$0xff]
  %v1896 = vld [vmem:[%s1 + $0x39c0] sm:$0xff]
  %v1897 = vld [vmem:[%s1 + $0x39c8] sm:$0xff]
  %v1898 = vld [vmem:[%s1 + $0x39d0] sm:$0xff]
  %v1899 = vld [vmem:[%s1 + $0x39d8] sm:$0xff]
  %v1900 = vld [vmem:[%s1 + $0x39e0] sm:$0xff]
  %v1901 = vld [vmem:[%s1 + $0x39e8] sm:$0xff]
  %v1902 = vld [vmem:[%s1 + $0x39f0] sm:$0xff]
  %v1903 = vld [vmem:[%s1 + $0x39f8] sm:$0xff]
  %v1904 = vld [vmem:[%s1 + $0x3a00] sm:$0xff]
  %v1905 = vld [vmem:[%s1 + $0x3a08] sm:$0xff]
  %v1906 = vld [vmem:[%s1 + $0x3a10] sm:$0xff]
  %v1907 = vld [vmem:[%s1 + $0x3a18] sm:$0xff]
  %v1908 = vld [vmem:[%s1 + $0x3a20] sm:$0xff]
  %v1909 = vld [vmem:[%s1 + $0x3a28] sm:$0xff]
  %v1910 = vld [vmem:[%s1 + $0x3a30] sm:$0xff]
  %v1911 = vld [vmem:[%s1 + $0x3a38] sm:$0xff]
  %v1912 = vld [vmem:[%s1 + $0x3a40] sm:$0xff]
  %v1913 = vld [vmem:[%s1 + $0x3a48] sm:$0xff]
  %v1914 = vld [vmem:[%s1 + $0x3a50] sm:$0xff]
  %v1915 = vld [vmem:[%s1 + $0x3a58] sm:$0xff]
  %v1916 = vld [vmem:[%s1 + $0x3a60] sm:$0xff]
  %v1917 = vld [vmem:[%s1 + $0x3a68] sm:$0xff]
  %v1918 = vld [vmem:[%s1 + $0x3a70] sm:$0xff]
  %v1919 = vld [vmem:[%s1 + $0x3a78] sm:$0xff]
  %v1920 = vld [vmem:[%s1 + $0x3a80] sm:$0xff]
  %v1921 = vld [vmem:[%s1 + $0x3a88] sm:$0xff]
  %v1922 = vld [vmem:[%s1 + $0x3a90] sm:$0xff]
  %v1923 = vld [vmem:[%s1 + $0x3a98] sm:$0xff]
  %v1924 = vld [vmem:[%s1 + $0x3aa0] sm:$0xff]
  %v1925 = vld [vmem:[%s1 + $0x3aa8] sm:$0xff]
  %v1926 = vld [vmem:[%s1 + $0x3ab0] sm:$0xff]
  %v1927 = vld [vmem:[%s1 + $0x3ab8] sm:$0xff]
  %v1928 = vld [vmem:[%s1 + $0x3ac0] sm:$0xff]
  %v1929 = vld [vmem:[%s1 + $0x3ac8] sm:$0xff]
  %v1930 = vld [vmem:[%s1 + $0x3ad0] sm:$0xff]
  %v1931 = vld [vmem:[%s1 + $0x3ad8] sm:$0xff]
  %v1932 = vld [vmem:[%s1 + $0x3ae0] sm:$0xff]
  %v1933 = vld [vmem:[%s1 + $0x3ae8] sm:$0xff]
  %v1934 = vld [vmem:[%s1 + $0x3af0] sm:$0xff]
  %v1935 = vld [vmem:[%s1 + $0x3af8] sm:$0xff]
  %v1936 = vld [vmem:[%s1 + $0x3b00] sm:$0xff]
  %v1937 = vld [vmem:[%s1 + $0x3b08] sm:$0xff]
  %v1938 = vld [vmem:[%s1 + $0x3b10] sm:$0xff]
  %v1939 = vld [vmem:[%s1 + $0x3b18] sm:$0xff]
  %v1940 = vld [vmem:[%s1 + $0x3b20] sm:$0xff]
  %v1941 = vld [vmem:[%s1 + $0x3b28] sm:$0xff]
  %v1942 = vld [vmem:[%s1 + $0x3b30] sm:$0xff]
  %v1943 = vld [vmem:[%s1 + $0x3b38] sm:$0xff]
  %v1944 = vld [vmem:[%s1 + $0x3b40] sm:$0xff]
  %v1945 = vld [vmem:[%s1 + $0x3b48] sm:$0xff]
  %v1946 = vld [vmem:[%s1 + $0x3b50] sm:$0xff]
  %v1947 = vld [vmem:[%s1 + $0x3b58] sm:$0xff]
  %v1948 = vld [vmem:[%s1 + $0x3b60] sm:$0xff]
  %v1949 = vld [vmem:[%s1 + $0x3b68] sm:$0xff]
  %v1950 = vld [vmem:[%s1 + $0x3b70] sm:$0xff]
  %v1951 = vld [vmem:[%s1 + $0x3b78] sm:$0xff]
  %v1952 = vld [vmem:[%s1 + $0x3b80] sm:$0xff]
  %v1953 = vld [vmem:[%s1 + $0x3b88] sm:$0xff]
  %v1954 = vld [vmem:[%s1 + $0x3b90] sm:$0xff]
  %v1955 = vld [vmem:[%s1 + $0x3b98] sm:$0xff]
  %v1956 = vld [vmem:[%s1 + $0x3ba0] sm:$0xff]
  %v1957 = vld [vmem:[%s1 + $0x3ba8] sm:$0xff]
  %v1958 = vld [vmem:[%s1 + $0x3bb0] sm:$0xff]
  %v1959 = vld [vmem:[%s1 + $0x3bb8] sm:$0xff]
  %v1960 = vld [vmem:[%s1 + $0x3bc0] sm:$0xff]
  %v1961 = vld [vmem:[%s1 + $0x3bc8] sm:$0xff]
  %v1962 = vld [vmem:[%s1 + $0x3bd0] sm:$0xff]
  %v1963 = vld [vmem:[%s1 + $0x3bd8] sm:$0xff]
  %v1964 = vld [vmem:[%s1 + $0x3be0] sm:$0xff]
  %v1965 = vld [vmem:[%s1 + $0x3be8] sm:$0xff]
  %v1966 = vld [vmem:[%s1 + $0x3bf0] sm:$0xff]
  %v1967 = vld [vmem:[%s1 + $0x3bf8] sm:$0xff]
  %v1968 = vld [vmem:[%s1 + $0x3c00] sm:$0xff]
  %v1969 = vld [vmem:[%s1 + $0x3c08] sm:$0xff]
  %v1970 = vld [vmem:[%s1 + $0x3c10] sm:$0xff]
  %v1971 = vld [vmem:[%s1 + $0x3c18] sm:$0xff]
  %v1972 = vld [vmem:[%s1 + $0x3c20] sm:$0xff]
  %v1973 = vld [vmem:[%s1 + $0x3c28] sm:$0xff]
  %v1974 = vld [vmem:[%s1 + $0x3c30] sm:$0xff]
  %v1975 = vld [vmem:[%s1 + $0x3c38] sm:$0xff]
  %v1976 = vld [vmem:[%s1 + $0x3c40] sm:$0xff]
  %v1977 = vld [vmem:[%s1 + $0x3c48] sm:$0xff]
  %v1978 = vld [vmem:[%s1 + $0x3c50] sm:$0xff]
  %v1979 = vld [vmem:[%s1 + $0x3c58] sm:$0xff]
  %v1980 = vld [vmem:[%s1 + $0x3c60] sm:$0xff]
  %v1981 = vld [vmem:[%s1 + $0x3c68] sm:$0xff]
  %v1982 = vld [vmem:[%s1 + $0x3c70] sm:$0xff]
  %v1983 = vld [vmem:[%s1 + $0x3c78] sm:$0xff]
  %v1984 = vld [vmem:[%s1 + $0x3c80] sm:$0xff]
  %v1985 = vld [vmem:[%s1 + $0x3c88] sm:$0xff]
  %v1986 = vld [vmem:[%s1 + $0x3c90] sm:$0xff]
  %v1987 = vld [vmem:[%s1 + $0x3c98] sm:$0xff]
  %v1988 = vld [vmem:[%s1 + $0x3ca0] sm:$0xff]
  %v1989 = vld [vmem:[%s1 + $0x3ca8] sm:$0xff]
  %v1990 = vld [vmem:[%s1 + $0x3cb0] sm:$0xff]
  %v1991 = vld [vmem:[%s1 + $0x3cb8] sm:$0xff]
  %v1992 = vld [vmem:[%s1 + $0x3cc0] sm:$0xff]
  %v1993 = vld [vmem:[%s1 + $0x3cc8] sm:$0xff]
  %v1994 = vld [vmem:[%s1 + $0x3cd0] sm:$0xff]
  %v1995 = vld [vmem:[%s1 + $0x3cd8] sm:$0xff]
  %v1996 = vld [vmem:[%s1 + $0x3ce0] sm:$0xff]
  %v1997 = vld [vmem:[%s1 + $0x3ce8] sm:$0xff]
  %v1998 = vld [vmem:[%s1 + $0x3cf0] sm:$0xff]
  %v1999 = vld [vmem:[%s1 + $0x3cf8] sm:$0xff]
  %v2000 = vld [vmem:[%s1 + $0x3d00] sm:$0xff]
  %v2001 = vld [vmem:[%s1 + $0x3d08] sm:$0xff]
  %v2002 = vld [vmem:[%s1 + $0x3d10] sm:$0xff]
  %v2003 = vld [vmem:[%s1 + $0x3d18] sm:$0xff]
  %v2004 = vld [vmem:[%s1 + $0x3d20] sm:$0xff]
  %v2005 = vld [vmem:[%s1 + $0x3d28] sm:$0xff]
  %v2006 = vld [vmem:[%s1 + $0x3d30] sm:$0xff]
  %v2007 = vld [vmem:[%s1 + $0x3d38] sm:$0xff]
  %v2008 = vld [vmem:[%s1 + $0x3d40] sm:$0xff]
  %v2009 = vld [vmem:[%s1 + $0x3d48] sm:$0xff]
  %v2010 = vld [vmem:[%s1 + $0x3d50] sm:$0xff]
  %v2011 = vld [vmem:[%s1 + $0x3d58] sm:$0xff]
  %v2012 = vld [vmem:[%s1 + $0x3d60] sm:$0xff]
  %v2013 = vld [vmem:[%s1 + $0x3d68] sm:$0xff]
  %v2014 = vld [vmem:[%s1 + $0x3d70] sm:$0xff]
  %v2015 = vld [vmem:[%s1 + $0x3d78] sm:$0xff]
  %v2016 = vld [vmem:[%s1 + $0x3d80] sm:$0xff]
  %v2017 = vld [vmem:[%s1 + $0x3d88] sm:$0xff]
  %v2018 = vld [vmem:[%s1 + $0x3d90] sm:$0xff]
  %v2019 = vld [vmem:[%s1 + $0x3d98] sm:$0xff]
  %v2020 = vld [vmem:[%s1 + $0x3da0] sm:$0xff]
  %v2021 = vld [vmem:[%s1 + $0x3da8] sm:$0xff]
  %v2022 = vld [vmem:[%s1 + $0x3db0] sm:$0xff]
  %v2023 = vld [vmem:[%s1 + $0x3db8] sm:$0xff]
  %v2024 = vld [vmem:[%s1 + $0x3dc0] sm:$0xff]
  %v2025 = vld [vmem:[%s1 + $0x3dc8] sm:$0xff]
  %v2026 = vld [vmem:[%s1 + $0x3dd0] sm:$0xff]
  %v2027 = vld [vmem:[%s1 + $0x3dd8] sm:$0xff]
  %v2028 = vld [vmem:[%s1 + $0x3de0] sm:$0xff]
  %v2029 = vld [vmem:[%s1 + $0x3de8] sm:$0xff]
  %v2030 = vld [vmem:[%s1 + $0x3df0] sm:$0xff]
  %v2031 = vld [vmem:[%s1 + $0x3df8] sm:$0xff]
  %v2032 = vld [vmem:[%s1 + $0x3e00] sm:$0xff]
  %v2033 = vld [vmem:[%s1 + $0x3e08] sm:$0xff]
  %v2034 = vld [vmem:[%s1 + $0x3e10] sm:$0xff]
  %v2035 = vld [vmem:[%s1 + $0x3e18] sm:$0xff]
  %v2036 = vld [vmem:[%s1 + $0x3e20] sm:$0xff]
  %v2037 = vld [vmem:[%s1 + $0x3e28] sm:$0xff]
  %v2038 = vld [vmem:[%s1 + $0x3e30] sm:$0xff]
  %v2039 = vld [vmem:[%s1 + $0x3e38] sm:$0xff]
  %v2040 = vld [vmem:[%s1 + $0x3e40] sm:$0xff]
  %v2041 = vld [vmem:[%s1 + $0x3e48] sm:$0xff]
  %v2042 = vld [vmem:[%s1 + $0x3e50] sm:$0xff]
  %v2043 = vld [vmem:[%s1 + $0x3e58] sm:$0xff]
  %v2044 = vld [vmem:[%s1 + $0x3e60] sm:$0xff]
  %v2045 = vld [vmem:[%s1 + $0x3e68] sm:$0xff]
  %v2046 = vld [vmem:[%s1 + $0x3e70] sm:$0xff]
  %v2047 = vld [vmem:[%s1 + $0x3e78] sm:$0xff]
  %v2048 = vld [vmem:[%s1 + $0x3e80] sm:$0xff]
  %v2049 = vld [vmem:[%s1 + $0x3e88] sm:$0xff]
  %v2050 = vld [vmem:[%s1 + $0x3e90] sm:$0xff]
  %v2051 = vld [vmem:[%s1 + $0x3e98] sm:$0xff]
  %v2052 = vld [vmem:[%s1 + $0x3ea0] sm:$0xff]
  %v2053 = vld [vmem:[%s1 + $0x3ea8] sm:$0xff]
  %v2054 = vld [vmem:[%s1 + $0x3eb0] sm:$0xff]
  %v2055 = vld [vmem:[%s1 + $0x3eb8] sm:$0xff]
  %v2056 = vld [vmem:[%s1 + $0x3ec0] sm:$0xff]
  %v2057 = vld [vmem:[%s1 + $0x3ec8] sm:$0xff]
  %v2058 = vld [vmem:[%s1 + $0x3ed0] sm:$0xff]
  %v2059 = vld [vmem:[%s1 + $0x3ed8] sm:$0xff]
  %v2060 = vld [vmem:[%s1 + $0x3ee0] sm:$0xff]
  %v2061 = vld [vmem:[%s1 + $0x3ee8] sm:$0xff]
  %v2062 = vld [vmem:[%s1 + $0x3ef0] sm:$0xff]
  %v2063 = vld [vmem:[%s1 + $0x3ef8] sm:$0xff]
  %v2064 = vld [vmem:[%s1 + $0x3f00] sm:$0xff]
  %v2065 = vld [vmem:[%s1 + $0x3f08] sm:$0xff]
  %v2066 = vld [vmem:[%s1 + $0x3f10] sm:$0xff]
  %v2067 = vld [vmem:[%s1 + $0x3f18] sm:$0xff]
  %v2068 = vld [vmem:[%s1 + $0x3f20] sm:$0xff]
  %v2069 = vld [vmem:[%s1 + $0x3f28] sm:$0xff]
  %v2070 = vld [vmem:[%s1 + $0x3f30] sm:$0xff]
  %v2071 = vld [vmem:[%s1 + $0x3f38] sm:$0xff]
  %v2072 = vld [vmem:[%s1 + $0x3f40] sm:$0xff]
  %v2073 = vld [vmem:[%s1 + $0x3f48] sm:$0xff]
  %v2074 = vld [vmem:[%s1 + $0x3f50] sm:$0xff]
  %v2075 = vld [vmem:[%s1 + $0x3f58] sm:$0xff]
  %v2076 = vld [vmem:[%s1 + $0x3f60] sm:$0xff]
  %v2077 = vld [vmem:[%s1 + $0x3f68] sm:$0xff]
  %v2078 = vld [vmem:[%s1 + $0x3f70] sm:$0xff]
  %v2079 = vld [vmem:[%s1 + $0x3f78] sm:$0xff]
  %v2080 = vld [vmem:[%s1 + $0x3f80] sm:$0xff]
  %v2081 = vld [vmem:[%s1 + $0x3f88] sm:$0xff]
  %v2082 = vld [vmem:[%s1 + $0x3f90] sm:$0xff]
  %v2083 = vld [vmem:[%s1 + $0x3f98] sm:$0xff]
  %v2084 = vld [vmem:[%s1 + $0x3fa0] sm:$0xff]
  %v2085 = vld [vmem:[%s1 + $0x3fa8] sm:$0xff]
  %v2086 = vld [vmem:[%s1 + $0x3fb0] sm:$0xff]
  %v2087 = vld [vmem:[%s1 + $0x3fb8] sm:$0xff]
  %v2088 = vld [vmem:[%s1 + $0x3fc0] sm:$0xff]
  %v2089 = vld [vmem:[%s1 + $0x3fc8] sm:$0xff]
  %v2090 = vld [vmem:[%s1 + $0x3fd0] sm:$0xff]
  %v2091 = vld [vmem:[%s1 + $0x3fd8] sm:$0xff]
  %v2092 = vld [vmem:[%s1 + $0x3fe0] sm:$0xff]
  %v2093 = vld [vmem:[%s1 + $0x3fe8] sm:$0xff]
  %v2094 = vld [vmem:[%s1 + $0x3ff0] sm:$0xff]
  %v2095 = vld [vmem:[%s1 + $0x3ff8] sm:$0xff]
  %v2096 = vld [vmem:[%s2] sm:$0xf]
  %v2098 = vperm.slane %v2096, 0
  %v2099 = vperm.slane %v2096, 1
  %v2100 = vperm.slane %v2096, 2
  %v2101 = vperm.slane %v2096, 3
  %2106 = vmatpush.msra.mxu0 %v108
  %2107 = vmatpush.msra.mxu0 %v104
  %2108 = vmatpush.msra.mxu0 %v100
  %2109 = vmatpush.msra.mxu0 %v96
  %2110 = vmatpush.msra.mxu0 %v92
  %2111 = vmatpush.msra.mxu0 %v88
  %2112 = vmatpush.msra.mxu0 %v84
  %2113 = vmatpush.msra.mxu0 %v80
  %2114 = vmatpush.msra.mxu0 %v76
  %2115 = vmatpush.msra.mxu0 %v72
  %2116 = vmatpush.msra.mxu0 %v68
  %2117 = vmatpush.msra.mxu0 %v64
  %2118 = vmatpush.msra.mxu0 %v60
  %2119 = vmatpush.msra.mxu0 %v56
  %2120 = vmatpush.msra.mxu0 %v52
  %2121 = vmatpush.msra.mxu0 %v48
  %2122 = vmatmul.f32.gmra.mxu0 %v16
  %v2123 = vpop.f32.mrf.mxu0
  %v2124 = vadd.f32 %v2098, %v2123
  %2125 = vdwg.mxu0
  %2126 = vmatpush.msra.mxu0 %v172
  %2127 = vmatpush.msra.mxu0 %v168
  %2128 = vmatpush.msra.mxu0 %v164
  %2129 = vmatpush.msra.mxu0 %v160
  %2130 = vmatpush.msra.mxu0 %v156
  %2131 = vmatpush.msra.mxu0 %v152
  %2132 = vmatpush.msra.mxu0 %v148
  %2133 = vmatpush.msra.mxu0 %v144
  %2134 = vmatpush.msra.mxu0 %v140
  %2135 = vmatpush.msra.mxu0 %v136
  %2136 = vmatpush.msra.mxu0 %v132
  %2137 = vmatpush.msra.mxu0 %v128
  %2138 = vmatpush.msra.mxu0 %v124
  %2139 = vmatpush.msra.mxu0 %v120
  %2140 = vmatpush.msra.mxu0 %v116
  %2141 = vmatpush.msra.mxu0 %v112
  %2142 = vmatmul.f32.gmra.mxu0 %v17
  %v2143 = vpop.f32.mrf.mxu0
  %v2144 = vadd.f32 %v2124, %v2143
  %2145 = vdwg.mxu0
  %2146 = vmatpush.msra.mxu0 %v236
  %2147 = vmatpush.msra.mxu0 %v232
  %2148 = vmatpush.msra.mxu0 %v228
  %2149 = vmatpush.msra.mxu0 %v224
  %2150 = vmatpush.msra.mxu0 %v220
  %2151 = vmatpush.msra.mxu0 %v216
  %2152 = vmatpush.msra.mxu0 %v212
  %2153 = vmatpush.msra.mxu0 %v208
  %2154 = vmatpush.msra.mxu0 %v204
  %2155 = vmatpush.msra.mxu0 %v200
  %2156 = vmatpush.msra.mxu0 %v196
  %2157 = vmatpush.msra.mxu0 %v192
  %2158 = vmatpush.msra.mxu0 %v188
  %2159 = vmatpush.msra.mxu0 %v184
  %2160 = vmatpush.msra.mxu0 %v180
  %2161 = vmatpush.msra.mxu0 %v176
  %2162 = vmatmul.f32.gmra.mxu0 %v18
  %v2163 = vpop.f32.mrf.mxu0
  %v2164 = vadd.f32 %v2144, %v2163
  %2165 = vdwg.mxu0
  %2166 = vmatpush.msra.mxu0 %v300
  %2167 = vmatpush.msra.mxu0 %v296
  %2168 = vmatpush.msra.mxu0 %v292
  %2169 = vmatpush.msra.mxu0 %v288
  %2170 = vmatpush.msra.mxu0 %v284
  %2171 = vmatpush.msra.mxu0 %v280
  %2172 = vmatpush.msra.mxu0 %v276
  %2173 = vmatpush.msra.mxu0 %v272
  %2174 = vmatpush.msra.mxu0 %v268
  %2175 = vmatpush.msra.mxu0 %v264
  %2176 = vmatpush.msra.mxu0 %v260
  %2177 = vmatpush.msra.mxu0 %v256
  %2178 = vmatpush.msra.mxu0 %v252
  %2179 = vmatpush.msra.mxu0 %v248
  %2180 = vmatpush.msra.mxu0 %v244
  %2181 = vmatpush.msra.mxu0 %v240
  %2182 = vmatmul.f32.gmra.mxu0 %v19
  %v2183 = vpop.f32.mrf.mxu0
  %v2184 = vadd.f32 %v2164, %v2183
  %2185 = vdwg.mxu0
  %2186 = vmatpush.msra.mxu0 %v364
  %2187 = vmatpush.msra.mxu0 %v360
  %2188 = vmatpush.msra.mxu0 %v356
  %2189 = vmatpush.msra.mxu0 %v352
  %2190 = vmatpush.msra.mxu0 %v348
  %2191 = vmatpush.msra.mxu0 %v344
  %2192 = vmatpush.msra.mxu0 %v340
  %2193 = vmatpush.msra.mxu0 %v336
  %2194 = vmatpush.msra.mxu0 %v332
  %2195 = vmatpush.msra.mxu0 %v328
  %2196 = vmatpush.msra.mxu0 %v324
  %2197 = vmatpush.msra.mxu0 %v320
  %2198 = vmatpush.msra.mxu0 %v316
  %2199 = vmatpush.msra.mxu0 %v312
  %2200 = vmatpush.msra.mxu0 %v308
  %2201 = vmatpush.msra.mxu0 %v304
  %2202 = vmatmul.f32.gmra.mxu0 %v20
  %v2203 = vpop.f32.mrf.mxu0
  %v2204 = vadd.f32 %v2184, %v2203
  %2205 = vdwg.mxu0
  %2206 = vmatpush.msra.mxu0 %v428
  %2207 = vmatpush.msra.mxu0 %v424
  %2208 = vmatpush.msra.mxu0 %v420
  %2209 = vmatpush.msra.mxu0 %v416
  %2210 = vmatpush.msra.mxu0 %v412
  %2211 = vmatpush.msra.mxu0 %v408
  %2212 = vmatpush.msra.mxu0 %v404
  %2213 = vmatpush.msra.mxu0 %v400
  %2214 = vmatpush.msra.mxu0 %v396
  %2215 = vmatpush.msra.mxu0 %v392
  %2216 = vmatpush.msra.mxu0 %v388
  %2217 = vmatpush.msra.mxu0 %v384
  %2218 = vmatpush.msra.mxu0 %v380
  %2219 = vmatpush.msra.mxu0 %v376
  %2220 = vmatpush.msra.mxu0 %v372
  %2221 = vmatpush.msra.mxu0 %v368
  %2222 = vmatmul.f32.gmra.mxu0 %v21
  %v2223 = vpop.f32.mrf.mxu0
  %v2224 = vadd.f32 %v2204, %v2223
  %2225 = vdwg.mxu0
  %2226 = vmatpush.msra.mxu0 %v492
  %2227 = vmatpush.msra.mxu0 %v488
  %2228 = vmatpush.msra.mxu0 %v484
  %2229 = vmatpush.msra.mxu0 %v480
  %2230 = vmatpush.msra.mxu0 %v476
  %2231 = vmatpush.msra.mxu0 %v472
  %2232 = vmatpush.msra.mxu0 %v468
  %2233 = vmatpush.msra.mxu0 %v464
  %2234 = vmatpush.msra.mxu0 %v460
  %2235 = vmatpush.msra.mxu0 %v456
  %2236 = vmatpush.msra.mxu0 %v452
  %2237 = vmatpush.msra.mxu0 %v448
  %2238 = vmatpush.msra.mxu0 %v444
  %2239 = vmatpush.msra.mxu0 %v440
  %2240 = vmatpush.msra.mxu0 %v436
  %2241 = vmatpush.msra.mxu0 %v432
  %2242 = vmatmul.f32.gmra.mxu0 %v22
  %v2243 = vpop.f32.mrf.mxu0
  %v2244 = vadd.f32 %v2224, %v2243
  %2245 = vdwg.mxu0
  %2246 = vmatpush.msra.mxu0 %v556
  %2247 = vmatpush.msra.mxu0 %v552
  %2248 = vmatpush.msra.mxu0 %v548
  %2249 = vmatpush.msra.mxu0 %v544
  %2250 = vmatpush.msra.mxu0 %v540
  %2251 = vmatpush.msra.mxu0 %v536
  %2252 = vmatpush.msra.mxu0 %v532
  %2253 = vmatpush.msra.mxu0 %v528
  %2254 = vmatpush.msra.mxu0 %v524
  %2255 = vmatpush.msra.mxu0 %v520
  %2256 = vmatpush.msra.mxu0 %v516
  %2257 = vmatpush.msra.mxu0 %v512
  %2258 = vmatpush.msra.mxu0 %v508
  %2259 = vmatpush.msra.mxu0 %v504
  %2260 = vmatpush.msra.mxu0 %v500
  %2261 = vmatpush.msra.mxu0 %v496
  %2262 = vmatmul.f32.gmra.mxu0 %v23
  %v2263 = vpop.f32.mrf.mxu0
  %v2264 = vadd.f32 %v2244, %v2263
  %2265 = vdwg.mxu0
  %2266 = vmatpush.msra.mxu0 %v620
  %2267 = vmatpush.msra.mxu0 %v616
  %2268 = vmatpush.msra.mxu0 %v612
  %2269 = vmatpush.msra.mxu0 %v608
  %2270 = vmatpush.msra.mxu0 %v604
  %2271 = vmatpush.msra.mxu0 %v600
  %2272 = vmatpush.msra.mxu0 %v596
  %2273 = vmatpush.msra.mxu0 %v592
  %2274 = vmatpush.msra.mxu0 %v588
  %2275 = vmatpush.msra.mxu0 %v584
  %2276 = vmatpush.msra.mxu0 %v580
  %2277 = vmatpush.msra.mxu0 %v576
  %2278 = vmatpush.msra.mxu0 %v572
  %2279 = vmatpush.msra.mxu0 %v568
  %2280 = vmatpush.msra.mxu0 %v564
  %2281 = vmatpush.msra.mxu0 %v560
  %2282 = vmatmul.f32.gmra.mxu0 %v24
  %v2283 = vpop.f32.mrf.mxu0
  %v2284 = vadd.f32 %v2264, %v2283
  %2285 = vdwg.mxu0
  %2286 = vmatpush.msra.mxu0 %v684
  %2287 = vmatpush.msra.mxu0 %v680
  %2288 = vmatpush.msra.mxu0 %v676
  %2289 = vmatpush.msra.mxu0 %v672
  %2290 = vmatpush.msra.mxu0 %v668
  %2291 = vmatpush.msra.mxu0 %v664
  %2292 = vmatpush.msra.mxu0 %v660
  %2293 = vmatpush.msra.mxu0 %v656
  %2294 = vmatpush.msra.mxu0 %v652
  %2295 = vmatpush.msra.mxu0 %v648
  %2296 = vmatpush.msra.mxu0 %v644
  %2297 = vmatpush.msra.mxu0 %v640
  %2298 = vmatpush.msra.mxu0 %v636
  %2299 = vmatpush.msra.mxu0 %v632
  %2300 = vmatpush.msra.mxu0 %v628
  %2301 = vmatpush.msra.mxu0 %v624
  %2302 = vmatmul.f32.gmra.mxu0 %v25
  %v2303 = vpop.f32.mrf.mxu0
  %v2304 = vadd.f32 %v2284, %v2303
  %2305 = vdwg.mxu0
  %2306 = vmatpush.msra.mxu0 %v748
  %2307 = vmatpush.msra.mxu0 %v744
  %2308 = vmatpush.msra.mxu0 %v740
  %2309 = vmatpush.msra.mxu0 %v736
  %2310 = vmatpush.msra.mxu0 %v732
  %2311 = vmatpush.msra.mxu0 %v728
  %2312 = vmatpush.msra.mxu0 %v724
  %2313 = vmatpush.msra.mxu0 %v720
  %2314 = vmatpush.msra.mxu0 %v716
  %2315 = vmatpush.msra.mxu0 %v712
  %2316 = vmatpush.msra.mxu0 %v708
  %2317 = vmatpush.msra.mxu0 %v704
  %2318 = vmatpush.msra.mxu0 %v700
  %2319 = vmatpush.msra.mxu0 %v696
  %2320 = vmatpush.msra.mxu0 %v692
  %2321 = vmatpush.msra.mxu0 %v688
  %2322 = vmatmul.f32.gmra.mxu0 %v26
  %v2323 = vpop.f32.mrf.mxu0
  %v2324 = vadd.f32 %v2304, %v2323
  %2325 = vdwg.mxu0
  %2326 = vmatpush.msra.mxu0 %v812
  %2327 = vmatpush.msra.mxu0 %v808
  %2328 = vmatpush.msra.mxu0 %v804
  %2329 = vmatpush.msra.mxu0 %v800
  %2330 = vmatpush.msra.mxu0 %v796
  %2331 = vmatpush.msra.mxu0 %v792
  %2332 = vmatpush.msra.mxu0 %v788
  %2333 = vmatpush.msra.mxu0 %v784
  %2334 = vmatpush.msra.mxu0 %v780
  %2335 = vmatpush.msra.mxu0 %v776
  %2336 = vmatpush.msra.mxu0 %v772
  %2337 = vmatpush.msra.mxu0 %v768
  %2338 = vmatpush.msra.mxu0 %v764
  %2339 = vmatpush.msra.mxu0 %v760
  %2340 = vmatpush.msra.mxu0 %v756
  %2341 = vmatpush.msra.mxu0 %v752
  %2342 = vmatmul.f32.gmra.mxu0 %v27
  %v2343 = vpop.f32.mrf.mxu0
  %v2344 = vadd.f32 %v2324, %v2343
  %2345 = vdwg.mxu0
  %2346 = vmatpush.msra.mxu0 %v876
  %2347 = vmatpush.msra.mxu0 %v872
  %2348 = vmatpush.msra.mxu0 %v868
  %2349 = vmatpush.msra.mxu0 %v864
  %2350 = vmatpush.msra.mxu0 %v860
  %2351 = vmatpush.msra.mxu0 %v856
  %2352 = vmatpush.msra.mxu0 %v852
  %2353 = vmatpush.msra.mxu0 %v848
  %2354 = vmatpush.msra.mxu0 %v844
  %2355 = vmatpush.msra.mxu0 %v840
  %2356 = vmatpush.msra.mxu0 %v836
  %2357 = vmatpush.msra.mxu0 %v832
  %2358 = vmatpush.msra.mxu0 %v828
  %2359 = vmatpush.msra.mxu0 %v824
  %2360 = vmatpush.msra.mxu0 %v820
  %2361 = vmatpush.msra.mxu0 %v816
  %2362 = vmatmul.f32.gmra.mxu0 %v28
  %v2363 = vpop.f32.mrf.mxu0
  %v2364 = vadd.f32 %v2344, %v2363
  %2365 = vdwg.mxu0
  %2366 = vmatpush.msra.mxu0 %v940
  %2367 = vmatpush.msra.mxu0 %v936
  %2368 = vmatpush.msra.mxu0 %v932
  %2369 = vmatpush.msra.mxu0 %v928
  %2370 = vmatpush.msra.mxu0 %v924
  %2371 = vmatpush.msra.mxu0 %v920
  %2372 = vmatpush.msra.mxu0 %v916
  %2373 = vmatpush.msra.mxu0 %v912
  %2374 = vmatpush.msra.mxu0 %v908
  %2375 = vmatpush.msra.mxu0 %v904
  %2376 = vmatpush.msra.mxu0 %v900
  %2377 = vmatpush.msra.mxu0 %v896
  %2378 = vmatpush.msra.mxu0 %v892
  %2379 = vmatpush.msra.mxu0 %v888
  %2380 = vmatpush.msra.mxu0 %v884
  %2381 = vmatpush.msra.mxu0 %v880
  %2382 = vmatmul.f32.gmra.mxu0 %v29
  %v2383 = vpop.f32.mrf.mxu0
  %v2384 = vadd.f32 %v2364, %v2383
  %2385 = vdwg.mxu0
  %2386 = vmatpush.msra.mxu0 %v1004
  %2387 = vmatpush.msra.mxu0 %v1000
  %2388 = vmatpush.msra.mxu0 %v996
  %2389 = vmatpush.msra.mxu0 %v992
  %2390 = vmatpush.msra.mxu0 %v988
  %2391 = vmatpush.msra.mxu0 %v984
  %2392 = vmatpush.msra.mxu0 %v980
  %2393 = vmatpush.msra.mxu0 %v976
  %2394 = vmatpush.msra.mxu0 %v972
  %2395 = vmatpush.msra.mxu0 %v968
  %2396 = vmatpush.msra.mxu0 %v964
  %2397 = vmatpush.msra.mxu0 %v960
  %2398 = vmatpush.msra.mxu0 %v956
  %2399 = vmatpush.msra.mxu0 %v952
  %2400 = vmatpush.msra.mxu0 %v948
  %2401 = vmatpush.msra.mxu0 %v944
  %2402 = vmatmul.f32.gmra.mxu0 %v30
  %v2403 = vpop.f32.mrf.mxu0
  %v2404 = vadd.f32 %v2384, %v2403
  %2405 = vdwg.mxu0
  %2406 = vmatpush.msra.mxu0 %v1068
  %2407 = vmatpush.msra.mxu0 %v1064
  %2408 = vmatpush.msra.mxu0 %v1060
  %2409 = vmatpush.msra.mxu0 %v1056
  %2410 = vmatpush.msra.mxu0 %v1052
  %2411 = vmatpush.msra.mxu0 %v1048
  %2412 = vmatpush.msra.mxu0 %v1044
  %2413 = vmatpush.msra.mxu0 %v1040
  %2414 = vmatpush.msra.mxu0 %v1036
  %2415 = vmatpush.msra.mxu0 %v1032
  %2416 = vmatpush.msra.mxu0 %v1028
  %2417 = vmatpush.msra.mxu0 %v1024
  %2418 = vmatpush.msra.mxu0 %v1020
  %2419 = vmatpush.msra.mxu0 %v1016
  %2420 = vmatpush.msra.mxu0 %v1012
  %2421 = vmatpush.msra.mxu0 %v1008
  %2422 = vmatmul.f32.gmra.mxu0 %v31
  %v2423 = vpop.f32.mrf.mxu0
  %v2424 = vadd.f32 %v2404, %v2423
  %2425 = vdwg.mxu0
  %2426 = vmatpush.msra.mxu0 %v1132
  %2427 = vmatpush.msra.mxu0 %v1128
  %2428 = vmatpush.msra.mxu0 %v1124
  %2429 = vmatpush.msra.mxu0 %v1120
  %2430 = vmatpush.msra.mxu0 %v1116
  %2431 = vmatpush.msra.mxu0 %v1112
  %2432 = vmatpush.msra.mxu0 %v1108
  %2433 = vmatpush.msra.mxu0 %v1104
  %2434 = vmatpush.msra.mxu0 %v1100
  %2435 = vmatpush.msra.mxu0 %v1096
  %2436 = vmatpush.msra.mxu0 %v1092
  %2437 = vmatpush.msra.mxu0 %v1088
  %2438 = vmatpush.msra.mxu0 %v1084
  %2439 = vmatpush.msra.mxu0 %v1080
  %2440 = vmatpush.msra.mxu0 %v1076
  %2441 = vmatpush.msra.mxu0 %v1072
  %2442 = vmatmul.f32.gmra.mxu0 %v32
  %v2443 = vpop.f32.mrf.mxu0
  %v2444 = vadd.f32 %v2424, %v2443
  %2445 = vdwg.mxu0
  %2446 = vmatpush.msra.mxu0 %v1196
  %2447 = vmatpush.msra.mxu0 %v1192
  %2448 = vmatpush.msra.mxu0 %v1188
  %2449 = vmatpush.msra.mxu0 %v1184
  %2450 = vmatpush.msra.mxu0 %v1180
  %2451 = vmatpush.msra.mxu0 %v1176
  %2452 = vmatpush.msra.mxu0 %v1172
  %2453 = vmatpush.msra.mxu0 %v1168
  %2454 = vmatpush.msra.mxu0 %v1164
  %2455 = vmatpush.msra.mxu0 %v1160
  %2456 = vmatpush.msra.mxu0 %v1156
  %2457 = vmatpush.msra.mxu0 %v1152
  %2458 = vmatpush.msra.mxu0 %v1148
  %2459 = vmatpush.msra.mxu0 %v1144
  %2460 = vmatpush.msra.mxu0 %v1140
  %2461 = vmatpush.msra.mxu0 %v1136
  %2462 = vmatmul.f32.gmra.mxu0 %v33
  %v2463 = vpop.f32.mrf.mxu0
  %v2464 = vadd.f32 %v2444, %v2463
  %2465 = vdwg.mxu0
  %2466 = vmatpush.msra.mxu0 %v1260
  %2467 = vmatpush.msra.mxu0 %v1256
  %2468 = vmatpush.msra.mxu0 %v1252
  %2469 = vmatpush.msra.mxu0 %v1248
  %2470 = vmatpush.msra.mxu0 %v1244
  %2471 = vmatpush.msra.mxu0 %v1240
  %2472 = vmatpush.msra.mxu0 %v1236
  %2473 = vmatpush.msra.mxu0 %v1232
  %2474 = vmatpush.msra.mxu0 %v1228
  %2475 = vmatpush.msra.mxu0 %v1224
  %2476 = vmatpush.msra.mxu0 %v1220
  %2477 = vmatpush.msra.mxu0 %v1216
  %2478 = vmatpush.msra.mxu0 %v1212
  %2479 = vmatpush.msra.mxu0 %v1208
  %2480 = vmatpush.msra.mxu0 %v1204
  %2481 = vmatpush.msra.mxu0 %v1200
  %2482 = vmatmul.f32.gmra.mxu0 %v34
  %v2483 = vpop.f32.mrf.mxu0
  %v2484 = vadd.f32 %v2464, %v2483
  %2485 = vdwg.mxu0
  %2486 = vmatpush.msra.mxu0 %v1324
  %2487 = vmatpush.msra.mxu0 %v1320
  %2488 = vmatpush.msra.mxu0 %v1316
  %2489 = vmatpush.msra.mxu0 %v1312
  %2490 = vmatpush.msra.mxu0 %v1308
  %2491 = vmatpush.msra.mxu0 %v1304
  %2492 = vmatpush.msra.mxu0 %v1300
  %2493 = vmatpush.msra.mxu0 %v1296
  %2494 = vmatpush.msra.mxu0 %v1292
  %2495 = vmatpush.msra.mxu0 %v1288
  %2496 = vmatpush.msra.mxu0 %v1284
  %2497 = vmatpush.msra.mxu0 %v1280
  %2498 = vmatpush.msra.mxu0 %v1276
  %2499 = vmatpush.msra.mxu0 %v1272
  %2500 = vmatpush.msra.mxu0 %v1268
  %2501 = vmatpush.msra.mxu0 %v1264
  %2502 = vmatmul.f32.gmra.mxu0 %v35
  %v2503 = vpop.f32.mrf.mxu0
  %v2504 = vadd.f32 %v2484, %v2503
  %2505 = vdwg.mxu0
  %2506 = vmatpush.msra.mxu0 %v1388
  %2507 = vmatpush.msra.mxu0 %v1384
  %2508 = vmatpush.msra.mxu0 %v1380
  %2509 = vmatpush.msra.mxu0 %v1376
  %2510 = vmatpush.msra.mxu0 %v1372
  %2511 = vmatpush.msra.mxu0 %v1368
  %2512 = vmatpush.msra.mxu0 %v1364
  %2513 = vmatpush.msra.mxu0 %v1360
  %2514 = vmatpush.msra.mxu0 %v1356
  %2515 = vmatpush.msra.mxu0 %v1352
  %2516 = vmatpush.msra.mxu0 %v1348
  %2517 = vmatpush.msra.mxu0 %v1344
  %2518 = vmatpush.msra.mxu0 %v1340
  %2519 = vmatpush.msra.mxu0 %v1336
  %2520 = vmatpush.msra.mxu0 %v1332
  %2521 = vmatpush.msra.mxu0 %v1328
  %2522 = vmatmul.f32.gmra.mxu0 %v36
  %v2523 = vpop.f32.mrf.mxu0
  %v2524 = vadd.f32 %v2504, %v2523
  %2525 = vdwg.mxu0
  %2526 = vmatpush.msra.mxu0 %v1452
  %2527 = vmatpush.msra.mxu0 %v1448
  %2528 = vmatpush.msra.mxu0 %v1444
  %2529 = vmatpush.msra.mxu0 %v1440
  %2530 = vmatpush.msra.mxu0 %v1436
  %2531 = vmatpush.msra.mxu0 %v1432
  %2532 = vmatpush.msra.mxu0 %v1428
  %2533 = vmatpush.msra.mxu0 %v1424
  %2534 = vmatpush.msra.mxu0 %v1420
  %2535 = vmatpush.msra.mxu0 %v1416
  %2536 = vmatpush.msra.mxu0 %v1412
  %2537 = vmatpush.msra.mxu0 %v1408
  %2538 = vmatpush.msra.mxu0 %v1404
  %2539 = vmatpush.msra.mxu0 %v1400
  %2540 = vmatpush.msra.mxu0 %v1396
  %2541 = vmatpush.msra.mxu0 %v1392
  %2542 = vmatmul.f32.gmra.mxu0 %v37
  %v2543 = vpop.f32.mrf.mxu0
  %v2544 = vadd.f32 %v2524, %v2543
  %2545 = vdwg.mxu0
  %2546 = vmatpush.msra.mxu0 %v1516
  %2547 = vmatpush.msra.mxu0 %v1512
  %2548 = vmatpush.msra.mxu0 %v1508
  %2549 = vmatpush.msra.mxu0 %v1504
  %2550 = vmatpush.msra.mxu0 %v1500
  %2551 = vmatpush.msra.mxu0 %v1496
  %2552 = vmatpush.msra.mxu0 %v1492
  %2553 = vmatpush.msra.mxu0 %v1488
  %2554 = vmatpush.msra.mxu0 %v1484
  %2555 = vmatpush.msra.mxu0 %v1480
  %2556 = vmatpush.msra.mxu0 %v1476
  %2557 = vmatpush.msra.mxu0 %v1472
  %2558 = vmatpush.msra.mxu0 %v1468
  %2559 = vmatpush.msra.mxu0 %v1464
  %2560 = vmatpush.msra.mxu0 %v1460
  %2561 = vmatpush.msra.mxu0 %v1456
  %2562 = vmatmul.f32.gmra.mxu0 %v38
  %v2563 = vpop.f32.mrf.mxu0
  %v2564 = vadd.f32 %v2544, %v2563
  %2565 = vdwg.mxu0
  %2566 = vmatpush.msra.mxu0 %v1580
  %2567 = vmatpush.msra.mxu0 %v1576
  %2568 = vmatpush.msra.mxu0 %v1572
  %2569 = vmatpush.msra.mxu0 %v1568
  %2570 = vmatpush.msra.mxu0 %v1564
  %2571 = vmatpush.msra.mxu0 %v1560
  %2572 = vmatpush.msra.mxu0 %v1556
  %2573 = vmatpush.msra.mxu0 %v1552
  %2574 = vmatpush.msra.mxu0 %v1548
  %2575 = vmatpush.msra.mxu0 %v1544
  %2576 = vmatpush.msra.mxu0 %v1540
  %2577 = vmatpush.msra.mxu0 %v1536
  %2578 = vmatpush.msra.mxu0 %v1532
  %2579 = vmatpush.msra.mxu0 %v1528
  %2580 = vmatpush.msra.mxu0 %v1524
  %2581 = vmatpush.msra.mxu0 %v1520
  %2582 = vmatmul.f32.gmra.mxu0 %v39
  %v2583 = vpop.f32.mrf.mxu0
  %v2584 = vadd.f32 %v2564, %v2583
  %2585 = vdwg.mxu0
  %2586 = vmatpush.msra.mxu0 %v1644
  %2587 = vmatpush.msra.mxu0 %v1640
  %2588 = vmatpush.msra.mxu0 %v1636
  %2589 = vmatpush.msra.mxu0 %v1632
  %2590 = vmatpush.msra.mxu0 %v1628
  %2591 = vmatpush.msra.mxu0 %v1624
  %2592 = vmatpush.msra.mxu0 %v1620
  %2593 = vmatpush.msra.mxu0 %v1616
  %2594 = vmatpush.msra.mxu0 %v1612
  %2595 = vmatpush.msra.mxu0 %v1608
  %2596 = vmatpush.msra.mxu0 %v1604
  %2597 = vmatpush.msra.mxu0 %v1600
  %2598 = vmatpush.msra.mxu0 %v1596
  %2599 = vmatpush.msra.mxu0 %v1592
  %2600 = vmatpush.msra.mxu0 %v1588
  %2601 = vmatpush.msra.mxu0 %v1584
  %2602 = vmatmul.f32.gmra.mxu0 %v40
  %v2603 = vpop.f32.mrf.mxu0
  %v2604 = vadd.f32 %v2584, %v2603
  %2605 = vdwg.mxu0
  %2606 = vmatpush.msra.mxu0 %v1708
  %2607 = vmatpush.msra.mxu0 %v1704
  %2608 = vmatpush.msra.mxu0 %v1700
  %2609 = vmatpush.msra.mxu0 %v1696
  %2610 = vmatpush.msra.mxu0 %v1692
  %2611 = vmatpush.msra.mxu0 %v1688
  %2612 = vmatpush.msra.mxu0 %v1684
  %2613 = vmatpush.msra.mxu0 %v1680
  %2614 = vmatpush.msra.mxu0 %v1676
  %2615 = vmatpush.msra.mxu0 %v1672
  %2616 = vmatpush.msra.mxu0 %v1668
  %2617 = vmatpush.msra.mxu0 %v1664
  %2618 = vmatpush.msra.mxu0 %v1660
  %2619 = vmatpush.msra.mxu0 %v1656
  %2620 = vmatpush.msra.mxu0 %v1652
  %2621 = vmatpush.msra.mxu0 %v1648
  %2622 = vmatmul.f32.gmra.mxu0 %v41
  %v2623 = vpop.f32.mrf.mxu0
  %v2624 = vadd.f32 %v2604, %v2623
  %2625 = vdwg.mxu0
  %2626 = vmatpush.msra.mxu0 %v1772
  %2627 = vmatpush.msra.mxu0 %v1768
  %2628 = vmatpush.msra.mxu0 %v1764
  %2629 = vmatpush.msra.mxu0 %v1760
  %2630 = vmatpush.msra.mxu0 %v1756
  %2631 = vmatpush.msra.mxu0 %v1752
  %2632 = vmatpush.msra.mxu0 %v1748
  %2633 = vmatpush.msra.mxu0 %v1744
  %2634 = vmatpush.msra.mxu0 %v1740
  %2635 = vmatpush.msra.mxu0 %v1736
  %2636 = vmatpush.msra.mxu0 %v1732
  %2637 = vmatpush.msra.mxu0 %v1728
  %2638 = vmatpush.msra.mxu0 %v1724
  %2639 = vmatpush.msra.mxu0 %v1720
  %2640 = vmatpush.msra.mxu0 %v1716
  %2641 = vmatpush.msra.mxu0 %v1712
  %2642 = vmatmul.f32.gmra.mxu0 %v42
  %v2643 = vpop.f32.mrf.mxu0
  %v2644 = vadd.f32 %v2624, %v2643
  %2645 = vdwg.mxu0
  %2646 = vmatpush.msra.mxu0 %v1836
  %2647 = vmatpush.msra.mxu0 %v1832
  %2648 = vmatpush.msra.mxu0 %v1828
  %2649 = vmatpush.msra.mxu0 %v1824
  %2650 = vmatpush.msra.mxu0 %v1820
  %2651 = vmatpush.msra.mxu0 %v1816
  %2652 = vmatpush.msra.mxu0 %v1812
  %2653 = vmatpush.msra.mxu0 %v1808
  %2654 = vmatpush.msra.mxu0 %v1804
  %2655 = vmatpush.msra.mxu0 %v1800
  %2656 = vmatpush.msra.mxu0 %v1796
  %2657 = vmatpush.msra.mxu0 %v1792
  %2658 = vmatpush.msra.mxu0 %v1788
  %2659 = vmatpush.msra.mxu0 %v1784
  %2660 = vmatpush.msra.mxu0 %v1780
  %2661 = vmatpush.msra.mxu0 %v1776
  %2662 = vmatmul.f32.gmra.mxu0 %v43
  %v2663 = vpop.f32.mrf.mxu0
  %v2664 = vadd.f32 %v2644, %v2663
  %2665 = vdwg.mxu0
  %2666 = vmatpush.msra.mxu0 %v1900
  %2667 = vmatpush.msra.mxu0 %v1896
  %2668 = vmatpush.msra.mxu0 %v1892
  %2669 = vmatpush.msra.mxu0 %v1888
  %2670 = vmatpush.msra.mxu0 %v1884
  %2671 = vmatpush.msra.mxu0 %v1880
  %2672 = vmatpush.msra.mxu0 %v1876
  %2673 = vmatpush.msra.mxu0 %v1872
  %2674 = vmatpush.msra.mxu0 %v1868
  %2675 = vmatpush.msra.mxu0 %v1864
  %2676 = vmatpush.msra.mxu0 %v1860
  %2677 = vmatpush.msra.mxu0 %v1856
  %2678 = vmatpush.msra.mxu0 %v1852
  %2679 = vmatpush.msra.mxu0 %v1848
  %2680 = vmatpush.msra.mxu0 %v1844
  %2681 = vmatpush.msra.mxu0 %v1840
  %2682 = vmatmul.f32.gmra.mxu0 %v44
  %v2683 = vpop.f32.mrf.mxu0
  %v2684 = vadd.f32 %v2664, %v2683
  %2685 = vdwg.mxu0
  %2686 = vmatpush.msra.mxu0 %v1964
  %2687 = vmatpush.msra.mxu0 %v1960
  %2688 = vmatpush.msra.mxu0 %v1956
  %2689 = vmatpush.msra.mxu0 %v1952
  %2690 = vmatpush.msra.mxu0 %v1948
  %2691 = vmatpush.msra.mxu0 %v1944
  %2692 = vmatpush.msra.mxu0 %v1940
  %2693 = vmatpush.msra.mxu0 %v1936
  %2694 = vmatpush.msra.mxu0 %v1932
  %2695 = vmatpush.msra.mxu0 %v1928
  %2696 = vmatpush.msra.mxu0 %v1924
  %2697 = vmatpush.msra.mxu0 %v1920
  %2698 = vmatpush.msra.mxu0 %v1916
  %2699 = vmatpush.msra.mxu0 %v1912
  %2700 = vmatpush.msra.mxu0 %v1908
  %2701 = vmatpush.msra.mxu0 %v1904
  %2702 = vmatmul.f32.gmra.mxu0 %v45
  %v2703 = vpop.f32.mrf.mxu0
  %v2704 = vadd.f32 %v2684, %v2703
  %2705 = vdwg.mxu0
  %2706 = vmatpush.msra.mxu0 %v2028
  %2707 = vmatpush.msra.mxu0 %v2024
  %2708 = vmatpush.msra.mxu0 %v2020
  %2709 = vmatpush.msra.mxu0 %v2016
  %2710 = vmatpush.msra.mxu0 %v2012
  %2711 = vmatpush.msra.mxu0 %v2008
  %2712 = vmatpush.msra.mxu0 %v2004
  %2713 = vmatpush.msra.mxu0 %v2000
  %2714 = vmatpush.msra.mxu0 %v1996
  %2715 = vmatpush.msra.mxu0 %v1992
  %2716 = vmatpush.msra.mxu0 %v1988
  %2717 = vmatpush.msra.mxu0 %v1984
  %2718 = vmatpush.msra.mxu0 %v1980
  %2719 = vmatpush.msra.mxu0 %v1976
  %2720 = vmatpush.msra.mxu0 %v1972
  %2721 = vmatpush.msra.mxu0 %v1968
  %2722 = vmatmul.f32.gmra.mxu0 %v46
  %v2723 = vpop.f32.mrf.mxu0
  %v2724 = vadd.f32 %v2704, %v2723
  %2725 = vdwg.mxu0
  %2726 = vmatpush.msra.mxu0 %v2092
  %2727 = vmatpush.msra.mxu0 %v2088
  %2728 = vmatpush.msra.mxu0 %v2084
  %2729 = vmatpush.msra.mxu0 %v2080
  %2730 = vmatpush.msra.mxu0 %v2076
  %2731 = vmatpush.msra.mxu0 %v2072
  %2732 = vmatpush.msra.mxu0 %v2068
  %2733 = vmatpush.msra.mxu0 %v2064
  %2734 = vmatpush.msra.mxu0 %v2060
  %2735 = vmatpush.msra.mxu0 %v2056
  %2736 = vmatpush.msra.mxu0 %v2052
  %2737 = vmatpush.msra.mxu0 %v2048
  %2738 = vmatpush.msra.mxu0 %v2044
  %2739 = vmatpush.msra.mxu0 %v2040
  %2740 = vmatpush.msra.mxu0 %v2036
  %2741 = vmatpush.msra.mxu0 %v2032
  %2742 = vmatmul.f32.gmra.mxu0 %v47
  %v2743 = vpop.f32.mrf.mxu0
  %v2744 = vadd.f32 %v2724, %v2743
  %2745 = vdwg.mxu0
  %2746 = vmatpush.msra.mxu0 %v109
  %2747 = vmatpush.msra.mxu0 %v105
  %2748 = vmatpush.msra.mxu0 %v101
  %2749 = vmatpush.msra.mxu0 %v97
  %2750 = vmatpush.msra.mxu0 %v93
  %2751 = vmatpush.msra.mxu0 %v89
  %2752 = vmatpush.msra.mxu0 %v85
  %2753 = vmatpush.msra.mxu0 %v81
  %2754 = vmatpush.msra.mxu0 %v77
  %2755 = vmatpush.msra.mxu0 %v73
  %2756 = vmatpush.msra.mxu0 %v69
  %2757 = vmatpush.msra.mxu0 %v65
  %2758 = vmatpush.msra.mxu0 %v61
  %2759 = vmatpush.msra.mxu0 %v57
  %2760 = vmatpush.msra.mxu0 %v53
  %2761 = vmatpush.msra.mxu0 %v49
  %2762 = vmatmul.f32.gmra.mxu0 %v16
  %v2763 = vpop.f32.mrf.mxu0
  %v2764 = vadd.f32 %v2099, %v2763
  %2765 = vdwg.mxu0
  %2766 = vmatpush.msra.mxu0 %v173
  %2767 = vmatpush.msra.mxu0 %v169
  %2768 = vmatpush.msra.mxu0 %v165
  %2769 = vmatpush.msra.mxu0 %v161
  %2770 = vmatpush.msra.mxu0 %v157
  %2771 = vmatpush.msra.mxu0 %v153
  %2772 = vmatpush.msra.mxu0 %v149
  %2773 = vmatpush.msra.mxu0 %v145
  %2774 = vmatpush.msra.mxu0 %v141
  %2775 = vmatpush.msra.mxu0 %v137
  %2776 = vmatpush.msra.mxu0 %v133
  %2777 = vmatpush.msra.mxu0 %v129
  %2778 = vmatpush.msra.mxu0 %v125
  %2779 = vmatpush.msra.mxu0 %v121
  %2780 = vmatpush.msra.mxu0 %v117
  %2781 = vmatpush.msra.mxu0 %v113
  %2782 = vmatmul.f32.gmra.mxu0 %v17
  %v2783 = vpop.f32.mrf.mxu0
  %v2784 = vadd.f32 %v2764, %v2783
  %2785 = vdwg.mxu0
  %2786 = vmatpush.msra.mxu0 %v237
  %2787 = vmatpush.msra.mxu0 %v233
  %2788 = vmatpush.msra.mxu0 %v229
  %2789 = vmatpush.msra.mxu0 %v225
  %2790 = vmatpush.msra.mxu0 %v221
  %2791 = vmatpush.msra.mxu0 %v217
  %2792 = vmatpush.msra.mxu0 %v213
  %2793 = vmatpush.msra.mxu0 %v209
  %2794 = vmatpush.msra.mxu0 %v205
  %2795 = vmatpush.msra.mxu0 %v201
  %2796 = vmatpush.msra.mxu0 %v197
  %2797 = vmatpush.msra.mxu0 %v193
  %2798 = vmatpush.msra.mxu0 %v189
  %2799 = vmatpush.msra.mxu0 %v185
  %2800 = vmatpush.msra.mxu0 %v181
  %2801 = vmatpush.msra.mxu0 %v177
  %2802 = vmatmul.f32.gmra.mxu0 %v18
  %v2803 = vpop.f32.mrf.mxu0
  %v2804 = vadd.f32 %v2784, %v2803
  %2805 = vdwg.mxu0
  %2806 = vmatpush.msra.mxu0 %v301
  %2807 = vmatpush.msra.mxu0 %v297
  %2808 = vmatpush.msra.mxu0 %v293
  %2809 = vmatpush.msra.mxu0 %v289
  %2810 = vmatpush.msra.mxu0 %v285
  %2811 = vmatpush.msra.mxu0 %v281
  %2812 = vmatpush.msra.mxu0 %v277
  %2813 = vmatpush.msra.mxu0 %v273
  %2814 = vmatpush.msra.mxu0 %v269
  %2815 = vmatpush.msra.mxu0 %v265
  %2816 = vmatpush.msra.mxu0 %v261
  %2817 = vmatpush.msra.mxu0 %v257
  %2818 = vmatpush.msra.mxu0 %v253
  %2819 = vmatpush.msra.mxu0 %v249
  %2820 = vmatpush.msra.mxu0 %v245
  %2821 = vmatpush.msra.mxu0 %v241
  %2822 = vmatmul.f32.gmra.mxu0 %v19
  %v2823 = vpop.f32.mrf.mxu0
  %v2824 = vadd.f32 %v2804, %v2823
  %2825 = vdwg.mxu0
  %2826 = vmatpush.msra.mxu0 %v365
  %2827 = vmatpush.msra.mxu0 %v361
  %2828 = vmatpush.msra.mxu0 %v357
  %2829 = vmatpush.msra.mxu0 %v353
  %2830 = vmatpush.msra.mxu0 %v349
  %2831 = vmatpush.msra.mxu0 %v345
  %2832 = vmatpush.msra.mxu0 %v341
  %2833 = vmatpush.msra.mxu0 %v337
  %2834 = vmatpush.msra.mxu0 %v333
  %2835 = vmatpush.msra.mxu0 %v329
  %2836 = vmatpush.msra.mxu0 %v325
  %2837 = vmatpush.msra.mxu0 %v321
  %2838 = vmatpush.msra.mxu0 %v317
  %2839 = vmatpush.msra.mxu0 %v313
  %2840 = vmatpush.msra.mxu0 %v309
  %2841 = vmatpush.msra.mxu0 %v305
  %2842 = vmatmul.f32.gmra.mxu0 %v20
  %v2843 = vpop.f32.mrf.mxu0
  %v2844 = vadd.f32 %v2824, %v2843
  %2845 = vdwg.mxu0
  %2846 = vmatpush.msra.mxu0 %v429
  %2847 = vmatpush.msra.mxu0 %v425
  %2848 = vmatpush.msra.mxu0 %v421
  %2849 = vmatpush.msra.mxu0 %v417
  %2850 = vmatpush.msra.mxu0 %v413
  %2851 = vmatpush.msra.mxu0 %v409
  %2852 = vmatpush.msra.mxu0 %v405
  %2853 = vmatpush.msra.mxu0 %v401
  %2854 = vmatpush.msra.mxu0 %v397
  %2855 = vmatpush.msra.mxu0 %v393
  %2856 = vmatpush.msra.mxu0 %v389
  %2857 = vmatpush.msra.mxu0 %v385
  %2858 = vmatpush.msra.mxu0 %v381
  %2859 = vmatpush.msra.mxu0 %v377
  %2860 = vmatpush.msra.mxu0 %v373
  %2861 = vmatpush.msra.mxu0 %v369
  %2862 = vmatmul.f32.gmra.mxu0 %v21
  %v2863 = vpop.f32.mrf.mxu0
  %v2864 = vadd.f32 %v2844, %v2863
  %2865 = vdwg.mxu0
  %2866 = vmatpush.msra.mxu0 %v493
  %2867 = vmatpush.msra.mxu0 %v489
  %2868 = vmatpush.msra.mxu0 %v485
  %2869 = vmatpush.msra.mxu0 %v481
  %2870 = vmatpush.msra.mxu0 %v477
  %2871 = vmatpush.msra.mxu0 %v473
  %2872 = vmatpush.msra.mxu0 %v469
  %2873 = vmatpush.msra.mxu0 %v465
  %2874 = vmatpush.msra.mxu0 %v461
  %2875 = vmatpush.msra.mxu0 %v457
  %2876 = vmatpush.msra.mxu0 %v453
  %2877 = vmatpush.msra.mxu0 %v449
  %2878 = vmatpush.msra.mxu0 %v445
  %2879 = vmatpush.msra.mxu0 %v441
  %2880 = vmatpush.msra.mxu0 %v437
  %2881 = vmatpush.msra.mxu0 %v433
  %2882 = vmatmul.f32.gmra.mxu0 %v22
  %v2883 = vpop.f32.mrf.mxu0
  %v2884 = vadd.f32 %v2864, %v2883
  %2885 = vdwg.mxu0
  %2886 = vmatpush.msra.mxu0 %v557
  %2887 = vmatpush.msra.mxu0 %v553
  %2888 = vmatpush.msra.mxu0 %v549
  %2889 = vmatpush.msra.mxu0 %v545
  %2890 = vmatpush.msra.mxu0 %v541
  %2891 = vmatpush.msra.mxu0 %v537
  %2892 = vmatpush.msra.mxu0 %v533
  %2893 = vmatpush.msra.mxu0 %v529
  %2894 = vmatpush.msra.mxu0 %v525
  %2895 = vmatpush.msra.mxu0 %v521
  %2896 = vmatpush.msra.mxu0 %v517
  %2897 = vmatpush.msra.mxu0 %v513
  %2898 = vmatpush.msra.mxu0 %v509
  %2899 = vmatpush.msra.mxu0 %v505
  %2900 = vmatpush.msra.mxu0 %v501
  %2901 = vmatpush.msra.mxu0 %v497
  %2902 = vmatmul.f32.gmra.mxu0 %v23
  %v2903 = vpop.f32.mrf.mxu0
  %v2904 = vadd.f32 %v2884, %v2903
  %2905 = vdwg.mxu0
  %2906 = vmatpush.msra.mxu0 %v621
  %2907 = vmatpush.msra.mxu0 %v617
  %2908 = vmatpush.msra.mxu0 %v613
  %2909 = vmatpush.msra.mxu0 %v609
  %2910 = vmatpush.msra.mxu0 %v605
  %2911 = vmatpush.msra.mxu0 %v601
  %2912 = vmatpush.msra.mxu0 %v597
  %2913 = vmatpush.msra.mxu0 %v593
  %2914 = vmatpush.msra.mxu0 %v589
  %2915 = vmatpush.msra.mxu0 %v585
  %2916 = vmatpush.msra.mxu0 %v581
  %2917 = vmatpush.msra.mxu0 %v577
  %2918 = vmatpush.msra.mxu0 %v573
  %2919 = vmatpush.msra.mxu0 %v569
  %2920 = vmatpush.msra.mxu0 %v565
  %2921 = vmatpush.msra.mxu0 %v561
  %2922 = vmatmul.f32.gmra.mxu0 %v24
  %v2923 = vpop.f32.mrf.mxu0
  %v2924 = vadd.f32 %v2904, %v2923
  %2925 = vdwg.mxu0
  %2926 = vmatpush.msra.mxu0 %v685
  %2927 = vmatpush.msra.mxu0 %v681
  %2928 = vmatpush.msra.mxu0 %v677
  %2929 = vmatpush.msra.mxu0 %v673
  %2930 = vmatpush.msra.mxu0 %v669
  %2931 = vmatpush.msra.mxu0 %v665
  %2932 = vmatpush.msra.mxu0 %v661
  %2933 = vmatpush.msra.mxu0 %v657
  %2934 = vmatpush.msra.mxu0 %v653
  %2935 = vmatpush.msra.mxu0 %v649
  %2936 = vmatpush.msra.mxu0 %v645
  %2937 = vmatpush.msra.mxu0 %v641
  %2938 = vmatpush.msra.mxu0 %v637
  %2939 = vmatpush.msra.mxu0 %v633
  %2940 = vmatpush.msra.mxu0 %v629
  %2941 = vmatpush.msra.mxu0 %v625
  %2942 = vmatmul.f32.gmra.mxu0 %v25
  %v2943 = vpop.f32.mrf.mxu0
  %v2944 = vadd.f32 %v2924, %v2943
  %2945 = vdwg.mxu0
  %2946 = vmatpush.msra.mxu0 %v749
  %2947 = vmatpush.msra.mxu0 %v745
  %2948 = vmatpush.msra.mxu0 %v741
  %2949 = vmatpush.msra.mxu0 %v737
  %2950 = vmatpush.msra.mxu0 %v733
  %2951 = vmatpush.msra.mxu0 %v729
  %2952 = vmatpush.msra.mxu0 %v725
  %2953 = vmatpush.msra.mxu0 %v721
  %2954 = vmatpush.msra.mxu0 %v717
  %2955 = vmatpush.msra.mxu0 %v713
  %2956 = vmatpush.msra.mxu0 %v709
  %2957 = vmatpush.msra.mxu0 %v705
  %2958 = vmatpush.msra.mxu0 %v701
  %2959 = vmatpush.msra.mxu0 %v697
  %2960 = vmatpush.msra.mxu0 %v693
  %2961 = vmatpush.msra.mxu0 %v689
  %2962 = vmatmul.f32.gmra.mxu0 %v26
  %v2963 = vpop.f32.mrf.mxu0
  %v2964 = vadd.f32 %v2944, %v2963
  %2965 = vdwg.mxu0
  %2966 = vmatpush.msra.mxu0 %v813
  %2967 = vmatpush.msra.mxu0 %v809
  %2968 = vmatpush.msra.mxu0 %v805
  %2969 = vmatpush.msra.mxu0 %v801
  %2970 = vmatpush.msra.mxu0 %v797
  %2971 = vmatpush.msra.mxu0 %v793
  %2972 = vmatpush.msra.mxu0 %v789
  %2973 = vmatpush.msra.mxu0 %v785
  %2974 = vmatpush.msra.mxu0 %v781
  %2975 = vmatpush.msra.mxu0 %v777
  %2976 = vmatpush.msra.mxu0 %v773
  %2977 = vmatpush.msra.mxu0 %v769
  %2978 = vmatpush.msra.mxu0 %v765
  %2979 = vmatpush.msra.mxu0 %v761
  %2980 = vmatpush.msra.mxu0 %v757
  %2981 = vmatpush.msra.mxu0 %v753
  %2982 = vmatmul.f32.gmra.mxu0 %v27
  %v2983 = vpop.f32.mrf.mxu0
  %v2984 = vadd.f32 %v2964, %v2983
  %2985 = vdwg.mxu0
  %2986 = vmatpush.msra.mxu0 %v877
  %2987 = vmatpush.msra.mxu0 %v873
  %2988 = vmatpush.msra.mxu0 %v869
  %2989 = vmatpush.msra.mxu0 %v865
  %2990 = vmatpush.msra.mxu0 %v861
  %2991 = vmatpush.msra.mxu0 %v857
  %2992 = vmatpush.msra.mxu0 %v853
  %2993 = vmatpush.msra.mxu0 %v849
  %2994 = vmatpush.msra.mxu0 %v845
  %2995 = vmatpush.msra.mxu0 %v841
  %2996 = vmatpush.msra.mxu0 %v837
  %2997 = vmatpush.msra.mxu0 %v833
  %2998 = vmatpush.msra.mxu0 %v829
  %2999 = vmatpush.msra.mxu0 %v825
  %3000 = vmatpush.msra.mxu0 %v821
  %3001 = vmatpush.msra.mxu0 %v817
  %3002 = vmatmul.f32.gmra.mxu0 %v28
  %v3003 = vpop.f32.mrf.mxu0
  %v3004 = vadd.f32 %v2984, %v3003
  %3005 = vdwg.mxu0
  %3006 = vmatpush.msra.mxu0 %v941
  %3007 = vmatpush.msra.mxu0 %v937
  %3008 = vmatpush.msra.mxu0 %v933
  %3009 = vmatpush.msra.mxu0 %v929
  %3010 = vmatpush.msra.mxu0 %v925
  %3011 = vmatpush.msra.mxu0 %v921
  %3012 = vmatpush.msra.mxu0 %v917
  %3013 = vmatpush.msra.mxu0 %v913
  %3014 = vmatpush.msra.mxu0 %v909
  %3015 = vmatpush.msra.mxu0 %v905
  %3016 = vmatpush.msra.mxu0 %v901
  %3017 = vmatpush.msra.mxu0 %v897
  %3018 = vmatpush.msra.mxu0 %v893
  %3019 = vmatpush.msra.mxu0 %v889
  %3020 = vmatpush.msra.mxu0 %v885
  %3021 = vmatpush.msra.mxu0 %v881
  %3022 = vmatmul.f32.gmra.mxu0 %v29
  %v3023 = vpop.f32.mrf.mxu0
  %v3024 = vadd.f32 %v3004, %v3023
  %3025 = vdwg.mxu0
  %3026 = vmatpush.msra.mxu0 %v1005
  %3027 = vmatpush.msra.mxu0 %v1001
  %3028 = vmatpush.msra.mxu0 %v997
  %3029 = vmatpush.msra.mxu0 %v993
  %3030 = vmatpush.msra.mxu0 %v989
  %3031 = vmatpush.msra.mxu0 %v985
  %3032 = vmatpush.msra.mxu0 %v981
  %3033 = vmatpush.msra.mxu0 %v977
  %3034 = vmatpush.msra.mxu0 %v973
  %3035 = vmatpush.msra.mxu0 %v969
  %3036 = vmatpush.msra.mxu0 %v965
  %3037 = vmatpush.msra.mxu0 %v961
  %3038 = vmatpush.msra.mxu0 %v957
  %3039 = vmatpush.msra.mxu0 %v953
  %3040 = vmatpush.msra.mxu0 %v949
  %3041 = vmatpush.msra.mxu0 %v945
  %3042 = vmatmul.f32.gmra.mxu0 %v30
  %v3043 = vpop.f32.mrf.mxu0
  %v3044 = vadd.f32 %v3024, %v3043
  %3045 = vdwg.mxu0
  %3046 = vmatpush.msra.mxu0 %v1069
  %3047 = vmatpush.msra.mxu0 %v1065
  %3048 = vmatpush.msra.mxu0 %v1061
  %3049 = vmatpush.msra.mxu0 %v1057
  %3050 = vmatpush.msra.mxu0 %v1053
  %3051 = vmatpush.msra.mxu0 %v1049
  %3052 = vmatpush.msra.mxu0 %v1045
  %3053 = vmatpush.msra.mxu0 %v1041
  %3054 = vmatpush.msra.mxu0 %v1037
  %3055 = vmatpush.msra.mxu0 %v1033
  %3056 = vmatpush.msra.mxu0 %v1029
  %3057 = vmatpush.msra.mxu0 %v1025
  %3058 = vmatpush.msra.mxu0 %v1021
  %3059 = vmatpush.msra.mxu0 %v1017
  %3060 = vmatpush.msra.mxu0 %v1013
  %3061 = vmatpush.msra.mxu0 %v1009
  %3062 = vmatmul.f32.gmra.mxu0 %v31
  %v3063 = vpop.f32.mrf.mxu0
  %v3064 = vadd.f32 %v3044, %v3063
  %3065 = vdwg.mxu0
  %3066 = vmatpush.msra.mxu0 %v1133
  %3067 = vmatpush.msra.mxu0 %v1129
  %3068 = vmatpush.msra.mxu0 %v1125
  %3069 = vmatpush.msra.mxu0 %v1121
  %3070 = vmatpush.msra.mxu0 %v1117
  %3071 = vmatpush.msra.mxu0 %v1113
  %3072 = vmatpush.msra.mxu0 %v1109
  %3073 = vmatpush.msra.mxu0 %v1105
  %3074 = vmatpush.msra.mxu0 %v1101
  %3075 = vmatpush.msra.mxu0 %v1097
  %3076 = vmatpush.msra.mxu0 %v1093
  %3077 = vmatpush.msra.mxu0 %v1089
  %3078 = vmatpush.msra.mxu0 %v1085
  %3079 = vmatpush.msra.mxu0 %v1081
  %3080 = vmatpush.msra.mxu0 %v1077
  %3081 = vmatpush.msra.mxu0 %v1073
  %3082 = vmatmul.f32.gmra.mxu0 %v32
  %v3083 = vpop.f32.mrf.mxu0
  %v3084 = vadd.f32 %v3064, %v3083
  %3085 = vdwg.mxu0
  %3086 = vmatpush.msra.mxu0 %v1197
  %3087 = vmatpush.msra.mxu0 %v1193
  %3088 = vmatpush.msra.mxu0 %v1189
  %3089 = vmatpush.msra.mxu0 %v1185
  %3090 = vmatpush.msra.mxu0 %v1181
  %3091 = vmatpush.msra.mxu0 %v1177
  %3092 = vmatpush.msra.mxu0 %v1173
  %3093 = vmatpush.msra.mxu0 %v1169
  %3094 = vmatpush.msra.mxu0 %v1165
  %3095 = vmatpush.msra.mxu0 %v1161
  %3096 = vmatpush.msra.mxu0 %v1157
  %3097 = vmatpush.msra.mxu0 %v1153
  %3098 = vmatpush.msra.mxu0 %v1149
  %3099 = vmatpush.msra.mxu0 %v1145
  %3100 = vmatpush.msra.mxu0 %v1141
  %3101 = vmatpush.msra.mxu0 %v1137
  %3102 = vmatmul.f32.gmra.mxu0 %v33
  %v3103 = vpop.f32.mrf.mxu0
  %v3104 = vadd.f32 %v3084, %v3103
  %3105 = vdwg.mxu0
  %3106 = vmatpush.msra.mxu0 %v1261
  %3107 = vmatpush.msra.mxu0 %v1257
  %3108 = vmatpush.msra.mxu0 %v1253
  %3109 = vmatpush.msra.mxu0 %v1249
  %3110 = vmatpush.msra.mxu0 %v1245
  %3111 = vmatpush.msra.mxu0 %v1241
  %3112 = vmatpush.msra.mxu0 %v1237
  %3113 = vmatpush.msra.mxu0 %v1233
  %3114 = vmatpush.msra.mxu0 %v1229
  %3115 = vmatpush.msra.mxu0 %v1225
  %3116 = vmatpush.msra.mxu0 %v1221
  %3117 = vmatpush.msra.mxu0 %v1217
  %3118 = vmatpush.msra.mxu0 %v1213
  %3119 = vmatpush.msra.mxu0 %v1209
  %3120 = vmatpush.msra.mxu0 %v1205
  %3121 = vmatpush.msra.mxu0 %v1201
  %3122 = vmatmul.f32.gmra.mxu0 %v34
  %v3123 = vpop.f32.mrf.mxu0
  %v3124 = vadd.f32 %v3104, %v3123
  %3125 = vdwg.mxu0
  %3126 = vmatpush.msra.mxu0 %v1325
  %3127 = vmatpush.msra.mxu0 %v1321
  %3128 = vmatpush.msra.mxu0 %v1317
  %3129 = vmatpush.msra.mxu0 %v1313
  %3130 = vmatpush.msra.mxu0 %v1309
  %3131 = vmatpush.msra.mxu0 %v1305
  %3132 = vmatpush.msra.mxu0 %v1301
  %3133 = vmatpush.msra.mxu0 %v1297
  %3134 = vmatpush.msra.mxu0 %v1293
  %3135 = vmatpush.msra.mxu0 %v1289
  %3136 = vmatpush.msra.mxu0 %v1285
  %3137 = vmatpush.msra.mxu0 %v1281
  %3138 = vmatpush.msra.mxu0 %v1277
  %3139 = vmatpush.msra.mxu0 %v1273
  %3140 = vmatpush.msra.mxu0 %v1269
  %3141 = vmatpush.msra.mxu0 %v1265
  %3142 = vmatmul.f32.gmra.mxu0 %v35
  %v3143 = vpop.f32.mrf.mxu0
  %v3144 = vadd.f32 %v3124, %v3143
  %3145 = vdwg.mxu0
  %3146 = vmatpush.msra.mxu0 %v1389
  %3147 = vmatpush.msra.mxu0 %v1385
  %3148 = vmatpush.msra.mxu0 %v1381
  %3149 = vmatpush.msra.mxu0 %v1377
  %3150 = vmatpush.msra.mxu0 %v1373
  %3151 = vmatpush.msra.mxu0 %v1369
  %3152 = vmatpush.msra.mxu0 %v1365
  %3153 = vmatpush.msra.mxu0 %v1361
  %3154 = vmatpush.msra.mxu0 %v1357
  %3155 = vmatpush.msra.mxu0 %v1353
  %3156 = vmatpush.msra.mxu0 %v1349
  %3157 = vmatpush.msra.mxu0 %v1345
  %3158 = vmatpush.msra.mxu0 %v1341
  %3159 = vmatpush.msra.mxu0 %v1337
  %3160 = vmatpush.msra.mxu0 %v1333
  %3161 = vmatpush.msra.mxu0 %v1329
  %3162 = vmatmul.f32.gmra.mxu0 %v36
  %v3163 = vpop.f32.mrf.mxu0
  %v3164 = vadd.f32 %v3144, %v3163
  %3165 = vdwg.mxu0
  %3166 = vmatpush.msra.mxu0 %v1453
  %3167 = vmatpush.msra.mxu0 %v1449
  %3168 = vmatpush.msra.mxu0 %v1445
  %3169 = vmatpush.msra.mxu0 %v1441
  %3170 = vmatpush.msra.mxu0 %v1437
  %3171 = vmatpush.msra.mxu0 %v1433
  %3172 = vmatpush.msra.mxu0 %v1429
  %3173 = vmatpush.msra.mxu0 %v1425
  %3174 = vmatpush.msra.mxu0 %v1421
  %3175 = vmatpush.msra.mxu0 %v1417
  %3176 = vmatpush.msra.mxu0 %v1413
  %3177 = vmatpush.msra.mxu0 %v1409
  %3178 = vmatpush.msra.mxu0 %v1405
  %3179 = vmatpush.msra.mxu0 %v1401
  %3180 = vmatpush.msra.mxu0 %v1397
  %3181 = vmatpush.msra.mxu0 %v1393
  %3182 = vmatmul.f32.gmra.mxu0 %v37
  %v3183 = vpop.f32.mrf.mxu0
  %v3184 = vadd.f32 %v3164, %v3183
  %3185 = vdwg.mxu0
  %3186 = vmatpush.msra.mxu0 %v1517
  %3187 = vmatpush.msra.mxu0 %v1513
  %3188 = vmatpush.msra.mxu0 %v1509
  %3189 = vmatpush.msra.mxu0 %v1505
  %3190 = vmatpush.msra.mxu0 %v1501
  %3191 = vmatpush.msra.mxu0 %v1497
  %3192 = vmatpush.msra.mxu0 %v1493
  %3193 = vmatpush.msra.mxu0 %v1489
  %3194 = vmatpush.msra.mxu0 %v1485
  %3195 = vmatpush.msra.mxu0 %v1481
  %3196 = vmatpush.msra.mxu0 %v1477
  %3197 = vmatpush.msra.mxu0 %v1473
  %3198 = vmatpush.msra.mxu0 %v1469
  %3199 = vmatpush.msra.mxu0 %v1465
  %3200 = vmatpush.msra.mxu0 %v1461
  %3201 = vmatpush.msra.mxu0 %v1457
  %3202 = vmatmul.f32.gmra.mxu0 %v38
  %v3203 = vpop.f32.mrf.mxu0
  %v3204 = vadd.f32 %v3184, %v3203
  %3205 = vdwg.mxu0
  %3206 = vmatpush.msra.mxu0 %v1581
  %3207 = vmatpush.msra.mxu0 %v1577
  %3208 = vmatpush.msra.mxu0 %v1573
  %3209 = vmatpush.msra.mxu0 %v1569
  %3210 = vmatpush.msra.mxu0 %v1565
  %3211 = vmatpush.msra.mxu0 %v1561
  %3212 = vmatpush.msra.mxu0 %v1557
  %3213 = vmatpush.msra.mxu0 %v1553
  %3214 = vmatpush.msra.mxu0 %v1549
  %3215 = vmatpush.msra.mxu0 %v1545
  %3216 = vmatpush.msra.mxu0 %v1541
  %3217 = vmatpush.msra.mxu0 %v1537
  %3218 = vmatpush.msra.mxu0 %v1533
  %3219 = vmatpush.msra.mxu0 %v1529
  %3220 = vmatpush.msra.mxu0 %v1525
  %3221 = vmatpush.msra.mxu0 %v1521
  %3222 = vmatmul.f32.gmra.mxu0 %v39
  %v3223 = vpop.f32.mrf.mxu0
  %v3224 = vadd.f32 %v3204, %v3223
  %3225 = vdwg.mxu0
  %3226 = vmatpush.msra.mxu0 %v1645
  %3227 = vmatpush.msra.mxu0 %v1641
  %3228 = vmatpush.msra.mxu0 %v1637
  %3229 = vmatpush.msra.mxu0 %v1633
  %3230 = vmatpush.msra.mxu0 %v1629
  %3231 = vmatpush.msra.mxu0 %v1625
  %3232 = vmatpush.msra.mxu0 %v1621
  %3233 = vmatpush.msra.mxu0 %v1617
  %3234 = vmatpush.msra.mxu0 %v1613
  %3235 = vmatpush.msra.mxu0 %v1609
  %3236 = vmatpush.msra.mxu0 %v1605
  %3237 = vmatpush.msra.mxu0 %v1601
  %3238 = vmatpush.msra.mxu0 %v1597
  %3239 = vmatpush.msra.mxu0 %v1593
  %3240 = vmatpush.msra.mxu0 %v1589
  %3241 = vmatpush.msra.mxu0 %v1585
  %3242 = vmatmul.f32.gmra.mxu0 %v40
  %v3243 = vpop.f32.mrf.mxu0
  %v3244 = vadd.f32 %v3224, %v3243
  %3245 = vdwg.mxu0
  %3246 = vmatpush.msra.mxu0 %v1709
  %3247 = vmatpush.msra.mxu0 %v1705
  %3248 = vmatpush.msra.mxu0 %v1701
  %3249 = vmatpush.msra.mxu0 %v1697
  %3250 = vmatpush.msra.mxu0 %v1693
  %3251 = vmatpush.msra.mxu0 %v1689
  %3252 = vmatpush.msra.mxu0 %v1685
  %3253 = vmatpush.msra.mxu0 %v1681
  %3254 = vmatpush.msra.mxu0 %v1677
  %3255 = vmatpush.msra.mxu0 %v1673
  %3256 = vmatpush.msra.mxu0 %v1669
  %3257 = vmatpush.msra.mxu0 %v1665
  %3258 = vmatpush.msra.mxu0 %v1661
  %3259 = vmatpush.msra.mxu0 %v1657
  %3260 = vmatpush.msra.mxu0 %v1653
  %3261 = vmatpush.msra.mxu0 %v1649
  %3262 = vmatmul.f32.gmra.mxu0 %v41
  %v3263 = vpop.f32.mrf.mxu0
  %v3264 = vadd.f32 %v3244, %v3263
  %3265 = vdwg.mxu0
  %3266 = vmatpush.msra.mxu0 %v1773
  %3267 = vmatpush.msra.mxu0 %v1769
  %3268 = vmatpush.msra.mxu0 %v1765
  %3269 = vmatpush.msra.mxu0 %v1761
  %3270 = vmatpush.msra.mxu0 %v1757
  %3271 = vmatpush.msra.mxu0 %v1753
  %3272 = vmatpush.msra.mxu0 %v1749
  %3273 = vmatpush.msra.mxu0 %v1745
  %3274 = vmatpush.msra.mxu0 %v1741
  %3275 = vmatpush.msra.mxu0 %v1737
  %3276 = vmatpush.msra.mxu0 %v1733
  %3277 = vmatpush.msra.mxu0 %v1729
  %3278 = vmatpush.msra.mxu0 %v1725
  %3279 = vmatpush.msra.mxu0 %v1721
  %3280 = vmatpush.msra.mxu0 %v1717
  %3281 = vmatpush.msra.mxu0 %v1713
  %3282 = vmatmul.f32.gmra.mxu0 %v42
  %v3283 = vpop.f32.mrf.mxu0
  %v3284 = vadd.f32 %v3264, %v3283
  %3285 = vdwg.mxu0
  %3286 = vmatpush.msra.mxu0 %v1837
  %3287 = vmatpush.msra.mxu0 %v1833
  %3288 = vmatpush.msra.mxu0 %v1829
  %3289 = vmatpush.msra.mxu0 %v1825
  %3290 = vmatpush.msra.mxu0 %v1821
  %3291 = vmatpush.msra.mxu0 %v1817
  %3292 = vmatpush.msra.mxu0 %v1813
  %3293 = vmatpush.msra.mxu0 %v1809
  %3294 = vmatpush.msra.mxu0 %v1805
  %3295 = vmatpush.msra.mxu0 %v1801
  %3296 = vmatpush.msra.mxu0 %v1797
  %3297 = vmatpush.msra.mxu0 %v1793
  %3298 = vmatpush.msra.mxu0 %v1789
  %3299 = vmatpush.msra.mxu0 %v1785
  %3300 = vmatpush.msra.mxu0 %v1781
  %3301 = vmatpush.msra.mxu0 %v1777
  %3302 = vmatmul.f32.gmra.mxu0 %v43
  %v3303 = vpop.f32.mrf.mxu0
  %v3304 = vadd.f32 %v3284, %v3303
  %3305 = vdwg.mxu0
  %3306 = vmatpush.msra.mxu0 %v1901
  %3307 = vmatpush.msra.mxu0 %v1897
  %3308 = vmatpush.msra.mxu0 %v1893
  %3309 = vmatpush.msra.mxu0 %v1889
  %3310 = vmatpush.msra.mxu0 %v1885
  %3311 = vmatpush.msra.mxu0 %v1881
  %3312 = vmatpush.msra.mxu0 %v1877
  %3313 = vmatpush.msra.mxu0 %v1873
  %3314 = vmatpush.msra.mxu0 %v1869
  %3315 = vmatpush.msra.mxu0 %v1865
  %3316 = vmatpush.msra.mxu0 %v1861
  %3317 = vmatpush.msra.mxu0 %v1857
  %3318 = vmatpush.msra.mxu0 %v1853
  %3319 = vmatpush.msra.mxu0 %v1849
  %3320 = vmatpush.msra.mxu0 %v1845
  %3321 = vmatpush.msra.mxu0 %v1841
  %3322 = vmatmul.f32.gmra.mxu0 %v44
  %v3323 = vpop.f32.mrf.mxu0
  %v3324 = vadd.f32 %v3304, %v3323
  %3325 = vdwg.mxu0
  %3326 = vmatpush.msra.mxu0 %v1965
  %3327 = vmatpush.msra.mxu0 %v1961
  %3328 = vmatpush.msra.mxu0 %v1957
  %3329 = vmatpush.msra.mxu0 %v1953
  %3330 = vmatpush.msra.mxu0 %v1949
  %3331 = vmatpush.msra.mxu0 %v1945
  %3332 = vmatpush.msra.mxu0 %v1941
  %3333 = vmatpush.msra.mxu0 %v1937
  %3334 = vmatpush.msra.mxu0 %v1933
  %3335 = vmatpush.msra.mxu0 %v1929
  %3336 = vmatpush.msra.mxu0 %v1925
  %3337 = vmatpush.msra.mxu0 %v1921
  %3338 = vmatpush.msra.mxu0 %v1917
  %3339 = vmatpush.msra.mxu0 %v1913
  %3340 = vmatpush.msra.mxu0 %v1909
  %3341 = vmatpush.msra.mxu0 %v1905
  %3342 = vmatmul.f32.gmra.mxu0 %v45
  %v3343 = vpop.f32.mrf.mxu0
  %v3344 = vadd.f32 %v3324, %v3343
  %3345 = vdwg.mxu0
  %3346 = vmatpush.msra.mxu0 %v2029
  %3347 = vmatpush.msra.mxu0 %v2025
  %3348 = vmatpush.msra.mxu0 %v2021
  %3349 = vmatpush.msra.mxu0 %v2017
  %3350 = vmatpush.msra.mxu0 %v2013
  %3351 = vmatpush.msra.mxu0 %v2009
  %3352 = vmatpush.msra.mxu0 %v2005
  %3353 = vmatpush.msra.mxu0 %v2001
  %3354 = vmatpush.msra.mxu0 %v1997
  %3355 = vmatpush.msra.mxu0 %v1993
  %3356 = vmatpush.msra.mxu0 %v1989
  %3357 = vmatpush.msra.mxu0 %v1985
  %3358 = vmatpush.msra.mxu0 %v1981
  %3359 = vmatpush.msra.mxu0 %v1977
  %3360 = vmatpush.msra.mxu0 %v1973
  %3361 = vmatpush.msra.mxu0 %v1969
  %3362 = vmatmul.f32.gmra.mxu0 %v46
  %v3363 = vpop.f32.mrf.mxu0
  %v3364 = vadd.f32 %v3344, %v3363
  %3365 = vdwg.mxu0
  %3366 = vmatpush.msra.mxu0 %v2093
  %3367 = vmatpush.msra.mxu0 %v2089
  %3368 = vmatpush.msra.mxu0 %v2085
  %3369 = vmatpush.msra.mxu0 %v2081
  %3370 = vmatpush.msra.mxu0 %v2077
  %3371 = vmatpush.msra.mxu0 %v2073
  %3372 = vmatpush.msra.mxu0 %v2069
  %3373 = vmatpush.msra.mxu0 %v2065
  %3374 = vmatpush.msra.mxu0 %v2061
  %3375 = vmatpush.msra.mxu0 %v2057
  %3376 = vmatpush.msra.mxu0 %v2053
  %3377 = vmatpush.msra.mxu0 %v2049
  %3378 = vmatpush.msra.mxu0 %v2045
  %3379 = vmatpush.msra.mxu0 %v2041
  %3380 = vmatpush.msra.mxu0 %v2037
  %3381 = vmatpush.msra.mxu0 %v2033
  %3382 = vmatmul.f32.gmra.mxu0 %v47
  %v3383 = vpop.f32.mrf.mxu0
  %v3384 = vadd.f32 %v3364, %v3383
  %3385 = vdwg.mxu0
  %3386 = vmatpush.msra.mxu0 %v110
  %3387 = vmatpush.msra.mxu0 %v106
  %3388 = vmatpush.msra.mxu0 %v102
  %3389 = vmatpush.msra.mxu0 %v98
  %3390 = vmatpush.msra.mxu0 %v94
  %3391 = vmatpush.msra.mxu0 %v90
  %3392 = vmatpush.msra.mxu0 %v86
  %3393 = vmatpush.msra.mxu0 %v82
  %3394 = vmatpush.msra.mxu0 %v78
  %3395 = vmatpush.msra.mxu0 %v74
  %3396 = vmatpush.msra.mxu0 %v70
  %3397 = vmatpush.msra.mxu0 %v66
  %3398 = vmatpush.msra.mxu0 %v62
  %3399 = vmatpush.msra.mxu0 %v58
  %3400 = vmatpush.msra.mxu0 %v54
  %3401 = vmatpush.msra.mxu0 %v50
  %3402 = vmatmul.f32.gmra.mxu0 %v16
  %v3403 = vpop.f32.mrf.mxu0
  %v3404 = vadd.f32 %v2100, %v3403
  %3405 = vdwg.mxu0
  %3406 = vmatpush.msra.mxu0 %v174
  %3407 = vmatpush.msra.mxu0 %v170
  %3408 = vmatpush.msra.mxu0 %v166
  %3409 = vmatpush.msra.mxu0 %v162
  %3410 = vmatpush.msra.mxu0 %v158
  %3411 = vmatpush.msra.mxu0 %v154
  %3412 = vmatpush.msra.mxu0 %v150
  %3413 = vmatpush.msra.mxu0 %v146
  %3414 = vmatpush.msra.mxu0 %v142
  %3415 = vmatpush.msra.mxu0 %v138
  %3416 = vmatpush.msra.mxu0 %v134
  %3417 = vmatpush.msra.mxu0 %v130
  %3418 = vmatpush.msra.mxu0 %v126
  %3419 = vmatpush.msra.mxu0 %v122
  %3420 = vmatpush.msra.mxu0 %v118
  %3421 = vmatpush.msra.mxu0 %v114
  %3422 = vmatmul.f32.gmra.mxu0 %v17
  %v3423 = vpop.f32.mrf.mxu0
  %v3424 = vadd.f32 %v3404, %v3423
  %3425 = vdwg.mxu0
  %3426 = vmatpush.msra.mxu0 %v238
  %3427 = vmatpush.msra.mxu0 %v234
  %3428 = vmatpush.msra.mxu0 %v230
  %3429 = vmatpush.msra.mxu0 %v226
  %3430 = vmatpush.msra.mxu0 %v222
  %3431 = vmatpush.msra.mxu0 %v218
  %3432 = vmatpush.msra.mxu0 %v214
  %3433 = vmatpush.msra.mxu0 %v210
  %3434 = vmatpush.msra.mxu0 %v206
  %3435 = vmatpush.msra.mxu0 %v202
  %3436 = vmatpush.msra.mxu0 %v198
  %3437 = vmatpush.msra.mxu0 %v194
  %3438 = vmatpush.msra.mxu0 %v190
  %3439 = vmatpush.msra.mxu0 %v186
  %3440 = vmatpush.msra.mxu0 %v182
  %3441 = vmatpush.msra.mxu0 %v178
  %3442 = vmatmul.f32.gmra.mxu0 %v18
  %v3443 = vpop.f32.mrf.mxu0
  %v3444 = vadd.f32 %v3424, %v3443
  %3445 = vdwg.mxu0
  %3446 = vmatpush.msra.mxu0 %v302
  %3447 = vmatpush.msra.mxu0 %v298
  %3448 = vmatpush.msra.mxu0 %v294
  %3449 = vmatpush.msra.mxu0 %v290
  %3450 = vmatpush.msra.mxu0 %v286
  %3451 = vmatpush.msra.mxu0 %v282
  %3452 = vmatpush.msra.mxu0 %v278
  %3453 = vmatpush.msra.mxu0 %v274
  %3454 = vmatpush.msra.mxu0 %v270
  %3455 = vmatpush.msra.mxu0 %v266
  %3456 = vmatpush.msra.mxu0 %v262
  %3457 = vmatpush.msra.mxu0 %v258
  %3458 = vmatpush.msra.mxu0 %v254
  %3459 = vmatpush.msra.mxu0 %v250
  %3460 = vmatpush.msra.mxu0 %v246
  %3461 = vmatpush.msra.mxu0 %v242
  %3462 = vmatmul.f32.gmra.mxu0 %v19
  %v3463 = vpop.f32.mrf.mxu0
  %v3464 = vadd.f32 %v3444, %v3463
  %3465 = vdwg.mxu0
  %3466 = vmatpush.msra.mxu0 %v366
  %3467 = vmatpush.msra.mxu0 %v362
  %3468 = vmatpush.msra.mxu0 %v358
  %3469 = vmatpush.msra.mxu0 %v354
  %3470 = vmatpush.msra.mxu0 %v350
  %3471 = vmatpush.msra.mxu0 %v346
  %3472 = vmatpush.msra.mxu0 %v342
  %3473 = vmatpush.msra.mxu0 %v338
  %3474 = vmatpush.msra.mxu0 %v334
  %3475 = vmatpush.msra.mxu0 %v330
  %3476 = vmatpush.msra.mxu0 %v326
  %3477 = vmatpush.msra.mxu0 %v322
  %3478 = vmatpush.msra.mxu0 %v318
  %3479 = vmatpush.msra.mxu0 %v314
  %3480 = vmatpush.msra.mxu0 %v310
  %3481 = vmatpush.msra.mxu0 %v306
  %3482 = vmatmul.f32.gmra.mxu0 %v20
  %v3483 = vpop.f32.mrf.mxu0
  %v3484 = vadd.f32 %v3464, %v3483
  %3485 = vdwg.mxu0
  %3486 = vmatpush.msra.mxu0 %v430
  %3487 = vmatpush.msra.mxu0 %v426
  %3488 = vmatpush.msra.mxu0 %v422
  %3489 = vmatpush.msra.mxu0 %v418
  %3490 = vmatpush.msra.mxu0 %v414
  %3491 = vmatpush.msra.mxu0 %v410
  %3492 = vmatpush.msra.mxu0 %v406
  %3493 = vmatpush.msra.mxu0 %v402
  %3494 = vmatpush.msra.mxu0 %v398
  %3495 = vmatpush.msra.mxu0 %v394
  %3496 = vmatpush.msra.mxu0 %v390
  %3497 = vmatpush.msra.mxu0 %v386
  %3498 = vmatpush.msra.mxu0 %v382
  %3499 = vmatpush.msra.mxu0 %v378
  %3500 = vmatpush.msra.mxu0 %v374
  %3501 = vmatpush.msra.mxu0 %v370
  %3502 = vmatmul.f32.gmra.mxu0 %v21
  %v3503 = vpop.f32.mrf.mxu0
  %v3504 = vadd.f32 %v3484, %v3503
  %3505 = vdwg.mxu0
  %3506 = vmatpush.msra.mxu0 %v494
  %3507 = vmatpush.msra.mxu0 %v490
  %3508 = vmatpush.msra.mxu0 %v486
  %3509 = vmatpush.msra.mxu0 %v482
  %3510 = vmatpush.msra.mxu0 %v478
  %3511 = vmatpush.msra.mxu0 %v474
  %3512 = vmatpush.msra.mxu0 %v470
  %3513 = vmatpush.msra.mxu0 %v466
  %3514 = vmatpush.msra.mxu0 %v462
  %3515 = vmatpush.msra.mxu0 %v458
  %3516 = vmatpush.msra.mxu0 %v454
  %3517 = vmatpush.msra.mxu0 %v450
  %3518 = vmatpush.msra.mxu0 %v446
  %3519 = vmatpush.msra.mxu0 %v442
  %3520 = vmatpush.msra.mxu0 %v438
  %3521 = vmatpush.msra.mxu0 %v434
  %3522 = vmatmul.f32.gmra.mxu0 %v22
  %v3523 = vpop.f32.mrf.mxu0
  %v3524 = vadd.f32 %v3504, %v3523
  %3525 = vdwg.mxu0
  %3526 = vmatpush.msra.mxu0 %v558
  %3527 = vmatpush.msra.mxu0 %v554
  %3528 = vmatpush.msra.mxu0 %v550
  %3529 = vmatpush.msra.mxu0 %v546
  %3530 = vmatpush.msra.mxu0 %v542
  %3531 = vmatpush.msra.mxu0 %v538
  %3532 = vmatpush.msra.mxu0 %v534
  %3533 = vmatpush.msra.mxu0 %v530
  %3534 = vmatpush.msra.mxu0 %v526
  %3535 = vmatpush.msra.mxu0 %v522
  %3536 = vmatpush.msra.mxu0 %v518
  %3537 = vmatpush.msra.mxu0 %v514
  %3538 = vmatpush.msra.mxu0 %v510
  %3539 = vmatpush.msra.mxu0 %v506
  %3540 = vmatpush.msra.mxu0 %v502
  %3541 = vmatpush.msra.mxu0 %v498
  %3542 = vmatmul.f32.gmra.mxu0 %v23
  %v3543 = vpop.f32.mrf.mxu0
  %v3544 = vadd.f32 %v3524, %v3543
  %3545 = vdwg.mxu0
  %3546 = vmatpush.msra.mxu0 %v622
  %3547 = vmatpush.msra.mxu0 %v618
  %3548 = vmatpush.msra.mxu0 %v614
  %3549 = vmatpush.msra.mxu0 %v610
  %3550 = vmatpush.msra.mxu0 %v606
  %3551 = vmatpush.msra.mxu0 %v602
  %3552 = vmatpush.msra.mxu0 %v598
  %3553 = vmatpush.msra.mxu0 %v594
  %3554 = vmatpush.msra.mxu0 %v590
  %3555 = vmatpush.msra.mxu0 %v586
  %3556 = vmatpush.msra.mxu0 %v582
  %3557 = vmatpush.msra.mxu0 %v578
  %3558 = vmatpush.msra.mxu0 %v574
  %3559 = vmatpush.msra.mxu0 %v570
  %3560 = vmatpush.msra.mxu0 %v566
  %3561 = vmatpush.msra.mxu0 %v562
  %3562 = vmatmul.f32.gmra.mxu0 %v24
  %v3563 = vpop.f32.mrf.mxu0
  %v3564 = vadd.f32 %v3544, %v3563
  %3565 = vdwg.mxu0
  %3566 = vmatpush.msra.mxu0 %v686
  %3567 = vmatpush.msra.mxu0 %v682
  %3568 = vmatpush.msra.mxu0 %v678
  %3569 = vmatpush.msra.mxu0 %v674
  %3570 = vmatpush.msra.mxu0 %v670
  %3571 = vmatpush.msra.mxu0 %v666
  %3572 = vmatpush.msra.mxu0 %v662
  %3573 = vmatpush.msra.mxu0 %v658
  %3574 = vmatpush.msra.mxu0 %v654
  %3575 = vmatpush.msra.mxu0 %v650
  %3576 = vmatpush.msra.mxu0 %v646
  %3577 = vmatpush.msra.mxu0 %v642
  %3578 = vmatpush.msra.mxu0 %v638
  %3579 = vmatpush.msra.mxu0 %v634
  %3580 = vmatpush.msra.mxu0 %v630
  %3581 = vmatpush.msra.mxu0 %v626
  %3582 = vmatmul.f32.gmra.mxu0 %v25
  %v3583 = vpop.f32.mrf.mxu0
  %v3584 = vadd.f32 %v3564, %v3583
  %3585 = vdwg.mxu0
  %3586 = vmatpush.msra.mxu0 %v750
  %3587 = vmatpush.msra.mxu0 %v746
  %3588 = vmatpush.msra.mxu0 %v742
  %3589 = vmatpush.msra.mxu0 %v738
  %3590 = vmatpush.msra.mxu0 %v734
  %3591 = vmatpush.msra.mxu0 %v730
  %3592 = vmatpush.msra.mxu0 %v726
  %3593 = vmatpush.msra.mxu0 %v722
  %3594 = vmatpush.msra.mxu0 %v718
  %3595 = vmatpush.msra.mxu0 %v714
  %3596 = vmatpush.msra.mxu0 %v710
  %3597 = vmatpush.msra.mxu0 %v706
  %3598 = vmatpush.msra.mxu0 %v702
  %3599 = vmatpush.msra.mxu0 %v698
  %3600 = vmatpush.msra.mxu0 %v694
  %3601 = vmatpush.msra.mxu0 %v690
  %3602 = vmatmul.f32.gmra.mxu0 %v26
  %v3603 = vpop.f32.mrf.mxu0
  %v3604 = vadd.f32 %v3584, %v3603
  %3605 = vdwg.mxu0
  %3606 = vmatpush.msra.mxu0 %v814
  %3607 = vmatpush.msra.mxu0 %v810
  %3608 = vmatpush.msra.mxu0 %v806
  %3609 = vmatpush.msra.mxu0 %v802
  %3610 = vmatpush.msra.mxu0 %v798
  %3611 = vmatpush.msra.mxu0 %v794
  %3612 = vmatpush.msra.mxu0 %v790
  %3613 = vmatpush.msra.mxu0 %v786
  %3614 = vmatpush.msra.mxu0 %v782
  %3615 = vmatpush.msra.mxu0 %v778
  %3616 = vmatpush.msra.mxu0 %v774
  %3617 = vmatpush.msra.mxu0 %v770
  %3618 = vmatpush.msra.mxu0 %v766
  %3619 = vmatpush.msra.mxu0 %v762
  %3620 = vmatpush.msra.mxu0 %v758
  %3621 = vmatpush.msra.mxu0 %v754
  %3622 = vmatmul.f32.gmra.mxu0 %v27
  %v3623 = vpop.f32.mrf.mxu0
  %v3624 = vadd.f32 %v3604, %v3623
  %3625 = vdwg.mxu0
  %3626 = vmatpush.msra.mxu0 %v878
  %3627 = vmatpush.msra.mxu0 %v874
  %3628 = vmatpush.msra.mxu0 %v870
  %3629 = vmatpush.msra.mxu0 %v866
  %3630 = vmatpush.msra.mxu0 %v862
  %3631 = vmatpush.msra.mxu0 %v858
  %3632 = vmatpush.msra.mxu0 %v854
  %3633 = vmatpush.msra.mxu0 %v850
  %3634 = vmatpush.msra.mxu0 %v846
  %3635 = vmatpush.msra.mxu0 %v842
  %3636 = vmatpush.msra.mxu0 %v838
  %3637 = vmatpush.msra.mxu0 %v834
  %3638 = vmatpush.msra.mxu0 %v830
  %3639 = vmatpush.msra.mxu0 %v826
  %3640 = vmatpush.msra.mxu0 %v822
  %3641 = vmatpush.msra.mxu0 %v818
  %3642 = vmatmul.f32.gmra.mxu0 %v28
  %v3643 = vpop.f32.mrf.mxu0
  %v3644 = vadd.f32 %v3624, %v3643
  %3645 = vdwg.mxu0
  %3646 = vmatpush.msra.mxu0 %v942
  %3647 = vmatpush.msra.mxu0 %v938
  %3648 = vmatpush.msra.mxu0 %v934
  %3649 = vmatpush.msra.mxu0 %v930
  %3650 = vmatpush.msra.mxu0 %v926
  %3651 = vmatpush.msra.mxu0 %v922
  %3652 = vmatpush.msra.mxu0 %v918
  %3653 = vmatpush.msra.mxu0 %v914
  %3654 = vmatpush.msra.mxu0 %v910
  %3655 = vmatpush.msra.mxu0 %v906
  %3656 = vmatpush.msra.mxu0 %v902
  %3657 = vmatpush.msra.mxu0 %v898
  %3658 = vmatpush.msra.mxu0 %v894
  %3659 = vmatpush.msra.mxu0 %v890
  %3660 = vmatpush.msra.mxu0 %v886
  %3661 = vmatpush.msra.mxu0 %v882
  %3662 = vmatmul.f32.gmra.mxu0 %v29
  %v3663 = vpop.f32.mrf.mxu0
  %v3664 = vadd.f32 %v3644, %v3663
  %3665 = vdwg.mxu0
  %3666 = vmatpush.msra.mxu0 %v1006
  %3667 = vmatpush.msra.mxu0 %v1002
  %3668 = vmatpush.msra.mxu0 %v998
  %3669 = vmatpush.msra.mxu0 %v994
  %3670 = vmatpush.msra.mxu0 %v990
  %3671 = vmatpush.msra.mxu0 %v986
  %3672 = vmatpush.msra.mxu0 %v982
  %3673 = vmatpush.msra.mxu0 %v978
  %3674 = vmatpush.msra.mxu0 %v974
  %3675 = vmatpush.msra.mxu0 %v970
  %3676 = vmatpush.msra.mxu0 %v966
  %3677 = vmatpush.msra.mxu0 %v962
  %3678 = vmatpush.msra.mxu0 %v958
  %3679 = vmatpush.msra.mxu0 %v954
  %3680 = vmatpush.msra.mxu0 %v950
  %3681 = vmatpush.msra.mxu0 %v946
  %3682 = vmatmul.f32.gmra.mxu0 %v30
  %v3683 = vpop.f32.mrf.mxu0
  %v3684 = vadd.f32 %v3664, %v3683
  %3685 = vdwg.mxu0
  %3686 = vmatpush.msra.mxu0 %v1070
  %3687 = vmatpush.msra.mxu0 %v1066
  %3688 = vmatpush.msra.mxu0 %v1062
  %3689 = vmatpush.msra.mxu0 %v1058
  %3690 = vmatpush.msra.mxu0 %v1054
  %3691 = vmatpush.msra.mxu0 %v1050
  %3692 = vmatpush.msra.mxu0 %v1046
  %3693 = vmatpush.msra.mxu0 %v1042
  %3694 = vmatpush.msra.mxu0 %v1038
  %3695 = vmatpush.msra.mxu0 %v1034
  %3696 = vmatpush.msra.mxu0 %v1030
  %3697 = vmatpush.msra.mxu0 %v1026
  %3698 = vmatpush.msra.mxu0 %v1022
  %3699 = vmatpush.msra.mxu0 %v1018
  %3700 = vmatpush.msra.mxu0 %v1014
  %3701 = vmatpush.msra.mxu0 %v1010
  %3702 = vmatmul.f32.gmra.mxu0 %v31
  %v3703 = vpop.f32.mrf.mxu0
  %v3704 = vadd.f32 %v3684, %v3703
  %3705 = vdwg.mxu0
  %3706 = vmatpush.msra.mxu0 %v1134
  %3707 = vmatpush.msra.mxu0 %v1130
  %3708 = vmatpush.msra.mxu0 %v1126
  %3709 = vmatpush.msra.mxu0 %v1122
  %3710 = vmatpush.msra.mxu0 %v1118
  %3711 = vmatpush.msra.mxu0 %v1114
  %3712 = vmatpush.msra.mxu0 %v1110
  %3713 = vmatpush.msra.mxu0 %v1106
  %3714 = vmatpush.msra.mxu0 %v1102
  %3715 = vmatpush.msra.mxu0 %v1098
  %3716 = vmatpush.msra.mxu0 %v1094
  %3717 = vmatpush.msra.mxu0 %v1090
  %3718 = vmatpush.msra.mxu0 %v1086
  %3719 = vmatpush.msra.mxu0 %v1082
  %3720 = vmatpush.msra.mxu0 %v1078
  %3721 = vmatpush.msra.mxu0 %v1074
  %3722 = vmatmul.f32.gmra.mxu0 %v32
  %v3723 = vpop.f32.mrf.mxu0
  %v3724 = vadd.f32 %v3704, %v3723
  %3725 = vdwg.mxu0
  %3726 = vmatpush.msra.mxu0 %v1198
  %3727 = vmatpush.msra.mxu0 %v1194
  %3728 = vmatpush.msra.mxu0 %v1190
  %3729 = vmatpush.msra.mxu0 %v1186
  %3730 = vmatpush.msra.mxu0 %v1182
  %3731 = vmatpush.msra.mxu0 %v1178
  %3732 = vmatpush.msra.mxu0 %v1174
  %3733 = vmatpush.msra.mxu0 %v1170
  %3734 = vmatpush.msra.mxu0 %v1166
  %3735 = vmatpush.msra.mxu0 %v1162
  %3736 = vmatpush.msra.mxu0 %v1158
  %3737 = vmatpush.msra.mxu0 %v1154
  %3738 = vmatpush.msra.mxu0 %v1150
  %3739 = vmatpush.msra.mxu0 %v1146
  %3740 = vmatpush.msra.mxu0 %v1142
  %3741 = vmatpush.msra.mxu0 %v1138
  %3742 = vmatmul.f32.gmra.mxu0 %v33
  %v3743 = vpop.f32.mrf.mxu0
  %v3744 = vadd.f32 %v3724, %v3743
  %3745 = vdwg.mxu0
  %3746 = vmatpush.msra.mxu0 %v1262
  %3747 = vmatpush.msra.mxu0 %v1258
  %3748 = vmatpush.msra.mxu0 %v1254
  %3749 = vmatpush.msra.mxu0 %v1250
  %3750 = vmatpush.msra.mxu0 %v1246
  %3751 = vmatpush.msra.mxu0 %v1242
  %3752 = vmatpush.msra.mxu0 %v1238
  %3753 = vmatpush.msra.mxu0 %v1234
  %3754 = vmatpush.msra.mxu0 %v1230
  %3755 = vmatpush.msra.mxu0 %v1226
  %3756 = vmatpush.msra.mxu0 %v1222
  %3757 = vmatpush.msra.mxu0 %v1218
  %3758 = vmatpush.msra.mxu0 %v1214
  %3759 = vmatpush.msra.mxu0 %v1210
  %3760 = vmatpush.msra.mxu0 %v1206
  %3761 = vmatpush.msra.mxu0 %v1202
  %3762 = vmatmul.f32.gmra.mxu0 %v34
  %v3763 = vpop.f32.mrf.mxu0
  %v3764 = vadd.f32 %v3744, %v3763
  %3765 = vdwg.mxu0
  %3766 = vmatpush.msra.mxu0 %v1326
  %3767 = vmatpush.msra.mxu0 %v1322
  %3768 = vmatpush.msra.mxu0 %v1318
  %3769 = vmatpush.msra.mxu0 %v1314
  %3770 = vmatpush.msra.mxu0 %v1310
  %3771 = vmatpush.msra.mxu0 %v1306
  %3772 = vmatpush.msra.mxu0 %v1302
  %3773 = vmatpush.msra.mxu0 %v1298
  %3774 = vmatpush.msra.mxu0 %v1294
  %3775 = vmatpush.msra.mxu0 %v1290
  %3776 = vmatpush.msra.mxu0 %v1286
  %3777 = vmatpush.msra.mxu0 %v1282
  %3778 = vmatpush.msra.mxu0 %v1278
  %3779 = vmatpush.msra.mxu0 %v1274
  %3780 = vmatpush.msra.mxu0 %v1270
  %3781 = vmatpush.msra.mxu0 %v1266
  %3782 = vmatmul.f32.gmra.mxu0 %v35
  %v3783 = vpop.f32.mrf.mxu0
  %v3784 = vadd.f32 %v3764, %v3783
  %3785 = vdwg.mxu0
  %3786 = vmatpush.msra.mxu0 %v1390
  %3787 = vmatpush.msra.mxu0 %v1386
  %3788 = vmatpush.msra.mxu0 %v1382
  %3789 = vmatpush.msra.mxu0 %v1378
  %3790 = vmatpush.msra.mxu0 %v1374
  %3791 = vmatpush.msra.mxu0 %v1370
  %3792 = vmatpush.msra.mxu0 %v1366
  %3793 = vmatpush.msra.mxu0 %v1362
  %3794 = vmatpush.msra.mxu0 %v1358
  %3795 = vmatpush.msra.mxu0 %v1354
  %3796 = vmatpush.msra.mxu0 %v1350
  %3797 = vmatpush.msra.mxu0 %v1346
  %3798 = vmatpush.msra.mxu0 %v1342
  %3799 = vmatpush.msra.mxu0 %v1338
  %3800 = vmatpush.msra.mxu0 %v1334
  %3801 = vmatpush.msra.mxu0 %v1330
  %3802 = vmatmul.f32.gmra.mxu0 %v36
  %v3803 = vpop.f32.mrf.mxu0
  %v3804 = vadd.f32 %v3784, %v3803
  %3805 = vdwg.mxu0
  %3806 = vmatpush.msra.mxu0 %v1454
  %3807 = vmatpush.msra.mxu0 %v1450
  %3808 = vmatpush.msra.mxu0 %v1446
  %3809 = vmatpush.msra.mxu0 %v1442
  %3810 = vmatpush.msra.mxu0 %v1438
  %3811 = vmatpush.msra.mxu0 %v1434
  %3812 = vmatpush.msra.mxu0 %v1430
  %3813 = vmatpush.msra.mxu0 %v1426
  %3814 = vmatpush.msra.mxu0 %v1422
  %3815 = vmatpush.msra.mxu0 %v1418
  %3816 = vmatpush.msra.mxu0 %v1414
  %3817 = vmatpush.msra.mxu0 %v1410
  %3818 = vmatpush.msra.mxu0 %v1406
  %3819 = vmatpush.msra.mxu0 %v1402
  %3820 = vmatpush.msra.mxu0 %v1398
  %3821 = vmatpush.msra.mxu0 %v1394
  %3822 = vmatmul.f32.gmra.mxu0 %v37
  %v3823 = vpop.f32.mrf.mxu0
  %v3824 = vadd.f32 %v3804, %v3823
  %3825 = vdwg.mxu0
  %3826 = vmatpush.msra.mxu0 %v1518
  %3827 = vmatpush.msra.mxu0 %v1514
  %3828 = vmatpush.msra.mxu0 %v1510
  %3829 = vmatpush.msra.mxu0 %v1506
  %3830 = vmatpush.msra.mxu0 %v1502
  %3831 = vmatpush.msra.mxu0 %v1498
  %3832 = vmatpush.msra.mxu0 %v1494
  %3833 = vmatpush.msra.mxu0 %v1490
  %3834 = vmatpush.msra.mxu0 %v1486
  %3835 = vmatpush.msra.mxu0 %v1482
  %3836 = vmatpush.msra.mxu0 %v1478
  %3837 = vmatpush.msra.mxu0 %v1474
  %3838 = vmatpush.msra.mxu0 %v1470
  %3839 = vmatpush.msra.mxu0 %v1466
  %3840 = vmatpush.msra.mxu0 %v1462
  %3841 = vmatpush.msra.mxu0 %v1458
  %3842 = vmatmul.f32.gmra.mxu0 %v38
  %v3843 = vpop.f32.mrf.mxu0
  %v3844 = vadd.f32 %v3824, %v3843
  %3845 = vdwg.mxu0
  %3846 = vmatpush.msra.mxu0 %v1582
  %3847 = vmatpush.msra.mxu0 %v1578
  %3848 = vmatpush.msra.mxu0 %v1574
  %3849 = vmatpush.msra.mxu0 %v1570
  %3850 = vmatpush.msra.mxu0 %v1566
  %3851 = vmatpush.msra.mxu0 %v1562
  %3852 = vmatpush.msra.mxu0 %v1558
  %3853 = vmatpush.msra.mxu0 %v1554
  %3854 = vmatpush.msra.mxu0 %v1550
  %3855 = vmatpush.msra.mxu0 %v1546
  %3856 = vmatpush.msra.mxu0 %v1542
  %3857 = vmatpush.msra.mxu0 %v1538
  %3858 = vmatpush.msra.mxu0 %v1534
  %3859 = vmatpush.msra.mxu0 %v1530
  %3860 = vmatpush.msra.mxu0 %v1526
  %3861 = vmatpush.msra.mxu0 %v1522
  %3862 = vmatmul.f32.gmra.mxu0 %v39
  %v3863 = vpop.f32.mrf.mxu0
  %v3864 = vadd.f32 %v3844, %v3863
  %3865 = vdwg.mxu0
  %3866 = vmatpush.msra.mxu0 %v1646
  %3867 = vmatpush.msra.mxu0 %v1642
  %3868 = vmatpush.msra.mxu0 %v1638
  %3869 = vmatpush.msra.mxu0 %v1634
  %3870 = vmatpush.msra.mxu0 %v1630
  %3871 = vmatpush.msra.mxu0 %v1626
  %3872 = vmatpush.msra.mxu0 %v1622
  %3873 = vmatpush.msra.mxu0 %v1618
  %3874 = vmatpush.msra.mxu0 %v1614
  %3875 = vmatpush.msra.mxu0 %v1610
  %3876 = vmatpush.msra.mxu0 %v1606
  %3877 = vmatpush.msra.mxu0 %v1602
  %3878 = vmatpush.msra.mxu0 %v1598
  %3879 = vmatpush.msra.mxu0 %v1594
  %3880 = vmatpush.msra.mxu0 %v1590
  %3881 = vmatpush.msra.mxu0 %v1586
  %3882 = vmatmul.f32.gmra.mxu0 %v40
  %v3883 = vpop.f32.mrf.mxu0
  %v3884 = vadd.f32 %v3864, %v3883
  %3885 = vdwg.mxu0
  %3886 = vmatpush.msra.mxu0 %v1710
  %3887 = vmatpush.msra.mxu0 %v1706
  %3888 = vmatpush.msra.mxu0 %v1702
  %3889 = vmatpush.msra.mxu0 %v1698
  %3890 = vmatpush.msra.mxu0 %v1694
  %3891 = vmatpush.msra.mxu0 %v1690
  %3892 = vmatpush.msra.mxu0 %v1686
  %3893 = vmatpush.msra.mxu0 %v1682
  %3894 = vmatpush.msra.mxu0 %v1678
  %3895 = vmatpush.msra.mxu0 %v1674
  %3896 = vmatpush.msra.mxu0 %v1670
  %3897 = vmatpush.msra.mxu0 %v1666
  %3898 = vmatpush.msra.mxu0 %v1662
  %3899 = vmatpush.msra.mxu0 %v1658
  %3900 = vmatpush.msra.mxu0 %v1654
  %3901 = vmatpush.msra.mxu0 %v1650
  %3902 = vmatmul.f32.gmra.mxu0 %v41
  %v3903 = vpop.f32.mrf.mxu0
  %v3904 = vadd.f32 %v3884, %v3903
  %3905 = vdwg.mxu0
  %3906 = vmatpush.msra.mxu0 %v1774
  %3907 = vmatpush.msra.mxu0 %v1770
  %3908 = vmatpush.msra.mxu0 %v1766
  %3909 = vmatpush.msra.mxu0 %v1762
  %3910 = vmatpush.msra.mxu0 %v1758
  %3911 = vmatpush.msra.mxu0 %v1754
  %3912 = vmatpush.msra.mxu0 %v1750
  %3913 = vmatpush.msra.mxu0 %v1746
  %3914 = vmatpush.msra.mxu0 %v1742
  %3915 = vmatpush.msra.mxu0 %v1738
  %3916 = vmatpush.msra.mxu0 %v1734
  %3917 = vmatpush.msra.mxu0 %v1730
  %3918 = vmatpush.msra.mxu0 %v1726
  %3919 = vmatpush.msra.mxu0 %v1722
  %3920 = vmatpush.msra.mxu0 %v1718
  %3921 = vmatpush.msra.mxu0 %v1714
  %3922 = vmatmul.f32.gmra.mxu0 %v42
  %v3923 = vpop.f32.mrf.mxu0
  %v3924 = vadd.f32 %v3904, %v3923
  %3925 = vdwg.mxu0
  %3926 = vmatpush.msra.mxu0 %v1838
  %3927 = vmatpush.msra.mxu0 %v1834
  %3928 = vmatpush.msra.mxu0 %v1830
  %3929 = vmatpush.msra.mxu0 %v1826
  %3930 = vmatpush.msra.mxu0 %v1822
  %3931 = vmatpush.msra.mxu0 %v1818
  %3932 = vmatpush.msra.mxu0 %v1814
  %3933 = vmatpush.msra.mxu0 %v1810
  %3934 = vmatpush.msra.mxu0 %v1806
  %3935 = vmatpush.msra.mxu0 %v1802
  %3936 = vmatpush.msra.mxu0 %v1798
  %3937 = vmatpush.msra.mxu0 %v1794
  %3938 = vmatpush.msra.mxu0 %v1790
  %3939 = vmatpush.msra.mxu0 %v1786
  %3940 = vmatpush.msra.mxu0 %v1782
  %3941 = vmatpush.msra.mxu0 %v1778
  %3942 = vmatmul.f32.gmra.mxu0 %v43
  %v3943 = vpop.f32.mrf.mxu0
  %v3944 = vadd.f32 %v3924, %v3943
  %3945 = vdwg.mxu0
  %3946 = vmatpush.msra.mxu0 %v1902
  %3947 = vmatpush.msra.mxu0 %v1898
  %3948 = vmatpush.msra.mxu0 %v1894
  %3949 = vmatpush.msra.mxu0 %v1890
  %3950 = vmatpush.msra.mxu0 %v1886
  %3951 = vmatpush.msra.mxu0 %v1882
  %3952 = vmatpush.msra.mxu0 %v1878
  %3953 = vmatpush.msra.mxu0 %v1874
  %3954 = vmatpush.msra.mxu0 %v1870
  %3955 = vmatpush.msra.mxu0 %v1866
  %3956 = vmatpush.msra.mxu0 %v1862
  %3957 = vmatpush.msra.mxu0 %v1858
  %3958 = vmatpush.msra.mxu0 %v1854
  %3959 = vmatpush.msra.mxu0 %v1850
  %3960 = vmatpush.msra.mxu0 %v1846
  %3961 = vmatpush.msra.mxu0 %v1842
  %3962 = vmatmul.f32.gmra.mxu0 %v44
  %v3963 = vpop.f32.mrf.mxu0
  %v3964 = vadd.f32 %v3944, %v3963
  %3965 = vdwg.mxu0
  %3966 = vmatpush.msra.mxu0 %v1966
  %3967 = vmatpush.msra.mxu0 %v1962
  %3968 = vmatpush.msra.mxu0 %v1958
  %3969 = vmatpush.msra.mxu0 %v1954
  %3970 = vmatpush.msra.mxu0 %v1950
  %3971 = vmatpush.msra.mxu0 %v1946
  %3972 = vmatpush.msra.mxu0 %v1942
  %3973 = vmatpush.msra.mxu0 %v1938
  %3974 = vmatpush.msra.mxu0 %v1934
  %3975 = vmatpush.msra.mxu0 %v1930
  %3976 = vmatpush.msra.mxu0 %v1926
  %3977 = vmatpush.msra.mxu0 %v1922
  %3978 = vmatpush.msra.mxu0 %v1918
  %3979 = vmatpush.msra.mxu0 %v1914
  %3980 = vmatpush.msra.mxu0 %v1910
  %3981 = vmatpush.msra.mxu0 %v1906
  %3982 = vmatmul.f32.gmra.mxu0 %v45
  %v3983 = vpop.f32.mrf.mxu0
  %v3984 = vadd.f32 %v3964, %v3983
  %3985 = vdwg.mxu0
  %3986 = vmatpush.msra.mxu0 %v2030
  %3987 = vmatpush.msra.mxu0 %v2026
  %3988 = vmatpush.msra.mxu0 %v2022
  %3989 = vmatpush.msra.mxu0 %v2018
  %3990 = vmatpush.msra.mxu0 %v2014
  %3991 = vmatpush.msra.mxu0 %v2010
  %3992 = vmatpush.msra.mxu0 %v2006
  %3993 = vmatpush.msra.mxu0 %v2002
  %3994 = vmatpush.msra.mxu0 %v1998
  %3995 = vmatpush.msra.mxu0 %v1994
  %3996 = vmatpush.msra.mxu0 %v1990
  %3997 = vmatpush.msra.mxu0 %v1986
  %3998 = vmatpush.msra.mxu0 %v1982
  %3999 = vmatpush.msra.mxu0 %v1978
  %4000 = vmatpush.msra.mxu0 %v1974
  %4001 = vmatpush.msra.mxu0 %v1970
  %4002 = vmatmul.f32.gmra.mxu0 %v46
  %v4003 = vpop.f32.mrf.mxu0
  %v4004 = vadd.f32 %v3984, %v4003
  %4005 = vdwg.mxu0
  %4006 = vmatpush.msra.mxu0 %v2094
  %4007 = vmatpush.msra.mxu0 %v2090
  %4008 = vmatpush.msra.mxu0 %v2086
  %4009 = vmatpush.msra.mxu0 %v2082
  %4010 = vmatpush.msra.mxu0 %v2078
  %4011 = vmatpush.msra.mxu0 %v2074
  %4012 = vmatpush.msra.mxu0 %v2070
  %4013 = vmatpush.msra.mxu0 %v2066
  %4014 = vmatpush.msra.mxu0 %v2062
  %4015 = vmatpush.msra.mxu0 %v2058
  %4016 = vmatpush.msra.mxu0 %v2054
  %4017 = vmatpush.msra.mxu0 %v2050
  %4018 = vmatpush.msra.mxu0 %v2046
  %4019 = vmatpush.msra.mxu0 %v2042
  %4020 = vmatpush.msra.mxu0 %v2038
  %4021 = vmatpush.msra.mxu0 %v2034
  %4022 = vmatmul.f32.gmra.mxu0 %v47
  %v4023 = vpop.f32.mrf.mxu0
  %v4024 = vadd.f32 %v4004, %v4023
  %4025 = vdwg.mxu0
  %4026 = vmatpush.msra.mxu0 %v111
  %4027 = vmatpush.msra.mxu0 %v107
  %4028 = vmatpush.msra.mxu0 %v103
  %4029 = vmatpush.msra.mxu0 %v99
  %4030 = vmatpush.msra.mxu0 %v95
  %4031 = vmatpush.msra.mxu0 %v91
  %4032 = vmatpush.msra.mxu0 %v87
  %4033 = vmatpush.msra.mxu0 %v83
  %4034 = vmatpush.msra.mxu0 %v79
  %4035 = vmatpush.msra.mxu0 %v75
  %4036 = vmatpush.msra.mxu0 %v71
  %4037 = vmatpush.msra.mxu0 %v67
  %4038 = vmatpush.msra.mxu0 %v63
  %4039 = vmatpush.msra.mxu0 %v59
  %4040 = vmatpush.msra.mxu0 %v55
  %4041 = vmatpush.msra.mxu0 %v51
  %4042 = vmatmul.f32.gmra.mxu0 %v16
  %v4043 = vpop.f32.mrf.mxu0
  %v4044 = vadd.f32 %v2101, %v4043
  %4045 = vdwg.mxu0
  %4046 = vmatpush.msra.mxu0 %v175
  %4047 = vmatpush.msra.mxu0 %v171
  %4048 = vmatpush.msra.mxu0 %v167
  %4049 = vmatpush.msra.mxu0 %v163
  %4050 = vmatpush.msra.mxu0 %v159
  %4051 = vmatpush.msra.mxu0 %v155
  %4052 = vmatpush.msra.mxu0 %v151
  %4053 = vmatpush.msra.mxu0 %v147
  %4054 = vmatpush.msra.mxu0 %v143
  %4055 = vmatpush.msra.mxu0 %v139
  %4056 = vmatpush.msra.mxu0 %v135
  %4057 = vmatpush.msra.mxu0 %v131
  %4058 = vmatpush.msra.mxu0 %v127
  %4059 = vmatpush.msra.mxu0 %v123
  %4060 = vmatpush.msra.mxu0 %v119
  %4061 = vmatpush.msra.mxu0 %v115
  %4062 = vmatmul.f32.gmra.mxu0 %v17
  %v4063 = vpop.f32.mrf.mxu0
  %v4064 = vadd.f32 %v4044, %v4063
  %4065 = vdwg.mxu0
  %4066 = vmatpush.msra.mxu0 %v239
  %4067 = vmatpush.msra.mxu0 %v235
  %4068 = vmatpush.msra.mxu0 %v231
  %4069 = vmatpush.msra.mxu0 %v227
  %4070 = vmatpush.msra.mxu0 %v223
  %4071 = vmatpush.msra.mxu0 %v219
  %4072 = vmatpush.msra.mxu0 %v215
  %4073 = vmatpush.msra.mxu0 %v211
  %4074 = vmatpush.msra.mxu0 %v207
  %4075 = vmatpush.msra.mxu0 %v203
  %4076 = vmatpush.msra.mxu0 %v199
  %4077 = vmatpush.msra.mxu0 %v195
  %4078 = vmatpush.msra.mxu0 %v191
  %4079 = vmatpush.msra.mxu0 %v187
  %4080 = vmatpush.msra.mxu0 %v183
  %4081 = vmatpush.msra.mxu0 %v179
  %4082 = vmatmul.f32.gmra.mxu0 %v18
  %v4083 = vpop.f32.mrf.mxu0
  %v4084 = vadd.f32 %v4064, %v4083
  %4085 = vdwg.mxu0
  %4086 = vmatpush.msra.mxu0 %v303
  %4087 = vmatpush.msra.mxu0 %v299
  %4088 = vmatpush.msra.mxu0 %v295
  %4089 = vmatpush.msra.mxu0 %v291
  %4090 = vmatpush.msra.mxu0 %v287
  %4091 = vmatpush.msra.mxu0 %v283
  %4092 = vmatpush.msra.mxu0 %v279
  %4093 = vmatpush.msra.mxu0 %v275
  %4094 = vmatpush.msra.mxu0 %v271
  %4095 = vmatpush.msra.mxu0 %v267
  %4096 = vmatpush.msra.mxu0 %v263
  %4097 = vmatpush.msra.mxu0 %v259
  %4098 = vmatpush.msra.mxu0 %v255
  %4099 = vmatpush.msra.mxu0 %v251
  %4100 = vmatpush.msra.mxu0 %v247
  %4101 = vmatpush.msra.mxu0 %v243
  %4102 = vmatmul.f32.gmra.mxu0 %v19
  %v4103 = vpop.f32.mrf.mxu0
  %v4104 = vadd.f32 %v4084, %v4103
  %4105 = vdwg.mxu0
  %4106 = vmatpush.msra.mxu0 %v367
  %4107 = vmatpush.msra.mxu0 %v363
  %4108 = vmatpush.msra.mxu0 %v359
  %4109 = vmatpush.msra.mxu0 %v355
  %4110 = vmatpush.msra.mxu0 %v351
  %4111 = vmatpush.msra.mxu0 %v347
  %4112 = vmatpush.msra.mxu0 %v343
  %4113 = vmatpush.msra.mxu0 %v339
  %4114 = vmatpush.msra.mxu0 %v335
  %4115 = vmatpush.msra.mxu0 %v331
  %4116 = vmatpush.msra.mxu0 %v327
  %4117 = vmatpush.msra.mxu0 %v323
  %4118 = vmatpush.msra.mxu0 %v319
  %4119 = vmatpush.msra.mxu0 %v315
  %4120 = vmatpush.msra.mxu0 %v311
  %4121 = vmatpush.msra.mxu0 %v307
  %4122 = vmatmul.f32.gmra.mxu0 %v20
  %v4123 = vpop.f32.mrf.mxu0
  %v4124 = vadd.f32 %v4104, %v4123
  %4125 = vdwg.mxu0
  %4126 = vmatpush.msra.mxu0 %v431
  %4127 = vmatpush.msra.mxu0 %v427
  %4128 = vmatpush.msra.mxu0 %v423
  %4129 = vmatpush.msra.mxu0 %v419
  %4130 = vmatpush.msra.mxu0 %v415
  %4131 = vmatpush.msra.mxu0 %v411
  %4132 = vmatpush.msra.mxu0 %v407
  %4133 = vmatpush.msra.mxu0 %v403
  %4134 = vmatpush.msra.mxu0 %v399
  %4135 = vmatpush.msra.mxu0 %v395
  %4136 = vmatpush.msra.mxu0 %v391
  %4137 = vmatpush.msra.mxu0 %v387
  %4138 = vmatpush.msra.mxu0 %v383
  %4139 = vmatpush.msra.mxu0 %v379
  %4140 = vmatpush.msra.mxu0 %v375
  %4141 = vmatpush.msra.mxu0 %v371
  %4142 = vmatmul.f32.gmra.mxu0 %v21
  %v4143 = vpop.f32.mrf.mxu0
  %v4144 = vadd.f32 %v4124, %v4143
  %4145 = vdwg.mxu0
  %4146 = vmatpush.msra.mxu0 %v495
  %4147 = vmatpush.msra.mxu0 %v491
  %4148 = vmatpush.msra.mxu0 %v487
  %4149 = vmatpush.msra.mxu0 %v483
  %4150 = vmatpush.msra.mxu0 %v479
  %4151 = vmatpush.msra.mxu0 %v475
  %4152 = vmatpush.msra.mxu0 %v471
  %4153 = vmatpush.msra.mxu0 %v467
  %4154 = vmatpush.msra.mxu0 %v463
  %4155 = vmatpush.msra.mxu0 %v459
  %4156 = vmatpush.msra.mxu0 %v455
  %4157 = vmatpush.msra.mxu0 %v451
  %4158 = vmatpush.msra.mxu0 %v447
  %4159 = vmatpush.msra.mxu0 %v443
  %4160 = vmatpush.msra.mxu0 %v439
  %4161 = vmatpush.msra.mxu0 %v435
  %4162 = vmatmul.f32.gmra.mxu0 %v22
  %v4163 = vpop.f32.mrf.mxu0
  %v4164 = vadd.f32 %v4144, %v4163
  %4165 = vdwg.mxu0
  %4166 = vmatpush.msra.mxu0 %v559
  %4167 = vmatpush.msra.mxu0 %v555
  %4168 = vmatpush.msra.mxu0 %v551
  %4169 = vmatpush.msra.mxu0 %v547
  %4170 = vmatpush.msra.mxu0 %v543
  %4171 = vmatpush.msra.mxu0 %v539
  %4172 = vmatpush.msra.mxu0 %v535
  %4173 = vmatpush.msra.mxu0 %v531
  %4174 = vmatpush.msra.mxu0 %v527
  %4175 = vmatpush.msra.mxu0 %v523
  %4176 = vmatpush.msra.mxu0 %v519
  %4177 = vmatpush.msra.mxu0 %v515
  %4178 = vmatpush.msra.mxu0 %v511
  %4179 = vmatpush.msra.mxu0 %v507
  %4180 = vmatpush.msra.mxu0 %v503
  %4181 = vmatpush.msra.mxu0 %v499
  %4182 = vmatmul.f32.gmra.mxu0 %v23
  %v4183 = vpop.f32.mrf.mxu0
  %v4184 = vadd.f32 %v4164, %v4183
  %4185 = vdwg.mxu0
  %4186 = vmatpush.msra.mxu0 %v623
  %4187 = vmatpush.msra.mxu0 %v619
  %4188 = vmatpush.msra.mxu0 %v615
  %4189 = vmatpush.msra.mxu0 %v611
  %4190 = vmatpush.msra.mxu0 %v607
  %4191 = vmatpush.msra.mxu0 %v603
  %4192 = vmatpush.msra.mxu0 %v599
  %4193 = vmatpush.msra.mxu0 %v595
  %4194 = vmatpush.msra.mxu0 %v591
  %4195 = vmatpush.msra.mxu0 %v587
  %4196 = vmatpush.msra.mxu0 %v583
  %4197 = vmatpush.msra.mxu0 %v579
  %4198 = vmatpush.msra.mxu0 %v575
  %4199 = vmatpush.msra.mxu0 %v571
  %4200 = vmatpush.msra.mxu0 %v567
  %4201 = vmatpush.msra.mxu0 %v563
  %4202 = vmatmul.f32.gmra.mxu0 %v24
  %v4203 = vpop.f32.mrf.mxu0
  %v4204 = vadd.f32 %v4184, %v4203
  %4205 = vdwg.mxu0
  %4206 = vmatpush.msra.mxu0 %v687
  %4207 = vmatpush.msra.mxu0 %v683
  %4208 = vmatpush.msra.mxu0 %v679
  %4209 = vmatpush.msra.mxu0 %v675
  %4210 = vmatpush.msra.mxu0 %v671
  %4211 = vmatpush.msra.mxu0 %v667
  %4212 = vmatpush.msra.mxu0 %v663
  %4213 = vmatpush.msra.mxu0 %v659
  %4214 = vmatpush.msra.mxu0 %v655
  %4215 = vmatpush.msra.mxu0 %v651
  %4216 = vmatpush.msra.mxu0 %v647
  %4217 = vmatpush.msra.mxu0 %v643
  %4218 = vmatpush.msra.mxu0 %v639
  %4219 = vmatpush.msra.mxu0 %v635
  %4220 = vmatpush.msra.mxu0 %v631
  %4221 = vmatpush.msra.mxu0 %v627
  %4222 = vmatmul.f32.gmra.mxu0 %v25
  %v4223 = vpop.f32.mrf.mxu0
  %v4224 = vadd.f32 %v4204, %v4223
  %4225 = vdwg.mxu0
  %4226 = vmatpush.msra.mxu0 %v751
  %4227 = vmatpush.msra.mxu0 %v747
  %4228 = vmatpush.msra.mxu0 %v743
  %4229 = vmatpush.msra.mxu0 %v739
  %4230 = vmatpush.msra.mxu0 %v735
  %4231 = vmatpush.msra.mxu0 %v731
  %4232 = vmatpush.msra.mxu0 %v727
  %4233 = vmatpush.msra.mxu0 %v723
  %4234 = vmatpush.msra.mxu0 %v719
  %4235 = vmatpush.msra.mxu0 %v715
  %4236 = vmatpush.msra.mxu0 %v711
  %4237 = vmatpush.msra.mxu0 %v707
  %4238 = vmatpush.msra.mxu0 %v703
  %4239 = vmatpush.msra.mxu0 %v699
  %4240 = vmatpush.msra.mxu0 %v695
  %4241 = vmatpush.msra.mxu0 %v691
  %4242 = vmatmul.f32.gmra.mxu0 %v26
  %v4243 = vpop.f32.mrf.mxu0
  %v4244 = vadd.f32 %v4224, %v4243
  %4245 = vdwg.mxu0
  %4246 = vmatpush.msra.mxu0 %v815
  %4247 = vmatpush.msra.mxu0 %v811
  %4248 = vmatpush.msra.mxu0 %v807
  %4249 = vmatpush.msra.mxu0 %v803
  %4250 = vmatpush.msra.mxu0 %v799
  %4251 = vmatpush.msra.mxu0 %v795
  %4252 = vmatpush.msra.mxu0 %v791
  %4253 = vmatpush.msra.mxu0 %v787
  %4254 = vmatpush.msra.mxu0 %v783
  %4255 = vmatpush.msra.mxu0 %v779
  %4256 = vmatpush.msra.mxu0 %v775
  %4257 = vmatpush.msra.mxu0 %v771
  %4258 = vmatpush.msra.mxu0 %v767
  %4259 = vmatpush.msra.mxu0 %v763
  %4260 = vmatpush.msra.mxu0 %v759
  %4261 = vmatpush.msra.mxu0 %v755
  %4262 = vmatmul.f32.gmra.mxu0 %v27
  %v4263 = vpop.f32.mrf.mxu0
  %v4264 = vadd.f32 %v4244, %v4263
  %4265 = vdwg.mxu0
  %4266 = vmatpush.msra.mxu0 %v879
  %4267 = vmatpush.msra.mxu0 %v875
  %4268 = vmatpush.msra.mxu0 %v871
  %4269 = vmatpush.msra.mxu0 %v867
  %4270 = vmatpush.msra.mxu0 %v863
  %4271 = vmatpush.msra.mxu0 %v859
  %4272 = vmatpush.msra.mxu0 %v855
  %4273 = vmatpush.msra.mxu0 %v851
  %4274 = vmatpush.msra.mxu0 %v847
  %4275 = vmatpush.msra.mxu0 %v843
  %4276 = vmatpush.msra.mxu0 %v839
  %4277 = vmatpush.msra.mxu0 %v835
  %4278 = vmatpush.msra.mxu0 %v831
  %4279 = vmatpush.msra.mxu0 %v827
  %4280 = vmatpush.msra.mxu0 %v823
  %4281 = vmatpush.msra.mxu0 %v819
  %4282 = vmatmul.f32.gmra.mxu0 %v28
  %v4283 = vpop.f32.mrf.mxu0
  %v4284 = vadd.f32 %v4264, %v4283
  %4285 = vdwg.mxu0
  %4286 = vmatpush.msra.mxu0 %v943
  %4287 = vmatpush.msra.mxu0 %v939
  %4288 = vmatpush.msra.mxu0 %v935
  %4289 = vmatpush.msra.mxu0 %v931
  %4290 = vmatpush.msra.mxu0 %v927
  %4291 = vmatpush.msra.mxu0 %v923
  %4292 = vmatpush.msra.mxu0 %v919
  %4293 = vmatpush.msra.mxu0 %v915
  %4294 = vmatpush.msra.mxu0 %v911
  %4295 = vmatpush.msra.mxu0 %v907
  %4296 = vmatpush.msra.mxu0 %v903
  %4297 = vmatpush.msra.mxu0 %v899
  %4298 = vmatpush.msra.mxu0 %v895
  %4299 = vmatpush.msra.mxu0 %v891
  %4300 = vmatpush.msra.mxu0 %v887
  %4301 = vmatpush.msra.mxu0 %v883
  %4302 = vmatmul.f32.gmra.mxu0 %v29
  %v4303 = vpop.f32.mrf.mxu0
  %v4304 = vadd.f32 %v4284, %v4303
  %4305 = vdwg.mxu0
  %4306 = vmatpush.msra.mxu0 %v1007
  %4307 = vmatpush.msra.mxu0 %v1003
  %4308 = vmatpush.msra.mxu0 %v999
  %4309 = vmatpush.msra.mxu0 %v995
  %4310 = vmatpush.msra.mxu0 %v991
  %4311 = vmatpush.msra.mxu0 %v987
  %4312 = vmatpush.msra.mxu0 %v983
  %4313 = vmatpush.msra.mxu0 %v979
  %4314 = vmatpush.msra.mxu0 %v975
  %4315 = vmatpush.msra.mxu0 %v971
  %4316 = vmatpush.msra.mxu0 %v967
  %4317 = vmatpush.msra.mxu0 %v963
  %4318 = vmatpush.msra.mxu0 %v959
  %4319 = vmatpush.msra.mxu0 %v955
  %4320 = vmatpush.msra.mxu0 %v951
  %4321 = vmatpush.msra.mxu0 %v947
  %4322 = vmatmul.f32.gmra.mxu0 %v30
  %v4323 = vpop.f32.mrf.mxu0
  %v4324 = vadd.f32 %v4304, %v4323
  %4325 = vdwg.mxu0
  %4326 = vmatpush.msra.mxu0 %v1071
  %4327 = vmatpush.msra.mxu0 %v1067
  %4328 = vmatpush.msra.mxu0 %v1063
  %4329 = vmatpush.msra.mxu0 %v1059
  %4330 = vmatpush.msra.mxu0 %v1055
  %4331 = vmatpush.msra.mxu0 %v1051
  %4332 = vmatpush.msra.mxu0 %v1047
  %4333 = vmatpush.msra.mxu0 %v1043
  %4334 = vmatpush.msra.mxu0 %v1039
  %4335 = vmatpush.msra.mxu0 %v1035
  %4336 = vmatpush.msra.mxu0 %v1031
  %4337 = vmatpush.msra.mxu0 %v1027
  %4338 = vmatpush.msra.mxu0 %v1023
  %4339 = vmatpush.msra.mxu0 %v1019
  %4340 = vmatpush.msra.mxu0 %v1015
  %4341 = vmatpush.msra.mxu0 %v1011
  %4342 = vmatmul.f32.gmra.mxu0 %v31
  %v4343 = vpop.f32.mrf.mxu0
  %v4344 = vadd.f32 %v4324, %v4343
  %4345 = vdwg.mxu0
  %4346 = vmatpush.msra.mxu0 %v1135
  %4347 = vmatpush.msra.mxu0 %v1131
  %4348 = vmatpush.msra.mxu0 %v1127
  %4349 = vmatpush.msra.mxu0 %v1123
  %4350 = vmatpush.msra.mxu0 %v1119
  %4351 = vmatpush.msra.mxu0 %v1115
  %4352 = vmatpush.msra.mxu0 %v1111
  %4353 = vmatpush.msra.mxu0 %v1107
  %4354 = vmatpush.msra.mxu0 %v1103
  %4355 = vmatpush.msra.mxu0 %v1099
  %4356 = vmatpush.msra.mxu0 %v1095
  %4357 = vmatpush.msra.mxu0 %v1091
  %4358 = vmatpush.msra.mxu0 %v1087
  %4359 = vmatpush.msra.mxu0 %v1083
  %4360 = vmatpush.msra.mxu0 %v1079
  %4361 = vmatpush.msra.mxu0 %v1075
  %4362 = vmatmul.f32.gmra.mxu0 %v32
  %v4363 = vpop.f32.mrf.mxu0
  %v4364 = vadd.f32 %v4344, %v4363
  %4365 = vdwg.mxu0
  %4366 = vmatpush.msra.mxu0 %v1199
  %4367 = vmatpush.msra.mxu0 %v1195
  %4368 = vmatpush.msra.mxu0 %v1191
  %4369 = vmatpush.msra.mxu0 %v1187
  %4370 = vmatpush.msra.mxu0 %v1183
  %4371 = vmatpush.msra.mxu0 %v1179
  %4372 = vmatpush.msra.mxu0 %v1175
  %4373 = vmatpush.msra.mxu0 %v1171
  %4374 = vmatpush.msra.mxu0 %v1167
  %4375 = vmatpush.msra.mxu0 %v1163
  %4376 = vmatpush.msra.mxu0 %v1159
  %4377 = vmatpush.msra.mxu0 %v1155
  %4378 = vmatpush.msra.mxu0 %v1151
  %4379 = vmatpush.msra.mxu0 %v1147
  %4380 = vmatpush.msra.mxu0 %v1143
  %4381 = vmatpush.msra.mxu0 %v1139
  %4382 = vmatmul.f32.gmra.mxu0 %v33
  %v4383 = vpop.f32.mrf.mxu0
  %v4384 = vadd.f32 %v4364, %v4383
  %4385 = vdwg.mxu0
  %4386 = vmatpush.msra.mxu0 %v1263
  %4387 = vmatpush.msra.mxu0 %v1259
  %4388 = vmatpush.msra.mxu0 %v1255
  %4389 = vmatpush.msra.mxu0 %v1251
  %4390 = vmatpush.msra.mxu0 %v1247
  %4391 = vmatpush.msra.mxu0 %v1243
  %4392 = vmatpush.msra.mxu0 %v1239
  %4393 = vmatpush.msra.mxu0 %v1235
  %4394 = vmatpush.msra.mxu0 %v1231
  %4395 = vmatpush.msra.mxu0 %v1227
  %4396 = vmatpush.msra.mxu0 %v1223
  %4397 = vmatpush.msra.mxu0 %v1219
  %4398 = vmatpush.msra.mxu0 %v1215
  %4399 = vmatpush.msra.mxu0 %v1211
  %4400 = vmatpush.msra.mxu0 %v1207
  %4401 = vmatpush.msra.mxu0 %v1203
  %4402 = vmatmul.f32.gmra.mxu0 %v34
  %v4403 = vpop.f32.mrf.mxu0
  %v4404 = vadd.f32 %v4384, %v4403
  %4405 = vdwg.mxu0
  %4406 = vmatpush.msra.mxu0 %v1327
  %4407 = vmatpush.msra.mxu0 %v1323
  %4408 = vmatpush.msra.mxu0 %v1319
  %4409 = vmatpush.msra.mxu0 %v1315
  %4410 = vmatpush.msra.mxu0 %v1311
  %4411 = vmatpush.msra.mxu0 %v1307
  %4412 = vmatpush.msra.mxu0 %v1303
  %4413 = vmatpush.msra.mxu0 %v1299
  %4414 = vmatpush.msra.mxu0 %v1295
  %4415 = vmatpush.msra.mxu0 %v1291
  %4416 = vmatpush.msra.mxu0 %v1287
  %4417 = vmatpush.msra.mxu0 %v1283
  %4418 = vmatpush.msra.mxu0 %v1279
  %4419 = vmatpush.msra.mxu0 %v1275
  %4420 = vmatpush.msra.mxu0 %v1271
  %4421 = vmatpush.msra.mxu0 %v1267
  %4422 = vmatmul.f32.gmra.mxu0 %v35
  %v4423 = vpop.f32.mrf.mxu0
  %v4424 = vadd.f32 %v4404, %v4423
  %4425 = vdwg.mxu0
  %4426 = vmatpush.msra.mxu0 %v1391
  %4427 = vmatpush.msra.mxu0 %v1387
  %4428 = vmatpush.msra.mxu0 %v1383
  %4429 = vmatpush.msra.mxu0 %v1379
  %4430 = vmatpush.msra.mxu0 %v1375
  %4431 = vmatpush.msra.mxu0 %v1371
  %4432 = vmatpush.msra.mxu0 %v1367
  %4433 = vmatpush.msra.mxu0 %v1363
  %4434 = vmatpush.msra.mxu0 %v1359
  %4435 = vmatpush.msra.mxu0 %v1355
  %4436 = vmatpush.msra.mxu0 %v1351
  %4437 = vmatpush.msra.mxu0 %v1347
  %4438 = vmatpush.msra.mxu0 %v1343
  %4439 = vmatpush.msra.mxu0 %v1339
  %4440 = vmatpush.msra.mxu0 %v1335
  %4441 = vmatpush.msra.mxu0 %v1331
  %4442 = vmatmul.f32.gmra.mxu0 %v36
  %v4443 = vpop.f32.mrf.mxu0
  %v4444 = vadd.f32 %v4424, %v4443
  %4445 = vdwg.mxu0
  %4446 = vmatpush.msra.mxu0 %v1455
  %4447 = vmatpush.msra.mxu0 %v1451
  %4448 = vmatpush.msra.mxu0 %v1447
  %4449 = vmatpush.msra.mxu0 %v1443
  %4450 = vmatpush.msra.mxu0 %v1439
  %4451 = vmatpush.msra.mxu0 %v1435
  %4452 = vmatpush.msra.mxu0 %v1431
  %4453 = vmatpush.msra.mxu0 %v1427
  %4454 = vmatpush.msra.mxu0 %v1423
  %4455 = vmatpush.msra.mxu0 %v1419
  %4456 = vmatpush.msra.mxu0 %v1415
  %4457 = vmatpush.msra.mxu0 %v1411
  %4458 = vmatpush.msra.mxu0 %v1407
  %4459 = vmatpush.msra.mxu0 %v1403
  %4460 = vmatpush.msra.mxu0 %v1399
  %4461 = vmatpush.msra.mxu0 %v1395
  %4462 = vmatmul.f32.gmra.mxu0 %v37
  %v4463 = vpop.f32.mrf.mxu0
  %v4464 = vadd.f32 %v4444, %v4463
  %4465 = vdwg.mxu0
  %4466 = vmatpush.msra.mxu0 %v1519
  %4467 = vmatpush.msra.mxu0 %v1515
  %4468 = vmatpush.msra.mxu0 %v1511
  %4469 = vmatpush.msra.mxu0 %v1507
  %4470 = vmatpush.msra.mxu0 %v1503
  %4471 = vmatpush.msra.mxu0 %v1499
  %4472 = vmatpush.msra.mxu0 %v1495
  %4473 = vmatpush.msra.mxu0 %v1491
  %4474 = vmatpush.msra.mxu0 %v1487
  %4475 = vmatpush.msra.mxu0 %v1483
  %4476 = vmatpush.msra.mxu0 %v1479
  %4477 = vmatpush.msra.mxu0 %v1475
  %4478 = vmatpush.msra.mxu0 %v1471
  %4479 = vmatpush.msra.mxu0 %v1467
  %4480 = vmatpush.msra.mxu0 %v1463
  %4481 = vmatpush.msra.mxu0 %v1459
  %4482 = vmatmul.f32.gmra.mxu0 %v38
  %v4483 = vpop.f32.mrf.mxu0
  %v4484 = vadd.f32 %v4464, %v4483
  %4485 = vdwg.mxu0
  %4486 = vmatpush.msra.mxu0 %v1583
  %4487 = vmatpush.msra.mxu0 %v1579
  %4488 = vmatpush.msra.mxu0 %v1575
  %4489 = vmatpush.msra.mxu0 %v1571
  %4490 = vmatpush.msra.mxu0 %v1567
  %4491 = vmatpush.msra.mxu0 %v1563
  %4492 = vmatpush.msra.mxu0 %v1559
  %4493 = vmatpush.msra.mxu0 %v1555
  %4494 = vmatpush.msra.mxu0 %v1551
  %4495 = vmatpush.msra.mxu0 %v1547
  %4496 = vmatpush.msra.mxu0 %v1543
  %4497 = vmatpush.msra.mxu0 %v1539
  %4498 = vmatpush.msra.mxu0 %v1535
  %4499 = vmatpush.msra.mxu0 %v1531
  %4500 = vmatpush.msra.mxu0 %v1527
  %4501 = vmatpush.msra.mxu0 %v1523
  %4502 = vmatmul.f32.gmra.mxu0 %v39
  %v4503 = vpop.f32.mrf.mxu0
  %v4504 = vadd.f32 %v4484, %v4503
  %4505 = vdwg.mxu0
  %4506 = vmatpush.msra.mxu0 %v1647
  %4507 = vmatpush.msra.mxu0 %v1643
  %4508 = vmatpush.msra.mxu0 %v1639
  %4509 = vmatpush.msra.mxu0 %v1635
  %4510 = vmatpush.msra.mxu0 %v1631
  %4511 = vmatpush.msra.mxu0 %v1627
  %4512 = vmatpush.msra.mxu0 %v1623
  %4513 = vmatpush.msra.mxu0 %v1619
  %4514 = vmatpush.msra.mxu0 %v1615
  %4515 = vmatpush.msra.mxu0 %v1611
  %4516 = vmatpush.msra.mxu0 %v1607
  %4517 = vmatpush.msra.mxu0 %v1603
  %4518 = vmatpush.msra.mxu0 %v1599
  %4519 = vmatpush.msra.mxu0 %v1595
  %4520 = vmatpush.msra.mxu0 %v1591
  %4521 = vmatpush.msra.mxu0 %v1587
  %4522 = vmatmul.f32.gmra.mxu0 %v40
  %v4523 = vpop.f32.mrf.mxu0
  %v4524 = vadd.f32 %v4504, %v4523
  %4525 = vdwg.mxu0
  %4526 = vmatpush.msra.mxu0 %v1711
  %4527 = vmatpush.msra.mxu0 %v1707
  %4528 = vmatpush.msra.mxu0 %v1703
  %4529 = vmatpush.msra.mxu0 %v1699
  %4530 = vmatpush.msra.mxu0 %v1695
  %4531 = vmatpush.msra.mxu0 %v1691
  %4532 = vmatpush.msra.mxu0 %v1687
  %4533 = vmatpush.msra.mxu0 %v1683
  %4534 = vmatpush.msra.mxu0 %v1679
  %4535 = vmatpush.msra.mxu0 %v1675
  %4536 = vmatpush.msra.mxu0 %v1671
  %4537 = vmatpush.msra.mxu0 %v1667
  %4538 = vmatpush.msra.mxu0 %v1663
  %4539 = vmatpush.msra.mxu0 %v1659
  %4540 = vmatpush.msra.mxu0 %v1655
  %4541 = vmatpush.msra.mxu0 %v1651
  %4542 = vmatmul.f32.gmra.mxu0 %v41
  %v4543 = vpop.f32.mrf.mxu0
  %v4544 = vadd.f32 %v4524, %v4543
  %4545 = vdwg.mxu0
  %4546 = vmatpush.msra.mxu0 %v1775
  %4547 = vmatpush.msra.mxu0 %v1771
  %4548 = vmatpush.msra.mxu0 %v1767
  %4549 = vmatpush.msra.mxu0 %v1763
  %4550 = vmatpush.msra.mxu0 %v1759
  %4551 = vmatpush.msra.mxu0 %v1755
  %4552 = vmatpush.msra.mxu0 %v1751
  %4553 = vmatpush.msra.mxu0 %v1747
  %4554 = vmatpush.msra.mxu0 %v1743
  %4555 = vmatpush.msra.mxu0 %v1739
  %4556 = vmatpush.msra.mxu0 %v1735
  %4557 = vmatpush.msra.mxu0 %v1731
  %4558 = vmatpush.msra.mxu0 %v1727
  %4559 = vmatpush.msra.mxu0 %v1723
  %4560 = vmatpush.msra.mxu0 %v1719
  %4561 = vmatpush.msra.mxu0 %v1715
  %4562 = vmatmul.f32.gmra.mxu0 %v42
  %v4563 = vpop.f32.mrf.mxu0
  %v4564 = vadd.f32 %v4544, %v4563
  %4565 = vdwg.mxu0
  %4566 = vmatpush.msra.mxu0 %v1839
  %4567 = vmatpush.msra.mxu0 %v1835
  %4568 = vmatpush.msra.mxu0 %v1831
  %4569 = vmatpush.msra.mxu0 %v1827
  %4570 = vmatpush.msra.mxu0 %v1823
  %4571 = vmatpush.msra.mxu0 %v1819
  %4572 = vmatpush.msra.mxu0 %v1815
  %4573 = vmatpush.msra.mxu0 %v1811
  %4574 = vmatpush.msra.mxu0 %v1807
  %4575 = vmatpush.msra.mxu0 %v1803
  %4576 = vmatpush.msra.mxu0 %v1799
  %4577 = vmatpush.msra.mxu0 %v1795
  %4578 = vmatpush.msra.mxu0 %v1791
  %4579 = vmatpush.msra.mxu0 %v1787
  %4580 = vmatpush.msra.mxu0 %v1783
  %4581 = vmatpush.msra.mxu0 %v1779
  %4582 = vmatmul.f32.gmra.mxu0 %v43
  %v4583 = vpop.f32.mrf.mxu0
  %v4584 = vadd.f32 %v4564, %v4583
  %4585 = vdwg.mxu0
  %4586 = vmatpush.msra.mxu0 %v1903
  %4587 = vmatpush.msra.mxu0 %v1899
  %4588 = vmatpush.msra.mxu0 %v1895
  %4589 = vmatpush.msra.mxu0 %v1891
  %4590 = vmatpush.msra.mxu0 %v1887
  %4591 = vmatpush.msra.mxu0 %v1883
  %4592 = vmatpush.msra.mxu0 %v1879
  %4593 = vmatpush.msra.mxu0 %v1875
  %4594 = vmatpush.msra.mxu0 %v1871
  %4595 = vmatpush.msra.mxu0 %v1867
  %4596 = vmatpush.msra.mxu0 %v1863
  %4597 = vmatpush.msra.mxu0 %v1859
  %4598 = vmatpush.msra.mxu0 %v1855
  %4599 = vmatpush.msra.mxu0 %v1851
  %4600 = vmatpush.msra.mxu0 %v1847
  %4601 = vmatpush.msra.mxu0 %v1843
  %4602 = vmatmul.f32.gmra.mxu0 %v44
  %v4603 = vpop.f32.mrf.mxu0
  %v4604 = vadd.f32 %v4584, %v4603
  %4605 = vdwg.mxu0
  %4606 = vmatpush.msra.mxu0 %v1967
  %4607 = vmatpush.msra.mxu0 %v1963
  %4608 = vmatpush.msra.mxu0 %v1959
  %4609 = vmatpush.msra.mxu0 %v1955
  %4610 = vmatpush.msra.mxu0 %v1951
  %4611 = vmatpush.msra.mxu0 %v1947
  %4612 = vmatpush.msra.mxu0 %v1943
  %4613 = vmatpush.msra.mxu0 %v1939
  %4614 = vmatpush.msra.mxu0 %v1935
  %4615 = vmatpush.msra.mxu0 %v1931
  %4616 = vmatpush.msra.mxu0 %v1927
  %4617 = vmatpush.msra.mxu0 %v1923
  %4618 = vmatpush.msra.mxu0 %v1919
  %4619 = vmatpush.msra.mxu0 %v1915
  %4620 = vmatpush.msra.mxu0 %v1911
  %4621 = vmatpush.msra.mxu0 %v1907
  %4622 = vmatmul.f32.gmra.mxu0 %v45
  %v4623 = vpop.f32.mrf.mxu0
  %v4624 = vadd.f32 %v4604, %v4623
  %4625 = vdwg.mxu0
  %4626 = vmatpush.msra.mxu0 %v2031
  %4627 = vmatpush.msra.mxu0 %v2027
  %4628 = vmatpush.msra.mxu0 %v2023
  %4629 = vmatpush.msra.mxu0 %v2019
  %4630 = vmatpush.msra.mxu0 %v2015
  %4631 = vmatpush.msra.mxu0 %v2011
  %4632 = vmatpush.msra.mxu0 %v2007
  %4633 = vmatpush.msra.mxu0 %v2003
  %4634 = vmatpush.msra.mxu0 %v1999
  %4635 = vmatpush.msra.mxu0 %v1995
  %4636 = vmatpush.msra.mxu0 %v1991
  %4637 = vmatpush.msra.mxu0 %v1987
  %4638 = vmatpush.msra.mxu0 %v1983
  %4639 = vmatpush.msra.mxu0 %v1979
  %4640 = vmatpush.msra.mxu0 %v1975
  %4641 = vmatpush.msra.mxu0 %v1971
  %4642 = vmatmul.f32.gmra.mxu0 %v46
  %v4643 = vpop.f32.mrf.mxu0
  %v4644 = vadd.f32 %v4624, %v4643
  %4645 = vdwg.mxu0
  %4646 = vmatpush.msra.mxu0 %v2095
  %4647 = vmatpush.msra.mxu0 %v2091
  %4648 = vmatpush.msra.mxu0 %v2087
  %4649 = vmatpush.msra.mxu0 %v2083
  %4650 = vmatpush.msra.mxu0 %v2079
  %4651 = vmatpush.msra.mxu0 %v2075
  %4652 = vmatpush.msra.mxu0 %v2071
  %4653 = vmatpush.msra.mxu0 %v2067
  %4654 = vmatpush.msra.mxu0 %v2063
  %4655 = vmatpush.msra.mxu0 %v2059
  %4656 = vmatpush.msra.mxu0 %v2055
  %4657 = vmatpush.msra.mxu0 %v2051
  %4658 = vmatpush.msra.mxu0 %v2047
  %4659 = vmatpush.msra.mxu0 %v2043
  %4660 = vmatpush.msra.mxu0 %v2039
  %4661 = vmatpush.msra.mxu0 %v2035
  %4662 = vmatmul.f32.gmra.mxu0 %v47
  %v4663 = vpop.f32.mrf.mxu0
  %v4664 = vadd.f32 %v4644, %v4663
  %4665 = vdwg.mxu0
  %4666 = vst [vmem:[%s3] sm:$0xff] %v2744
  %4667 = vst [vmem:[%s3 + $0x8] sm:$0xff] %v3384
  %4668 = vst [vmem:[%s3 + $0x10] sm:$0xff] %v4024
  %4669 = vst [vmem:[%s3 + $0x18] sm:$0xff] %v4664
  %s4670 = smul.u32 0, 8
  %v4671 = vlaneseq
  %v4672 = vshrl.u32 %v4671, 7
  %v4673 = vstv %s4670
  %v4674 = vadd.s32 %v4673, %v4672
  %vm4675 = vcmp.lt.s32.totalorder %v4674, 2
  %v4676 = vsel %vm4675, 1, 0
  %v4677 = vcvt.s32.f32 %v4676
  %v4678 = vmul.f32 %v2744, %v4677
  %v4679 = vmul.f32 %v3384, %v4677
  %v4680 = vmul.f32 %v4024, %v4677
  %v4681 = vmul.f32 %v4664, %v4677
  %v4682 = vrot.slane %v4678, 4
  %v4683 = vadd.f32 %v4678, %v4682
  %v4684 = vrot.slane %v4683, 2
  %v4685 = vadd.f32 %v4683, %v4684
  %v4686 = vrot.slane %v4685, 1
  %v4687 = vadd.f32 %v4685, %v4686
  %v4688 = vrot.slane %v4679, 4
  %v4689 = vadd.f32 %v4679, %v4688
  %v4690 = vrot.slane %v4689, 2
  %v4691 = vadd.f32 %v4689, %v4690
  %v4692 = vrot.slane %v4691, 1
  %v4693 = vadd.f32 %v4691, %v4692
  %v4694 = vrot.slane %v4680, 4
  %v4695 = vadd.f32 %v4680, %v4694
  %v4696 = vrot.slane %v4695, 2
  %v4697 = vadd.f32 %v4695, %v4696
  %v4698 = vrot.slane %v4697, 1
  %v4699 = vadd.f32 %v4697, %v4698
  %v4700 = vrot.slane %v4681, 4
  %v4701 = vadd.f32 %v4681, %v4700
  %v4702 = vrot.slane %v4701, 2
  %v4703 = vadd.f32 %v4701, %v4702
  %v4704 = vrot.slane %v4703, 1
  %v4705 = vadd.f32 %v4703, %v4704
  %v4706 = vmul.f32 %v4678, %v4678
  %v4707 = vmul.f32 %v4679, %v4679
  %v4708 = vmul.f32 %v4680, %v4680
  %v4709 = vmul.f32 %v4681, %v4681
  %v4710 = vrot.slane %v4706, 4
  %v4711 = vadd.f32 %v4706, %v4710
  %v4712 = vrot.slane %v4711, 2
  %v4713 = vadd.f32 %v4711, %v4712
  %v4714 = vrot.slane %v4713, 1
  %v4715 = vadd.f32 %v4713, %v4714
  %v4716 = vrot.slane %v4707, 4
  %v4717 = vadd.f32 %v4707, %v4716
  %v4718 = vrot.slane %v4717, 2
  %v4719 = vadd.f32 %v4717, %v4718
  %v4720 = vrot.slane %v4719, 1
  %v4721 = vadd.f32 %v4719, %v4720
  %v4722 = vrot.slane %v4708, 4
  %v4723 = vadd.f32 %v4708, %v4722
  %v4724 = vrot.slane %v4723, 2
  %v4725 = vadd.f32 %v4723, %v4724
  %v4726 = vrot.slane %v4725, 1
  %v4727 = vadd.f32 %v4725, %v4726
  %v4728 = vrot.slane %v4709, 4
  %v4729 = vadd.f32 %v4709, %v4728
  %v4730 = vrot.slane %v4729, 2
  %v4731 = vadd.f32 %v4729, %v4730
  %v4732 = vrot.slane %v4731, 1
  %v4733 = vadd.f32 %v4731, %v4732
  %vm4734 = vcmask 1040384
  %v4735 = vsel %vm4734, %v4687, %v4715
  %v4736 = vsel %vm4734, %v4693, %v4721
  %v4737 = vsel %vm4734, %v4699, %v4727
  %v4738 = vsel %vm4734, %v4705, %v4733
  %v4743 = vrot.slane %v4736, 6
  %v4744 = vrot.slane %v4737, 4
  %v4745 = vrot.slane %v4738, 2
  %vm4746 = vcmask 1041408
  %v4747 = vsel %vm4746, %v4735, %v4743
  %vm4748 = vcmask 1045508
  %v4749 = vsel %vm4748, %v4744, %v4745
  %vm4750 = vcmask 1043456
  %v4751 = vsel %vm4750, %v4747, %v4749
  %4753 = vst [vmem:[%s4] sm:$0xff] %v4751
  // Predicated region
  $region14: #{patch_discriminator_forward.13} parent=0 // pred_check
    _
  $region15: #{patch_discriminator_forward.13} parent=0 // pred_check_branch
    %4755 = sbr.rel (0) target = $region17
  $region16: #{patch_discriminator_forward.13} parent=0 // pred_region
    _
  $region17: #{patch_discriminator_forward.13} parent=0 // pred_fallthru
    _
  // Predicated region
  $region18: #{patch_discriminator_forward.13} parent=0 // pred_check
    _
  $region19: #{patch_discriminator_forward.13} parent=0 // pred_check_branch
    %4757 = sbr.rel (0) target = $region21
  $region20: #{patch_discriminator_forward.13} parent=0 // pred_region
    _
  $region21: #{patch_discriminator_forward.13} parent=0 // pred_fallthru
    _
  // Predicated region
  $region22: #{patch_discriminator_forward.13} parent=0 // pred_check
    _
  $region23: #{patch_discriminator_forward.13} parent=0 // pred_check_branch
    %4759 = sbr.rel (0) target = $region25
  $region24: #{patch_discriminator_forward.13} parent=0 // pred_region
    _
  $region25: #{patch_discriminator_forward.13} parent=0 // pred_fallthru
    _
  // Predicated region
  $region26: #{patch_discriminator_forward.13} parent=0 // pred_check
    _
  $region27: #{patch_discriminator_forward.13} parent=0 // pred_check_branch
    %4761 = sbr.rel (0) target = $region29
  $region28: #{patch_discriminator_forward.13} parent=0 // pred_region
    _
  $region29: #{patch_discriminator_forward.13} parent=0 // pred_fallthru
    _

</llo_original>
